<compile_context>
chip_gen: v5e
topology: v5e:2x2
jax: 0.10.0
libtpu: 0.0.40
codegen_flags: <defaults>
</compile_context>

<pallas_src>
import functools

import jax
import jax.numpy as jnp
from jax import lax
from jax.experimental import pallas as pl
from jax.experimental.pallas import tpu as pltpu


# ----------------------------------------------------------------------------
# in-kernel helpers
# ----------------------------------------------------------------------------
def _gates(g, H):
    """Split a (B,4H) pre-activation into PyTorch-ordered LSTM gates (i,f,g,o).

    Two full-width transcendental passes instead of four quarter-width ones.
    """
    s = jax.nn.sigmoid(g)
    t = jnp.tanh(g)
    return s[:, 0:H], s[:, H:2 * H], t[:, 2 * H:3 * H], s[:, 3 * H:4 * H]


def _tree_sum(parts):
    while len(parts) > 1:
        nxt = [parts[i] + parts[i + 1] for i in range(0, len(parts) - 1, 2)]
        if len(parts) % 2:
            nxt.append(parts[-1])
        parts = nxt
    return parts[0]


def _vpu_matvec(h, w):
    """(B,D)@(D,N) without the MXU: D rank-1 lane-broadcast FMAs, tree-summed.

    Used only for the BiLSTM hidden-state recurrence so the serially dependent
    tiny matmuls stop paying MXU round-trip latency on every decode step.
    """
    D = h.shape[1]
    return _tree_sum([h[:, k:k + 1] * w[k:k + 1, :] for k in range(D)])


# ----------------------------------------------------------------------------
# the fused kernel: caption encoder + full autoregressive greedy decode
# ----------------------------------------------------------------------------
def atdnet_decoder_kernel(start_idx, end_idx, *refs):
    (emb_seq_ref, len_ref, img_ref, emb_tab_ref,
     enc_wx, enc_bx, enc_wh, enc_bh, enc_wa, enc_ba,
     ca_wf, ca_bf, dec_att_w, dec_att_b, ca_wfull, ca_bfull,
     gate_w_emb, gate_w_h1, gate_w_ctx, gate_b,
     va_wemb, va_bemb, va_wfa, va_bfa, va_wfull, va_bfull,
     al_w_emb, al_w_fh, al_w_h2, al_w_img, al_w_h1, al_b,
     cl_w_h1, cl_w_cap, cl_w_img, cl_w_h2, cl_w_yuan, cl_b,
     cl_wcn, cl_wcm, cl_bc,
     bi_wif, bi_whf, bi_bf, bi_wir, bi_br, bi_wfc_f, bi_wfc_r, bi_bfc,
     fc_w, fc_b,
     seq_ref, logp_ref,
     ph_scr, pm_scr) = refs

    f32 = jnp.float32
    B, T, _ = emb_seq_ref.shape
    _, R, F = img_ref.shape
    V = emb_tab_ref.shape[0]
    D = enc_wh.shape[0]          # emb_dim == caption_features_dim == decoder_dim
    A = ca_wf.shape[1]
    MAXLEN = seq_ref.shape[1]

    # ------------------------------------------------------------------
    # CaptionEncoderC (runs once).  Input projection hoisted over all T;
    # per-sample masking (iota < len) replaces the sort/trim-by-length trick.
    # ------------------------------------------------------------------
    emb_seq = emb_seq_ref[...]                                           # (B,T,D)
    cap_mask = (lax.broadcasted_iota(jnp.int32, (B, T), 1)
                < len_ref[...]).astype(f32)                              # (B,T)
    gx_enc = (jnp.dot(emb_seq.reshape(B * T, D), enc_wx[...],
                      preferred_element_type=f32)
              + enc_bx[...]).reshape(B, T, 4 * D)
    wh_e = enc_wh[...]
    bh_e = enc_bh[...]
    h = jnp.zeros((B, D), f32)
    c = jnp.zeros((B, D), f32)
    fh = jnp.zeros((B, D), f32)
    for t in range(T):                       # statically unrolled (T small, fixed)
        g = gx_enc[:, t, :] + jnp.dot(h, wh_e, preferred_element_type=f32) + bh_e
        gi, gf, gn, go = _gates(g, D)
        c_new = gf * c + gi * gn
        h_new = go * jnp.tanh(c_new)
        alive = cap_mask[:, t:t + 1]                                     # (B,1)
        h = alive * h_new + (1.0 - alive) * h
        c = alive * c_new + (1.0 - alive) * c
        fh = alive * h_new + (1.0 - alive) * fh
        ph_scr[:, pl.ds(t, 1), :] = (alive * h_new).reshape(B, 1, D)
        pm_scr[:, pl.ds(t, 1), :] = (alive * c_new).reshape(B, 1, D)
    prev_h = ph_scr[...]                                                 # (B,T,D)
    prev_m = pm_scr[...]
    final_hidden = jnp.tanh(jnp.dot(fh, enc_wa[...], preferred_element_type=f32)
                            + enc_ba[...])                               # (B,D)

    # ------------------------------------------------------------------
    # Decode-loop invariants, hoisted once.  The while body touches NO refs.
    # ------------------------------------------------------------------
    img = img_ref[...]                                                   # (B,R,F)
    image_mean = jnp.mean(img, axis=1)                                   # (B,F)
    emb_table = emb_tab_ref[...]                                         # (V,D)

    ca_att1 = (jnp.dot(prev_h.reshape(B * T, D), ca_wf[...],
                       preferred_element_type=f32) + ca_bf[...]).reshape(B, T, A)
    fe = jnp.maximum(jnp.dot(img.reshape(B * R, F), va_wemb[...],
                             preferred_element_type=f32) + va_bemb[...], 0.0)
    va_att1 = (jnp.dot(fe, va_wfa[...], preferred_element_type=f32)
               + va_bfa[...]).reshape(B, R, A)
    # BiLSTM input projection: x_t = alpha_t * prev_h_t  =>  x_t@W == alpha_t*(prev_h_t@W)
    bi_gxh = jnp.dot(prev_h.reshape(B * T, D), bi_wif[...],
                     preferred_element_type=f32).reshape(B, T, 4 * D)
    bi_gxr = jnp.dot(prev_h[:, T - 1, :], bi_wir[...],
                     preferred_element_type=f32)                         # (B,4D)
    # attention-LSTM invariant partial dots (final_hidden / image_mean / biases)
    al_const = (jnp.dot(final_hidden, al_w_fh[...], preferred_element_type=f32)
                + jnp.dot(image_mean, al_w_img[...], preferred_element_type=f32)
                + al_b[...])                                             # (B,4D)

    # weights hoisted into values once (closed over by the while body)
    al_w_emb_v = al_w_emb[...]; al_w_h2_v = al_w_h2[...]; al_w_h1_v = al_w_h1[...]
    dec_att_w_v = dec_att_w[...]; dec_att_b_v = dec_att_b[...]
    ca_wfull_r = ca_wfull[...].reshape(1, 1, A); ca_bfull_v = ca_bfull[...]
    va_wfull_r = va_wfull[...].reshape(1, 1, A); va_bfull_v = va_bfull[...]
    gate_w_emb_v = gate_w_emb[...]; gate_w_h1_v = gate_w_h1[...]
    gate_w_ctx_v = gate_w_ctx[...]; gate_b_v = gate_b[...]
    bi_whf_v = bi_whf[...]; bi_bf_v = bi_bf[...]; bi_br_v = bi_br[...]
    bi_wfc_f_v = bi_wfc_f[...]; bi_wfc_r_v = bi_wfc_r[...]; bi_bfc_v = bi_bfc[...]
    cl_w_h1_v = cl_w_h1[...]; cl_w_cap_v = cl_w_cap[...]; cl_w_img_v = cl_w_img[...]
    cl_w_h2_v = cl_w_h2[...]; cl_w_yuan_v = cl_w_yuan[...]; cl_b_v = cl_b[...]
    cl_wcn_v = cl_wcn[...]; cl_wcm_v = cl_wcm[...]; cl_bc_v = cl_bc[...]
    fc_w_v = fc_w[...]; fc_b_v = fc_b[...]

    iota_T = lax.broadcasted_iota(jnp.int32, (B, T), 1)
    iota_V = lax.broadcasted_iota(jnp.int32, (B, V), 1)
    iota_L = lax.broadcasted_iota(jnp.int32, (B, MAXLEN), 1)

    # ------------------------------------------------------------------
    # Greedy (sample_max) autoregressive decode with real early exit.
    # ------------------------------------------------------------------
    def cond_fn(carry):
        t, cont = carry[0], carry[1]
        return jnp.logical_and(t < MAXLEN, cont > 0)

    def body_fn(carry):
        (t, cont, it, h1, c1, h2, c2, unfinished, seq_acc, logp_acc) = carry

        # EmbeddingC(it): exact gather via one-hot matmul + ReLU (dropout = identity).
        onehot = (iota_V == it).astype(f32)
        emb = jnp.maximum(jnp.dot(onehot, emb_table, preferred_element_type=f32), 0.0)

        # attention LSTM: sum of independent partial dots (invariant part hoisted).
        g1 = (jnp.dot(emb, al_w_emb_v, preferred_element_type=f32)
              + jnp.dot(h2, al_w_h2_v, preferred_element_type=f32)
              + jnp.dot(h1, al_w_h1_v, preferred_element_type=f32)
              + al_const)
        i1, f1, n1, o1 = _gates(g1, D)
        c1n = f1 * c1 + i1 * n1
        h1n = o1 * jnp.tanh(c1n)

        # fused caption/visual decoder-att projection: one (D,2A) dot.
        att12 = jnp.dot(h1n, dec_att_w_v, preferred_element_type=f32) + dec_att_b_v
        att2 = att12[:, 0:A]
        att2v = att12[:, A:2 * A]

        # CaptionAttentionC (features projection hoisted).
        tt = jnp.tanh(ca_att1 + att2.reshape(B, 1, A))
        att = jnp.sum(tt * ca_wfull_r, axis=2) + ca_bfull_v                 # (B,T)
        att = jnp.where(cap_mask == 0.0, -1e10, att)
        att = att - jnp.max(att, axis=1, keepdims=True)
        pe = jnp.exp(att)
        alpha_c = pe / jnp.sum(pe, axis=1, keepdims=True)                   # (B,T)
        context = jnp.sum(prev_h * alpha_c.reshape(B, T, 1), axis=1)        # (B,D)

        # fused context_gate / sc_affine / tc_affine: one (B,3D) slab via partial dots.
        gcat = (jnp.dot(emb, gate_w_emb_v, preferred_element_type=f32)
                + jnp.dot(h1n, gate_w_h1_v, preferred_element_type=f32)
                + jnp.dot(context, gate_w_ctx_v, preferred_element_type=f32)
                + gate_b_v)
        zt = jax.nn.sigmoid(gcat[:, 0:D])
        sc = jnp.tanh(gcat[:, D:2 * D])
        tc = jnp.tanh(gcat[:, 2 * D:3 * D])
        attend_cap = zt * sc + (1.0 - zt) * tc                              # (B,D)

        # BiLSTM over text_a = alpha_c[:,:,None]*prev_h; input projection hoisted,
        # hidden recurrence on the VPU (no MXU round trips on the serial chain).
        hf = jnp.zeros((B, D), f32)
        cf = jnp.zeros((B, D), f32)
        for l in range(T):                      # statically unrolled forward pass
            gl = (alpha_c[:, l:l + 1] * bi_gxh[:, l, :]
                  + _vpu_matvec(hf, bi_whf_v) + bi_bf_v)
            il, fl, nl, ol = _gates(gl, D)
            cf = fl * cf + il * nl
            hf = ol * jnp.tanh(cf)
        # reverse direction of outputs[-1]: one step on x[T-1] from the zero state.
        gr = alpha_c[:, T - 1:T] * bi_gxr + bi_br_v
        ir, _fr, nr, orr = _gates(gr, D)
        hr = orr * jnp.tanh(ir * nr)
        yuan = (jnp.dot(hf, bi_wfc_f_v, preferred_element_type=f32)
                + jnp.dot(hr, bi_wfc_r_v, preferred_element_type=f32)
                + bi_bfc_v)                                                 # (B,D)

        # VisualAttentionC (att_embed / features_att hoisted).
        attv = jnp.maximum(va_att1 + att2v.reshape(B, 1, A), 0.0)
        sv = jnp.sum(attv * va_wfull_r, axis=2) + va_bfull_v                # (B,R)
        sv = sv - jnp.max(sv, axis=1, keepdims=True)
        ev = jnp.exp(sv)
        alpha_v = ev / jnp.sum(ev, axis=1, keepdims=True)
        attend_img = jnp.sum(img * alpha_v.reshape(B, R, 1), axis=1)        # (B,F)

        # SelectC (hard path): exact 1.0 one-hot at the first max of alpha_c.
        mx = jnp.max(alpha_c, axis=1, keepdims=True)
        first = jnp.min(jnp.where(alpha_c == mx, iota_T, T), axis=1, keepdims=True)
        selw = (iota_T == first).astype(f32)
        sel_mem = jnp.sum(prev_m * selw.reshape(B, T, 1), axis=1)           # (B,D)

        # CopyLSTMCellC: sum of independent partial dots (no concat scratch).
        g2 = (jnp.dot(h1n, cl_w_h1_v, preferred_element_type=f32)
              + jnp.dot(attend_cap, cl_w_cap_v, preferred_element_type=f32)
              + jnp.dot(attend_img, cl_w_img_v, preferred_element_type=f32)
              + jnp.dot(h2, cl_w_h2_v, preferred_element_type=f32)
              + jnp.dot(yuan, cl_w_yuan_v, preferred_element_type=f32)
              + cl_b_v)
        i2, f2, n2, o2 = _gates(g2, D)
        c_tilde = f2 * c2 + i2 * n2
        copy_gate = jax.nn.sigmoid(
            jnp.dot(c_tilde, cl_wcn_v, preferred_element_type=f32)
            + jnp.dot(sel_mem, cl_wcm_v, preferred_element_type=f32) + cl_bc_v)
        c2n = copy_gate * sel_mem + (1.0 - copy_gate) * c_tilde
        h2n = o2 * jnp.tanh(c2n)

        # fc + log_softmax statistics + greedy sampling, all in-VMEM.
        logits = jnp.dot(h2n, fc_w_v, preferred_element_type=f32) + fc_b_v
        m = jnp.max(logits, axis=1, keepdims=True)
        lse = jnp.log(jnp.sum(jnp.exp(logits - m), axis=1, keepdims=True))
        sample_lp = -lse                                        # max log-prob, (B,1)
        it_new = jnp.min(jnp.where(logits == m, iota_V, V), axis=1, keepdims=True)
        it_new = jnp.where(it_new == end_idx, 0, it_new)
        unf_new = unfinished * (it_new > 0).astype(f32)
        it_new = it_new * unf_new.astype(jnp.int32)

        # write-combine: update the carried (B,MAXLEN) accumulators; the outputs
        # get ONE dense store after the loop (no per-step single-lane vst.msk).
        hit = iota_L == t
        seq_acc = jnp.where(hit, it_new, seq_acc)
        logp_acc = jnp.where(hit, sample_lp, logp_acc)

        # torch `break`: stop iterating once every sample has finished.
        cont_new = (jnp.sum(unf_new) > 0.0).astype(jnp.int32)
        return (t + 1, cont_new, it_new, h1n, c1n, h2n, c2n, unf_new,
                seq_acc, logp_acc)

    z = jnp.zeros((B, D), f32)
    carry0 = (jnp.array(0, jnp.int32), jnp.array(1, jnp.int32),
              jnp.full((B, 1), start_idx, jnp.int32),
              z, z, z, z,
              jnp.ones((B, 1), f32),
              jnp.zeros((B, MAXLEN), jnp.int32),
              jnp.zeros((B, MAXLEN), f32))
    final = lax.while_loop(cond_fn, body_fn, carry0)

    # single dense epilogue store per output.
    seq_ref[...] = final[8]
    logp_ref[...] = final[9]


# ----------------------------------------------------------------------------
# wrapper: weight splitting / fusing + the single pallas_call
# ----------------------------------------------------------------------------
def decoder_forward(p, encoded_previous_captions, previous_cap_length, image_features,
                    start_idx, end_idx, max_len, sample_max=True, sample_rl=False):
    assert sample_max and not sample_rl  # TODO(synk): sample_rl multinomial path not implemented.
    B, R, F = image_features.shape
    T = encoded_previous_captions.shape[1]
    D = p['fc_w'].shape[0]

    # One-time glue (outside the kernel): embed + ReLU the previous caption tokens.
    emb_seq = jnp.maximum(jnp.take(p['emb_table'], encoded_previous_captions, axis=0), 0.0)
    len_i = previous_cap_length.astype(jnp.int32).reshape(B, 1)

    zDD = jnp.zeros((D, D), jnp.float32)

    # attention LSTM split by input segment [emb|final_hidden|h2|image_mean] + h1.
    al_b = p['al_bih'] + p['al_bhh']
    al_w_emb = p['al_wih'][0:D]
    al_w_fh = p['al_wih'][D:2 * D]
    al_w_h2 = p['al_wih'][2 * D:3 * D]
    al_w_img = p['al_wih'][3 * D:3 * D + F]
    al_w_h1 = p['al_whh']

    # copy LSTM split by input segment [h1|attend_cap|attend_img] + h2 + yuan.
    cl_b = p['cl_bx'] + p['cl_bh'] + p['cl_bw']
    cl_w_h1 = p['cl_wx'][0:D]
    cl_w_cap = p['cl_wx'][D:2 * D]
    cl_w_img = p['cl_wx'][2 * D:2 * D + F]
    cl_w_h2 = p['cl_wh']
    cl_w_yuan = p['cl_ww']
    cl_bc = p['cl_bcn'] + p['cl_bcm']

    # fused caption + visual decoder-att projection: one (D, 2A) dot per step.
    dec_att_w = jnp.concatenate([p['ca_wd'], p['va_wda']], axis=1)
    dec_att_b = jnp.concatenate([p['ca_bd'], p['va_bda']], axis=1)

    # fused context_gate / sc_affine / tc_affine: three (D, 3D) partial weights
    # (output columns = [gate | sc | tc]; zero blocks for absent inputs).
    gate_w_emb = jnp.concatenate([p['ca_wg'][0:D], zDD, p['ca_wtc'][0:D]], axis=1)
    gate_w_h1 = jnp.concatenate([p['ca_wg'][D:2 * D], zDD, p['ca_wtc'][D:2 * D]], axis=1)
    gate_w_ctx = jnp.concatenate([p['ca_wg'][2 * D:3 * D], p['ca_wsc'], zDD], axis=1)
    gate_b = jnp.concatenate([p['ca_bg'], p['ca_bsc'], p['ca_btc']], axis=1)

    # BiLSTM biases / fc_bi split (bi_whr multiplies a zero state -> not needed).
    bi_bf = p['bi_bif'] + p['bi_bhf']
    bi_br = p['bi_bir'] + p['bi_bhr']
    bi_wfc_f = p['bi_wfc'][0:D]
    bi_wfc_r = p['bi_wfc'][D:2 * D]

    ca_wfull_row = p['ca_wfull'].T      # (1, A)
    va_wfull_row = p['va_wfull'].T      # (1, A)

    inputs = [
        emb_seq, len_i, image_features, p['emb_table'],
        p['enc_wx'], p['enc_bx'], p['enc_wh'], p['enc_bh'], p['enc_wa'], p['enc_ba'],
        p['ca_wf'], p['ca_bf'], dec_att_w, dec_att_b, ca_wfull_row, p['ca_bfull'],
        gate_w_emb, gate_w_h1, gate_w_ctx, gate_b,
        p['va_wemb'], p['va_bemb'], p['va_wfa'], p['va_bfa'], va_wfull_row, p['va_bfull'],
        al_w_emb, al_w_fh, al_w_h2, al_w_img, al_w_h1, al_b,
        cl_w_h1, cl_w_cap, cl_w_img, cl_w_h2, cl_w_yuan, cl_b,
        p['cl_wcn'], p['cl_wcm'], cl_bc,
        p['bi_wif'], p['bi_whf'], bi_bf, p['bi_wir'], bi_br, bi_wfc_f, bi_wfc_r, p['bi_bfc'],
        p['fc_w'], p['fc_b'],
    ]

    scratch_shapes = [
        pltpu.VMEM((B, T, D), jnp.float32),    # previous_encoded_h
        pltpu.VMEM((B, T, D), jnp.float32),    # previous_encoded_m
    ]

    # NOTE: at production sizes (large V, F) the fc / embedding tensors would need
    # a lane-tiled grid, bf16 weights and an explicit vmem_limit_bytes; at these
    # shapes everything (<1 MiB) is VMEM-resident in a single grid-less call.
    seq, logp = pl.pallas_call(
        functools.partial(atdnet_decoder_kernel, start_idx, end_idx),
        out_shape=(jax.ShapeDtypeStruct((B, max_len), jnp.int32),
                   jax.ShapeDtypeStruct((B, max_len), jnp.float32)),
        scratch_shapes=scratch_shapes,
    )(*inputs)
    return seq, logp


# ----------------------------------------------------------------------------
# parameter init (deterministic, synthetic)
# ----------------------------------------------------------------------------
def init_params(key, V, D, A, F):
    keys = iter(jax.random.split(key, 64))

    def dense(in_dim, out_dim, scale=0.1):
        k1, k2 = jax.random.split(next(keys))
        w_t = jax.random.uniform(k1, (in_dim, out_dim), jnp.float32, -scale, scale)
        b = jax.random.uniform(k2, (1, out_dim), jnp.float32, -scale, scale)
        return w_t, b

    p = {}
    p['emb_table'] = jax.random.normal(next(keys), (V, D), jnp.float32) * 0.1
    # caption encoder: LSTMCellC(emb_dim, enc_hid_dim) + affine_hn
    p['enc_wx'], p['enc_bx'] = dense(D, 4 * D)
    p['enc_wh'], p['enc_bh'] = dense(D, 4 * D)
    p['enc_wa'], p['enc_ba'] = dense(D, D)
    # caption attention
    p['ca_wf'], p['ca_bf'] = dense(D, A)
    p['ca_wd'], p['ca_bd'] = dense(D, A)
    p['ca_wfull'], p['ca_bfull'] = dense(A, 1)
    p['ca_wg'], p['ca_bg'] = dense(3 * D, D)
    p['ca_wsc'], p['ca_bsc'] = dense(D, D)
    p['ca_wtc'], p['ca_btc'] = dense(2 * D, D)
    # visual attention
    p['va_wemb'], p['va_bemb'] = dense(F, D)
    p['va_wfa'], p['va_bfa'] = dense(D, A)
    p['va_wda'], p['va_bda'] = dense(D, A)
    p['va_wfull'], p['va_bfull'] = dense(A, 1)
    # attention_lstm (nn.LSTMCell(3*emb + image_feat, decoder_dim))
    p['al_wih'], p['al_bih'] = dense(3 * D + F, 4 * D)
    p['al_whh'], p['al_bhh'] = dense(D, 4 * D)
    # copy_lstm (CopyLSTMCellC(2*emb + image_feat, decoder_dim))
    p['cl_wx'], p['cl_bx'] = dense(2 * D + F, 4 * D)
    p['cl_wh'], p['cl_bh'] = dense(D, 4 * D)
    p['cl_ww'], p['cl_bw'] = dense(D, 4 * D)
    p['cl_wcn'], p['cl_bcn'] = dense(D, D)
    p['cl_wcm'], p['cl_bcm'] = dense(D, D)
    # fc to vocab
    p['fc_w'], p['fc_b'] = dense(D, V)
    # BiLSTM (forward + reverse directions) + fc_bi  (whr acts on a zero state)
    p['bi_wif'], p['bi_bif'] = dense(D, 4 * D)
    p['bi_whf'], p['bi_bhf'] = dense(D, 4 * D)
    p['bi_wir'], p['bi_bir'] = dense(D, 4 * D)
    p['bi_whr'], p['bi_bhr'] = dense(D, 4 * D)
    p['bi_wfc'], p['bi_bfc'] = dense(2 * D, D)
    return p


# ----------------------------------------------------------------------------
if __name__ == "__main__":
    V, D, A, F = 32, 32, 16, 64          # vocab, decoder/emb/caption dim, attn dim, image feat dim
    B, T, R = 2, 8, 9                    # batch, prev-caption len, image regions
    MAX_LEN = 18
    START_IDX, END_IDX = 1, 2            # word_map['<start>'], word_map['<end>']

    key = jax.random.PRNGKey(0)
    kp, k1, k2 = jax.random.split(key, 3)
    params = init_params(kp, V, D, A, F)

    encoded_previous_captions = jax.random.randint(k1, (B, T), 3, V, dtype=jnp.int32)
    previous_cap_length = jnp.array([[T], [5]], dtype=jnp.int32)   # max length == T
    image_features = jax.random.normal(k2, (B, R, F), jnp.float32)

    fwd = jax.jit(lambda p, s, sl, img: decoder_forward(
        p, s, sl, img, START_IDX, END_IDX, MAX_LEN, sample_max=True, sample_rl=False))

    seq, seq_logprobs = fwd(params, encoded_previous_captions, previous_cap_length,
                            image_features)
    jax.block_until_ready((seq, seq_logprobs))
    assert seq.shape == (B, MAX_LEN) and seq_logprobs.shape == (B, MAX_LEN)
    print("KERNEL_OK")
</pallas_src>

<mosaic_0001>
module attributes {stable_mosaic.version = 11 : i64} {
  func.func @atdnet_decoder_kernel(%arg0: memref<2x8x32xf32, #tpu.memory_space<vmem>>, %arg1: memref<2x1xi32, #tpu.memory_space<vmem>>, %arg2: memref<2x9x64xf32, #tpu.memory_space<vmem>>, %arg3: memref<32x32xf32, #tpu.memory_space<vmem>>, %arg4: memref<32x128xf32, #tpu.memory_space<vmem>>, %arg5: memref<1x128xf32, #tpu.memory_space<vmem>>, %arg6: memref<32x128xf32, #tpu.memory_space<vmem>>, %arg7: memref<1x128xf32, #tpu.memory_space<vmem>>, %arg8: memref<32x32xf32, #tpu.memory_space<vmem>>, %arg9: memref<1x32xf32, #tpu.memory_space<vmem>>, %arg10: memref<32x16xf32, #tpu.memory_space<vmem>>, %arg11: memref<1x16xf32, #tpu.memory_space<vmem>>, %arg12: memref<32x32xf32, #tpu.memory_space<vmem>>, %arg13: memref<1x32xf32, #tpu.memory_space<vmem>>, %arg14: memref<1x16xf32, #tpu.memory_space<vmem>>, %arg15: memref<1x1xf32, #tpu.memory_space<vmem>>, %arg16: memref<32x96xf32, #tpu.memory_space<vmem>>, %arg17: memref<32x96xf32, #tpu.memory_space<vmem>>, %arg18: memref<32x96xf32, #tpu.memory_space<vmem>>, %arg19: memref<1x96xf32, #tpu.memory_space<vmem>>, %arg20: memref<64x32xf32, #tpu.memory_space<vmem>>, %arg21: memref<1x32xf32, #tpu.memory_space<vmem>>, %arg22: memref<32x16xf32, #tpu.memory_space<vmem>>, %arg23: memref<1x16xf32, #tpu.memory_space<vmem>>, %arg24: memref<1x16xf32, #tpu.memory_space<vmem>>, %arg25: memref<1x1xf32, #tpu.memory_space<vmem>>, %arg26: memref<32x128xf32, #tpu.memory_space<vmem>>, %arg27: memref<32x128xf32, #tpu.memory_space<vmem>>, %arg28: memref<32x128xf32, #tpu.memory_space<vmem>>, %arg29: memref<64x128xf32, #tpu.memory_space<vmem>>, %arg30: memref<32x128xf32, #tpu.memory_space<vmem>>, %arg31: memref<1x128xf32, #tpu.memory_space<vmem>>, %arg32: memref<32x128xf32, #tpu.memory_space<vmem>>, %arg33: memref<32x128xf32, #tpu.memory_space<vmem>>, %arg34: memref<64x128xf32, #tpu.memory_space<vmem>>, %arg35: memref<32x128xf32, #tpu.memory_space<vmem>>, %arg36: memref<32x128xf32, #tpu.memory_space<vmem>>, %arg37: memref<1x128xf32, #tpu.memory_space<vmem>>, %arg38: memref<32x32xf32, #tpu.memory_space<vmem>>, %arg39: memref<32x32xf32, #tpu.memory_space<vmem>>, %arg40: memref<1x32xf32, #tpu.memory_space<vmem>>, %arg41: memref<32x128xf32, #tpu.memory_space<vmem>>, %arg42: memref<32x128xf32, #tpu.memory_space<vmem>>, %arg43: memref<1x128xf32, #tpu.memory_space<vmem>>, %arg44: memref<32x128xf32, #tpu.memory_space<vmem>>, %arg45: memref<1x128xf32, #tpu.memory_space<vmem>>, %arg46: memref<32x32xf32, #tpu.memory_space<vmem>>, %arg47: memref<32x32xf32, #tpu.memory_space<vmem>>, %arg48: memref<1x32xf32, #tpu.memory_space<vmem>>, %arg49: memref<32x32xf32, #tpu.memory_space<vmem>>, %arg50: memref<1x32xf32, #tpu.memory_space<vmem>>, %arg51: memref<2x18xi32, #tpu.memory_space<vmem>>, %arg52: memref<2x18xf32, #tpu.memory_space<vmem>>, %arg53: memref<2x8x32xf32, #tpu.memory_space<vmem>>, %arg54: memref<2x8x32xf32, #tpu.memory_space<vmem>>) attributes {dimension_semantics = [], scalar_prefetch = 0 : i64, scratch_operands = 2 : i64, tpu.core_type = #tpu.core_type<tc>} {
    %c0 = arith.constant 0 : index
    %c0_0 = arith.constant 0 : index
    %c0_1 = arith.constant 0 : index
    %0 = vector.load %arg0[%c0, %c0_0, %c0_1] : memref<2x8x32xf32, #tpu.memory_space<vmem>>, vector<2x8x32xf32>
    %1 = tpu.iota {dimensions = array<i32: 1>} : vector<2x8xi32>
    %c0_2 = arith.constant 0 : index
    %c0_3 = arith.constant 0 : index
    %2 = vector.load %arg1[%c0_2, %c0_3] : memref<2x1xi32, #tpu.memory_space<vmem>>, vector<2x1xi32>
    %3 = vector.broadcast %2 : vector<2x1xi32> to vector<2x8xi32>
    %4 = arith.cmpi slt, %1, %3 : vector<2x8xi32>
    %5 = arith.extui %4 : vector<2x8xi1> to vector<2x8xi32>
    %6 = arith.sitofp %5 : vector<2x8xi32> to vector<2x8xf32>
    %7 = vector.shape_cast %0 : vector<2x8x32xf32> to vector<16x32xf32>
    %c0_4 = arith.constant 0 : index
    %c0_5 = arith.constant 0 : index
    %8 = vector.load %arg4[%c0_4, %c0_5] : memref<32x128xf32, #tpu.memory_space<vmem>>, vector<32x128xf32>
    %cst = arith.constant dense<0.000000e+00> : vector<16x128xf32>
    %9 = tpu.matmul %7, %8, %cst {dimension_numbers = #tpu.dot_dimension_numbers<[1], [0], [0], [1], [0, 0, 1, 1], [], []>} : vector<16x32xf32>, vector<32x128xf32>, vector<16x128xf32> -> vector<16x128xf32>
    %c0_6 = arith.constant 0 : index
    %c0_7 = arith.constant 0 : index
    %10 = vector.load %arg5[%c0_6, %c0_7] : memref<1x128xf32, #tpu.memory_space<vmem>>, vector<1x128xf32>
    %11 = vector.broadcast %10 : vector<1x128xf32> to vector<16x128xf32>
    %12 = arith.addf %9, %11 : vector<16x128xf32>
    %13 = vector.shape_cast %12 : vector<16x128xf32> to vector<2x8x128xf32>
    %c0_8 = arith.constant 0 : index
    %c0_9 = arith.constant 0 : index
    %14 = vector.load %arg6[%c0_8, %c0_9] : memref<32x128xf32, #tpu.memory_space<vmem>>, vector<32x128xf32>
    %c0_10 = arith.constant 0 : index
    %c0_11 = arith.constant 0 : index
    %15 = vector.load %arg7[%c0_10, %c0_11] : memref<1x128xf32, #tpu.memory_space<vmem>>, vector<1x128xf32>
    %cst_12 = arith.constant 0.000000e+00 : f32
    %16 = vector.broadcast %cst_12 : f32 to vector<2x32xf32>
    %cst_13 = arith.constant 0.000000e+00 : f32
    %17 = vector.broadcast %cst_13 : f32 to vector<2x32xf32>
    %cst_14 = arith.constant 0.000000e+00 : f32
    %18 = vector.broadcast %cst_14 : f32 to vector<2x32xf32>
    %19 = vector.extract_strided_slice %13 {offsets = [0, 0, 0], sizes = [2, 1, 128], strides = [1, 1, 1]} : vector<2x8x128xf32> to vector<2x1x128xf32>
    %20 = vector.shape_cast %19 : vector<2x1x128xf32> to vector<2x128xf32>
    %cst_15 = arith.constant dense<0.000000e+00> : vector<2x128xf32>
    %21 = tpu.matmul %16, %14, %cst_15 {dimension_numbers = #tpu.dot_dimension_numbers<[1], [0], [0], [1], [0, 0, 1, 1], [], []>} : vector<2x32xf32>, vector<32x128xf32>, vector<2x128xf32> -> vector<2x128xf32>
    %22 = arith.addf %20, %21 : vector<2x128xf32>
    %23 = vector.broadcast %15 : vector<1x128xf32> to vector<2x128xf32>
    %24 = arith.addf %22, %23 : vector<2x128xf32>
    %25 = arith.negf %24 : vector<2x128xf32>
    %26 = math.exp %25 : vector<2x128xf32>
    %cst_16 = arith.constant 1.000000e+00 : f32
    %27 = vector.broadcast %cst_16 : f32 to vector<2x128xf32>
    %28 = arith.addf %27, %26 : vector<2x128xf32>
    %29 = arith.divf %27, %28 : vector<2x128xf32>
    %30 = math.tanh %24 : vector<2x128xf32>
    %31 = vector.extract_strided_slice %29 {offsets = [0, 0], sizes = [2, 32], strides = [1, 1]} : vector<2x128xf32> to vector<2x32xf32>
    %32 = vector.extract_strided_slice %29 {offsets = [0, 32], sizes = [2, 32], strides = [1, 1]} : vector<2x128xf32> to vector<2x32xf32>
    %33 = vector.extract_strided_slice %30 {offsets = [0, 64], sizes = [2, 32], strides = [1, 1]} : vector<2x128xf32> to vector<2x32xf32>
    %34 = vector.extract_strided_slice %29 {offsets = [0, 96], sizes = [2, 32], strides = [1, 1]} : vector<2x128xf32> to vector<2x32xf32>
    %35 = arith.mulf %32, %17 : vector<2x32xf32>
    %36 = arith.mulf %31, %33 : vector<2x32xf32>
    %37 = arith.addf %35, %36 : vector<2x32xf32>
    %38 = math.tanh %37 : vector<2x32xf32>
    %39 = arith.mulf %34, %38 : vector<2x32xf32>
    %40 = vector.extract_strided_slice %6 {offsets = [0, 0], sizes = [2, 1], strides = [1, 1]} : vector<2x8xf32> to vector<2x1xf32>
    %41 = vector.broadcast %40 : vector<2x1xf32> to vector<2x32xf32>
    %42 = arith.mulf %41, %39 : vector<2x32xf32>
    %cst_17 = arith.constant 1.000000e+00 : f32
    %43 = vector.broadcast %cst_17 : f32 to vector<2x1xf32>
    %44 = arith.subf %43, %40 : vector<2x1xf32>
    %45 = vector.broadcast %44 : vector<2x1xf32> to vector<2x32xf32>
    %46 = arith.mulf %45, %16 : vector<2x32xf32>
    %47 = arith.addf %42, %46 : vector<2x32xf32>
    %48 = vector.broadcast %40 : vector<2x1xf32> to vector<2x32xf32>
    %49 = arith.mulf %48, %37 : vector<2x32xf32>
    %cst_18 = arith.constant 1.000000e+00 : f32
    %50 = vector.broadcast %cst_18 : f32 to vector<2x1xf32>
    %51 = arith.subf %50, %40 : vector<2x1xf32>
    %52 = vector.broadcast %51 : vector<2x1xf32> to vector<2x32xf32>
    %53 = arith.mulf %52, %17 : vector<2x32xf32>
    %54 = arith.addf %49, %53 : vector<2x32xf32>
    %55 = vector.broadcast %40 : vector<2x1xf32> to vector<2x32xf32>
    %56 = arith.mulf %55, %39 : vector<2x32xf32>
    %cst_19 = arith.constant 1.000000e+00 : f32
    %57 = vector.broadcast %cst_19 : f32 to vector<2x1xf32>
    %58 = arith.subf %57, %40 : vector<2x1xf32>
    %59 = vector.broadcast %58 : vector<2x1xf32> to vector<2x32xf32>
    %60 = arith.mulf %59, %18 : vector<2x32xf32>
    %61 = arith.addf %56, %60 : vector<2x32xf32>
    %62 = vector.broadcast %40 : vector<2x1xf32> to vector<2x32xf32>
    %63 = arith.mulf %62, %39 : vector<2x32xf32>
    %64 = vector.shape_cast %63 : vector<2x32xf32> to vector<2x1x32xf32>
    %c0_20 = arith.constant 0 : index
    %c0_21 = arith.constant 0 : index
    %c0_22 = arith.constant 0 : index
    %65 = vector.load %arg53[%c0_20, %c0_21, %c0_22] : memref<2x8x32xf32, #tpu.memory_space<vmem>>, vector<2x1x32xf32>
    tpu.vector_store %arg53[%c0_20, %c0_21, %c0_22], %64 {strides = array<i32>} : memref<2x8x32xf32, #tpu.memory_space<vmem>>, vector<2x1x32xf32>,
    %66 = vector.broadcast %40 : vector<2x1xf32> to vector<2x32xf32>
    %67 = arith.mulf %66, %37 : vector<2x32xf32>
    %68 = vector.shape_cast %67 : vector<2x32xf32> to vector<2x1x32xf32>
    %c0_23 = arith.constant 0 : index
    %c0_24 = arith.constant 0 : index
    %c0_25 = arith.constant 0 : index
    %69 = vector.load %arg54[%c0_23, %c0_24, %c0_25] : memref<2x8x32xf32, #tpu.memory_space<vmem>>, vector<2x1x32xf32>
    tpu.vector_store %arg54[%c0_23, %c0_24, %c0_25], %68 {strides = array<i32>} : memref<2x8x32xf32, #tpu.memory_space<vmem>>, vector<2x1x32xf32>,
    %70 = vector.extract_strided_slice %13 {offsets = [0, 1, 0], sizes = [2, 1, 128], strides = [1, 1, 1]} : vector<2x8x128xf32> to vector<2x1x128xf32>
    %71 = vector.shape_cast %70 : vector<2x1x128xf32> to vector<2x128xf32>
    %cst_26 = arith.constant dense<0.000000e+00> : vector<2x128xf32>
    %72 = tpu.matmul %47, %14, %cst_26 {dimension_numbers = #tpu.dot_dimension_numbers<[1], [0], [0], [1], [0, 0, 1, 1], [], []>} : vector<2x32xf32>, vector<32x128xf32>, vector<2x128xf32> -> vector<2x128xf32>
    %73 = arith.addf %71, %72 : vector<2x128xf32>
    %74 = vector.broadcast %15 : vector<1x128xf32> to vector<2x128xf32>
    %75 = arith.addf %73, %74 : vector<2x128xf32>
    %76 = arith.negf %75 : vector<2x128xf32>
    %77 = math.exp %76 : vector<2x128xf32>
    %cst_27 = arith.constant 1.000000e+00 : f32
    %78 = vector.broadcast %cst_27 : f32 to vector<2x128xf32>
    %79 = arith.addf %78, %77 : vector<2x128xf32>
    %80 = arith.divf %78, %79 : vector<2x128xf32>
    %81 = math.tanh %75 : vector<2x128xf32>
    %82 = vector.extract_strided_slice %80 {offsets = [0, 0], sizes = [2, 32], strides = [1, 1]} : vector<2x128xf32> to vector<2x32xf32>
    %83 = vector.extract_strided_slice %80 {offsets = [0, 32], sizes = [2, 32], strides = [1, 1]} : vector<2x128xf32> to vector<2x32xf32>
    %84 = vector.extract_strided_slice %81 {offsets = [0, 64], sizes = [2, 32], strides = [1, 1]} : vector<2x128xf32> to vector<2x32xf32>
    %85 = vector.extract_strided_slice %80 {offsets = [0, 96], sizes = [2, 32], strides = [1, 1]} : vector<2x128xf32> to vector<2x32xf32>
    %86 = arith.mulf %83, %54 : vector<2x32xf32>
    %87 = arith.mulf %82, %84 : vector<2x32xf32>
    %88 = arith.addf %86, %87 : vector<2x32xf32>
    %89 = math.tanh %88 : vector<2x32xf32>
    %90 = arith.mulf %85, %89 : vector<2x32xf32>
    %91 = vector.extract_strided_slice %6 {offsets = [0, 1], sizes = [2, 1], strides = [1, 1]} : vector<2x8xf32> to vector<2x1xf32>
    %92 = vector.broadcast %91 : vector<2x1xf32> to vector<2x32xf32>
    %93 = arith.mulf %92, %90 : vector<2x32xf32>
    %cst_28 = arith.constant 1.000000e+00 : f32
    %94 = vector.broadcast %cst_28 : f32 to vector<2x1xf32>
    %95 = arith.subf %94, %91 : vector<2x1xf32>
    %96 = vector.broadcast %95 : vector<2x1xf32> to vector<2x32xf32>
    %97 = arith.mulf %96, %47 : vector<2x32xf32>
    %98 = arith.addf %93, %97 : vector<2x32xf32>
    %99 = vector.broadcast %91 : vector<2x1xf32> to vector<2x32xf32>
    %100 = arith.mulf %99, %88 : vector<2x32xf32>
    %cst_29 = arith.constant 1.000000e+00 : f32
    %101 = vector.broadcast %cst_29 : f32 to vector<2x1xf32>
    %102 = arith.subf %101, %91 : vector<2x1xf32>
    %103 = vector.broadcast %102 : vector<2x1xf32> to vector<2x32xf32>
    %104 = arith.mulf %103, %54 : vector<2x32xf32>
    %105 = arith.addf %100, %104 : vector<2x32xf32>
    %106 = vector.broadcast %91 : vector<2x1xf32> to vector<2x32xf32>
    %107 = arith.mulf %106, %90 : vector<2x32xf32>
    %cst_30 = arith.constant 1.000000e+00 : f32
    %108 = vector.broadcast %cst_30 : f32 to vector<2x1xf32>
    %109 = arith.subf %108, %91 : vector<2x1xf32>
    %110 = vector.broadcast %109 : vector<2x1xf32> to vector<2x32xf32>
    %111 = arith.mulf %110, %61 : vector<2x32xf32>
    %112 = arith.addf %107, %111 : vector<2x32xf32>
    %113 = vector.broadcast %91 : vector<2x1xf32> to vector<2x32xf32>
    %114 = arith.mulf %113, %90 : vector<2x32xf32>
    %115 = vector.shape_cast %114 : vector<2x32xf32> to vector<2x1x32xf32>
    %c0_31 = arith.constant 0 : index
    %c1 = arith.constant 1 : index
    %c0_32 = arith.constant 0 : index
    %116 = vector.load %arg53[%c0_31, %c1, %c0_32] : memref<2x8x32xf32, #tpu.memory_space<vmem>>, vector<2x1x32xf32>
    tpu.vector_store %arg53[%c0_31, %c1, %c0_32], %115 {strides = array<i32>} : memref<2x8x32xf32, #tpu.memory_space<vmem>>, vector<2x1x32xf32>,
    %117 = vector.broadcast %91 : vector<2x1xf32> to vector<2x32xf32>
    %118 = arith.mulf %117, %88 : vector<2x32xf32>
    %119 = vector.shape_cast %118 : vector<2x32xf32> to vector<2x1x32xf32>
    %c0_33 = arith.constant 0 : index
    %c1_34 = arith.constant 1 : index
    %c0_35 = arith.constant 0 : index
    %120 = vector.load %arg54[%c0_33, %c1_34, %c0_35] : memref<2x8x32xf32, #tpu.memory_space<vmem>>, vector<2x1x32xf32>
    tpu.vector_store %arg54[%c0_33, %c1_34, %c0_35], %119 {strides = array<i32>} : memref<2x8x32xf32, #tpu.memory_space<vmem>>, vector<2x1x32xf32>,
    %121 = vector.extract_strided_slice %13 {offsets = [0, 2, 0], sizes = [2, 1, 128], strides = [1, 1, 1]} : vector<2x8x128xf32> to vector<2x1x128xf32>
    %122 = vector.shape_cast %121 : vector<2x1x128xf32> to vector<2x128xf32>
    %cst_36 = arith.constant dense<0.000000e+00> : vector<2x128xf32>
    %123 = tpu.matmul %98, %14, %cst_36 {dimension_numbers = #tpu.dot_dimension_numbers<[1], [0], [0], [1], [0, 0, 1, 1], [], []>} : vector<2x32xf32>, vector<32x128xf32>, vector<2x128xf32> -> vector<2x128xf32>
    %124 = arith.addf %122, %123 : vector<2x128xf32>
    %125 = vector.broadcast %15 : vector<1x128xf32> to vector<2x128xf32>
    %126 = arith.addf %124, %125 : vector<2x128xf32>
    %127 = arith.negf %126 : vector<2x128xf32>
    %128 = math.exp %127 : vector<2x128xf32>
    %cst_37 = arith.constant 1.000000e+00 : f32
    %129 = vector.broadcast %cst_37 : f32 to vector<2x128xf32>
    %130 = arith.addf %129, %128 : vector<2x128xf32>
    %131 = arith.divf %129, %130 : vector<2x128xf32>
    %132 = math.tanh %126 : vector<2x128xf32>
    %133 = vector.extract_strided_slice %131 {offsets = [0, 0], sizes = [2, 32], strides = [1, 1]} : vector<2x128xf32> to vector<2x32xf32>
    %134 = vector.extract_strided_slice %131 {offsets = [0, 32], sizes = [2, 32], strides = [1, 1]} : vector<2x128xf32> to vector<2x32xf32>
    %135 = vector.extract_strided_slice %132 {offsets = [0, 64], sizes = [2, 32], strides = [1, 1]} : vector<2x128xf32> to vector<2x32xf32>
    %136 = vector.extract_strided_slice %131 {offsets = [0, 96], sizes = [2, 32], strides = [1, 1]} : vector<2x128xf32> to vector<2x32xf32>
    %137 = arith.mulf %134, %105 : vector<2x32xf32>
    %138 = arith.mulf %133, %135 : vector<2x32xf32>
    %139 = arith.addf %137, %138 : vector<2x32xf32>
    %140 = math.tanh %139 : vector<2x32xf32>
    %141 = arith.mulf %136, %140 : vector<2x32xf32>
    %142 = vector.extract_strided_slice %6 {offsets = [0, 2], sizes = [2, 1], strides = [1, 1]} : vector<2x8xf32> to vector<2x1xf32>
    %143 = vector.broadcast %142 : vector<2x1xf32> to vector<2x32xf32>
    %144 = arith.mulf %143, %141 : vector<2x32xf32>
    %cst_38 = arith.constant 1.000000e+00 : f32
    %145 = vector.broadcast %cst_38 : f32 to vector<2x1xf32>
    %146 = arith.subf %145, %142 : vector<2x1xf32>
    %147 = vector.broadcast %146 : vector<2x1xf32> to vector<2x32xf32>
    %148 = arith.mulf %147, %98 : vector<2x32xf32>
    %149 = arith.addf %144, %148 : vector<2x32xf32>
    %150 = vector.broadcast %142 : vector<2x1xf32> to vector<2x32xf32>
    %151 = arith.mulf %150, %139 : vector<2x32xf32>
    %cst_39 = arith.constant 1.000000e+00 : f32
    %152 = vector.broadcast %cst_39 : f32 to vector<2x1xf32>
    %153 = arith.subf %152, %142 : vector<2x1xf32>
    %154 = vector.broadcast %153 : vector<2x1xf32> to vector<2x32xf32>
    %155 = arith.mulf %154, %105 : vector<2x32xf32>
    %156 = arith.addf %151, %155 : vector<2x32xf32>
    %157 = vector.broadcast %142 : vector<2x1xf32> to vector<2x32xf32>
    %158 = arith.mulf %157, %141 : vector<2x32xf32>
    %cst_40 = arith.constant 1.000000e+00 : f32
    %159 = vector.broadcast %cst_40 : f32 to vector<2x1xf32>
    %160 = arith.subf %159, %142 : vector<2x1xf32>
    %161 = vector.broadcast %160 : vector<2x1xf32> to vector<2x32xf32>
    %162 = arith.mulf %161, %112 : vector<2x32xf32>
    %163 = arith.addf %158, %162 : vector<2x32xf32>
    %164 = vector.broadcast %142 : vector<2x1xf32> to vector<2x32xf32>
    %165 = arith.mulf %164, %141 : vector<2x32xf32>
    %166 = vector.shape_cast %165 : vector<2x32xf32> to vector<2x1x32xf32>
    %c0_41 = arith.constant 0 : index
    %c2 = arith.constant 2 : index
    %c0_42 = arith.constant 0 : index
    %167 = vector.load %arg53[%c0_41, %c2, %c0_42] : memref<2x8x32xf32, #tpu.memory_space<vmem>>, vector<2x1x32xf32>
    tpu.vector_store %arg53[%c0_41, %c2, %c0_42], %166 {strides = array<i32>} : memref<2x8x32xf32, #tpu.memory_space<vmem>>, vector<2x1x32xf32>,
    %168 = vector.broadcast %142 : vector<2x1xf32> to vector<2x32xf32>
    %169 = arith.mulf %168, %139 : vector<2x32xf32>
    %170 = vector.shape_cast %169 : vector<2x32xf32> to vector<2x1x32xf32>
    %c0_43 = arith.constant 0 : index
    %c2_44 = arith.constant 2 : index
    %c0_45 = arith.constant 0 : index
    %171 = vector.load %arg54[%c0_43, %c2_44, %c0_45] : memref<2x8x32xf32, #tpu.memory_space<vmem>>, vector<2x1x32xf32>
    tpu.vector_store %arg54[%c0_43, %c2_44, %c0_45], %170 {strides = array<i32>} : memref<2x8x32xf32, #tpu.memory_space<vmem>>, vector<2x1x32xf32>,
    %172 = vector.extract_strided_slice %13 {offsets = [0, 3, 0], sizes = [2, 1, 128], strides = [1, 1, 1]} : vector<2x8x128xf32> to vector<2x1x128xf32>
    %173 = vector.shape_cast %172 : vector<2x1x128xf32> to vector<2x128xf32>
    %cst_46 = arith.constant dense<0.000000e+00> : vector<2x128xf32>
    %174 = tpu.matmul %149, %14, %cst_46 {dimension_numbers = #tpu.dot_dimension_numbers<[1], [0], [0], [1], [0, 0, 1, 1], [], []>} : vector<2x32xf32>, vector<32x128xf32>, vector<2x128xf32> -> vector<2x128xf32>
    %175 = arith.addf %173, %174 : vector<2x128xf32>
    %176 = vector.broadcast %15 : vector<1x128xf32> to vector<2x128xf32>
    %177 = arith.addf %175, %176 : vector<2x128xf32>
    %178 = arith.negf %177 : vector<2x128xf32>
    %179 = math.exp %178 : vector<2x128xf32>
    %cst_47 = arith.constant 1.000000e+00 : f32
    %180 = vector.broadcast %cst_47 : f32 to vector<2x128xf32>
    %181 = arith.addf %180, %179 : vector<2x128xf32>
    %182 = arith.divf %180, %181 : vector<2x128xf32>
    %183 = math.tanh %177 : vector<2x128xf32>
    %184 = vector.extract_strided_slice %182 {offsets = [0, 0], sizes = [2, 32], strides = [1, 1]} : vector<2x128xf32> to vector<2x32xf32>
    %185 = vector.extract_strided_slice %182 {offsets = [0, 32], sizes = [2, 32], strides = [1, 1]} : vector<2x128xf32> to vector<2x32xf32>
    %186 = vector.extract_strided_slice %183 {offsets = [0, 64], sizes = [2, 32], strides = [1, 1]} : vector<2x128xf32> to vector<2x32xf32>
    %187 = vector.extract_strided_slice %182 {offsets = [0, 96], sizes = [2, 32], strides = [1, 1]} : vector<2x128xf32> to vector<2x32xf32>
    %188 = arith.mulf %185, %156 : vector<2x32xf32>
    %189 = arith.mulf %184, %186 : vector<2x32xf32>
    %190 = arith.addf %188, %189 : vector<2x32xf32>
    %191 = math.tanh %190 : vector<2x32xf32>
    %192 = arith.mulf %187, %191 : vector<2x32xf32>
    %193 = vector.extract_strided_slice %6 {offsets = [0, 3], sizes = [2, 1], strides = [1, 1]} : vector<2x8xf32> to vector<2x1xf32>
    %194 = vector.broadcast %193 : vector<2x1xf32> to vector<2x32xf32>
    %195 = arith.mulf %194, %192 : vector<2x32xf32>
    %cst_48 = arith.constant 1.000000e+00 : f32
    %196 = vector.broadcast %cst_48 : f32 to vector<2x1xf32>
    %197 = arith.subf %196, %193 : vector<2x1xf32>
    %198 = vector.broadcast %197 : vector<2x1xf32> to vector<2x32xf32>
    %199 = arith.mulf %198, %149 : vector<2x32xf32>
    %200 = arith.addf %195, %199 : vector<2x32xf32>
    %201 = vector.broadcast %193 : vector<2x1xf32> to vector<2x32xf32>
    %202 = arith.mulf %201, %190 : vector<2x32xf32>
    %cst_49 = arith.constant 1.000000e+00 : f32
    %203 = vector.broadcast %cst_49 : f32 to vector<2x1xf32>
    %204 = arith.subf %203, %193 : vector<2x1xf32>
    %205 = vector.broadcast %204 : vector<2x1xf32> to vector<2x32xf32>
    %206 = arith.mulf %205, %156 : vector<2x32xf32>
    %207 = arith.addf %202, %206 : vector<2x32xf32>
    %208 = vector.broadcast %193 : vector<2x1xf32> to vector<2x32xf32>
    %209 = arith.mulf %208, %192 : vector<2x32xf32>
    %cst_50 = arith.constant 1.000000e+00 : f32
    %210 = vector.broadcast %cst_50 : f32 to vector<2x1xf32>
    %211 = arith.subf %210, %193 : vector<2x1xf32>
    %212 = vector.broadcast %211 : vector<2x1xf32> to vector<2x32xf32>
    %213 = arith.mulf %212, %163 : vector<2x32xf32>
    %214 = arith.addf %209, %213 : vector<2x32xf32>
    %215 = vector.broadcast %193 : vector<2x1xf32> to vector<2x32xf32>
    %216 = arith.mulf %215, %192 : vector<2x32xf32>
    %217 = vector.shape_cast %216 : vector<2x32xf32> to vector<2x1x32xf32>
    %c0_51 = arith.constant 0 : index
    %c3 = arith.constant 3 : index
    %c0_52 = arith.constant 0 : index
    %218 = vector.load %arg53[%c0_51, %c3, %c0_52] : memref<2x8x32xf32, #tpu.memory_space<vmem>>, vector<2x1x32xf32>
    tpu.vector_store %arg53[%c0_51, %c3, %c0_52], %217 {strides = array<i32>} : memref<2x8x32xf32, #tpu.memory_space<vmem>>, vector<2x1x32xf32>,
    %219 = vector.broadcast %193 : vector<2x1xf32> to vector<2x32xf32>
    %220 = arith.mulf %219, %190 : vector<2x32xf32>
    %221 = vector.shape_cast %220 : vector<2x32xf32> to vector<2x1x32xf32>
    %c0_53 = arith.constant 0 : index
    %c3_54 = arith.constant 3 : index
    %c0_55 = arith.constant 0 : index
    %222 = vector.load %arg54[%c0_53, %c3_54, %c0_55] : memref<2x8x32xf32, #tpu.memory_space<vmem>>, vector<2x1x32xf32>
    tpu.vector_store %arg54[%c0_53, %c3_54, %c0_55], %221 {strides = array<i32>} : memref<2x8x32xf32, #tpu.memory_space<vmem>>, vector<2x1x32xf32>,
    %223 = vector.extract_strided_slice %13 {offsets = [0, 4, 0], sizes = [2, 1, 128], strides = [1, 1, 1]} : vector<2x8x128xf32> to vector<2x1x128xf32>
    %224 = vector.shape_cast %223 : vector<2x1x128xf32> to vector<2x128xf32>
    %cst_56 = arith.constant dense<0.000000e+00> : vector<2x128xf32>
    %225 = tpu.matmul %200, %14, %cst_56 {dimension_numbers = #tpu.dot_dimension_numbers<[1], [0], [0], [1], [0, 0, 1, 1], [], []>} : vector<2x32xf32>, vector<32x128xf32>, vector<2x128xf32> -> vector<2x128xf32>
    %226 = arith.addf %224, %225 : vector<2x128xf32>
    %227 = vector.broadcast %15 : vector<1x128xf32> to vector<2x128xf32>
    %228 = arith.addf %226, %227 : vector<2x128xf32>
    %229 = arith.negf %228 : vector<2x128xf32>
    %230 = math.exp %229 : vector<2x128xf32>
    %cst_57 = arith.constant 1.000000e+00 : f32
    %231 = vector.broadcast %cst_57 : f32 to vector<2x128xf32>
    %232 = arith.addf %231, %230 : vector<2x128xf32>
    %233 = arith.divf %231, %232 : vector<2x128xf32>
    %234 = math.tanh %228 : vector<2x128xf32>
    %235 = vector.extract_strided_slice %233 {offsets = [0, 0], sizes = [2, 32], strides = [1, 1]} : vector<2x128xf32> to vector<2x32xf32>
    %236 = vector.extract_strided_slice %233 {offsets = [0, 32], sizes = [2, 32], strides = [1, 1]} : vector<2x128xf32> to vector<2x32xf32>
    %237 = vector.extract_strided_slice %234 {offsets = [0, 64], sizes = [2, 32], strides = [1, 1]} : vector<2x128xf32> to vector<2x32xf32>
    %238 = vector.extract_strided_slice %233 {offsets = [0, 96], sizes = [2, 32], strides = [1, 1]} : vector<2x128xf32> to vector<2x32xf32>
    %239 = arith.mulf %236, %207 : vector<2x32xf32>
    %240 = arith.mulf %235, %237 : vector<2x32xf32>
    %241 = arith.addf %239, %240 : vector<2x32xf32>
    %242 = math.tanh %241 : vector<2x32xf32>
    %243 = arith.mulf %238, %242 : vector<2x32xf32>
    %244 = vector.extract_strided_slice %6 {offsets = [0, 4], sizes = [2, 1], strides = [1, 1]} : vector<2x8xf32> to vector<2x1xf32>
    %245 = vector.broadcast %244 : vector<2x1xf32> to vector<2x32xf32>
    %246 = arith.mulf %245, %243 : vector<2x32xf32>
    %cst_58 = arith.constant 1.000000e+00 : f32
    %247 = vector.broadcast %cst_58 : f32 to vector<2x1xf32>
    %248 = arith.subf %247, %244 : vector<2x1xf32>
    %249 = vector.broadcast %248 : vector<2x1xf32> to vector<2x32xf32>
    %250 = arith.mulf %249, %200 : vector<2x32xf32>
    %251 = arith.addf %246, %250 : vector<2x32xf32>
    %252 = vector.broadcast %244 : vector<2x1xf32> to vector<2x32xf32>
    %253 = arith.mulf %252, %241 : vector<2x32xf32>
    %cst_59 = arith.constant 1.000000e+00 : f32
    %254 = vector.broadcast %cst_59 : f32 to vector<2x1xf32>
    %255 = arith.subf %254, %244 : vector<2x1xf32>
    %256 = vector.broadcast %255 : vector<2x1xf32> to vector<2x32xf32>
    %257 = arith.mulf %256, %207 : vector<2x32xf32>
    %258 = arith.addf %253, %257 : vector<2x32xf32>
    %259 = vector.broadcast %244 : vector<2x1xf32> to vector<2x32xf32>
    %260 = arith.mulf %259, %243 : vector<2x32xf32>
    %cst_60 = arith.constant 1.000000e+00 : f32
    %261 = vector.broadcast %cst_60 : f32 to vector<2x1xf32>
    %262 = arith.subf %261, %244 : vector<2x1xf32>
    %263 = vector.broadcast %262 : vector<2x1xf32> to vector<2x32xf32>
    %264 = arith.mulf %263, %214 : vector<2x32xf32>
    %265 = arith.addf %260, %264 : vector<2x32xf32>
    %266 = vector.broadcast %244 : vector<2x1xf32> to vector<2x32xf32>
    %267 = arith.mulf %266, %243 : vector<2x32xf32>
    %268 = vector.shape_cast %267 : vector<2x32xf32> to vector<2x1x32xf32>
    %c0_61 = arith.constant 0 : index
    %c4 = arith.constant 4 : index
    %c0_62 = arith.constant 0 : index
    %269 = vector.load %arg53[%c0_61, %c4, %c0_62] : memref<2x8x32xf32, #tpu.memory_space<vmem>>, vector<2x1x32xf32>
    tpu.vector_store %arg53[%c0_61, %c4, %c0_62], %268 {strides = array<i32>} : memref<2x8x32xf32, #tpu.memory_space<vmem>>, vector<2x1x32xf32>,
    %270 = vector.broadcast %244 : vector<2x1xf32> to vector<2x32xf32>
    %271 = arith.mulf %270, %241 : vector<2x32xf32>
    %272 = vector.shape_cast %271 : vector<2x32xf32> to vector<2x1x32xf32>
    %c0_63 = arith.constant 0 : index
    %c4_64 = arith.constant 4 : index
    %c0_65 = arith.constant 0 : index
    %273 = vector.load %arg54[%c0_63, %c4_64, %c0_65] : memref<2x8x32xf32, #tpu.memory_space<vmem>>, vector<2x1x32xf32>
    tpu.vector_store %arg54[%c0_63, %c4_64, %c0_65], %272 {strides = array<i32>} : memref<2x8x32xf32, #tpu.memory_space<vmem>>, vector<2x1x32xf32>,
    %274 = vector.extract_strided_slice %13 {offsets = [0, 5, 0], sizes = [2, 1, 128], strides = [1, 1, 1]} : vector<2x8x128xf32> to vector<2x1x128xf32>
    %275 = vector.shape_cast %274 : vector<2x1x128xf32> to vector<2x128xf32>
    %cst_66 = arith.constant dense<0.000000e+00> : vector<2x128xf32>
    %276 = tpu.matmul %251, %14, %cst_66 {dimension_numbers = #tpu.dot_dimension_numbers<[1], [0], [0], [1], [0, 0, 1, 1], [], []>} : vector<2x32xf32>, vector<32x128xf32>, vector<2x128xf32> -> vector<2x128xf32>
    %277 = arith.addf %275, %276 : vector<2x128xf32>
    %278 = vector.broadcast %15 : vector<1x128xf32> to vector<2x128xf32>
    %279 = arith.addf %277, %278 : vector<2x128xf32>
    %280 = arith.negf %279 : vector<2x128xf32>
    %281 = math.exp %280 : vector<2x128xf32>
    %cst_67 = arith.constant 1.000000e+00 : f32
    %282 = vector.broadcast %cst_67 : f32 to vector<2x128xf32>
    %283 = arith.addf %282, %281 : vector<2x128xf32>
    %284 = arith.divf %282, %283 : vector<2x128xf32>
    %285 = math.tanh %279 : vector<2x128xf32>
    %286 = vector.extract_strided_slice %284 {offsets = [0, 0], sizes = [2, 32], strides = [1, 1]} : vector<2x128xf32> to vector<2x32xf32>
    %287 = vector.extract_strided_slice %284 {offsets = [0, 32], sizes = [2, 32], strides = [1, 1]} : vector<2x128xf32> to vector<2x32xf32>
    %288 = vector.extract_strided_slice %285 {offsets = [0, 64], sizes = [2, 32], strides = [1, 1]} : vector<2x128xf32> to vector<2x32xf32>
    %289 = vector.extract_strided_slice %284 {offsets = [0, 96], sizes = [2, 32], strides = [1, 1]} : vector<2x128xf32> to vector<2x32xf32>
    %290 = arith.mulf %287, %258 : vector<2x32xf32>
    %291 = arith.mulf %286, %288 : vector<2x32xf32>
    %292 = arith.addf %290, %291 : vector<2x32xf32>
    %293 = math.tanh %292 : vector<2x32xf32>
    %294 = arith.mulf %289, %293 : vector<2x32xf32>
    %295 = vector.extract_strided_slice %6 {offsets = [0, 5], sizes = [2, 1], strides = [1, 1]} : vector<2x8xf32> to vector<2x1xf32>
    %296 = vector.broadcast %295 : vector<2x1xf32> to vector<2x32xf32>
    %297 = arith.mulf %296, %294 : vector<2x32xf32>
    %cst_68 = arith.constant 1.000000e+00 : f32
    %298 = vector.broadcast %cst_68 : f32 to vector<2x1xf32>
    %299 = arith.subf %298, %295 : vector<2x1xf32>
    %300 = vector.broadcast %299 : vector<2x1xf32> to vector<2x32xf32>
    %301 = arith.mulf %300, %251 : vector<2x32xf32>
    %302 = arith.addf %297, %301 : vector<2x32xf32>
    %303 = vector.broadcast %295 : vector<2x1xf32> to vector<2x32xf32>
    %304 = arith.mulf %303, %292 : vector<2x32xf32>
    %cst_69 = arith.constant 1.000000e+00 : f32
    %305 = vector.broadcast %cst_69 : f32 to vector<2x1xf32>
    %306 = arith.subf %305, %295 : vector<2x1xf32>
    %307 = vector.broadcast %306 : vector<2x1xf32> to vector<2x32xf32>
    %308 = arith.mulf %307, %258 : vector<2x32xf32>
    %309 = arith.addf %304, %308 : vector<2x32xf32>
    %310 = vector.broadcast %295 : vector<2x1xf32> to vector<2x32xf32>
    %311 = arith.mulf %310, %294 : vector<2x32xf32>
    %cst_70 = arith.constant 1.000000e+00 : f32
    %312 = vector.broadcast %cst_70 : f32 to vector<2x1xf32>
    %313 = arith.subf %312, %295 : vector<2x1xf32>
    %314 = vector.broadcast %313 : vector<2x1xf32> to vector<2x32xf32>
    %315 = arith.mulf %314, %265 : vector<2x32xf32>
    %316 = arith.addf %311, %315 : vector<2x32xf32>
    %317 = vector.broadcast %295 : vector<2x1xf32> to vector<2x32xf32>
    %318 = arith.mulf %317, %294 : vector<2x32xf32>
    %319 = vector.shape_cast %318 : vector<2x32xf32> to vector<2x1x32xf32>
    %c0_71 = arith.constant 0 : index
    %c5 = arith.constant 5 : index
    %c0_72 = arith.constant 0 : index
    %320 = vector.load %arg53[%c0_71, %c5, %c0_72] : memref<2x8x32xf32, #tpu.memory_space<vmem>>, vector<2x1x32xf32>
    tpu.vector_store %arg53[%c0_71, %c5, %c0_72], %319 {strides = array<i32>} : memref<2x8x32xf32, #tpu.memory_space<vmem>>, vector<2x1x32xf32>,
    %321 = vector.broadcast %295 : vector<2x1xf32> to vector<2x32xf32>
    %322 = arith.mulf %321, %292 : vector<2x32xf32>
    %323 = vector.shape_cast %322 : vector<2x32xf32> to vector<2x1x32xf32>
    %c0_73 = arith.constant 0 : index
    %c5_74 = arith.constant 5 : index
    %c0_75 = arith.constant 0 : index
    %324 = vector.load %arg54[%c0_73, %c5_74, %c0_75] : memref<2x8x32xf32, #tpu.memory_space<vmem>>, vector<2x1x32xf32>
    tpu.vector_store %arg54[%c0_73, %c5_74, %c0_75], %323 {strides = array<i32>} : memref<2x8x32xf32, #tpu.memory_space<vmem>>, vector<2x1x32xf32>,
    %325 = vector.extract_strided_slice %13 {offsets = [0, 6, 0], sizes = [2, 1, 128], strides = [1, 1, 1]} : vector<2x8x128xf32> to vector<2x1x128xf32>
    %326 = vector.shape_cast %325 : vector<2x1x128xf32> to vector<2x128xf32>
    %cst_76 = arith.constant dense<0.000000e+00> : vector<2x128xf32>
    %327 = tpu.matmul %302, %14, %cst_76 {dimension_numbers = #tpu.dot_dimension_numbers<[1], [0], [0], [1], [0, 0, 1, 1], [], []>} : vector<2x32xf32>, vector<32x128xf32>, vector<2x128xf32> -> vector<2x128xf32>
    %328 = arith.addf %326, %327 : vector<2x128xf32>
    %329 = vector.broadcast %15 : vector<1x128xf32> to vector<2x128xf32>
    %330 = arith.addf %328, %329 : vector<2x128xf32>
    %331 = arith.negf %330 : vector<2x128xf32>
    %332 = math.exp %331 : vector<2x128xf32>
    %cst_77 = arith.constant 1.000000e+00 : f32
    %333 = vector.broadcast %cst_77 : f32 to vector<2x128xf32>
    %334 = arith.addf %333, %332 : vector<2x128xf32>
    %335 = arith.divf %333, %334 : vector<2x128xf32>
    %336 = math.tanh %330 : vector<2x128xf32>
    %337 = vector.extract_strided_slice %335 {offsets = [0, 0], sizes = [2, 32], strides = [1, 1]} : vector<2x128xf32> to vector<2x32xf32>
    %338 = vector.extract_strided_slice %335 {offsets = [0, 32], sizes = [2, 32], strides = [1, 1]} : vector<2x128xf32> to vector<2x32xf32>
    %339 = vector.extract_strided_slice %336 {offsets = [0, 64], sizes = [2, 32], strides = [1, 1]} : vector<2x128xf32> to vector<2x32xf32>
    %340 = vector.extract_strided_slice %335 {offsets = [0, 96], sizes = [2, 32], strides = [1, 1]} : vector<2x128xf32> to vector<2x32xf32>
    %341 = arith.mulf %338, %309 : vector<2x32xf32>
    %342 = arith.mulf %337, %339 : vector<2x32xf32>
    %343 = arith.addf %341, %342 : vector<2x32xf32>
    %344 = math.tanh %343 : vector<2x32xf32>
    %345 = arith.mulf %340, %344 : vector<2x32xf32>
    %346 = vector.extract_strided_slice %6 {offsets = [0, 6], sizes = [2, 1], strides = [1, 1]} : vector<2x8xf32> to vector<2x1xf32>
    %347 = vector.broadcast %346 : vector<2x1xf32> to vector<2x32xf32>
    %348 = arith.mulf %347, %345 : vector<2x32xf32>
    %cst_78 = arith.constant 1.000000e+00 : f32
    %349 = vector.broadcast %cst_78 : f32 to vector<2x1xf32>
    %350 = arith.subf %349, %346 : vector<2x1xf32>
    %351 = vector.broadcast %350 : vector<2x1xf32> to vector<2x32xf32>
    %352 = arith.mulf %351, %302 : vector<2x32xf32>
    %353 = arith.addf %348, %352 : vector<2x32xf32>
    %354 = vector.broadcast %346 : vector<2x1xf32> to vector<2x32xf32>
    %355 = arith.mulf %354, %343 : vector<2x32xf32>
    %cst_79 = arith.constant 1.000000e+00 : f32
    %356 = vector.broadcast %cst_79 : f32 to vector<2x1xf32>
    %357 = arith.subf %356, %346 : vector<2x1xf32>
    %358 = vector.broadcast %357 : vector<2x1xf32> to vector<2x32xf32>
    %359 = arith.mulf %358, %309 : vector<2x32xf32>
    %360 = arith.addf %355, %359 : vector<2x32xf32>
    %361 = vector.broadcast %346 : vector<2x1xf32> to vector<2x32xf32>
    %362 = arith.mulf %361, %345 : vector<2x32xf32>
    %cst_80 = arith.constant 1.000000e+00 : f32
    %363 = vector.broadcast %cst_80 : f32 to vector<2x1xf32>
    %364 = arith.subf %363, %346 : vector<2x1xf32>
    %365 = vector.broadcast %364 : vector<2x1xf32> to vector<2x32xf32>
    %366 = arith.mulf %365, %316 : vector<2x32xf32>
    %367 = arith.addf %362, %366 : vector<2x32xf32>
    %368 = vector.broadcast %346 : vector<2x1xf32> to vector<2x32xf32>
    %369 = arith.mulf %368, %345 : vector<2x32xf32>
    %370 = vector.shape_cast %369 : vector<2x32xf32> to vector<2x1x32xf32>
    %c0_81 = arith.constant 0 : index
    %c6 = arith.constant 6 : index
    %c0_82 = arith.constant 0 : index
    %371 = vector.load %arg53[%c0_81, %c6, %c0_82] : memref<2x8x32xf32, #tpu.memory_space<vmem>>, vector<2x1x32xf32>
    tpu.vector_store %arg53[%c0_81, %c6, %c0_82], %370 {strides = array<i32>} : memref<2x8x32xf32, #tpu.memory_space<vmem>>, vector<2x1x32xf32>,
    %372 = vector.broadcast %346 : vector<2x1xf32> to vector<2x32xf32>
    %373 = arith.mulf %372, %343 : vector<2x32xf32>
    %374 = vector.shape_cast %373 : vector<2x32xf32> to vector<2x1x32xf32>
    %c0_83 = arith.constant 0 : index
    %c6_84 = arith.constant 6 : index
    %c0_85 = arith.constant 0 : index
    %375 = vector.load %arg54[%c0_83, %c6_84, %c0_85] : memref<2x8x32xf32, #tpu.memory_space<vmem>>, vector<2x1x32xf32>
    tpu.vector_store %arg54[%c0_83, %c6_84, %c0_85], %374 {strides = array<i32>} : memref<2x8x32xf32, #tpu.memory_space<vmem>>, vector<2x1x32xf32>,
    %376 = vector.extract_strided_slice %13 {offsets = [0, 7, 0], sizes = [2, 1, 128], strides = [1, 1, 1]} : vector<2x8x128xf32> to vector<2x1x128xf32>
    %377 = vector.shape_cast %376 : vector<2x1x128xf32> to vector<2x128xf32>
    %cst_86 = arith.constant dense<0.000000e+00> : vector<2x128xf32>
    %378 = tpu.matmul %353, %14, %cst_86 {dimension_numbers = #tpu.dot_dimension_numbers<[1], [0], [0], [1], [0, 0, 1, 1], [], []>} : vector<2x32xf32>, vector<32x128xf32>, vector<2x128xf32> -> vector<2x128xf32>
    %379 = arith.addf %377, %378 : vector<2x128xf32>
    %380 = vector.broadcast %15 : vector<1x128xf32> to vector<2x128xf32>
    %381 = arith.addf %379, %380 : vector<2x128xf32>
    %382 = arith.negf %381 : vector<2x128xf32>
    %383 = math.exp %382 : vector<2x128xf32>
    %cst_87 = arith.constant 1.000000e+00 : f32
    %384 = vector.broadcast %cst_87 : f32 to vector<2x128xf32>
    %385 = arith.addf %384, %383 : vector<2x128xf32>
    %386 = arith.divf %384, %385 : vector<2x128xf32>
    %387 = math.tanh %381 : vector<2x128xf32>
    %388 = vector.extract_strided_slice %386 {offsets = [0, 0], sizes = [2, 32], strides = [1, 1]} : vector<2x128xf32> to vector<2x32xf32>
    %389 = vector.extract_strided_slice %386 {offsets = [0, 32], sizes = [2, 32], strides = [1, 1]} : vector<2x128xf32> to vector<2x32xf32>
    %390 = vector.extract_strided_slice %387 {offsets = [0, 64], sizes = [2, 32], strides = [1, 1]} : vector<2x128xf32> to vector<2x32xf32>
    %391 = vector.extract_strided_slice %386 {offsets = [0, 96], sizes = [2, 32], strides = [1, 1]} : vector<2x128xf32> to vector<2x32xf32>
    %392 = arith.mulf %389, %360 : vector<2x32xf32>
    %393 = arith.mulf %388, %390 : vector<2x32xf32>
    %394 = arith.addf %392, %393 : vector<2x32xf32>
    %395 = math.tanh %394 : vector<2x32xf32>
    %396 = arith.mulf %391, %395 : vector<2x32xf32>
    %397 = vector.extract_strided_slice %6 {offsets = [0, 7], sizes = [2, 1], strides = [1, 1]} : vector<2x8xf32> to vector<2x1xf32>
    %398 = vector.broadcast %397 : vector<2x1xf32> to vector<2x32xf32>
    %399 = arith.mulf %398, %396 : vector<2x32xf32>
    %cst_88 = arith.constant 1.000000e+00 : f32
    %400 = vector.broadcast %cst_88 : f32 to vector<2x1xf32>
    %401 = arith.subf %400, %397 : vector<2x1xf32>
    %402 = vector.broadcast %401 : vector<2x1xf32> to vector<2x32xf32>
    %403 = arith.mulf %402, %367 : vector<2x32xf32>
    %404 = arith.addf %399, %403 : vector<2x32xf32>
    %405 = vector.broadcast %397 : vector<2x1xf32> to vector<2x32xf32>
    %406 = arith.mulf %405, %396 : vector<2x32xf32>
    %407 = vector.shape_cast %406 : vector<2x32xf32> to vector<2x1x32xf32>
    %c0_89 = arith.constant 0 : index
    %c7 = arith.constant 7 : index
    %c0_90 = arith.constant 0 : index
    %408 = vector.load %arg53[%c0_89, %c7, %c0_90] : memref<2x8x32xf32, #tpu.memory_space<vmem>>, vector<2x1x32xf32>
    tpu.vector_store %arg53[%c0_89, %c7, %c0_90], %407 {strides = array<i32>} : memref<2x8x32xf32, #tpu.memory_space<vmem>>, vector<2x1x32xf32>,
    %409 = vector.broadcast %397 : vector<2x1xf32> to vector<2x32xf32>
    %410 = arith.mulf %409, %394 : vector<2x32xf32>
    %411 = vector.shape_cast %410 : vector<2x32xf32> to vector<2x1x32xf32>
    %c0_91 = arith.constant 0 : index
    %c7_92 = arith.constant 7 : index
    %c0_93 = arith.constant 0 : index
    %412 = vector.load %arg54[%c0_91, %c7_92, %c0_93] : memref<2x8x32xf32, #tpu.memory_space<vmem>>, vector<2x1x32xf32>
    tpu.vector_store %arg54[%c0_91, %c7_92, %c0_93], %411 {strides = array<i32>} : memref<2x8x32xf32, #tpu.memory_space<vmem>>, vector<2x1x32xf32>,
    %c0_94 = arith.constant 0 : index
    %c0_95 = arith.constant 0 : index
    %c0_96 = arith.constant 0 : index
    %413 = vector.load %arg53[%c0_94, %c0_95, %c0_96] : memref<2x8x32xf32, #tpu.memory_space<vmem>>, vector<2x8x32xf32>
    %c0_97 = arith.constant 0 : index
    %c0_98 = arith.constant 0 : index
    %c0_99 = arith.constant 0 : index
    %414 = vector.load %arg54[%c0_97, %c0_98, %c0_99] : memref<2x8x32xf32, #tpu.memory_space<vmem>>, vector<2x8x32xf32>
    %c0_100 = arith.constant 0 : index
    %c0_101 = arith.constant 0 : index
    %415 = vector.load %arg8[%c0_100, %c0_101] : memref<32x32xf32, #tpu.memory_space<vmem>>, vector<32x32xf32>
    %cst_102 = arith.constant dense<0.000000e+00> : vector<2x32xf32>
    %416 = tpu.matmul %404, %415, %cst_102 {dimension_numbers = #tpu.dot_dimension_numbers<[1], [0], [0], [1], [0, 0, 1, 1], [], []>} : vector<2x32xf32>, vector<32x32xf32>, vector<2x32xf32> -> vector<2x32xf32>
    %c0_103 = arith.constant 0 : index
    %c0_104 = arith.constant 0 : index
    %417 = vector.load %arg9[%c0_103, %c0_104] : memref<1x32xf32, #tpu.memory_space<vmem>>, vector<1x32xf32>
    %418 = vector.broadcast %417 : vector<1x32xf32> to vector<2x32xf32>
    %419 = arith.addf %416, %418 : vector<2x32xf32>
    %420 = math.tanh %419 : vector<2x32xf32>
    %c0_105 = arith.constant 0 : index
    %c0_106 = arith.constant 0 : index
    %c0_107 = arith.constant 0 : index
    %421 = vector.load %arg2[%c0_105, %c0_106, %c0_107] : memref<2x9x64xf32, #tpu.memory_space<vmem>>, vector<2x9x64xf32>
    %cst_108 = arith.constant dense<0.000000e+00> : vector<2x64xf32>
    %422 = vector.multi_reduction <add>, %421, %cst_108 [1] : vector<2x9x64xf32> to vector<2x64xf32>
    %cst_109 = arith.constant 9.000000e+00 : f32
    %423 = vector.broadcast %cst_109 : f32 to vector<2x64xf32>
    %424 = arith.divf %422, %423 : vector<2x64xf32>
    %c0_110 = arith.constant 0 : index
    %c0_111 = arith.constant 0 : index
    %425 = vector.load %arg3[%c0_110, %c0_111] : memref<32x32xf32, #tpu.memory_space<vmem>>, vector<32x32xf32>
    %426 = vector.shape_cast %413 : vector<2x8x32xf32> to vector<16x32xf32>
    %c0_112 = arith.constant 0 : index
    %c0_113 = arith.constant 0 : index
    %427 = vector.load %arg10[%c0_112, %c0_113] : memref<32x16xf32, #tpu.memory_space<vmem>>, vector<32x16xf32>
    %cst_114 = arith.constant dense<0.000000e+00> : vector<16x16xf32>
    %428 = tpu.matmul %426, %427, %cst_114 {dimension_numbers = #tpu.dot_dimension_numbers<[1], [0], [0], [1], [0, 0, 1, 1], [], []>} : vector<16x32xf32>, vector<32x16xf32>, vector<16x16xf32> -> vector<16x16xf32>
    %c0_115 = arith.constant 0 : index
    %c0_116 = arith.constant 0 : index
    %429 = vector.load %arg11[%c0_115, %c0_116] : memref<1x16xf32, #tpu.memory_space<vmem>>, vector<1x16xf32>
    %430 = vector.broadcast %429 : vector<1x16xf32> to vector<16x16xf32>
    %431 = arith.addf %428, %430 : vector<16x16xf32>
    %432 = vector.shape_cast %431 : vector<16x16xf32> to vector<2x8x16xf32>
    %433 = vector.shape_cast %421 : vector<2x9x64xf32> to vector<18x64xf32>
    %c0_117 = arith.constant 0 : index
    %c0_118 = arith.constant 0 : index
    %434 = vector.load %arg20[%c0_117, %c0_118] : memref<64x32xf32, #tpu.memory_space<vmem>>, vector<64x32xf32>
    %cst_119 = arith.constant dense<0.000000e+00> : vector<18x32xf32>
    %435 = tpu.matmul %433, %434, %cst_119 {dimension_numbers = #tpu.dot_dimension_numbers<[1], [0], [0], [1], [0, 0, 1, 1], [], []>} : vector<18x64xf32>, vector<64x32xf32>, vector<18x32xf32> -> vector<18x32xf32>
    %c0_120 = arith.constant 0 : index
    %c0_121 = arith.constant 0 : index
    %436 = vector.load %arg21[%c0_120, %c0_121] : memref<1x32xf32, #tpu.memory_space<vmem>>, vector<1x32xf32>
    %437 = vector.broadcast %436 : vector<1x32xf32> to vector<18x32xf32>
    %438 = arith.addf %435, %437 : vector<18x32xf32>
    %cst_122 = arith.constant 0.000000e+00 : f32
    %439 = vector.broadcast %cst_122 : f32 to vector<18x32xf32>
    %440 = arith.maximumf %438, %439 : vector<18x32xf32>
    %c0_123 = arith.constant 0 : index
    %c0_124 = arith.constant 0 : index
    %441 = vector.load %arg22[%c0_123, %c0_124] : memref<32x16xf32, #tpu.memory_space<vmem>>, vector<32x16xf32>
    %cst_125 = arith.constant dense<0.000000e+00> : vector<18x16xf32>
    %442 = tpu.matmul %440, %441, %cst_125 {dimension_numbers = #tpu.dot_dimension_numbers<[1], [0], [0], [1], [0, 0, 1, 1], [], []>} : vector<18x32xf32>, vector<32x16xf32>, vector<18x16xf32> -> vector<18x16xf32>
    %c0_126 = arith.constant 0 : index
    %c0_127 = arith.constant 0 : index
    %443 = vector.load %arg23[%c0_126, %c0_127] : memref<1x16xf32, #tpu.memory_space<vmem>>, vector<1x16xf32>
    %444 = vector.broadcast %443 : vector<1x16xf32> to vector<18x16xf32>
    %445 = arith.addf %442, %444 : vector<18x16xf32>
    %446 = vector.shape_cast %445 : vector<18x16xf32> to vector<2x9x16xf32>
    %447 = vector.shape_cast %413 : vector<2x8x32xf32> to vector<16x32xf32>
    %c0_128 = arith.constant 0 : index
    %c0_129 = arith.constant 0 : index
    %448 = vector.load %arg41[%c0_128, %c0_129] : memref<32x128xf32, #tpu.memory_space<vmem>>, vector<32x128xf32>
    %cst_130 = arith.constant dense<0.000000e+00> : vector<16x128xf32>
    %449 = tpu.matmul %447, %448, %cst_130 {dimension_numbers = #tpu.dot_dimension_numbers<[1], [0], [0], [1], [0, 0, 1, 1], [], []>} : vector<16x32xf32>, vector<32x128xf32>, vector<16x128xf32> -> vector<16x128xf32>
    %450 = vector.shape_cast %449 : vector<16x128xf32> to vector<2x8x128xf32>
    %451 = vector.extract_strided_slice %413 {offsets = [0, 7, 0], sizes = [2, 1, 32], strides = [1, 1, 1]} : vector<2x8x32xf32> to vector<2x1x32xf32>
    %452 = vector.shape_cast %451 : vector<2x1x32xf32> to vector<2x32xf32>
    %c0_131 = arith.constant 0 : index
    %c0_132 = arith.constant 0 : index
    %453 = vector.load %arg44[%c0_131, %c0_132] : memref<32x128xf32, #tpu.memory_space<vmem>>, vector<32x128xf32>
    %cst_133 = arith.constant dense<0.000000e+00> : vector<2x128xf32>
    %454 = tpu.matmul %452, %453, %cst_133 {dimension_numbers = #tpu.dot_dimension_numbers<[1], [0], [0], [1], [0, 0, 1, 1], [], []>} : vector<2x32xf32>, vector<32x128xf32>, vector<2x128xf32> -> vector<2x128xf32>
    %c0_134 = arith.constant 0 : index
    %c0_135 = arith.constant 0 : index
    %455 = vector.load %arg27[%c0_134, %c0_135] : memref<32x128xf32, #tpu.memory_space<vmem>>, vector<32x128xf32>
    %cst_136 = arith.constant dense<0.000000e+00> : vector<2x128xf32>
    %456 = tpu.matmul %420, %455, %cst_136 {dimension_numbers = #tpu.dot_dimension_numbers<[1], [0], [0], [1], [0, 0, 1, 1], [], []>} : vector<2x32xf32>, vector<32x128xf32>, vector<2x128xf32> -> vector<2x128xf32>
    %c0_137 = arith.constant 0 : index
    %c0_138 = arith.constant 0 : index
    %457 = vector.load %arg29[%c0_137, %c0_138] : memref<64x128xf32, #tpu.memory_space<vmem>>, vector<64x128xf32>
    %cst_139 = arith.constant dense<0.000000e+00> : vector<2x128xf32>
    %458 = tpu.matmul %424, %457, %cst_139 {dimension_numbers = #tpu.dot_dimension_numbers<[1], [0], [0], [1], [0, 0, 1, 1], [], []>} : vector<2x64xf32>, vector<64x128xf32>, vector<2x128xf32> -> vector<2x128xf32>
    %459 = arith.addf %456, %458 : vector<2x128xf32>
    %c0_140 = arith.constant 0 : index
    %c0_141 = arith.constant 0 : index
    %460 = vector.load %arg31[%c0_140, %c0_141] : memref<1x128xf32, #tpu.memory_space<vmem>>, vector<1x128xf32>
    %461 = vector.broadcast %460 : vector<1x128xf32> to vector<2x128xf32>
    %462 = arith.addf %459, %461 : vector<2x128xf32>
    %c0_142 = arith.constant 0 : index
    %c0_143 = arith.constant 0 : index
    %463 = vector.load %arg26[%c0_142, %c0_143] : memref<32x128xf32, #tpu.memory_space<vmem>>, vector<32x128xf32>
    %c0_144 = arith.constant 0 : index
    %c0_145 = arith.constant 0 : index
    %464 = vector.load %arg28[%c0_144, %c0_145] : memref<32x128xf32, #tpu.memory_space<vmem>>, vector<32x128xf32>
    %c0_146 = arith.constant 0 : index
    %c0_147 = arith.constant 0 : index
    %465 = vector.load %arg30[%c0_146, %c0_147] : memref<32x128xf32, #tpu.memory_space<vmem>>, vector<32x128xf32>
    %c0_148 = arith.constant 0 : index
    %c0_149 = arith.constant 0 : index
    %466 = vector.load %arg12[%c0_148, %c0_149] : memref<32x32xf32, #tpu.memory_space<vmem>>, vector<32x32xf32>
    %c0_150 = arith.constant 0 : index
    %c0_151 = arith.constant 0 : index
    %467 = vector.load %arg13[%c0_150, %c0_151] : memref<1x32xf32, #tpu.memory_space<vmem>>, vector<1x32xf32>
    %c0_152 = arith.constant 0 : index
    %c0_153 = arith.constant 0 : index
    %468 = vector.load %arg14[%c0_152, %c0_153] : memref<1x16xf32, #tpu.memory_space<vmem>>, vector<1x16xf32>
    %469 = vector.shape_cast %468 : vector<1x16xf32> to vector<1x1x16xf32>
    %c0_154 = arith.constant 0 : index
    %c0_155 = arith.constant 0 : index
    %470 = vector.load %arg15[%c0_154, %c0_155] : memref<1x1xf32, #tpu.memory_space<vmem>>, vector<1x1xf32>
    %c0_156 = arith.constant 0 : index
    %c0_157 = arith.constant 0 : index
    %471 = vector.load %arg24[%c0_156, %c0_157] : memref<1x16xf32, #tpu.memory_space<vmem>>, vector<1x16xf32>
    %472 = vector.shape_cast %471 : vector<1x16xf32> to vector<1x1x16xf32>
    %c0_158 = arith.constant 0 : index
    %c0_159 = arith.constant 0 : index
    %473 = vector.load %arg25[%c0_158, %c0_159] : memref<1x1xf32, #tpu.memory_space<vmem>>, vector<1x1xf32>
    %c0_160 = arith.constant 0 : index
    %c0_161 = arith.constant 0 : index
    %474 = vector.load %arg16[%c0_160, %c0_161] : memref<32x96xf32, #tpu.memory_space<vmem>>, vector<32x96xf32>
    %c0_162 = arith.constant 0 : index
    %c0_163 = arith.constant 0 : index
    %475 = vector.load %arg17[%c0_162, %c0_163] : memref<32x96xf32, #tpu.memory_space<vmem>>, vector<32x96xf32>
    %c0_164 = arith.constant 0 : index
    %c0_165 = arith.constant 0 : index
    %476 = vector.load %arg18[%c0_164, %c0_165] : memref<32x96xf32, #tpu.memory_space<vmem>>, vector<32x96xf32>
    %c0_166 = arith.constant 0 : index
    %c0_167 = arith.constant 0 : index
    %477 = vector.load %arg19[%c0_166, %c0_167] : memref<1x96xf32, #tpu.memory_space<vmem>>, vector<1x96xf32>
    %c0_168 = arith.constant 0 : index
    %c0_169 = arith.constant 0 : index
    %478 = vector.load %arg42[%c0_168, %c0_169] : memref<32x128xf32, #tpu.memory_space<vmem>>, vector<32x128xf32>
    %c0_170 = arith.constant 0 : index
    %c0_171 = arith.constant 0 : index
    %479 = vector.load %arg43[%c0_170, %c0_171] : memref<1x128xf32, #tpu.memory_space<vmem>>, vector<1x128xf32>
    %c0_172 = arith.constant 0 : index
    %c0_173 = arith.constant 0 : index
    %480 = vector.load %arg45[%c0_172, %c0_173] : memref<1x128xf32, #tpu.memory_space<vmem>>, vector<1x128xf32>
    %c0_174 = arith.constant 0 : index
    %c0_175 = arith.constant 0 : index
    %481 = vector.load %arg46[%c0_174, %c0_175] : memref<32x32xf32, #tpu.memory_space<vmem>>, vector<32x32xf32>
    %c0_176 = arith.constant 0 : index
    %c0_177 = arith.constant 0 : index
    %482 = vector.load %arg47[%c0_176, %c0_177] : memref<32x32xf32, #tpu.memory_space<vmem>>, vector<32x32xf32>
    %c0_178 = arith.constant 0 : index
    %c0_179 = arith.constant 0 : index
    %483 = vector.load %arg48[%c0_178, %c0_179] : memref<1x32xf32, #tpu.memory_space<vmem>>, vector<1x32xf32>
    %c0_180 = arith.constant 0 : index
    %c0_181 = arith.constant 0 : index
    %484 = vector.load %arg32[%c0_180, %c0_181] : memref<32x128xf32, #tpu.memory_space<vmem>>, vector<32x128xf32>
    %c0_182 = arith.constant 0 : index
    %c0_183 = arith.constant 0 : index
    %485 = vector.load %arg33[%c0_182, %c0_183] : memref<32x128xf32, #tpu.memory_space<vmem>>, vector<32x128xf32>
    %c0_184 = arith.constant 0 : index
    %c0_185 = arith.constant 0 : index
    %486 = vector.load %arg34[%c0_184, %c0_185] : memref<64x128xf32, #tpu.memory_space<vmem>>, vector<64x128xf32>
    %c0_186 = arith.constant 0 : index
    %c0_187 = arith.constant 0 : index
    %487 = vector.load %arg35[%c0_186, %c0_187] : memref<32x128xf32, #tpu.memory_space<vmem>>, vector<32x128xf32>
    %c0_188 = arith.constant 0 : index
    %c0_189 = arith.constant 0 : index
    %488 = vector.load %arg36[%c0_188, %c0_189] : memref<32x128xf32, #tpu.memory_space<vmem>>, vector<32x128xf32>
    %c0_190 = arith.constant 0 : index
    %c0_191 = arith.constant 0 : index
    %489 = vector.load %arg37[%c0_190, %c0_191] : memref<1x128xf32, #tpu.memory_space<vmem>>, vector<1x128xf32>
    %c0_192 = arith.constant 0 : index
    %c0_193 = arith.constant 0 : index
    %490 = vector.load %arg38[%c0_192, %c0_193] : memref<32x32xf32, #tpu.memory_space<vmem>>, vector<32x32xf32>
    %c0_194 = arith.constant 0 : index
    %c0_195 = arith.constant 0 : index
    %491 = vector.load %arg39[%c0_194, %c0_195] : memref<32x32xf32, #tpu.memory_space<vmem>>, vector<32x32xf32>
    %c0_196 = arith.constant 0 : index
    %c0_197 = arith.constant 0 : index
    %492 = vector.load %arg40[%c0_196, %c0_197] : memref<1x32xf32, #tpu.memory_space<vmem>>, vector<1x32xf32>
    %c0_198 = arith.constant 0 : index
    %c0_199 = arith.constant 0 : index
    %493 = vector.load %arg49[%c0_198, %c0_199] : memref<32x32xf32, #tpu.memory_space<vmem>>, vector<32x32xf32>
    %c0_200 = arith.constant 0 : index
    %c0_201 = arith.constant 0 : index
    %494 = vector.load %arg50[%c0_200, %c0_201] : memref<1x32xf32, #tpu.memory_space<vmem>>, vector<1x32xf32>
    %495 = tpu.iota {dimensions = array<i32: 1>} : vector<2x8xi32>
    %496 = tpu.iota {dimensions = array<i32: 1>} : vector<2x32xi32>
    %497 = tpu.iota {dimensions = array<i32: 1>} : vector<2x18xi32>
    %cst_202 = arith.constant 0.000000e+00 : f32
    %498 = vector.broadcast %cst_202 : f32 to vector<2x32xf32>
    %c1_i32 = arith.constant 1 : i32
    %499 = vector.broadcast %c1_i32 : i32 to vector<2x1xi32>
    %cst_203 = arith.constant 1.000000e+00 : f32
    %500 = vector.broadcast %cst_203 : f32 to vector<2x1xf32>
    %c0_i32 = arith.constant 0 : i32
    %501 = vector.broadcast %c0_i32 : i32 to vector<2x18xi32>
    %cst_204 = arith.constant 0.000000e+00 : f32
    %502 = vector.broadcast %cst_204 : f32 to vector<2x18xf32>
    %c0_i32_205 = arith.constant 0 : i32
    %c1_i32_206 = arith.constant 1 : i32
    %503:10 = scf.while (%arg55 = %c0_i32_205, %arg56 = %c1_i32_206, %arg57 = %499, %arg58 = %498, %arg59 = %498, %arg60 = %498, %arg61 = %498, %arg62 = %500, %arg63 = %501, %arg64 = %502) : (i32, i32, vector<2x1xi32>, vector<2x32xf32>, vector<2x32xf32>, vector<2x32xf32>, vector<2x32xf32>, vector<2x1xf32>, vector<2x18xi32>, vector<2x18xf32>) -> (i32, i32, vector<2x1xi32>, vector<2x32xf32>, vector<2x32xf32>, vector<2x32xf32>, vector<2x32xf32>, vector<2x1xf32>, vector<2x18xi32>, vector<2x18xf32>) {
      %c18_i32 = arith.constant 18 : i32
      %506 = arith.cmpi slt, %arg55, %c18_i32 : i32
      %c0_i32_211 = arith.constant 0 : i32
      %507 = arith.cmpi sgt, %arg56, %c0_i32_211 : i32
      %508 = arith.andi %506, %507 : i1
      scf.condition(%508) %arg55, %arg56, %arg57, %arg58, %arg59, %arg60, %arg61, %arg62, %arg63, %arg64 : i32, i32, vector<2x1xi32>, vector<2x32xf32>, vector<2x32xf32>, vector<2x32xf32>, vector<2x32xf32>, vector<2x1xf32>, vector<2x18xi32>, vector<2x18xf32>
    } do {
    ^bb0(%arg55: i32, %arg56: i32, %arg57: vector<2x1xi32>, %arg58: vector<2x32xf32>, %arg59: vector<2x32xf32>, %arg60: vector<2x32xf32>, %arg61: vector<2x32xf32>, %arg62: vector<2x1xf32>, %arg63: vector<2x18xi32>, %arg64: vector<2x18xf32>):
      %506 = vector.broadcast %arg57 : vector<2x1xi32> to vector<2x32xi32>
      %507 = arith.cmpi eq, %496, %506 : vector<2x32xi32>
      %508 = arith.extui %507 : vector<2x32xi1> to vector<2x32xi32>
      %509 = arith.sitofp %508 : vector<2x32xi32> to vector<2x32xf32>
      %cst_211 = arith.constant dense<0.000000e+00> : vector<2x32xf32>
      %510 = tpu.matmul %509, %425, %cst_211 {dimension_numbers = #tpu.dot_dimension_numbers<[1], [0], [0], [1], [0, 0, 1, 1], [], []>} : vector<2x32xf32>, vector<32x32xf32>, vector<2x32xf32> -> vector<2x32xf32>
      %cst_212 = arith.constant 0.000000e+00 : f32
      %511 = vector.broadcast %cst_212 : f32 to vector<2x32xf32>
      %512 = arith.maximumf %510, %511 : vector<2x32xf32>
      %cst_213 = arith.constant dense<0.000000e+00> : vector<2x128xf32>
      %513 = tpu.matmul %512, %463, %cst_213 {dimension_numbers = #tpu.dot_dimension_numbers<[1], [0], [0], [1], [0, 0, 1, 1], [], []>} : vector<2x32xf32>, vector<32x128xf32>, vector<2x128xf32> -> vector<2x128xf32>
      %cst_214 = arith.constant dense<0.000000e+00> : vector<2x128xf32>
      %514 = tpu.matmul %arg60, %464, %cst_214 {dimension_numbers = #tpu.dot_dimension_numbers<[1], [0], [0], [1], [0, 0, 1, 1], [], []>} : vector<2x32xf32>, vector<32x128xf32>, vector<2x128xf32> -> vector<2x128xf32>
      %515 = arith.addf %513, %514 : vector<2x128xf32>
      %cst_215 = arith.constant dense<0.000000e+00> : vector<2x128xf32>
      %516 = tpu.matmul %arg58, %465, %cst_215 {dimension_numbers = #tpu.dot_dimension_numbers<[1], [0], [0], [1], [0, 0, 1, 1], [], []>} : vector<2x32xf32>, vector<32x128xf32>, vector<2x128xf32> -> vector<2x128xf32>
      %517 = arith.addf %515, %516 : vector<2x128xf32>
      %518 = arith.addf %517, %462 : vector<2x128xf32>
      %519 = arith.negf %518 : vector<2x128xf32>
      %520 = math.exp %519 : vector<2x128xf32>
      %cst_216 = arith.constant 1.000000e+00 : f32
      %521 = vector.broadcast %cst_216 : f32 to vector<2x128xf32>
      %522 = arith.addf %521, %520 : vector<2x128xf32>
      %523 = arith.divf %521, %522 : vector<2x128xf32>
      %524 = math.tanh %518 : vector<2x128xf32>
      %525 = vector.extract_strided_slice %523 {offsets = [0, 0], sizes = [2, 32], strides = [1, 1]} : vector<2x128xf32> to vector<2x32xf32>
      %526 = vector.extract_strided_slice %523 {offsets = [0, 32], sizes = [2, 32], strides = [1, 1]} : vector<2x128xf32> to vector<2x32xf32>
      %527 = vector.extract_strided_slice %524 {offsets = [0, 64], sizes = [2, 32], strides = [1, 1]} : vector<2x128xf32> to vector<2x32xf32>
      %528 = vector.extract_strided_slice %523 {offsets = [0, 96], sizes = [2, 32], strides = [1, 1]} : vector<2x128xf32> to vector<2x32xf32>
      %529 = arith.mulf %526, %arg59 : vector<2x32xf32>
      %530 = arith.mulf %525, %527 : vector<2x32xf32>
      %531 = arith.addf %529, %530 : vector<2x32xf32>
      %532 = math.tanh %531 : vector<2x32xf32>
      %533 = arith.mulf %528, %532 : vector<2x32xf32>
      %cst_217 = arith.constant dense<0.000000e+00> : vector<2x32xf32>
      %534 = tpu.matmul %533, %466, %cst_217 {dimension_numbers = #tpu.dot_dimension_numbers<[1], [0], [0], [1], [0, 0, 1, 1], [], []>} : vector<2x32xf32>, vector<32x32xf32>, vector<2x32xf32> -> vector<2x32xf32>
      %535 = vector.broadcast %467 : vector<1x32xf32> to vector<2x32xf32>
      %536 = arith.addf %534, %535 : vector<2x32xf32>
      %537 = vector.extract_strided_slice %536 {offsets = [0, 0], sizes = [2, 16], strides = [1, 1]} : vector<2x32xf32> to vector<2x16xf32>
      %538 = vector.extract_strided_slice %536 {offsets = [0, 16], sizes = [2, 16], strides = [1, 1]} : vector<2x32xf32> to vector<2x16xf32>
      %539 = vector.shape_cast %537 : vector<2x16xf32> to vector<2x1x16xf32>
      %540 = vector.broadcast %539 : vector<2x1x16xf32> to vector<2x8x16xf32>
      %541 = arith.addf %432, %540 : vector<2x8x16xf32>
      %542 = math.tanh %541 : vector<2x8x16xf32>
      %543 = vector.broadcast %469 : vector<1x1x16xf32> to vector<2x8x16xf32>
      %544 = arith.mulf %542, %543 : vector<2x8x16xf32>
      %cst_218 = arith.constant dense<0.000000e+00> : vector<2x8xf32>
      %545 = vector.multi_reduction <add>, %544, %cst_218 [2] : vector<2x8x16xf32> to vector<2x8xf32>
      %546 = vector.broadcast %470 : vector<1x1xf32> to vector<2x8xf32>
      %547 = arith.addf %545, %546 : vector<2x8xf32>
      %cst_219 = arith.constant 0.000000e+00 : f32
      %548 = vector.broadcast %cst_219 : f32 to vector<2x8xf32>
      %549 = arith.cmpf oeq, %6, %548 : vector<2x8xf32>
      %cst_220 = arith.constant -1.000000e+10 : f32
      %550 = vector.broadcast %cst_220 : f32 to vector<2x8xf32>
      %551 = arith.select %549, %550, %547 : vector<2x8xi1>, vector<2x8xf32>
      %cst_221 = arith.constant dense<0xFF800000> : vector<2xf32>
      %552 = vector.multi_reduction <maximumf>, %551, %cst_221 [1] : vector<2x8xf32> to vector<2xf32>
      %553 = vector.shape_cast %552 : vector<2xf32> to vector<2x1xf32>
      %554 = vector.broadcast %553 : vector<2x1xf32> to vector<2x8xf32>
      %555 = arith.subf %551, %554 : vector<2x8xf32>
      %556 = math.exp %555 : vector<2x8xf32>
      %cst_222 = arith.constant dense<0.000000e+00> : vector<2xf32>
      %557 = vector.multi_reduction <add>, %556, %cst_222 [1] : vector<2x8xf32> to vector<2xf32>
      %558 = vector.shape_cast %557 : vector<2xf32> to vector<2x1xf32>
      %559 = vector.broadcast %558 : vector<2x1xf32> to vector<2x8xf32>
      %560 = arith.divf %556, %559 : vector<2x8xf32>
      %561 = vector.shape_cast %560 : vector<2x8xf32> to vector<2x8x1xf32>
      %562 = vector.broadcast %561 : vector<2x8x1xf32> to vector<2x8x32xf32>
      %563 = arith.mulf %413, %562 : vector<2x8x32xf32>
      %cst_223 = arith.constant dense<0.000000e+00> : vector<2x32xf32>
      %564 = vector.multi_reduction <add>, %563, %cst_223 [1] : vector<2x8x32xf32> to vector<2x32xf32>
      %cst_224 = arith.constant dense<0.000000e+00> : vector<2x96xf32>
      %565 = tpu.matmul %512, %474, %cst_224 {dimension_numbers = #tpu.dot_dimension_numbers<[1], [0], [0], [1], [0, 0, 1, 1], [], []>} : vector<2x32xf32>, vector<32x96xf32>, vector<2x96xf32> -> vector<2x96xf32>
      %cst_225 = arith.constant dense<0.000000e+00> : vector<2x96xf32>
      %566 = tpu.matmul %533, %475, %cst_225 {dimension_numbers = #tpu.dot_dimension_numbers<[1], [0], [0], [1], [0, 0, 1, 1], [], []>} : vector<2x32xf32>, vector<32x96xf32>, vector<2x96xf32> -> vector<2x96xf32>
      %567 = arith.addf %565, %566 : vector<2x96xf32>
      %cst_226 = arith.constant dense<0.000000e+00> : vector<2x96xf32>
      %568 = tpu.matmul %564, %476, %cst_226 {dimension_numbers = #tpu.dot_dimension_numbers<[1], [0], [0], [1], [0, 0, 1, 1], [], []>} : vector<2x32xf32>, vector<32x96xf32>, vector<2x96xf32> -> vector<2x96xf32>
      %569 = arith.addf %567, %568 : vector<2x96xf32>
      %570 = vector.broadcast %477 : vector<1x96xf32> to vector<2x96xf32>
      %571 = arith.addf %569, %570 : vector<2x96xf32>
      %572 = vector.extract_strided_slice %571 {offsets = [0, 0], sizes = [2, 32], strides = [1, 1]} : vector<2x96xf32> to vector<2x32xf32>
      %573 = arith.negf %572 : vector<2x32xf32>
      %574 = math.exp %573 : vector<2x32xf32>
      %cst_227 = arith.constant 1.000000e+00 : f32
      %575 = vector.broadcast %cst_227 : f32 to vector<2x32xf32>
      %576 = arith.addf %575, %574 : vector<2x32xf32>
      %577 = arith.divf %575, %576 : vector<2x32xf32>
      %578 = vector.extract_strided_slice %571 {offsets = [0, 32], sizes = [2, 32], strides = [1, 1]} : vector<2x96xf32> to vector<2x32xf32>
      %579 = math.tanh %578 : vector<2x32xf32>
      %580 = vector.extract_strided_slice %571 {offsets = [0, 64], sizes = [2, 32], strides = [1, 1]} : vector<2x96xf32> to vector<2x32xf32>
      %581 = math.tanh %580 : vector<2x32xf32>
      %582 = arith.mulf %577, %579 : vector<2x32xf32>
      %cst_228 = arith.constant 1.000000e+00 : f32
      %583 = vector.broadcast %cst_228 : f32 to vector<2x32xf32>
      %584 = arith.subf %583, %577 : vector<2x32xf32>
      %585 = arith.mulf %584, %581 : vector<2x32xf32>
      %586 = arith.addf %582, %585 : vector<2x32xf32>
      %cst_229 = arith.constant 0.000000e+00 : f32
      %587 = vector.broadcast %cst_229 : f32 to vector<2x32xf32>
      %cst_230 = arith.constant 0.000000e+00 : f32
      %588 = vector.broadcast %cst_230 : f32 to vector<2x32xf32>
      %589 = vector.extract_strided_slice %560 {offsets = [0, 0], sizes = [2, 1], strides = [1, 1]} : vector<2x8xf32> to vector<2x1xf32>
      %590 = vector.extract_strided_slice %450 {offsets = [0, 0, 0], sizes = [2, 1, 128], strides = [1, 1, 1]} : vector<2x8x128xf32> to vector<2x1x128xf32>
      %591 = vector.shape_cast %590 : vector<2x1x128xf32> to vector<2x128xf32>
      %592 = vector.broadcast %589 : vector<2x1xf32> to vector<2x128xf32>
      %593 = arith.mulf %592, %591 : vector<2x128xf32>
      %594 = vector.extract_strided_slice %587 {offsets = [0, 0], sizes = [2, 1], strides = [1, 1]} : vector<2x32xf32> to vector<2x1xf32>
      %595 = vector.extract_strided_slice %478 {offsets = [0, 0], sizes = [1, 128], strides = [1, 1]} : vector<32x128xf32> to vector<1x128xf32>
      %596 = vector.broadcast %594 : vector<2x1xf32> to vector<2x128xf32>
      %597 = vector.broadcast %595 : vector<1x128xf32> to vector<2x128xf32>
      %598 = arith.mulf %596, %597 : vector<2x128xf32>
      %599 = vector.extract_strided_slice %587 {offsets = [0, 1], sizes = [2, 1], strides = [1, 1]} : vector<2x32xf32> to vector<2x1xf32>
      %600 = vector.extract_strided_slice %478 {offsets = [1, 0], sizes = [1, 128], strides = [1, 1]} : vector<32x128xf32> to vector<1x128xf32>
      %601 = vector.broadcast %599 : vector<2x1xf32> to vector<2x128xf32>
      %602 = vector.broadcast %600 : vector<1x128xf32> to vector<2x128xf32>
      %603 = arith.mulf %601, %602 : vector<2x128xf32>
      %604 = vector.extract_strided_slice %587 {offsets = [0, 2], sizes = [2, 1], strides = [1, 1]} : vector<2x32xf32> to vector<2x1xf32>
      %605 = vector.extract_strided_slice %478 {offsets = [2, 0], sizes = [1, 128], strides = [1, 1]} : vector<32x128xf32> to vector<1x128xf32>
      %606 = vector.broadcast %604 : vector<2x1xf32> to vector<2x128xf32>
      %607 = vector.broadcast %605 : vector<1x128xf32> to vector<2x128xf32>
      %608 = arith.mulf %606, %607 : vector<2x128xf32>
      %609 = vector.extract_strided_slice %587 {offsets = [0, 3], sizes = [2, 1], strides = [1, 1]} : vector<2x32xf32> to vector<2x1xf32>
      %610 = vector.extract_strided_slice %478 {offsets = [3, 0], sizes = [1, 128], strides = [1, 1]} : vector<32x128xf32> to vector<1x128xf32>
      %611 = vector.broadcast %609 : vector<2x1xf32> to vector<2x128xf32>
      %612 = vector.broadcast %610 : vector<1x128xf32> to vector<2x128xf32>
      %613 = arith.mulf %611, %612 : vector<2x128xf32>
      %614 = vector.extract_strided_slice %587 {offsets = [0, 4], sizes = [2, 1], strides = [1, 1]} : vector<2x32xf32> to vector<2x1xf32>
      %615 = vector.extract_strided_slice %478 {offsets = [4, 0], sizes = [1, 128], strides = [1, 1]} : vector<32x128xf32> to vector<1x128xf32>
      %616 = vector.broadcast %614 : vector<2x1xf32> to vector<2x128xf32>
      %617 = vector.broadcast %615 : vector<1x128xf32> to vector<2x128xf32>
      %618 = arith.mulf %616, %617 : vector<2x128xf32>
      %619 = vector.extract_strided_slice %587 {offsets = [0, 5], sizes = [2, 1], strides = [1, 1]} : vector<2x32xf32> to vector<2x1xf32>
      %620 = vector.extract_strided_slice %478 {offsets = [5, 0], sizes = [1, 128], strides = [1, 1]} : vector<32x128xf32> to vector<1x128xf32>
      %621 = vector.broadcast %619 : vector<2x1xf32> to vector<2x128xf32>
      %622 = vector.broadcast %620 : vector<1x128xf32> to vector<2x128xf32>
      %623 = arith.mulf %621, %622 : vector<2x128xf32>
      %624 = vector.extract_strided_slice %587 {offsets = [0, 6], sizes = [2, 1], strides = [1, 1]} : vector<2x32xf32> to vector<2x1xf32>
      %625 = vector.extract_strided_slice %478 {offsets = [6, 0], sizes = [1, 128], strides = [1, 1]} : vector<32x128xf32> to vector<1x128xf32>
      %626 = vector.broadcast %624 : vector<2x1xf32> to vector<2x128xf32>
      %627 = vector.broadcast %625 : vector<1x128xf32> to vector<2x128xf32>
      %628 = arith.mulf %626, %627 : vector<2x128xf32>
      %629 = vector.extract_strided_slice %587 {offsets = [0, 7], sizes = [2, 1], strides = [1, 1]} : vector<2x32xf32> to vector<2x1xf32>
      %630 = vector.extract_strided_slice %478 {offsets = [7, 0], sizes = [1, 128], strides = [1, 1]} : vector<32x128xf32> to vector<1x128xf32>
      %631 = vector.broadcast %629 : vector<2x1xf32> to vector<2x128xf32>
      %632 = vector.broadcast %630 : vector<1x128xf32> to vector<2x128xf32>
      %633 = arith.mulf %631, %632 : vector<2x128xf32>
      %634 = vector.extract_strided_slice %587 {offsets = [0, 8], sizes = [2, 1], strides = [1, 1]} : vector<2x32xf32> to vector<2x1xf32>
      %635 = vector.extract_strided_slice %478 {offsets = [8, 0], sizes = [1, 128], strides = [1, 1]} : vector<32x128xf32> to vector<1x128xf32>
      %636 = vector.broadcast %634 : vector<2x1xf32> to vector<2x128xf32>
      %637 = vector.broadcast %635 : vector<1x128xf32> to vector<2x128xf32>
      %638 = arith.mulf %636, %637 : vector<2x128xf32>
      %639 = vector.extract_strided_slice %587 {offsets = [0, 9], sizes = [2, 1], strides = [1, 1]} : vector<2x32xf32> to vector<2x1xf32>
      %640 = vector.extract_strided_slice %478 {offsets = [9, 0], sizes = [1, 128], strides = [1, 1]} : vector<32x128xf32> to vector<1x128xf32>
      %641 = vector.broadcast %639 : vector<2x1xf32> to vector<2x128xf32>
      %642 = vector.broadcast %640 : vector<1x128xf32> to vector<2x128xf32>
      %643 = arith.mulf %641, %642 : vector<2x128xf32>
      %644 = vector.extract_strided_slice %587 {offsets = [0, 10], sizes = [2, 1], strides = [1, 1]} : vector<2x32xf32> to vector<2x1xf32>
      %645 = vector.extract_strided_slice %478 {offsets = [10, 0], sizes = [1, 128], strides = [1, 1]} : vector<32x128xf32> to vector<1x128xf32>
      %646 = vector.broadcast %644 : vector<2x1xf32> to vector<2x128xf32>
      %647 = vector.broadcast %645 : vector<1x128xf32> to vector<2x128xf32>
      %648 = arith.mulf %646, %647 : vector<2x128xf32>
      %649 = vector.extract_strided_slice %587 {offsets = [0, 11], sizes = [2, 1], strides = [1, 1]} : vector<2x32xf32> to vector<2x1xf32>
      %650 = vector.extract_strided_slice %478 {offsets = [11, 0], sizes = [1, 128], strides = [1, 1]} : vector<32x128xf32> to vector<1x128xf32>
      %651 = vector.broadcast %649 : vector<2x1xf32> to vector<2x128xf32>
      %652 = vector.broadcast %650 : vector<1x128xf32> to vector<2x128xf32>
      %653 = arith.mulf %651, %652 : vector<2x128xf32>
      %654 = vector.extract_strided_slice %587 {offsets = [0, 12], sizes = [2, 1], strides = [1, 1]} : vector<2x32xf32> to vector<2x1xf32>
      %655 = vector.extract_strided_slice %478 {offsets = [12, 0], sizes = [1, 128], strides = [1, 1]} : vector<32x128xf32> to vector<1x128xf32>
      %656 = vector.broadcast %654 : vector<2x1xf32> to vector<2x128xf32>
      %657 = vector.broadcast %655 : vector<1x128xf32> to vector<2x128xf32>
      %658 = arith.mulf %656, %657 : vector<2x128xf32>
      %659 = vector.extract_strided_slice %587 {offsets = [0, 13], sizes = [2, 1], strides = [1, 1]} : vector<2x32xf32> to vector<2x1xf32>
      %660 = vector.extract_strided_slice %478 {offsets = [13, 0], sizes = [1, 128], strides = [1, 1]} : vector<32x128xf32> to vector<1x128xf32>
      %661 = vector.broadcast %659 : vector<2x1xf32> to vector<2x128xf32>
      %662 = vector.broadcast %660 : vector<1x128xf32> to vector<2x128xf32>
      %663 = arith.mulf %661, %662 : vector<2x128xf32>
      %664 = vector.extract_strided_slice %587 {offsets = [0, 14], sizes = [2, 1], strides = [1, 1]} : vector<2x32xf32> to vector<2x1xf32>
      %665 = vector.extract_strided_slice %478 {offsets = [14, 0], sizes = [1, 128], strides = [1, 1]} : vector<32x128xf32> to vector<1x128xf32>
      %666 = vector.broadcast %664 : vector<2x1xf32> to vector<2x128xf32>
      %667 = vector.broadcast %665 : vector<1x128xf32> to vector<2x128xf32>
      %668 = arith.mulf %666, %667 : vector<2x128xf32>
      %669 = vector.extract_strided_slice %587 {offsets = [0, 15], sizes = [2, 1], strides = [1, 1]} : vector<2x32xf32> to vector<2x1xf32>
      %670 = vector.extract_strided_slice %478 {offsets = [15, 0], sizes = [1, 128], strides = [1, 1]} : vector<32x128xf32> to vector<1x128xf32>
      %671 = vector.broadcast %669 : vector<2x1xf32> to vector<2x128xf32>
      %672 = vector.broadcast %670 : vector<1x128xf32> to vector<2x128xf32>
      %673 = arith.mulf %671, %672 : vector<2x128xf32>
      %674 = vector.extract_strided_slice %587 {offsets = [0, 16], sizes = [2, 1], strides = [1, 1]} : vector<2x32xf32> to vector<2x1xf32>
      %675 = vector.extract_strided_slice %478 {offsets = [16, 0], sizes = [1, 128], strides = [1, 1]} : vector<32x128xf32> to vector<1x128xf32>
      %676 = vector.broadcast %674 : vector<2x1xf32> to vector<2x128xf32>
      %677 = vector.broadcast %675 : vector<1x128xf32> to vector<2x128xf32>
      %678 = arith.mulf %676, %677 : vector<2x128xf32>
      %679 = vector.extract_strided_slice %587 {offsets = [0, 17], sizes = [2, 1], strides = [1, 1]} : vector<2x32xf32> to vector<2x1xf32>
      %680 = vector.extract_strided_slice %478 {offsets = [17, 0], sizes = [1, 128], strides = [1, 1]} : vector<32x128xf32> to vector<1x128xf32>
      %681 = vector.broadcast %679 : vector<2x1xf32> to vector<2x128xf32>
      %682 = vector.broadcast %680 : vector<1x128xf32> to vector<2x128xf32>
      %683 = arith.mulf %681, %682 : vector<2x128xf32>
      %684 = vector.extract_strided_slice %587 {offsets = [0, 18], sizes = [2, 1], strides = [1, 1]} : vector<2x32xf32> to vector<2x1xf32>
      %685 = vector.extract_strided_slice %478 {offsets = [18, 0], sizes = [1, 128], strides = [1, 1]} : vector<32x128xf32> to vector<1x128xf32>
      %686 = vector.broadcast %684 : vector<2x1xf32> to vector<2x128xf32>
      %687 = vector.broadcast %685 : vector<1x128xf32> to vector<2x128xf32>
      %688 = arith.mulf %686, %687 : vector<2x128xf32>
      %689 = vector.extract_strided_slice %587 {offsets = [0, 19], sizes = [2, 1], strides = [1, 1]} : vector<2x32xf32> to vector<2x1xf32>
      %690 = vector.extract_strided_slice %478 {offsets = [19, 0], sizes = [1, 128], strides = [1, 1]} : vector<32x128xf32> to vector<1x128xf32>
      %691 = vector.broadcast %689 : vector<2x1xf32> to vector<2x128xf32>
      %692 = vector.broadcast %690 : vector<1x128xf32> to vector<2x128xf32>
      %693 = arith.mulf %691, %692 : vector<2x128xf32>
      %694 = vector.extract_strided_slice %587 {offsets = [0, 20], sizes = [2, 1], strides = [1, 1]} : vector<2x32xf32> to vector<2x1xf32>
      %695 = vector.extract_strided_slice %478 {offsets = [20, 0], sizes = [1, 128], strides = [1, 1]} : vector<32x128xf32> to vector<1x128xf32>
      %696 = vector.broadcast %694 : vector<2x1xf32> to vector<2x128xf32>
      %697 = vector.broadcast %695 : vector<1x128xf32> to vector<2x128xf32>
      %698 = arith.mulf %696, %697 : vector<2x128xf32>
      %699 = vector.extract_strided_slice %587 {offsets = [0, 21], sizes = [2, 1], strides = [1, 1]} : vector<2x32xf32> to vector<2x1xf32>
      %700 = vector.extract_strided_slice %478 {offsets = [21, 0], sizes = [1, 128], strides = [1, 1]} : vector<32x128xf32> to vector<1x128xf32>
      %701 = vector.broadcast %699 : vector<2x1xf32> to vector<2x128xf32>
      %702 = vector.broadcast %700 : vector<1x128xf32> to vector<2x128xf32>
      %703 = arith.mulf %701, %702 : vector<2x128xf32>
      %704 = vector.extract_strided_slice %587 {offsets = [0, 22], sizes = [2, 1], strides = [1, 1]} : vector<2x32xf32> to vector<2x1xf32>
      %705 = vector.extract_strided_slice %478 {offsets = [22, 0], sizes = [1, 128], strides = [1, 1]} : vector<32x128xf32> to vector<1x128xf32>
      %706 = vector.broadcast %704 : vector<2x1xf32> to vector<2x128xf32>
      %707 = vector.broadcast %705 : vector<1x128xf32> to vector<2x128xf32>
      %708 = arith.mulf %706, %707 : vector<2x128xf32>
      %709 = vector.extract_strided_slice %587 {offsets = [0, 23], sizes = [2, 1], strides = [1, 1]} : vector<2x32xf32> to vector<2x1xf32>
      %710 = vector.extract_strided_slice %478 {offsets = [23, 0], sizes = [1, 128], strides = [1, 1]} : vector<32x128xf32> to vector<1x128xf32>
      %711 = vector.broadcast %709 : vector<2x1xf32> to vector<2x128xf32>
      %712 = vector.broadcast %710 : vector<1x128xf32> to vector<2x128xf32>
      %713 = arith.mulf %711, %712 : vector<2x128xf32>
      %714 = vector.extract_strided_slice %587 {offsets = [0, 24], sizes = [2, 1], strides = [1, 1]} : vector<2x32xf32> to vector<2x1xf32>
      %715 = vector.extract_strided_slice %478 {offsets = [24, 0], sizes = [1, 128], strides = [1, 1]} : vector<32x128xf32> to vector<1x128xf32>
      %716 = vector.broadcast %714 : vector<2x1xf32> to vector<2x128xf32>
      %717 = vector.broadcast %715 : vector<1x128xf32> to vector<2x128xf32>
      %718 = arith.mulf %716, %717 : vector<2x128xf32>
      %719 = vector.extract_strided_slice %587 {offsets = [0, 25], sizes = [2, 1], strides = [1, 1]} : vector<2x32xf32> to vector<2x1xf32>
      %720 = vector.extract_strided_slice %478 {offsets = [25, 0], sizes = [1, 128], strides = [1, 1]} : vector<32x128xf32> to vector<1x128xf32>
      %721 = vector.broadcast %719 : vector<2x1xf32> to vector<2x128xf32>
      %722 = vector.broadcast %720 : vector<1x128xf32> to vector<2x128xf32>
      %723 = arith.mulf %721, %722 : vector<2x128xf32>
      %724 = vector.extract_strided_slice %587 {offsets = [0, 26], sizes = [2, 1], strides = [1, 1]} : vector<2x32xf32> to vector<2x1xf32>
      %725 = vector.extract_strided_slice %478 {offsets = [26, 0], sizes = [1, 128], strides = [1, 1]} : vector<32x128xf32> to vector<1x128xf32>
      %726 = vector.broadcast %724 : vector<2x1xf32> to vector<2x128xf32>
      %727 = vector.broadcast %725 : vector<1x128xf32> to vector<2x128xf32>
      %728 = arith.mulf %726, %727 : vector<2x128xf32>
      %729 = vector.extract_strided_slice %587 {offsets = [0, 27], sizes = [2, 1], strides = [1, 1]} : vector<2x32xf32> to vector<2x1xf32>
      %730 = vector.extract_strided_slice %478 {offsets = [27, 0], sizes = [1, 128], strides = [1, 1]} : vector<32x128xf32> to vector<1x128xf32>
      %731 = vector.broadcast %729 : vector<2x1xf32> to vector<2x128xf32>
      %732 = vector.broadcast %730 : vector<1x128xf32> to vector<2x128xf32>
      %733 = arith.mulf %731, %732 : vector<2x128xf32>
      %734 = vector.extract_strided_slice %587 {offsets = [0, 28], sizes = [2, 1], strides = [1, 1]} : vector<2x32xf32> to vector<2x1xf32>
      %735 = vector.extract_strided_slice %478 {offsets = [28, 0], sizes = [1, 128], strides = [1, 1]} : vector<32x128xf32> to vector<1x128xf32>
      %736 = vector.broadcast %734 : vector<2x1xf32> to vector<2x128xf32>
      %737 = vector.broadcast %735 : vector<1x128xf32> to vector<2x128xf32>
      %738 = arith.mulf %736, %737 : vector<2x128xf32>
      %739 = vector.extract_strided_slice %587 {offsets = [0, 29], sizes = [2, 1], strides = [1, 1]} : vector<2x32xf32> to vector<2x1xf32>
      %740 = vector.extract_strided_slice %478 {offsets = [29, 0], sizes = [1, 128], strides = [1, 1]} : vector<32x128xf32> to vector<1x128xf32>
      %741 = vector.broadcast %739 : vector<2x1xf32> to vector<2x128xf32>
      %742 = vector.broadcast %740 : vector<1x128xf32> to vector<2x128xf32>
      %743 = arith.mulf %741, %742 : vector<2x128xf32>
      %744 = vector.extract_strided_slice %587 {offsets = [0, 30], sizes = [2, 1], strides = [1, 1]} : vector<2x32xf32> to vector<2x1xf32>
      %745 = vector.extract_strided_slice %478 {offsets = [30, 0], sizes = [1, 128], strides = [1, 1]} : vector<32x128xf32> to vector<1x128xf32>
      %746 = vector.broadcast %744 : vector<2x1xf32> to vector<2x128xf32>
      %747 = vector.broadcast %745 : vector<1x128xf32> to vector<2x128xf32>
      %748 = arith.mulf %746, %747 : vector<2x128xf32>
      %749 = vector.extract_strided_slice %587 {offsets = [0, 31], sizes = [2, 1], strides = [1, 1]} : vector<2x32xf32> to vector<2x1xf32>
      %750 = vector.extract_strided_slice %478 {offsets = [31, 0], sizes = [1, 128], strides = [1, 1]} : vector<32x128xf32> to vector<1x128xf32>
      %751 = vector.broadcast %749 : vector<2x1xf32> to vector<2x128xf32>
      %752 = vector.broadcast %750 : vector<1x128xf32> to vector<2x128xf32>
      %753 = arith.mulf %751, %752 : vector<2x128xf32>
      %754 = arith.addf %598, %603 : vector<2x128xf32>
      %755 = arith.addf %608, %613 : vector<2x128xf32>
      %756 = arith.addf %618, %623 : vector<2x128xf32>
      %757 = arith.addf %628, %633 : vector<2x128xf32>
      %758 = arith.addf %638, %643 : vector<2x128xf32>
      %759 = arith.addf %648, %653 : vector<2x128xf32>
      %760 = arith.addf %658, %663 : vector<2x128xf32>
      %761 = arith.addf %668, %673 : vector<2x128xf32>
      %762 = arith.addf %678, %683 : vector<2x128xf32>
      %763 = arith.addf %688, %693 : vector<2x128xf32>
      %764 = arith.addf %698, %703 : vector<2x128xf32>
      %765 = arith.addf %708, %713 : vector<2x128xf32>
      %766 = arith.addf %718, %723 : vector<2x128xf32>
      %767 = arith.addf %728, %733 : vector<2x128xf32>
      %768 = arith.addf %738, %743 : vector<2x128xf32>
      %769 = arith.addf %748, %753 : vector<2x128xf32>
      %770 = arith.addf %754, %755 : vector<2x128xf32>
      %771 = arith.addf %756, %757 : vector<2x128xf32>
      %772 = arith.addf %758, %759 : vector<2x128xf32>
      %773 = arith.addf %760, %761 : vector<2x128xf32>
      %774 = arith.addf %762, %763 : vector<2x128xf32>
      %775 = arith.addf %764, %765 : vector<2x128xf32>
      %776 = arith.addf %766, %767 : vector<2x128xf32>
      %777 = arith.addf %768, %769 : vector<2x128xf32>
      %778 = arith.addf %770, %771 : vector<2x128xf32>
      %779 = arith.addf %772, %773 : vector<2x128xf32>
      %780 = arith.addf %774, %775 : vector<2x128xf32>
      %781 = arith.addf %776, %777 : vector<2x128xf32>
      %782 = arith.addf %778, %779 : vector<2x128xf32>
      %783 = arith.addf %780, %781 : vector<2x128xf32>
      %784 = arith.addf %782, %783 : vector<2x128xf32>
      %785 = arith.addf %593, %784 : vector<2x128xf32>
      %786 = vector.broadcast %479 : vector<1x128xf32> to vector<2x128xf32>
      %787 = arith.addf %785, %786 : vector<2x128xf32>
      %788 = arith.negf %787 : vector<2x128xf32>
      %789 = math.exp %788 : vector<2x128xf32>
      %cst_231 = arith.constant 1.000000e+00 : f32
      %790 = vector.broadcast %cst_231 : f32 to vector<2x128xf32>
      %791 = arith.addf %790, %789 : vector<2x128xf32>
      %792 = arith.divf %790, %791 : vector<2x128xf32>
      %793 = math.tanh %787 : vector<2x128xf32>
      %794 = vector.extract_strided_slice %792 {offsets = [0, 0], sizes = [2, 32], strides = [1, 1]} : vector<2x128xf32> to vector<2x32xf32>
      %795 = vector.extract_strided_slice %792 {offsets = [0, 32], sizes = [2, 32], strides = [1, 1]} : vector<2x128xf32> to vector<2x32xf32>
      %796 = vector.extract_strided_slice %793 {offsets = [0, 64], sizes = [2, 32], strides = [1, 1]} : vector<2x128xf32> to vector<2x32xf32>
      %797 = vector.extract_strided_slice %792 {offsets = [0, 96], sizes = [2, 32], strides = [1, 1]} : vector<2x128xf32> to vector<2x32xf32>
      %798 = arith.mulf %795, %588 : vector<2x32xf32>
      %799 = arith.mulf %794, %796 : vector<2x32xf32>
      %800 = arith.addf %798, %799 : vector<2x32xf32>
      %801 = math.tanh %800 : vector<2x32xf32>
      %802 = arith.mulf %797, %801 : vector<2x32xf32>
      %803 = vector.extract_strided_slice %560 {offsets = [0, 1], sizes = [2, 1], strides = [1, 1]} : vector<2x8xf32> to vector<2x1xf32>
      %804 = vector.extract_strided_slice %450 {offsets = [0, 1, 0], sizes = [2, 1, 128], strides = [1, 1, 1]} : vector<2x8x128xf32> to vector<2x1x128xf32>
      %805 = vector.shape_cast %804 : vector<2x1x128xf32> to vector<2x128xf32>
      %806 = vector.broadcast %803 : vector<2x1xf32> to vector<2x128xf32>
      %807 = arith.mulf %806, %805 : vector<2x128xf32>
      %808 = vector.extract_strided_slice %802 {offsets = [0, 0], sizes = [2, 1], strides = [1, 1]} : vector<2x32xf32> to vector<2x1xf32>
      %809 = vector.extract_strided_slice %478 {offsets = [0, 0], sizes = [1, 128], strides = [1, 1]} : vector<32x128xf32> to vector<1x128xf32>
      %810 = vector.broadcast %808 : vector<2x1xf32> to vector<2x128xf32>
      %811 = vector.broadcast %809 : vector<1x128xf32> to vector<2x128xf32>
      %812 = arith.mulf %810, %811 : vector<2x128xf32>
      %813 = vector.extract_strided_slice %802 {offsets = [0, 1], sizes = [2, 1], strides = [1, 1]} : vector<2x32xf32> to vector<2x1xf32>
      %814 = vector.extract_strided_slice %478 {offsets = [1, 0], sizes = [1, 128], strides = [1, 1]} : vector<32x128xf32> to vector<1x128xf32>
      %815 = vector.broadcast %813 : vector<2x1xf32> to vector<2x128xf32>
      %816 = vector.broadcast %814 : vector<1x128xf32> to vector<2x128xf32>
      %817 = arith.mulf %815, %816 : vector<2x128xf32>
      %818 = vector.extract_strided_slice %802 {offsets = [0, 2], sizes = [2, 1], strides = [1, 1]} : vector<2x32xf32> to vector<2x1xf32>
      %819 = vector.extract_strided_slice %478 {offsets = [2, 0], sizes = [1, 128], strides = [1, 1]} : vector<32x128xf32> to vector<1x128xf32>
      %820 = vector.broadcast %818 : vector<2x1xf32> to vector<2x128xf32>
      %821 = vector.broadcast %819 : vector<1x128xf32> to vector<2x128xf32>
      %822 = arith.mulf %820, %821 : vector<2x128xf32>
      %823 = vector.extract_strided_slice %802 {offsets = [0, 3], sizes = [2, 1], strides = [1, 1]} : vector<2x32xf32> to vector<2x1xf32>
      %824 = vector.extract_strided_slice %478 {offsets = [3, 0], sizes = [1, 128], strides = [1, 1]} : vector<32x128xf32> to vector<1x128xf32>
      %825 = vector.broadcast %823 : vector<2x1xf32> to vector<2x128xf32>
      %826 = vector.broadcast %824 : vector<1x128xf32> to vector<2x128xf32>
      %827 = arith.mulf %825, %826 : vector<2x128xf32>
      %828 = vector.extract_strided_slice %802 {offsets = [0, 4], sizes = [2, 1], strides = [1, 1]} : vector<2x32xf32> to vector<2x1xf32>
      %829 = vector.extract_strided_slice %478 {offsets = [4, 0], sizes = [1, 128], strides = [1, 1]} : vector<32x128xf32> to vector<1x128xf32>
      %830 = vector.broadcast %828 : vector<2x1xf32> to vector<2x128xf32>
      %831 = vector.broadcast %829 : vector<1x128xf32> to vector<2x128xf32>
      %832 = arith.mulf %830, %831 : vector<2x128xf32>
      %833 = vector.extract_strided_slice %802 {offsets = [0, 5], sizes = [2, 1], strides = [1, 1]} : vector<2x32xf32> to vector<2x1xf32>
      %834 = vector.extract_strided_slice %478 {offsets = [5, 0], sizes = [1, 128], strides = [1, 1]} : vector<32x128xf32> to vector<1x128xf32>
      %835 = vector.broadcast %833 : vector<2x1xf32> to vector<2x128xf32>
      %836 = vector.broadcast %834 : vector<1x128xf32> to vector<2x128xf32>
      %837 = arith.mulf %835, %836 : vector<2x128xf32>
      %838 = vector.extract_strided_slice %802 {offsets = [0, 6], sizes = [2, 1], strides = [1, 1]} : vector<2x32xf32> to vector<2x1xf32>
      %839 = vector.extract_strided_slice %478 {offsets = [6, 0], sizes = [1, 128], strides = [1, 1]} : vector<32x128xf32> to vector<1x128xf32>
      %840 = vector.broadcast %838 : vector<2x1xf32> to vector<2x128xf32>
      %841 = vector.broadcast %839 : vector<1x128xf32> to vector<2x128xf32>
      %842 = arith.mulf %840, %841 : vector<2x128xf32>
      %843 = vector.extract_strided_slice %802 {offsets = [0, 7], sizes = [2, 1], strides = [1, 1]} : vector<2x32xf32> to vector<2x1xf32>
      %844 = vector.extract_strided_slice %478 {offsets = [7, 0], sizes = [1, 128], strides = [1, 1]} : vector<32x128xf32> to vector<1x128xf32>
      %845 = vector.broadcast %843 : vector<2x1xf32> to vector<2x128xf32>
      %846 = vector.broadcast %844 : vector<1x128xf32> to vector<2x128xf32>
      %847 = arith.mulf %845, %846 : vector<2x128xf32>
      %848 = vector.extract_strided_slice %802 {offsets = [0, 8], sizes = [2, 1], strides = [1, 1]} : vector<2x32xf32> to vector<2x1xf32>
      %849 = vector.extract_strided_slice %478 {offsets = [8, 0], sizes = [1, 128], strides = [1, 1]} : vector<32x128xf32> to vector<1x128xf32>
      %850 = vector.broadcast %848 : vector<2x1xf32> to vector<2x128xf32>
      %851 = vector.broadcast %849 : vector<1x128xf32> to vector<2x128xf32>
      %852 = arith.mulf %850, %851 : vector<2x128xf32>
      %853 = vector.extract_strided_slice %802 {offsets = [0, 9], sizes = [2, 1], strides = [1, 1]} : vector<2x32xf32> to vector<2x1xf32>
      %854 = vector.extract_strided_slice %478 {offsets = [9, 0], sizes = [1, 128], strides = [1, 1]} : vector<32x128xf32> to vector<1x128xf32>
      %855 = vector.broadcast %853 : vector<2x1xf32> to vector<2x128xf32>
      %856 = vector.broadcast %854 : vector<1x128xf32> to vector<2x128xf32>
      %857 = arith.mulf %855, %856 : vector<2x128xf32>
      %858 = vector.extract_strided_slice %802 {offsets = [0, 10], sizes = [2, 1], strides = [1, 1]} : vector<2x32xf32> to vector<2x1xf32>
      %859 = vector.extract_strided_slice %478 {offsets = [10, 0], sizes = [1, 128], strides = [1, 1]} : vector<32x128xf32> to vector<1x128xf32>
      %860 = vector.broadcast %858 : vector<2x1xf32> to vector<2x128xf32>
      %861 = vector.broadcast %859 : vector<1x128xf32> to vector<2x128xf32>
      %862 = arith.mulf %860, %861 : vector<2x128xf32>
      %863 = vector.extract_strided_slice %802 {offsets = [0, 11], sizes = [2, 1], strides = [1, 1]} : vector<2x32xf32> to vector<2x1xf32>
      %864 = vector.extract_strided_slice %478 {offsets = [11, 0], sizes = [1, 128], strides = [1, 1]} : vector<32x128xf32> to vector<1x128xf32>
      %865 = vector.broadcast %863 : vector<2x1xf32> to vector<2x128xf32>
      %866 = vector.broadcast %864 : vector<1x128xf32> to vector<2x128xf32>
      %867 = arith.mulf %865, %866 : vector<2x128xf32>
      %868 = vector.extract_strided_slice %802 {offsets = [0, 12], sizes = [2, 1], strides = [1, 1]} : vector<2x32xf32> to vector<2x1xf32>
      %869 = vector.extract_strided_slice %478 {offsets = [12, 0], sizes = [1, 128], strides = [1, 1]} : vector<32x128xf32> to vector<1x128xf32>
      %870 = vector.broadcast %868 : vector<2x1xf32> to vector<2x128xf32>
      %871 = vector.broadcast %869 : vector<1x128xf32> to vector<2x128xf32>
      %872 = arith.mulf %870, %871 : vector<2x128xf32>
      %873 = vector.extract_strided_slice %802 {offsets = [0, 13], sizes = [2, 1], strides = [1, 1]} : vector<2x32xf32> to vector<2x1xf32>
      %874 = vector.extract_strided_slice %478 {offsets = [13, 0], sizes = [1, 128], strides = [1, 1]} : vector<32x128xf32> to vector<1x128xf32>
      %875 = vector.broadcast %873 : vector<2x1xf32> to vector<2x128xf32>
      %876 = vector.broadcast %874 : vector<1x128xf32> to vector<2x128xf32>
      %877 = arith.mulf %875, %876 : vector<2x128xf32>
      %878 = vector.extract_strided_slice %802 {offsets = [0, 14], sizes = [2, 1], strides = [1, 1]} : vector<2x32xf32> to vector<2x1xf32>
      %879 = vector.extract_strided_slice %478 {offsets = [14, 0], sizes = [1, 128], strides = [1, 1]} : vector<32x128xf32> to vector<1x128xf32>
      %880 = vector.broadcast %878 : vector<2x1xf32> to vector<2x128xf32>
      %881 = vector.broadcast %879 : vector<1x128xf32> to vector<2x128xf32>
      %882 = arith.mulf %880, %881 : vector<2x128xf32>
      %883 = vector.extract_strided_slice %802 {offsets = [0, 15], sizes = [2, 1], strides = [1, 1]} : vector<2x32xf32> to vector<2x1xf32>
      %884 = vector.extract_strided_slice %478 {offsets = [15, 0], sizes = [1, 128], strides = [1, 1]} : vector<32x128xf32> to vector<1x128xf32>
      %885 = vector.broadcast %883 : vector<2x1xf32> to vector<2x128xf32>
      %886 = vector.broadcast %884 : vector<1x128xf32> to vector<2x128xf32>
      %887 = arith.mulf %885, %886 : vector<2x128xf32>
      %888 = vector.extract_strided_slice %802 {offsets = [0, 16], sizes = [2, 1], strides = [1, 1]} : vector<2x32xf32> to vector<2x1xf32>
      %889 = vector.extract_strided_slice %478 {offsets = [16, 0], sizes = [1, 128], strides = [1, 1]} : vector<32x128xf32> to vector<1x128xf32>
      %890 = vector.broadcast %888 : vector<2x1xf32> to vector<2x128xf32>
      %891 = vector.broadcast %889 : vector<1x128xf32> to vector<2x128xf32>
      %892 = arith.mulf %890, %891 : vector<2x128xf32>
      %893 = vector.extract_strided_slice %802 {offsets = [0, 17], sizes = [2, 1], strides = [1, 1]} : vector<2x32xf32> to vector<2x1xf32>
      %894 = vector.extract_strided_slice %478 {offsets = [17, 0], sizes = [1, 128], strides = [1, 1]} : vector<32x128xf32> to vector<1x128xf32>
      %895 = vector.broadcast %893 : vector<2x1xf32> to vector<2x128xf32>
      %896 = vector.broadcast %894 : vector<1x128xf32> to vector<2x128xf32>
      %897 = arith.mulf %895, %896 : vector<2x128xf32>
      %898 = vector.extract_strided_slice %802 {offsets = [0, 18], sizes = [2, 1], strides = [1, 1]} : vector<2x32xf32> to vector<2x1xf32>
      %899 = vector.extract_strided_slice %478 {offsets = [18, 0], sizes = [1, 128], strides = [1, 1]} : vector<32x128xf32> to vector<1x128xf32>
      %900 = vector.broadcast %898 : vector<2x1xf32> to vector<2x128xf32>
      %901 = vector.broadcast %899 : vector<1x128xf32> to vector<2x128xf32>
      %902 = arith.mulf %900, %901 : vector<2x128xf32>
      %903 = vector.extract_strided_slice %802 {offsets = [0, 19], sizes = [2, 1], strides = [1, 1]} : vector<2x32xf32> to vector<2x1xf32>
      %904 = vector.extract_strided_slice %478 {offsets = [19, 0], sizes = [1, 128], strides = [1, 1]} : vector<32x128xf32> to vector<1x128xf32>
      %905 = vector.broadcast %903 : vector<2x1xf32> to vector<2x128xf32>
      %906 = vector.broadcast %904 : vector<1x128xf32> to vector<2x128xf32>
      %907 = arith.mulf %905, %906 : vector<2x128xf32>
      %908 = vector.extract_strided_slice %802 {offsets = [0, 20], sizes = [2, 1], strides = [1, 1]} : vector<2x32xf32> to vector<2x1xf32>
      %909 = vector.extract_strided_slice %478 {offsets = [20, 0], sizes = [1, 128], strides = [1, 1]} : vector<32x128xf32> to vector<1x128xf32>
      %910 = vector.broadcast %908 : vector<2x1xf32> to vector<2x128xf32>
      %911 = vector.broadcast %909 : vector<1x128xf32> to vector<2x128xf32>
      %912 = arith.mulf %910, %911 : vector<2x128xf32>
      %913 = vector.extract_strided_slice %802 {offsets = [0, 21], sizes = [2, 1], strides = [1, 1]} : vector<2x32xf32> to vector<2x1xf32>
      %914 = vector.extract_strided_slice %478 {offsets = [21, 0], sizes = [1, 128], strides = [1, 1]} : vector<32x128xf32> to vector<1x128xf32>
      %915 = vector.broadcast %913 : vector<2x1xf32> to vector<2x128xf32>
      %916 = vector.broadcast %914 : vector<1x128xf32> to vector<2x128xf32>
      %917 = arith.mulf %915, %916 : vector<2x128xf32>
      %918 = vector.extract_strided_slice %802 {offsets = [0, 22], sizes = [2, 1], strides = [1, 1]} : vector<2x32xf32> to vector<2x1xf32>
      %919 = vector.extract_strided_slice %478 {offsets = [22, 0], sizes = [1, 128], strides = [1, 1]} : vector<32x128xf32> to vector<1x128xf32>
      %920 = vector.broadcast %918 : vector<2x1xf32> to vector<2x128xf32>
      %921 = vector.broadcast %919 : vector<1x128xf32> to vector<2x128xf32>
      %922 = arith.mulf %920, %921 : vector<2x128xf32>
      %923 = vector.extract_strided_slice %802 {offsets = [0, 23], sizes = [2, 1], strides = [1, 1]} : vector<2x32xf32> to vector<2x1xf32>
      %924 = vector.extract_strided_slice %478 {offsets = [23, 0], sizes = [1, 128], strides = [1, 1]} : vector<32x128xf32> to vector<1x128xf32>
      %925 = vector.broadcast %923 : vector<2x1xf32> to vector<2x128xf32>
      %926 = vector.broadcast %924 : vector<1x128xf32> to vector<2x128xf32>
      %927 = arith.mulf %925, %926 : vector<2x128xf32>
      %928 = vector.extract_strided_slice %802 {offsets = [0, 24], sizes = [2, 1], strides = [1, 1]} : vector<2x32xf32> to vector<2x1xf32>
      %929 = vector.extract_strided_slice %478 {offsets = [24, 0], sizes = [1, 128], strides = [1, 1]} : vector<32x128xf32> to vector<1x128xf32>
      %930 = vector.broadcast %928 : vector<2x1xf32> to vector<2x128xf32>
      %931 = vector.broadcast %929 : vector<1x128xf32> to vector<2x128xf32>
      %932 = arith.mulf %930, %931 : vector<2x128xf32>
      %933 = vector.extract_strided_slice %802 {offsets = [0, 25], sizes = [2, 1], strides = [1, 1]} : vector<2x32xf32> to vector<2x1xf32>
      %934 = vector.extract_strided_slice %478 {offsets = [25, 0], sizes = [1, 128], strides = [1, 1]} : vector<32x128xf32> to vector<1x128xf32>
      %935 = vector.broadcast %933 : vector<2x1xf32> to vector<2x128xf32>
      %936 = vector.broadcast %934 : vector<1x128xf32> to vector<2x128xf32>
      %937 = arith.mulf %935, %936 : vector<2x128xf32>
      %938 = vector.extract_strided_slice %802 {offsets = [0, 26], sizes = [2, 1], strides = [1, 1]} : vector<2x32xf32> to vector<2x1xf32>
      %939 = vector.extract_strided_slice %478 {offsets = [26, 0], sizes = [1, 128], strides = [1, 1]} : vector<32x128xf32> to vector<1x128xf32>
      %940 = vector.broadcast %938 : vector<2x1xf32> to vector<2x128xf32>
      %941 = vector.broadcast %939 : vector<1x128xf32> to vector<2x128xf32>
      %942 = arith.mulf %940, %941 : vector<2x128xf32>
      %943 = vector.extract_strided_slice %802 {offsets = [0, 27], sizes = [2, 1], strides = [1, 1]} : vector<2x32xf32> to vector<2x1xf32>
      %944 = vector.extract_strided_slice %478 {offsets = [27, 0], sizes = [1, 128], strides = [1, 1]} : vector<32x128xf32> to vector<1x128xf32>
      %945 = vector.broadcast %943 : vector<2x1xf32> to vector<2x128xf32>
      %946 = vector.broadcast %944 : vector<1x128xf32> to vector<2x128xf32>
      %947 = arith.mulf %945, %946 : vector<2x128xf32>
      %948 = vector.extract_strided_slice %802 {offsets = [0, 28], sizes = [2, 1], strides = [1, 1]} : vector<2x32xf32> to vector<2x1xf32>
      %949 = vector.extract_strided_slice %478 {offsets = [28, 0], sizes = [1, 128], strides = [1, 1]} : vector<32x128xf32> to vector<1x128xf32>
      %950 = vector.broadcast %948 : vector<2x1xf32> to vector<2x128xf32>
      %951 = vector.broadcast %949 : vector<1x128xf32> to vector<2x128xf32>
      %952 = arith.mulf %950, %951 : vector<2x128xf32>
      %953 = vector.extract_strided_slice %802 {offsets = [0, 29], sizes = [2, 1], strides = [1, 1]} : vector<2x32xf32> to vector<2x1xf32>
      %954 = vector.extract_strided_slice %478 {offsets = [29, 0], sizes = [1, 128], strides = [1, 1]} : vector<32x128xf32> to vector<1x128xf32>
      %955 = vector.broadcast %953 : vector<2x1xf32> to vector<2x128xf32>
      %956 = vector.broadcast %954 : vector<1x128xf32> to vector<2x128xf32>
      %957 = arith.mulf %955, %956 : vector<2x128xf32>
      %958 = vector.extract_strided_slice %802 {offsets = [0, 30], sizes = [2, 1], strides = [1, 1]} : vector<2x32xf32> to vector<2x1xf32>
      %959 = vector.extract_strided_slice %478 {offsets = [30, 0], sizes = [1, 128], strides = [1, 1]} : vector<32x128xf32> to vector<1x128xf32>
      %960 = vector.broadcast %958 : vector<2x1xf32> to vector<2x128xf32>
      %961 = vector.broadcast %959 : vector<1x128xf32> to vector<2x128xf32>
      %962 = arith.mulf %960, %961 : vector<2x128xf32>
      %963 = vector.extract_strided_slice %802 {offsets = [0, 31], sizes = [2, 1], strides = [1, 1]} : vector<2x32xf32> to vector<2x1xf32>
      %964 = vector.extract_strided_slice %478 {offsets = [31, 0], sizes = [1, 128], strides = [1, 1]} : vector<32x128xf32> to vector<1x128xf32>
      %965 = vector.broadcast %963 : vector<2x1xf32> to vector<2x128xf32>
      %966 = vector.broadcast %964 : vector<1x128xf32> to vector<2x128xf32>
      %967 = arith.mulf %965, %966 : vector<2x128xf32>
      %968 = arith.addf %812, %817 : vector<2x128xf32>
      %969 = arith.addf %822, %827 : vector<2x128xf32>
      %970 = arith.addf %832, %837 : vector<2x128xf32>
      %971 = arith.addf %842, %847 : vector<2x128xf32>
      %972 = arith.addf %852, %857 : vector<2x128xf32>
      %973 = arith.addf %862, %867 : vector<2x128xf32>
      %974 = arith.addf %872, %877 : vector<2x128xf32>
      %975 = arith.addf %882, %887 : vector<2x128xf32>
      %976 = arith.addf %892, %897 : vector<2x128xf32>
      %977 = arith.addf %902, %907 : vector<2x128xf32>
      %978 = arith.addf %912, %917 : vector<2x128xf32>
      %979 = arith.addf %922, %927 : vector<2x128xf32>
      %980 = arith.addf %932, %937 : vector<2x128xf32>
      %981 = arith.addf %942, %947 : vector<2x128xf32>
      %982 = arith.addf %952, %957 : vector<2x128xf32>
      %983 = arith.addf %962, %967 : vector<2x128xf32>
      %984 = arith.addf %968, %969 : vector<2x128xf32>
      %985 = arith.addf %970, %971 : vector<2x128xf32>
      %986 = arith.addf %972, %973 : vector<2x128xf32>
      %987 = arith.addf %974, %975 : vector<2x128xf32>
      %988 = arith.addf %976, %977 : vector<2x128xf32>
      %989 = arith.addf %978, %979 : vector<2x128xf32>
      %990 = arith.addf %980, %981 : vector<2x128xf32>
      %991 = arith.addf %982, %983 : vector<2x128xf32>
      %992 = arith.addf %984, %985 : vector<2x128xf32>
      %993 = arith.addf %986, %987 : vector<2x128xf32>
      %994 = arith.addf %988, %989 : vector<2x128xf32>
      %995 = arith.addf %990, %991 : vector<2x128xf32>
      %996 = arith.addf %992, %993 : vector<2x128xf32>
      %997 = arith.addf %994, %995 : vector<2x128xf32>
      %998 = arith.addf %996, %997 : vector<2x128xf32>
      %999 = arith.addf %807, %998 : vector<2x128xf32>
      %1000 = vector.broadcast %479 : vector<1x128xf32> to vector<2x128xf32>
      %1001 = arith.addf %999, %1000 : vector<2x128xf32>
      %1002 = arith.negf %1001 : vector<2x128xf32>
      %1003 = math.exp %1002 : vector<2x128xf32>
      %cst_232 = arith.constant 1.000000e+00 : f32
      %1004 = vector.broadcast %cst_232 : f32 to vector<2x128xf32>
      %1005 = arith.addf %1004, %1003 : vector<2x128xf32>
      %1006 = arith.divf %1004, %1005 : vector<2x128xf32>
      %1007 = math.tanh %1001 : vector<2x128xf32>
      %1008 = vector.extract_strided_slice %1006 {offsets = [0, 0], sizes = [2, 32], strides = [1, 1]} : vector<2x128xf32> to vector<2x32xf32>
      %1009 = vector.extract_strided_slice %1006 {offsets = [0, 32], sizes = [2, 32], strides = [1, 1]} : vector<2x128xf32> to vector<2x32xf32>
      %1010 = vector.extract_strided_slice %1007 {offsets = [0, 64], sizes = [2, 32], strides = [1, 1]} : vector<2x128xf32> to vector<2x32xf32>
      %1011 = vector.extract_strided_slice %1006 {offsets = [0, 96], sizes = [2, 32], strides = [1, 1]} : vector<2x128xf32> to vector<2x32xf32>
      %1012 = arith.mulf %1009, %800 : vector<2x32xf32>
      %1013 = arith.mulf %1008, %1010 : vector<2x32xf32>
      %1014 = arith.addf %1012, %1013 : vector<2x32xf32>
      %1015 = math.tanh %1014 : vector<2x32xf32>
      %1016 = arith.mulf %1011, %1015 : vector<2x32xf32>
      %1017 = vector.extract_strided_slice %560 {offsets = [0, 2], sizes = [2, 1], strides = [1, 1]} : vector<2x8xf32> to vector<2x1xf32>
      %1018 = vector.extract_strided_slice %450 {offsets = [0, 2, 0], sizes = [2, 1, 128], strides = [1, 1, 1]} : vector<2x8x128xf32> to vector<2x1x128xf32>
      %1019 = vector.shape_cast %1018 : vector<2x1x128xf32> to vector<2x128xf32>
      %1020 = vector.broadcast %1017 : vector<2x1xf32> to vector<2x128xf32>
      %1021 = arith.mulf %1020, %1019 : vector<2x128xf32>
      %1022 = vector.extract_strided_slice %1016 {offsets = [0, 0], sizes = [2, 1], strides = [1, 1]} : vector<2x32xf32> to vector<2x1xf32>
      %1023 = vector.extract_strided_slice %478 {offsets = [0, 0], sizes = [1, 128], strides = [1, 1]} : vector<32x128xf32> to vector<1x128xf32>
      %1024 = vector.broadcast %1022 : vector<2x1xf32> to vector<2x128xf32>
      %1025 = vector.broadcast %1023 : vector<1x128xf32> to vector<2x128xf32>
      %1026 = arith.mulf %1024, %1025 : vector<2x128xf32>
      %1027 = vector.extract_strided_slice %1016 {offsets = [0, 1], sizes = [2, 1], strides = [1, 1]} : vector<2x32xf32> to vector<2x1xf32>
      %1028 = vector.extract_strided_slice %478 {offsets = [1, 0], sizes = [1, 128], strides = [1, 1]} : vector<32x128xf32> to vector<1x128xf32>
      %1029 = vector.broadcast %1027 : vector<2x1xf32> to vector<2x128xf32>
      %1030 = vector.broadcast %1028 : vector<1x128xf32> to vector<2x128xf32>
      %1031 = arith.mulf %1029, %1030 : vector<2x128xf32>
      %1032 = vector.extract_strided_slice %1016 {offsets = [0, 2], sizes = [2, 1], strides = [1, 1]} : vector<2x32xf32> to vector<2x1xf32>
      %1033 = vector.extract_strided_slice %478 {offsets = [2, 0], sizes = [1, 128], strides = [1, 1]} : vector<32x128xf32> to vector<1x128xf32>
      %1034 = vector.broadcast %1032 : vector<2x1xf32> to vector<2x128xf32>
      %1035 = vector.broadcast %1033 : vector<1x128xf32> to vector<2x128xf32>
      %1036 = arith.mulf %1034, %1035 : vector<2x128xf32>
      %1037 = vector.extract_strided_slice %1016 {offsets = [0, 3], sizes = [2, 1], strides = [1, 1]} : vector<2x32xf32> to vector<2x1xf32>
      %1038 = vector.extract_strided_slice %478 {offsets = [3, 0], sizes = [1, 128], strides = [1, 1]} : vector<32x128xf32> to vector<1x128xf32>
      %1039 = vector.broadcast %1037 : vector<2x1xf32> to vector<2x128xf32>
      %1040 = vector.broadcast %1038 : vector<1x128xf32> to vector<2x128xf32>
      %1041 = arith.mulf %1039, %1040 : vector<2x128xf32>
      %1042 = vector.extract_strided_slice %1016 {offsets = [0, 4], sizes = [2, 1], strides = [1, 1]} : vector<2x32xf32> to vector<2x1xf32>
      %1043 = vector.extract_strided_slice %478 {offsets = [4, 0], sizes = [1, 128], strides = [1, 1]} : vector<32x128xf32> to vector<1x128xf32>
      %1044 = vector.broadcast %1042 : vector<2x1xf32> to vector<2x128xf32>
      %1045 = vector.broadcast %1043 : vector<1x128xf32> to vector<2x128xf32>
      %1046 = arith.mulf %1044, %1045 : vector<2x128xf32>
      %1047 = vector.extract_strided_slice %1016 {offsets = [0, 5], sizes = [2, 1], strides = [1, 1]} : vector<2x32xf32> to vector<2x1xf32>
      %1048 = vector.extract_strided_slice %478 {offsets = [5, 0], sizes = [1, 128], strides = [1, 1]} : vector<32x128xf32> to vector<1x128xf32>
      %1049 = vector.broadcast %1047 : vector<2x1xf32> to vector<2x128xf32>
      %1050 = vector.broadcast %1048 : vector<1x128xf32> to vector<2x128xf32>
      %1051 = arith.mulf %1049, %1050 : vector<2x128xf32>
      %1052 = vector.extract_strided_slice %1016 {offsets = [0, 6], sizes = [2, 1], strides = [1, 1]} : vector<2x32xf32> to vector<2x1xf32>
      %1053 = vector.extract_strided_slice %478 {offsets = [6, 0], sizes = [1, 128], strides = [1, 1]} : vector<32x128xf32> to vector<1x128xf32>
      %1054 = vector.broadcast %1052 : vector<2x1xf32> to vector<2x128xf32>
      %1055 = vector.broadcast %1053 : vector<1x128xf32> to vector<2x128xf32>
      %1056 = arith.mulf %1054, %1055 : vector<2x128xf32>
      %1057 = vector.extract_strided_slice %1016 {offsets = [0, 7], sizes = [2, 1], strides = [1, 1]} : vector<2x32xf32> to vector<2x1xf32>
      %1058 = vector.extract_strided_slice %478 {offsets = [7, 0], sizes = [1, 128], strides = [1, 1]} : vector<32x128xf32> to vector<1x128xf32>
      %1059 = vector.broadcast %1057 : vector<2x1xf32> to vector<2x128xf32>
      %1060 = vector.broadcast %1058 : vector<1x128xf32> to vector<2x128xf32>
      %1061 = arith.mulf %1059, %1060 : vector<2x128xf32>
      %1062 = vector.extract_strided_slice %1016 {offsets = [0, 8], sizes = [2, 1], strides = [1, 1]} : vector<2x32xf32> to vector<2x1xf32>
      %1063 = vector.extract_strided_slice %478 {offsets = [8, 0], sizes = [1, 128], strides = [1, 1]} : vector<32x128xf32> to vector<1x128xf32>
      %1064 = vector.broadcast %1062 : vector<2x1xf32> to vector<2x128xf32>
      %1065 = vector.broadcast %1063 : vector<1x128xf32> to vector<2x128xf32>
      %1066 = arith.mulf %1064, %1065 : vector<2x128xf32>
      %1067 = vector.extract_strided_slice %1016 {offsets = [0, 9], sizes = [2, 1], strides = [1, 1]} : vector<2x32xf32> to vector<2x1xf32>
      %1068 = vector.extract_strided_slice %478 {offsets = [9, 0], sizes = [1, 128], strides = [1, 1]} : vector<32x128xf32> to vector<1x128xf32>
      %1069 = vector.broadcast %1067 : vector<2x1xf32> to vector<2x128xf32>
      %1070 = vector.broadcast %1068 : vector<1x128xf32> to vector<2x128xf32>
      %1071 = arith.mulf %1069, %1070 : vector<2x128xf32>
      %1072 = vector.extract_strided_slice %1016 {offsets = [0, 10], sizes = [2, 1], strides = [1, 1]} : vector<2x32xf32> to vector<2x1xf32>
      %1073 = vector.extract_strided_slice %478 {offsets = [10, 0], sizes = [1, 128], strides = [1, 1]} : vector<32x128xf32> to vector<1x128xf32>
      %1074 = vector.broadcast %1072 : vector<2x1xf32> to vector<2x128xf32>
      %1075 = vector.broadcast %1073 : vector<1x128xf32> to vector<2x128xf32>
      %1076 = arith.mulf %1074, %1075 : vector<2x128xf32>
      %1077 = vector.extract_strided_slice %1016 {offsets = [0, 11], sizes = [2, 1], strides = [1, 1]} : vector<2x32xf32> to vector<2x1xf32>
      %1078 = vector.extract_strided_slice %478 {offsets = [11, 0], sizes = [1, 128], strides = [1, 1]} : vector<32x128xf32> to vector<1x128xf32>
      %1079 = vector.broadcast %1077 : vector<2x1xf32> to vector<2x128xf32>
      %1080 = vector.broadcast %1078 : vector<1x128xf32> to vector<2x128xf32>
      %1081 = arith.mulf %1079, %1080 : vector<2x128xf32>
      %1082 = vector.extract_strided_slice %1016 {offsets = [0, 12], sizes = [2, 1], strides = [1, 1]} : vector<2x32xf32> to vector<2x1xf32>
      %1083 = vector.extract_strided_slice %478 {offsets = [12, 0], sizes = [1, 128], strides = [1, 1]} : vector<32x128xf32> to vector<1x128xf32>
      %1084 = vector.broadcast %1082 : vector<2x1xf32> to vector<2x128xf32>
      %1085 = vector.broadcast %1083 : vector<1x128xf32> to vector<2x128xf32>
      %1086 = arith.mulf %1084, %1085 : vector<2x128xf32>
      %1087 = vector.extract_strided_slice %1016 {offsets = [0, 13], sizes = [2, 1], strides = [1, 1]} : vector<2x32xf32> to vector<2x1xf32>
      %1088 = vector.extract_strided_slice %478 {offsets = [13, 0], sizes = [1, 128], strides = [1, 1]} : vector<32x128xf32> to vector<1x128xf32>
      %1089 = vector.broadcast %1087 : vector<2x1xf32> to vector<2x128xf32>
      %1090 = vector.broadcast %1088 : vector<1x128xf32> to vector<2x128xf32>
      %1091 = arith.mulf %1089, %1090 : vector<2x128xf32>
      %1092 = vector.extract_strided_slice %1016 {offsets = [0, 14], sizes = [2, 1], strides = [1, 1]} : vector<2x32xf32> to vector<2x1xf32>
      %1093 = vector.extract_strided_slice %478 {offsets = [14, 0], sizes = [1, 128], strides = [1, 1]} : vector<32x128xf32> to vector<1x128xf32>
      %1094 = vector.broadcast %1092 : vector<2x1xf32> to vector<2x128xf32>
      %1095 = vector.broadcast %1093 : vector<1x128xf32> to vector<2x128xf32>
      %1096 = arith.mulf %1094, %1095 : vector<2x128xf32>
      %1097 = vector.extract_strided_slice %1016 {offsets = [0, 15], sizes = [2, 1], strides = [1, 1]} : vector<2x32xf32> to vector<2x1xf32>
      %1098 = vector.extract_strided_slice %478 {offsets = [15, 0], sizes = [1, 128], strides = [1, 1]} : vector<32x128xf32> to vector<1x128xf32>
      %1099 = vector.broadcast %1097 : vector<2x1xf32> to vector<2x128xf32>
      %1100 = vector.broadcast %1098 : vector<1x128xf32> to vector<2x128xf32>
      %1101 = arith.mulf %1099, %1100 : vector<2x128xf32>
      %1102 = vector.extract_strided_slice %1016 {offsets = [0, 16], sizes = [2, 1], strides = [1, 1]} : vector<2x32xf32> to vector<2x1xf32>
      %1103 = vector.extract_strided_slice %478 {offsets = [16, 0], sizes = [1, 128], strides = [1, 1]} : vector<32x128xf32> to vector<1x128xf32>
      %1104 = vector.broadcast %1102 : vector<2x1xf32> to vector<2x128xf32>
      %1105 = vector.broadcast %1103 : vector<1x128xf32> to vector<2x128xf32>
      %1106 = arith.mulf %1104, %1105 : vector<2x128xf32>
      %1107 = vector.extract_strided_slice %1016 {offsets = [0, 17], sizes = [2, 1], strides = [1, 1]} : vector<2x32xf32> to vector<2x1xf32>
      %1108 = vector.extract_strided_slice %478 {offsets = [17, 0], sizes = [1, 128], strides = [1, 1]} : vector<32x128xf32> to vector<1x128xf32>
      %1109 = vector.broadcast %1107 : vector<2x1xf32> to vector<2x128xf32>
      %1110 = vector.broadcast %1108 : vector<1x128xf32> to vector<2x128xf32>
      %1111 = arith.mulf %1109, %1110 : vector<2x128xf32>
      %1112 = vector.extract_strided_slice %1016 {offsets = [0, 18], sizes = [2, 1], strides = [1, 1]} : vector<2x32xf32> to vector<2x1xf32>
      %1113 = vector.extract_strided_slice %478 {offsets = [18, 0], sizes = [1, 128], strides = [1, 1]} : vector<32x128xf32> to vector<1x128xf32>
      %1114 = vector.broadcast %1112 : vector<2x1xf32> to vector<2x128xf32>
      %1115 = vector.broadcast %1113 : vector<1x128xf32> to vector<2x128xf32>
      %1116 = arith.mulf %1114, %1115 : vector<2x128xf32>
      %1117 = vector.extract_strided_slice %1016 {offsets = [0, 19], sizes = [2, 1], strides = [1, 1]} : vector<2x32xf32> to vector<2x1xf32>
      %1118 = vector.extract_strided_slice %478 {offsets = [19, 0], sizes = [1, 128], strides = [1, 1]} : vector<32x128xf32> to vector<1x128xf32>
      %1119 = vector.broadcast %1117 : vector<2x1xf32> to vector<2x128xf32>
      %1120 = vector.broadcast %1118 : vector<1x128xf32> to vector<2x128xf32>
      %1121 = arith.mulf %1119, %1120 : vector<2x128xf32>
      %1122 = vector.extract_strided_slice %1016 {offsets = [0, 20], sizes = [2, 1], strides = [1, 1]} : vector<2x32xf32> to vector<2x1xf32>
      %1123 = vector.extract_strided_slice %478 {offsets = [20, 0], sizes = [1, 128], strides = [1, 1]} : vector<32x128xf32> to vector<1x128xf32>
      %1124 = vector.broadcast %1122 : vector<2x1xf32> to vector<2x128xf32>
      %1125 = vector.broadcast %1123 : vector<1x128xf32> to vector<2x128xf32>
      %1126 = arith.mulf %1124, %1125 : vector<2x128xf32>
      %1127 = vector.extract_strided_slice %1016 {offsets = [0, 21], sizes = [2, 1], strides = [1, 1]} : vector<2x32xf32> to vector<2x1xf32>
      %1128 = vector.extract_strided_slice %478 {offsets = [21, 0], sizes = [1, 128], strides = [1, 1]} : vector<32x128xf32> to vector<1x128xf32>
      %1129 = vector.broadcast %1127 : vector<2x1xf32> to vector<2x128xf32>
      %1130 = vector.broadcast %1128 : vector<1x128xf32> to vector<2x128xf32>
      %1131 = arith.mulf %1129, %1130 : vector<2x128xf32>
      %1132 = vector.extract_strided_slice %1016 {offsets = [0, 22], sizes = [2, 1], strides = [1, 1]} : vector<2x32xf32> to vector<2x1xf32>
      %1133 = vector.extract_strided_slice %478 {offsets = [22, 0], sizes = [1, 128], strides = [1, 1]} : vector<32x128xf32> to vector<1x128xf32>
      %1134 = vector.broadcast %1132 : vector<2x1xf32> to vector<2x128xf32>
      %1135 = vector.broadcast %1133 : vector<1x128xf32> to vector<2x128xf32>
      %1136 = arith.mulf %1134, %1135 : vector<2x128xf32>
      %1137 = vector.extract_strided_slice %1016 {offsets = [0, 23], sizes = [2, 1], strides = [1, 1]} : vector<2x32xf32> to vector<2x1xf32>
      %1138 = vector.extract_strided_slice %478 {offsets = [23, 0], sizes = [1, 128], strides = [1, 1]} : vector<32x128xf32> to vector<1x128xf32>
      %1139 = vector.broadcast %1137 : vector<2x1xf32> to vector<2x128xf32>
      %1140 = vector.broadcast %1138 : vector<1x128xf32> to vector<2x128xf32>
      %1141 = arith.mulf %1139, %1140 : vector<2x128xf32>
      %1142 = vector.extract_strided_slice %1016 {offsets = [0, 24], sizes = [2, 1], strides = [1, 1]} : vector<2x32xf32> to vector<2x1xf32>
      %1143 = vector.extract_strided_slice %478 {offsets = [24, 0], sizes = [1, 128], strides = [1, 1]} : vector<32x128xf32> to vector<1x128xf32>
      %1144 = vector.broadcast %1142 : vector<2x1xf32> to vector<2x128xf32>
      %1145 = vector.broadcast %1143 : vector<1x128xf32> to vector<2x128xf32>
      %1146 = arith.mulf %1144, %1145 : vector<2x128xf32>
      %1147 = vector.extract_strided_slice %1016 {offsets = [0, 25], sizes = [2, 1], strides = [1, 1]} : vector<2x32xf32> to vector<2x1xf32>
      %1148 = vector.extract_strided_slice %478 {offsets = [25, 0], sizes = [1, 128], strides = [1, 1]} : vector<32x128xf32> to vector<1x128xf32>
      %1149 = vector.broadcast %1147 : vector<2x1xf32> to vector<2x128xf32>
      %1150 = vector.broadcast %1148 : vector<1x128xf32> to vector<2x128xf32>
      %1151 = arith.mulf %1149, %1150 : vector<2x128xf32>
      %1152 = vector.extract_strided_slice %1016 {offsets = [0, 26], sizes = [2, 1], strides = [1, 1]} : vector<2x32xf32> to vector<2x1xf32>
      %1153 = vector.extract_strided_slice %478 {offsets = [26, 0], sizes = [1, 128], strides = [1, 1]} : vector<32x128xf32> to vector<1x128xf32>
      %1154 = vector.broadcast %1152 : vector<2x1xf32> to vector<2x128xf32>
      %1155 = vector.broadcast %1153 : vector<1x128xf32> to vector<2x128xf32>
      %1156 = arith.mulf %1154, %1155 : vector<2x128xf32>
      %1157 = vector.extract_strided_slice %1016 {offsets = [0, 27], sizes = [2, 1], strides = [1, 1]} : vector<2x32xf32> to vector<2x1xf32>
      %1158 = vector.extract_strided_slice %478 {offsets = [27, 0], sizes = [1, 128], strides = [1, 1]} : vector<32x128xf32> to vector<1x128xf32>
      %1159 = vector.broadcast %1157 : vector<2x1xf32> to vector<2x128xf32>
      %1160 = vector.broadcast %1158 : vector<1x128xf32> to vector<2x128xf32>
      %1161 = arith.mulf %1159, %1160 : vector<2x128xf32>
      %1162 = vector.extract_strided_slice %1016 {offsets = [0, 28], sizes = [2, 1], strides = [1, 1]} : vector<2x32xf32> to vector<2x1xf32>
      %1163 = vector.extract_strided_slice %478 {offsets = [28, 0], sizes = [1, 128], strides = [1, 1]} : vector<32x128xf32> to vector<1x128xf32>
      %1164 = vector.broadcast %1162 : vector<2x1xf32> to vector<2x128xf32>
      %1165 = vector.broadcast %1163 : vector<1x128xf32> to vector<2x128xf32>
      %1166 = arith.mulf %1164, %1165 : vector<2x128xf32>
      %1167 = vector.extract_strided_slice %1016 {offsets = [0, 29], sizes = [2, 1], strides = [1, 1]} : vector<2x32xf32> to vector<2x1xf32>
      %1168 = vector.extract_strided_slice %478 {offsets = [29, 0], sizes = [1, 128], strides = [1, 1]} : vector<32x128xf32> to vector<1x128xf32>
      %1169 = vector.broadcast %1167 : vector<2x1xf32> to vector<2x128xf32>
      %1170 = vector.broadcast %1168 : vector<1x128xf32> to vector<2x128xf32>
      %1171 = arith.mulf %1169, %1170 : vector<2x128xf32>
      %1172 = vector.extract_strided_slice %1016 {offsets = [0, 30], sizes = [2, 1], strides = [1, 1]} : vector<2x32xf32> to vector<2x1xf32>
      %1173 = vector.extract_strided_slice %478 {offsets = [30, 0], sizes = [1, 128], strides = [1, 1]} : vector<32x128xf32> to vector<1x128xf32>
      %1174 = vector.broadcast %1172 : vector<2x1xf32> to vector<2x128xf32>
      %1175 = vector.broadcast %1173 : vector<1x128xf32> to vector<2x128xf32>
      %1176 = arith.mulf %1174, %1175 : vector<2x128xf32>
      %1177 = vector.extract_strided_slice %1016 {offsets = [0, 31], sizes = [2, 1], strides = [1, 1]} : vector<2x32xf32> to vector<2x1xf32>
      %1178 = vector.extract_strided_slice %478 {offsets = [31, 0], sizes = [1, 128], strides = [1, 1]} : vector<32x128xf32> to vector<1x128xf32>
      %1179 = vector.broadcast %1177 : vector<2x1xf32> to vector<2x128xf32>
      %1180 = vector.broadcast %1178 : vector<1x128xf32> to vector<2x128xf32>
      %1181 = arith.mulf %1179, %1180 : vector<2x128xf32>
      %1182 = arith.addf %1026, %1031 : vector<2x128xf32>
      %1183 = arith.addf %1036, %1041 : vector<2x128xf32>
      %1184 = arith.addf %1046, %1051 : vector<2x128xf32>
      %1185 = arith.addf %1056, %1061 : vector<2x128xf32>
      %1186 = arith.addf %1066, %1071 : vector<2x128xf32>
      %1187 = arith.addf %1076, %1081 : vector<2x128xf32>
      %1188 = arith.addf %1086, %1091 : vector<2x128xf32>
      %1189 = arith.addf %1096, %1101 : vector<2x128xf32>
      %1190 = arith.addf %1106, %1111 : vector<2x128xf32>
      %1191 = arith.addf %1116, %1121 : vector<2x128xf32>
      %1192 = arith.addf %1126, %1131 : vector<2x128xf32>
      %1193 = arith.addf %1136, %1141 : vector<2x128xf32>
      %1194 = arith.addf %1146, %1151 : vector<2x128xf32>
      %1195 = arith.addf %1156, %1161 : vector<2x128xf32>
      %1196 = arith.addf %1166, %1171 : vector<2x128xf32>
      %1197 = arith.addf %1176, %1181 : vector<2x128xf32>
      %1198 = arith.addf %1182, %1183 : vector<2x128xf32>
      %1199 = arith.addf %1184, %1185 : vector<2x128xf32>
      %1200 = arith.addf %1186, %1187 : vector<2x128xf32>
      %1201 = arith.addf %1188, %1189 : vector<2x128xf32>
      %1202 = arith.addf %1190, %1191 : vector<2x128xf32>
      %1203 = arith.addf %1192, %1193 : vector<2x128xf32>
      %1204 = arith.addf %1194, %1195 : vector<2x128xf32>
      %1205 = arith.addf %1196, %1197 : vector<2x128xf32>
      %1206 = arith.addf %1198, %1199 : vector<2x128xf32>
      %1207 = arith.addf %1200, %1201 : vector<2x128xf32>
      %1208 = arith.addf %1202, %1203 : vector<2x128xf32>
      %1209 = arith.addf %1204, %1205 : vector<2x128xf32>
      %1210 = arith.addf %1206, %1207 : vector<2x128xf32>
      %1211 = arith.addf %1208, %1209 : vector<2x128xf32>
      %1212 = arith.addf %1210, %1211 : vector<2x128xf32>
      %1213 = arith.addf %1021, %1212 : vector<2x128xf32>
      %1214 = vector.broadcast %479 : vector<1x128xf32> to vector<2x128xf32>
      %1215 = arith.addf %1213, %1214 : vector<2x128xf32>
      %1216 = arith.negf %1215 : vector<2x128xf32>
      %1217 = math.exp %1216 : vector<2x128xf32>
      %cst_233 = arith.constant 1.000000e+00 : f32
      %1218 = vector.broadcast %cst_233 : f32 to vector<2x128xf32>
      %1219 = arith.addf %1218, %1217 : vector<2x128xf32>
      %1220 = arith.divf %1218, %1219 : vector<2x128xf32>
      %1221 = math.tanh %1215 : vector<2x128xf32>
      %1222 = vector.extract_strided_slice %1220 {offsets = [0, 0], sizes = [2, 32], strides = [1, 1]} : vector<2x128xf32> to vector<2x32xf32>
      %1223 = vector.extract_strided_slice %1220 {offsets = [0, 32], sizes = [2, 32], strides = [1, 1]} : vector<2x128xf32> to vector<2x32xf32>
      %1224 = vector.extract_strided_slice %1221 {offsets = [0, 64], sizes = [2, 32], strides = [1, 1]} : vector<2x128xf32> to vector<2x32xf32>
      %1225 = vector.extract_strided_slice %1220 {offsets = [0, 96], sizes = [2, 32], strides = [1, 1]} : vector<2x128xf32> to vector<2x32xf32>
      %1226 = arith.mulf %1223, %1014 : vector<2x32xf32>
      %1227 = arith.mulf %1222, %1224 : vector<2x32xf32>
      %1228 = arith.addf %1226, %1227 : vector<2x32xf32>
      %1229 = math.tanh %1228 : vector<2x32xf32>
      %1230 = arith.mulf %1225, %1229 : vector<2x32xf32>
      %1231 = vector.extract_strided_slice %560 {offsets = [0, 3], sizes = [2, 1], strides = [1, 1]} : vector<2x8xf32> to vector<2x1xf32>
      %1232 = vector.extract_strided_slice %450 {offsets = [0, 3, 0], sizes = [2, 1, 128], strides = [1, 1, 1]} : vector<2x8x128xf32> to vector<2x1x128xf32>
      %1233 = vector.shape_cast %1232 : vector<2x1x128xf32> to vector<2x128xf32>
      %1234 = vector.broadcast %1231 : vector<2x1xf32> to vector<2x128xf32>
      %1235 = arith.mulf %1234, %1233 : vector<2x128xf32>
      %1236 = vector.extract_strided_slice %1230 {offsets = [0, 0], sizes = [2, 1], strides = [1, 1]} : vector<2x32xf32> to vector<2x1xf32>
      %1237 = vector.extract_strided_slice %478 {offsets = [0, 0], sizes = [1, 128], strides = [1, 1]} : vector<32x128xf32> to vector<1x128xf32>
      %1238 = vector.broadcast %1236 : vector<2x1xf32> to vector<2x128xf32>
      %1239 = vector.broadcast %1237 : vector<1x128xf32> to vector<2x128xf32>
      %1240 = arith.mulf %1238, %1239 : vector<2x128xf32>
      %1241 = vector.extract_strided_slice %1230 {offsets = [0, 1], sizes = [2, 1], strides = [1, 1]} : vector<2x32xf32> to vector<2x1xf32>
      %1242 = vector.extract_strided_slice %478 {offsets = [1, 0], sizes = [1, 128], strides = [1, 1]} : vector<32x128xf32> to vector<1x128xf32>
      %1243 = vector.broadcast %1241 : vector<2x1xf32> to vector<2x128xf32>
      %1244 = vector.broadcast %1242 : vector<1x128xf32> to vector<2x128xf32>
      %1245 = arith.mulf %1243, %1244 : vector<2x128xf32>
      %1246 = vector.extract_strided_slice %1230 {offsets = [0, 2], sizes = [2, 1], strides = [1, 1]} : vector<2x32xf32> to vector<2x1xf32>
      %1247 = vector.extract_strided_slice %478 {offsets = [2, 0], sizes = [1, 128], strides = [1, 1]} : vector<32x128xf32> to vector<1x128xf32>
      %1248 = vector.broadcast %1246 : vector<2x1xf32> to vector<2x128xf32>
      %1249 = vector.broadcast %1247 : vector<1x128xf32> to vector<2x128xf32>
      %1250 = arith.mulf %1248, %1249 : vector<2x128xf32>
      %1251 = vector.extract_strided_slice %1230 {offsets = [0, 3], sizes = [2, 1], strides = [1, 1]} : vector<2x32xf32> to vector<2x1xf32>
      %1252 = vector.extract_strided_slice %478 {offsets = [3, 0], sizes = [1, 128], strides = [1, 1]} : vector<32x128xf32> to vector<1x128xf32>
      %1253 = vector.broadcast %1251 : vector<2x1xf32> to vector<2x128xf32>
      %1254 = vector.broadcast %1252 : vector<1x128xf32> to vector<2x128xf32>
      %1255 = arith.mulf %1253, %1254 : vector<2x128xf32>
      %1256 = vector.extract_strided_slice %1230 {offsets = [0, 4], sizes = [2, 1], strides = [1, 1]} : vector<2x32xf32> to vector<2x1xf32>
      %1257 = vector.extract_strided_slice %478 {offsets = [4, 0], sizes = [1, 128], strides = [1, 1]} : vector<32x128xf32> to vector<1x128xf32>
      %1258 = vector.broadcast %1256 : vector<2x1xf32> to vector<2x128xf32>
      %1259 = vector.broadcast %1257 : vector<1x128xf32> to vector<2x128xf32>
      %1260 = arith.mulf %1258, %1259 : vector<2x128xf32>
      %1261 = vector.extract_strided_slice %1230 {offsets = [0, 5], sizes = [2, 1], strides = [1, 1]} : vector<2x32xf32> to vector<2x1xf32>
      %1262 = vector.extract_strided_slice %478 {offsets = [5, 0], sizes = [1, 128], strides = [1, 1]} : vector<32x128xf32> to vector<1x128xf32>
      %1263 = vector.broadcast %1261 : vector<2x1xf32> to vector<2x128xf32>
      %1264 = vector.broadcast %1262 : vector<1x128xf32> to vector<2x128xf32>
      %1265 = arith.mulf %1263, %1264 : vector<2x128xf32>
      %1266 = vector.extract_strided_slice %1230 {offsets = [0, 6], sizes = [2, 1], strides = [1, 1]} : vector<2x32xf32> to vector<2x1xf32>
      %1267 = vector.extract_strided_slice %478 {offsets = [6, 0], sizes = [1, 128], strides = [1, 1]} : vector<32x128xf32> to vector<1x128xf32>
      %1268 = vector.broadcast %1266 : vector<2x1xf32> to vector<2x128xf32>
      %1269 = vector.broadcast %1267 : vector<1x128xf32> to vector<2x128xf32>
      %1270 = arith.mulf %1268, %1269 : vector<2x128xf32>
      %1271 = vector.extract_strided_slice %1230 {offsets = [0, 7], sizes = [2, 1], strides = [1, 1]} : vector<2x32xf32> to vector<2x1xf32>
      %1272 = vector.extract_strided_slice %478 {offsets = [7, 0], sizes = [1, 128], strides = [1, 1]} : vector<32x128xf32> to vector<1x128xf32>
      %1273 = vector.broadcast %1271 : vector<2x1xf32> to vector<2x128xf32>
      %1274 = vector.broadcast %1272 : vector<1x128xf32> to vector<2x128xf32>
      %1275 = arith.mulf %1273, %1274 : vector<2x128xf32>
      %1276 = vector.extract_strided_slice %1230 {offsets = [0, 8], sizes = [2, 1], strides = [1, 1]} : vector<2x32xf32> to vector<2x1xf32>
      %1277 = vector.extract_strided_slice %478 {offsets = [8, 0], sizes = [1, 128], strides = [1, 1]} : vector<32x128xf32> to vector<1x128xf32>
      %1278 = vector.broadcast %1276 : vector<2x1xf32> to vector<2x128xf32>
      %1279 = vector.broadcast %1277 : vector<1x128xf32> to vector<2x128xf32>
      %1280 = arith.mulf %1278, %1279 : vector<2x128xf32>
      %1281 = vector.extract_strided_slice %1230 {offsets = [0, 9], sizes = [2, 1], strides = [1, 1]} : vector<2x32xf32> to vector<2x1xf32>
      %1282 = vector.extract_strided_slice %478 {offsets = [9, 0], sizes = [1, 128], strides = [1, 1]} : vector<32x128xf32> to vector<1x128xf32>
      %1283 = vector.broadcast %1281 : vector<2x1xf32> to vector<2x128xf32>
      %1284 = vector.broadcast %1282 : vector<1x128xf32> to vector<2x128xf32>
      %1285 = arith.mulf %1283, %1284 : vector<2x128xf32>
      %1286 = vector.extract_strided_slice %1230 {offsets = [0, 10], sizes = [2, 1], strides = [1, 1]} : vector<2x32xf32> to vector<2x1xf32>
      %1287 = vector.extract_strided_slice %478 {offsets = [10, 0], sizes = [1, 128], strides = [1, 1]} : vector<32x128xf32> to vector<1x128xf32>
      %1288 = vector.broadcast %1286 : vector<2x1xf32> to vector<2x128xf32>
      %1289 = vector.broadcast %1287 : vector<1x128xf32> to vector<2x128xf32>
      %1290 = arith.mulf %1288, %1289 : vector<2x128xf32>
      %1291 = vector.extract_strided_slice %1230 {offsets = [0, 11], sizes = [2, 1], strides = [1, 1]} : vector<2x32xf32> to vector<2x1xf32>
      %1292 = vector.extract_strided_slice %478 {offsets = [11, 0], sizes = [1, 128], strides = [1, 1]} : vector<32x128xf32> to vector<1x128xf32>
      %1293 = vector.broadcast %1291 : vector<2x1xf32> to vector<2x128xf32>
      %1294 = vector.broadcast %1292 : vector<1x128xf32> to vector<2x128xf32>
      %1295 = arith.mulf %1293, %1294 : vector<2x128xf32>
      %1296 = vector.extract_strided_slice %1230 {offsets = [0, 12], sizes = [2, 1], strides = [1, 1]} : vector<2x32xf32> to vector<2x1xf32>
      %1297 = vector.extract_strided_slice %478 {offsets = [12, 0], sizes = [1, 128], strides = [1, 1]} : vector<32x128xf32> to vector<1x128xf32>
      %1298 = vector.broadcast %1296 : vector<2x1xf32> to vector<2x128xf32>
      %1299 = vector.broadcast %1297 : vector<1x128xf32> to vector<2x128xf32>
      %1300 = arith.mulf %1298, %1299 : vector<2x128xf32>
      %1301 = vector.extract_strided_slice %1230 {offsets = [0, 13], sizes = [2, 1], strides = [1, 1]} : vector<2x32xf32> to vector<2x1xf32>
      %1302 = vector.extract_strided_slice %478 {offsets = [13, 0], sizes = [1, 128], strides = [1, 1]} : vector<32x128xf32> to vector<1x128xf32>
      %1303 = vector.broadcast %1301 : vector<2x1xf32> to vector<2x128xf32>
      %1304 = vector.broadcast %1302 : vector<1x128xf32> to vector<2x128xf32>
      %1305 = arith.mulf %1303, %1304 : vector<2x128xf32>
      %1306 = vector.extract_strided_slice %1230 {offsets = [0, 14], sizes = [2, 1], strides = [1, 1]} : vector<2x32xf32> to vector<2x1xf32>
      %1307 = vector.extract_strided_slice %478 {offsets = [14, 0], sizes = [1, 128], strides = [1, 1]} : vector<32x128xf32> to vector<1x128xf32>
      %1308 = vector.broadcast %1306 : vector<2x1xf32> to vector<2x128xf32>
      %1309 = vector.broadcast %1307 : vector<1x128xf32> to vector<2x128xf32>
      %1310 = arith.mulf %1308, %1309 : vector<2x128xf32>
      %1311 = vector.extract_strided_slice %1230 {offsets = [0, 15], sizes = [2, 1], strides = [1, 1]} : vector<2x32xf32> to vector<2x1xf32>
      %1312 = vector.extract_strided_slice %478 {offsets = [15, 0], sizes = [1, 128], strides = [1, 1]} : vector<32x128xf32> to vector<1x128xf32>
      %1313 = vector.broadcast %1311 : vector<2x1xf32> to vector<2x128xf32>
      %1314 = vector.broadcast %1312 : vector<1x128xf32> to vector<2x128xf32>
      %1315 = arith.mulf %1313, %1314 : vector<2x128xf32>
      %1316 = vector.extract_strided_slice %1230 {offsets = [0, 16], sizes = [2, 1], strides = [1, 1]} : vector<2x32xf32> to vector<2x1xf32>
      %1317 = vector.extract_strided_slice %478 {offsets = [16, 0], sizes = [1, 128], strides = [1, 1]} : vector<32x128xf32> to vector<1x128xf32>
      %1318 = vector.broadcast %1316 : vector<2x1xf32> to vector<2x128xf32>
      %1319 = vector.broadcast %1317 : vector<1x128xf32> to vector<2x128xf32>
      %1320 = arith.mulf %1318, %1319 : vector<2x128xf32>
      %1321 = vector.extract_strided_slice %1230 {offsets = [0, 17], sizes = [2, 1], strides = [1, 1]} : vector<2x32xf32> to vector<2x1xf32>
      %1322 = vector.extract_strided_slice %478 {offsets = [17, 0], sizes = [1, 128], strides = [1, 1]} : vector<32x128xf32> to vector<1x128xf32>
      %1323 = vector.broadcast %1321 : vector<2x1xf32> to vector<2x128xf32>
      %1324 = vector.broadcast %1322 : vector<1x128xf32> to vector<2x128xf32>
      %1325 = arith.mulf %1323, %1324 : vector<2x128xf32>
      %1326 = vector.extract_strided_slice %1230 {offsets = [0, 18], sizes = [2, 1], strides = [1, 1]} : vector<2x32xf32> to vector<2x1xf32>
      %1327 = vector.extract_strided_slice %478 {offsets = [18, 0], sizes = [1, 128], strides = [1, 1]} : vector<32x128xf32> to vector<1x128xf32>
      %1328 = vector.broadcast %1326 : vector<2x1xf32> to vector<2x128xf32>
      %1329 = vector.broadcast %1327 : vector<1x128xf32> to vector<2x128xf32>
      %1330 = arith.mulf %1328, %1329 : vector<2x128xf32>
      %1331 = vector.extract_strided_slice %1230 {offsets = [0, 19], sizes = [2, 1], strides = [1, 1]} : vector<2x32xf32> to vector<2x1xf32>
      %1332 = vector.extract_strided_slice %478 {offsets = [19, 0], sizes = [1, 128], strides = [1, 1]} : vector<32x128xf32> to vector<1x128xf32>
      %1333 = vector.broadcast %1331 : vector<2x1xf32> to vector<2x128xf32>
      %1334 = vector.broadcast %1332 : vector<1x128xf32> to vector<2x128xf32>
      %1335 = arith.mulf %1333, %1334 : vector<2x128xf32>
      %1336 = vector.extract_strided_slice %1230 {offsets = [0, 20], sizes = [2, 1], strides = [1, 1]} : vector<2x32xf32> to vector<2x1xf32>
      %1337 = vector.extract_strided_slice %478 {offsets = [20, 0], sizes = [1, 128], strides = [1, 1]} : vector<32x128xf32> to vector<1x128xf32>
      %1338 = vector.broadcast %1336 : vector<2x1xf32> to vector<2x128xf32>
      %1339 = vector.broadcast %1337 : vector<1x128xf32> to vector<2x128xf32>
      %1340 = arith.mulf %1338, %1339 : vector<2x128xf32>
      %1341 = vector.extract_strided_slice %1230 {offsets = [0, 21], sizes = [2, 1], strides = [1, 1]} : vector<2x32xf32> to vector<2x1xf32>
      %1342 = vector.extract_strided_slice %478 {offsets = [21, 0], sizes = [1, 128], strides = [1, 1]} : vector<32x128xf32> to vector<1x128xf32>
      %1343 = vector.broadcast %1341 : vector<2x1xf32> to vector<2x128xf32>
      %1344 = vector.broadcast %1342 : vector<1x128xf32> to vector<2x128xf32>
      %1345 = arith.mulf %1343, %1344 : vector<2x128xf32>
      %1346 = vector.extract_strided_slice %1230 {offsets = [0, 22], sizes = [2, 1], strides = [1, 1]} : vector<2x32xf32> to vector<2x1xf32>
      %1347 = vector.extract_strided_slice %478 {offsets = [22, 0], sizes = [1, 128], strides = [1, 1]} : vector<32x128xf32> to vector<1x128xf32>
      %1348 = vector.broadcast %1346 : vector<2x1xf32> to vector<2x128xf32>
      %1349 = vector.broadcast %1347 : vector<1x128xf32> to vector<2x128xf32>
      %1350 = arith.mulf %1348, %1349 : vector<2x128xf32>
      %1351 = vector.extract_strided_slice %1230 {offsets = [0, 23], sizes = [2, 1], strides = [1, 1]} : vector<2x32xf32> to vector<2x1xf32>
      %1352 = vector.extract_strided_slice %478 {offsets = [23, 0], sizes = [1, 128], strides = [1, 1]} : vector<32x128xf32> to vector<1x128xf32>
      %1353 = vector.broadcast %1351 : vector<2x1xf32> to vector<2x128xf32>
      %1354 = vector.broadcast %1352 : vector<1x128xf32> to vector<2x128xf32>
      %1355 = arith.mulf %1353, %1354 : vector<2x128xf32>
      %1356 = vector.extract_strided_slice %1230 {offsets = [0, 24], sizes = [2, 1], strides = [1, 1]} : vector<2x32xf32> to vector<2x1xf32>
      %1357 = vector.extract_strided_slice %478 {offsets = [24, 0], sizes = [1, 128], strides = [1, 1]} : vector<32x128xf32> to vector<1x128xf32>
      %1358 = vector.broadcast %1356 : vector<2x1xf32> to vector<2x128xf32>
      %1359 = vector.broadcast %1357 : vector<1x128xf32> to vector<2x128xf32>
      %1360 = arith.mulf %1358, %1359 : vector<2x128xf32>
      %1361 = vector.extract_strided_slice %1230 {offsets = [0, 25], sizes = [2, 1], strides = [1, 1]} : vector<2x32xf32> to vector<2x1xf32>
      %1362 = vector.extract_strided_slice %478 {offsets = [25, 0], sizes = [1, 128], strides = [1, 1]} : vector<32x128xf32> to vector<1x128xf32>
      %1363 = vector.broadcast %1361 : vector<2x1xf32> to vector<2x128xf32>
      %1364 = vector.broadcast %1362 : vector<1x128xf32> to vector<2x128xf32>
      %1365 = arith.mulf %1363, %1364 : vector<2x128xf32>
      %1366 = vector.extract_strided_slice %1230 {offsets = [0, 26], sizes = [2, 1], strides = [1, 1]} : vector<2x32xf32> to vector<2x1xf32>
      %1367 = vector.extract_strided_slice %478 {offsets = [26, 0], sizes = [1, 128], strides = [1, 1]} : vector<32x128xf32> to vector<1x128xf32>
      %1368 = vector.broadcast %1366 : vector<2x1xf32> to vector<2x128xf32>
      %1369 = vector.broadcast %1367 : vector<1x128xf32> to vector<2x128xf32>
      %1370 = arith.mulf %1368, %1369 : vector<2x128xf32>
      %1371 = vector.extract_strided_slice %1230 {offsets = [0, 27], sizes = [2, 1], strides = [1, 1]} : vector<2x32xf32> to vector<2x1xf32>
      %1372 = vector.extract_strided_slice %478 {offsets = [27, 0], sizes = [1, 128], strides = [1, 1]} : vector<32x128xf32> to vector<1x128xf32>
      %1373 = vector.broadcast %1371 : vector<2x1xf32> to vector<2x128xf32>
      %1374 = vector.broadcast %1372 : vector<1x128xf32> to vector<2x128xf32>
      %1375 = arith.mulf %1373, %1374 : vector<2x128xf32>
      %1376 = vector.extract_strided_slice %1230 {offsets = [0, 28], sizes = [2, 1], strides = [1, 1]} : vector<2x32xf32> to vector<2x1xf32>
      %1377 = vector.extract_strided_slice %478 {offsets = [28, 0], sizes = [1, 128], strides = [1, 1]} : vector<32x128xf32> to vector<1x128xf32>
      %1378 = vector.broadcast %1376 : vector<2x1xf32> to vector<2x128xf32>
      %1379 = vector.broadcast %1377 : vector<1x128xf32> to vector<2x128xf32>
      %1380 = arith.mulf %1378, %1379 : vector<2x128xf32>
      %1381 = vector.extract_strided_slice %1230 {offsets = [0, 29], sizes = [2, 1], strides = [1, 1]} : vector<2x32xf32> to vector<2x1xf32>
      %1382 = vector.extract_strided_slice %478 {offsets = [29, 0], sizes = [1, 128], strides = [1, 1]} : vector<32x128xf32> to vector<1x128xf32>
      %1383 = vector.broadcast %1381 : vector<2x1xf32> to vector<2x128xf32>
      %1384 = vector.broadcast %1382 : vector<1x128xf32> to vector<2x128xf32>
      %1385 = arith.mulf %1383, %1384 : vector<2x128xf32>
      %1386 = vector.extract_strided_slice %1230 {offsets = [0, 30], sizes = [2, 1], strides = [1, 1]} : vector<2x32xf32> to vector<2x1xf32>
      %1387 = vector.extract_strided_slice %478 {offsets = [30, 0], sizes = [1, 128], strides = [1, 1]} : vector<32x128xf32> to vector<1x128xf32>
      %1388 = vector.broadcast %1386 : vector<2x1xf32> to vector<2x128xf32>
      %1389 = vector.broadcast %1387 : vector<1x128xf32> to vector<2x128xf32>
      %1390 = arith.mulf %1388, %1389 : vector<2x128xf32>
      %1391 = vector.extract_strided_slice %1230 {offsets = [0, 31], sizes = [2, 1], strides = [1, 1]} : vector<2x32xf32> to vector<2x1xf32>
      %1392 = vector.extract_strided_slice %478 {offsets = [31, 0], sizes = [1, 128], strides = [1, 1]} : vector<32x128xf32> to vector<1x128xf32>
      %1393 = vector.broadcast %1391 : vector<2x1xf32> to vector<2x128xf32>
      %1394 = vector.broadcast %1392 : vector<1x128xf32> to vector<2x128xf32>
      %1395 = arith.mulf %1393, %1394 : vector<2x128xf32>
      %1396 = arith.addf %1240, %1245 : vector<2x128xf32>
      %1397 = arith.addf %1250, %1255 : vector<2x128xf32>
      %1398 = arith.addf %1260, %1265 : vector<2x128xf32>
      %1399 = arith.addf %1270, %1275 : vector<2x128xf32>
      %1400 = arith.addf %1280, %1285 : vector<2x128xf32>
      %1401 = arith.addf %1290, %1295 : vector<2x128xf32>
      %1402 = arith.addf %1300, %1305 : vector<2x128xf32>
      %1403 = arith.addf %1310, %1315 : vector<2x128xf32>
      %1404 = arith.addf %1320, %1325 : vector<2x128xf32>
      %1405 = arith.addf %1330, %1335 : vector<2x128xf32>
      %1406 = arith.addf %1340, %1345 : vector<2x128xf32>
      %1407 = arith.addf %1350, %1355 : vector<2x128xf32>
      %1408 = arith.addf %1360, %1365 : vector<2x128xf32>
      %1409 = arith.addf %1370, %1375 : vector<2x128xf32>
      %1410 = arith.addf %1380, %1385 : vector<2x128xf32>
      %1411 = arith.addf %1390, %1395 : vector<2x128xf32>
      %1412 = arith.addf %1396, %1397 : vector<2x128xf32>
      %1413 = arith.addf %1398, %1399 : vector<2x128xf32>
      %1414 = arith.addf %1400, %1401 : vector<2x128xf32>
      %1415 = arith.addf %1402, %1403 : vector<2x128xf32>
      %1416 = arith.addf %1404, %1405 : vector<2x128xf32>
      %1417 = arith.addf %1406, %1407 : vector<2x128xf32>
      %1418 = arith.addf %1408, %1409 : vector<2x128xf32>
      %1419 = arith.addf %1410, %1411 : vector<2x128xf32>
      %1420 = arith.addf %1412, %1413 : vector<2x128xf32>
      %1421 = arith.addf %1414, %1415 : vector<2x128xf32>
      %1422 = arith.addf %1416, %1417 : vector<2x128xf32>
      %1423 = arith.addf %1418, %1419 : vector<2x128xf32>
      %1424 = arith.addf %1420, %1421 : vector<2x128xf32>
      %1425 = arith.addf %1422, %1423 : vector<2x128xf32>
      %1426 = arith.addf %1424, %1425 : vector<2x128xf32>
      %1427 = arith.addf %1235, %1426 : vector<2x128xf32>
      %1428 = vector.broadcast %479 : vector<1x128xf32> to vector<2x128xf32>
      %1429 = arith.addf %1427, %1428 : vector<2x128xf32>
      %1430 = arith.negf %1429 : vector<2x128xf32>
      %1431 = math.exp %1430 : vector<2x128xf32>
      %cst_234 = arith.constant 1.000000e+00 : f32
      %1432 = vector.broadcast %cst_234 : f32 to vector<2x128xf32>
      %1433 = arith.addf %1432, %1431 : vector<2x128xf32>
      %1434 = arith.divf %1432, %1433 : vector<2x128xf32>
      %1435 = math.tanh %1429 : vector<2x128xf32>
      %1436 = vector.extract_strided_slice %1434 {offsets = [0, 0], sizes = [2, 32], strides = [1, 1]} : vector<2x128xf32> to vector<2x32xf32>
      %1437 = vector.extract_strided_slice %1434 {offsets = [0, 32], sizes = [2, 32], strides = [1, 1]} : vector<2x128xf32> to vector<2x32xf32>
      %1438 = vector.extract_strided_slice %1435 {offsets = [0, 64], sizes = [2, 32], strides = [1, 1]} : vector<2x128xf32> to vector<2x32xf32>
      %1439 = vector.extract_strided_slice %1434 {offsets = [0, 96], sizes = [2, 32], strides = [1, 1]} : vector<2x128xf32> to vector<2x32xf32>
      %1440 = arith.mulf %1437, %1228 : vector<2x32xf32>
      %1441 = arith.mulf %1436, %1438 : vector<2x32xf32>
      %1442 = arith.addf %1440, %1441 : vector<2x32xf32>
      %1443 = math.tanh %1442 : vector<2x32xf32>
      %1444 = arith.mulf %1439, %1443 : vector<2x32xf32>
      %1445 = vector.extract_strided_slice %560 {offsets = [0, 4], sizes = [2, 1], strides = [1, 1]} : vector<2x8xf32> to vector<2x1xf32>
      %1446 = vector.extract_strided_slice %450 {offsets = [0, 4, 0], sizes = [2, 1, 128], strides = [1, 1, 1]} : vector<2x8x128xf32> to vector<2x1x128xf32>
      %1447 = vector.shape_cast %1446 : vector<2x1x128xf32> to vector<2x128xf32>
      %1448 = vector.broadcast %1445 : vector<2x1xf32> to vector<2x128xf32>
      %1449 = arith.mulf %1448, %1447 : vector<2x128xf32>
      %1450 = vector.extract_strided_slice %1444 {offsets = [0, 0], sizes = [2, 1], strides = [1, 1]} : vector<2x32xf32> to vector<2x1xf32>
      %1451 = vector.extract_strided_slice %478 {offsets = [0, 0], sizes = [1, 128], strides = [1, 1]} : vector<32x128xf32> to vector<1x128xf32>
      %1452 = vector.broadcast %1450 : vector<2x1xf32> to vector<2x128xf32>
      %1453 = vector.broadcast %1451 : vector<1x128xf32> to vector<2x128xf32>
      %1454 = arith.mulf %1452, %1453 : vector<2x128xf32>
      %1455 = vector.extract_strided_slice %1444 {offsets = [0, 1], sizes = [2, 1], strides = [1, 1]} : vector<2x32xf32> to vector<2x1xf32>
      %1456 = vector.extract_strided_slice %478 {offsets = [1, 0], sizes = [1, 128], strides = [1, 1]} : vector<32x128xf32> to vector<1x128xf32>
      %1457 = vector.broadcast %1455 : vector<2x1xf32> to vector<2x128xf32>
      %1458 = vector.broadcast %1456 : vector<1x128xf32> to vector<2x128xf32>
      %1459 = arith.mulf %1457, %1458 : vector<2x128xf32>
      %1460 = vector.extract_strided_slice %1444 {offsets = [0, 2], sizes = [2, 1], strides = [1, 1]} : vector<2x32xf32> to vector<2x1xf32>
      %1461 = vector.extract_strided_slice %478 {offsets = [2, 0], sizes = [1, 128], strides = [1, 1]} : vector<32x128xf32> to vector<1x128xf32>
      %1462 = vector.broadcast %1460 : vector<2x1xf32> to vector<2x128xf32>
      %1463 = vector.broadcast %1461 : vector<1x128xf32> to vector<2x128xf32>
      %1464 = arith.mulf %1462, %1463 : vector<2x128xf32>
      %1465 = vector.extract_strided_slice %1444 {offsets = [0, 3], sizes = [2, 1], strides = [1, 1]} : vector<2x32xf32> to vector<2x1xf32>
      %1466 = vector.extract_strided_slice %478 {offsets = [3, 0], sizes = [1, 128], strides = [1, 1]} : vector<32x128xf32> to vector<1x128xf32>
      %1467 = vector.broadcast %1465 : vector<2x1xf32> to vector<2x128xf32>
      %1468 = vector.broadcast %1466 : vector<1x128xf32> to vector<2x128xf32>
      %1469 = arith.mulf %1467, %1468 : vector<2x128xf32>
      %1470 = vector.extract_strided_slice %1444 {offsets = [0, 4], sizes = [2, 1], strides = [1, 1]} : vector<2x32xf32> to vector<2x1xf32>
      %1471 = vector.extract_strided_slice %478 {offsets = [4, 0], sizes = [1, 128], strides = [1, 1]} : vector<32x128xf32> to vector<1x128xf32>
      %1472 = vector.broadcast %1470 : vector<2x1xf32> to vector<2x128xf32>
      %1473 = vector.broadcast %1471 : vector<1x128xf32> to vector<2x128xf32>
      %1474 = arith.mulf %1472, %1473 : vector<2x128xf32>
      %1475 = vector.extract_strided_slice %1444 {offsets = [0, 5], sizes = [2, 1], strides = [1, 1]} : vector<2x32xf32> to vector<2x1xf32>
      %1476 = vector.extract_strided_slice %478 {offsets = [5, 0], sizes = [1, 128], strides = [1, 1]} : vector<32x128xf32> to vector<1x128xf32>
      %1477 = vector.broadcast %1475 : vector<2x1xf32> to vector<2x128xf32>
      %1478 = vector.broadcast %1476 : vector<1x128xf32> to vector<2x128xf32>
      %1479 = arith.mulf %1477, %1478 : vector<2x128xf32>
      %1480 = vector.extract_strided_slice %1444 {offsets = [0, 6], sizes = [2, 1], strides = [1, 1]} : vector<2x32xf32> to vector<2x1xf32>
      %1481 = vector.extract_strided_slice %478 {offsets = [6, 0], sizes = [1, 128], strides = [1, 1]} : vector<32x128xf32> to vector<1x128xf32>
      %1482 = vector.broadcast %1480 : vector<2x1xf32> to vector<2x128xf32>
      %1483 = vector.broadcast %1481 : vector<1x128xf32> to vector<2x128xf32>
      %1484 = arith.mulf %1482, %1483 : vector<2x128xf32>
      %1485 = vector.extract_strided_slice %1444 {offsets = [0, 7], sizes = [2, 1], strides = [1, 1]} : vector<2x32xf32> to vector<2x1xf32>
      %1486 = vector.extract_strided_slice %478 {offsets = [7, 0], sizes = [1, 128], strides = [1, 1]} : vector<32x128xf32> to vector<1x128xf32>
      %1487 = vector.broadcast %1485 : vector<2x1xf32> to vector<2x128xf32>
      %1488 = vector.broadcast %1486 : vector<1x128xf32> to vector<2x128xf32>
      %1489 = arith.mulf %1487, %1488 : vector<2x128xf32>
      %1490 = vector.extract_strided_slice %1444 {offsets = [0, 8], sizes = [2, 1], strides = [1, 1]} : vector<2x32xf32> to vector<2x1xf32>
      %1491 = vector.extract_strided_slice %478 {offsets = [8, 0], sizes = [1, 128], strides = [1, 1]} : vector<32x128xf32> to vector<1x128xf32>
      %1492 = vector.broadcast %1490 : vector<2x1xf32> to vector<2x128xf32>
      %1493 = vector.broadcast %1491 : vector<1x128xf32> to vector<2x128xf32>
      %1494 = arith.mulf %1492, %1493 : vector<2x128xf32>
      %1495 = vector.extract_strided_slice %1444 {offsets = [0, 9], sizes = [2, 1], strides = [1, 1]} : vector<2x32xf32> to vector<2x1xf32>
      %1496 = vector.extract_strided_slice %478 {offsets = [9, 0], sizes = [1, 128], strides = [1, 1]} : vector<32x128xf32> to vector<1x128xf32>
      %1497 = vector.broadcast %1495 : vector<2x1xf32> to vector<2x128xf32>
      %1498 = vector.broadcast %1496 : vector<1x128xf32> to vector<2x128xf32>
      %1499 = arith.mulf %1497, %1498 : vector<2x128xf32>
      %1500 = vector.extract_strided_slice %1444 {offsets = [0, 10], sizes = [2, 1], strides = [1, 1]} : vector<2x32xf32> to vector<2x1xf32>
      %1501 = vector.extract_strided_slice %478 {offsets = [10, 0], sizes = [1, 128], strides = [1, 1]} : vector<32x128xf32> to vector<1x128xf32>
      %1502 = vector.broadcast %1500 : vector<2x1xf32> to vector<2x128xf32>
      %1503 = vector.broadcast %1501 : vector<1x128xf32> to vector<2x128xf32>
      %1504 = arith.mulf %1502, %1503 : vector<2x128xf32>
      %1505 = vector.extract_strided_slice %1444 {offsets = [0, 11], sizes = [2, 1], strides = [1, 1]} : vector<2x32xf32> to vector<2x1xf32>
      %1506 = vector.extract_strided_slice %478 {offsets = [11, 0], sizes = [1, 128], strides = [1, 1]} : vector<32x128xf32> to vector<1x128xf32>
      %1507 = vector.broadcast %1505 : vector<2x1xf32> to vector<2x128xf32>
      %1508 = vector.broadcast %1506 : vector<1x128xf32> to vector<2x128xf32>
      %1509 = arith.mulf %1507, %1508 : vector<2x128xf32>
      %1510 = vector.extract_strided_slice %1444 {offsets = [0, 12], sizes = [2, 1], strides = [1, 1]} : vector<2x32xf32> to vector<2x1xf32>
      %1511 = vector.extract_strided_slice %478 {offsets = [12, 0], sizes = [1, 128], strides = [1, 1]} : vector<32x128xf32> to vector<1x128xf32>
      %1512 = vector.broadcast %1510 : vector<2x1xf32> to vector<2x128xf32>
      %1513 = vector.broadcast %1511 : vector<1x128xf32> to vector<2x128xf32>
      %1514 = arith.mulf %1512, %1513 : vector<2x128xf32>
      %1515 = vector.extract_strided_slice %1444 {offsets = [0, 13], sizes = [2, 1], strides = [1, 1]} : vector<2x32xf32> to vector<2x1xf32>
      %1516 = vector.extract_strided_slice %478 {offsets = [13, 0], sizes = [1, 128], strides = [1, 1]} : vector<32x128xf32> to vector<1x128xf32>
      %1517 = vector.broadcast %1515 : vector<2x1xf32> to vector<2x128xf32>
      %1518 = vector.broadcast %1516 : vector<1x128xf32> to vector<2x128xf32>
      %1519 = arith.mulf %1517, %1518 : vector<2x128xf32>
      %1520 = vector.extract_strided_slice %1444 {offsets = [0, 14], sizes = [2, 1], strides = [1, 1]} : vector<2x32xf32> to vector<2x1xf32>
      %1521 = vector.extract_strided_slice %478 {offsets = [14, 0], sizes = [1, 128], strides = [1, 1]} : vector<32x128xf32> to vector<1x128xf32>
      %1522 = vector.broadcast %1520 : vector<2x1xf32> to vector<2x128xf32>
      %1523 = vector.broadcast %1521 : vector<1x128xf32> to vector<2x128xf32>
      %1524 = arith.mulf %1522, %1523 : vector<2x128xf32>
      %1525 = vector.extract_strided_slice %1444 {offsets = [0, 15], sizes = [2, 1], strides = [1, 1]} : vector<2x32xf32> to vector<2x1xf32>
      %1526 = vector.extract_strided_slice %478 {offsets = [15, 0], sizes = [1, 128], strides = [1, 1]} : vector<32x128xf32> to vector<1x128xf32>
      %1527 = vector.broadcast %1525 : vector<2x1xf32> to vector<2x128xf32>
      %1528 = vector.broadcast %1526 : vector<1x128xf32> to vector<2x128xf32>
      %1529 = arith.mulf %1527, %1528 : vector<2x128xf32>
      %1530 = vector.extract_strided_slice %1444 {offsets = [0, 16], sizes = [2, 1], strides = [1, 1]} : vector<2x32xf32> to vector<2x1xf32>
      %1531 = vector.extract_strided_slice %478 {offsets = [16, 0], sizes = [1, 128], strides = [1, 1]} : vector<32x128xf32> to vector<1x128xf32>
      %1532 = vector.broadcast %1530 : vector<2x1xf32> to vector<2x128xf32>
      %1533 = vector.broadcast %1531 : vector<1x128xf32> to vector<2x128xf32>
      %1534 = arith.mulf %1532, %1533 : vector<2x128xf32>
      %1535 = vector.extract_strided_slice %1444 {offsets = [0, 17], sizes = [2, 1], strides = [1, 1]} : vector<2x32xf32> to vector<2x1xf32>
      %1536 = vector.extract_strided_slice %478 {offsets = [17, 0], sizes = [1, 128], strides = [1, 1]} : vector<32x128xf32> to vector<1x128xf32>
      %1537 = vector.broadcast %1535 : vector<2x1xf32> to vector<2x128xf32>
      %1538 = vector.broadcast %1536 : vector<1x128xf32> to vector<2x128xf32>
      %1539 = arith.mulf %1537, %1538 : vector<2x128xf32>
      %1540 = vector.extract_strided_slice %1444 {offsets = [0, 18], sizes = [2, 1], strides = [1, 1]} : vector<2x32xf32> to vector<2x1xf32>
      %1541 = vector.extract_strided_slice %478 {offsets = [18, 0], sizes = [1, 128], strides = [1, 1]} : vector<32x128xf32> to vector<1x128xf32>
      %1542 = vector.broadcast %1540 : vector<2x1xf32> to vector<2x128xf32>
      %1543 = vector.broadcast %1541 : vector<1x128xf32> to vector<2x128xf32>
      %1544 = arith.mulf %1542, %1543 : vector<2x128xf32>
      %1545 = vector.extract_strided_slice %1444 {offsets = [0, 19], sizes = [2, 1], strides = [1, 1]} : vector<2x32xf32> to vector<2x1xf32>
      %1546 = vector.extract_strided_slice %478 {offsets = [19, 0], sizes = [1, 128], strides = [1, 1]} : vector<32x128xf32> to vector<1x128xf32>
      %1547 = vector.broadcast %1545 : vector<2x1xf32> to vector<2x128xf32>
      %1548 = vector.broadcast %1546 : vector<1x128xf32> to vector<2x128xf32>
      %1549 = arith.mulf %1547, %1548 : vector<2x128xf32>
      %1550 = vector.extract_strided_slice %1444 {offsets = [0, 20], sizes = [2, 1], strides = [1, 1]} : vector<2x32xf32> to vector<2x1xf32>
      %1551 = vector.extract_strided_slice %478 {offsets = [20, 0], sizes = [1, 128], strides = [1, 1]} : vector<32x128xf32> to vector<1x128xf32>
      %1552 = vector.broadcast %1550 : vector<2x1xf32> to vector<2x128xf32>
      %1553 = vector.broadcast %1551 : vector<1x128xf32> to vector<2x128xf32>
      %1554 = arith.mulf %1552, %1553 : vector<2x128xf32>
      %1555 = vector.extract_strided_slice %1444 {offsets = [0, 21], sizes = [2, 1], strides = [1, 1]} : vector<2x32xf32> to vector<2x1xf32>
      %1556 = vector.extract_strided_slice %478 {offsets = [21, 0], sizes = [1, 128], strides = [1, 1]} : vector<32x128xf32> to vector<1x128xf32>
      %1557 = vector.broadcast %1555 : vector<2x1xf32> to vector<2x128xf32>
      %1558 = vector.broadcast %1556 : vector<1x128xf32> to vector<2x128xf32>
      %1559 = arith.mulf %1557, %1558 : vector<2x128xf32>
      %1560 = vector.extract_strided_slice %1444 {offsets = [0, 22], sizes = [2, 1], strides = [1, 1]} : vector<2x32xf32> to vector<2x1xf32>
      %1561 = vector.extract_strided_slice %478 {offsets = [22, 0], sizes = [1, 128], strides = [1, 1]} : vector<32x128xf32> to vector<1x128xf32>
      %1562 = vector.broadcast %1560 : vector<2x1xf32> to vector<2x128xf32>
      %1563 = vector.broadcast %1561 : vector<1x128xf32> to vector<2x128xf32>
      %1564 = arith.mulf %1562, %1563 : vector<2x128xf32>
      %1565 = vector.extract_strided_slice %1444 {offsets = [0, 23], sizes = [2, 1], strides = [1, 1]} : vector<2x32xf32> to vector<2x1xf32>
      %1566 = vector.extract_strided_slice %478 {offsets = [23, 0], sizes = [1, 128], strides = [1, 1]} : vector<32x128xf32> to vector<1x128xf32>
      %1567 = vector.broadcast %1565 : vector<2x1xf32> to vector<2x128xf32>
      %1568 = vector.broadcast %1566 : vector<1x128xf32> to vector<2x128xf32>
      %1569 = arith.mulf %1567, %1568 : vector<2x128xf32>
      %1570 = vector.extract_strided_slice %1444 {offsets = [0, 24], sizes = [2, 1], strides = [1, 1]} : vector<2x32xf32> to vector<2x1xf32>
      %1571 = vector.extract_strided_slice %478 {offsets = [24, 0], sizes = [1, 128], strides = [1, 1]} : vector<32x128xf32> to vector<1x128xf32>
      %1572 = vector.broadcast %1570 : vector<2x1xf32> to vector<2x128xf32>
      %1573 = vector.broadcast %1571 : vector<1x128xf32> to vector<2x128xf32>
      %1574 = arith.mulf %1572, %1573 : vector<2x128xf32>
      %1575 = vector.extract_strided_slice %1444 {offsets = [0, 25], sizes = [2, 1], strides = [1, 1]} : vector<2x32xf32> to vector<2x1xf32>
      %1576 = vector.extract_strided_slice %478 {offsets = [25, 0], sizes = [1, 128], strides = [1, 1]} : vector<32x128xf32> to vector<1x128xf32>
      %1577 = vector.broadcast %1575 : vector<2x1xf32> to vector<2x128xf32>
      %1578 = vector.broadcast %1576 : vector<1x128xf32> to vector<2x128xf32>
      %1579 = arith.mulf %1577, %1578 : vector<2x128xf32>
      %1580 = vector.extract_strided_slice %1444 {offsets = [0, 26], sizes = [2, 1], strides = [1, 1]} : vector<2x32xf32> to vector<2x1xf32>
      %1581 = vector.extract_strided_slice %478 {offsets = [26, 0], sizes = [1, 128], strides = [1, 1]} : vector<32x128xf32> to vector<1x128xf32>
      %1582 = vector.broadcast %1580 : vector<2x1xf32> to vector<2x128xf32>
      %1583 = vector.broadcast %1581 : vector<1x128xf32> to vector<2x128xf32>
      %1584 = arith.mulf %1582, %1583 : vector<2x128xf32>
      %1585 = vector.extract_strided_slice %1444 {offsets = [0, 27], sizes = [2, 1], strides = [1, 1]} : vector<2x32xf32> to vector<2x1xf32>
      %1586 = vector.extract_strided_slice %478 {offsets = [27, 0], sizes = [1, 128], strides = [1, 1]} : vector<32x128xf32> to vector<1x128xf32>
      %1587 = vector.broadcast %1585 : vector<2x1xf32> to vector<2x128xf32>
      %1588 = vector.broadcast %1586 : vector<1x128xf32> to vector<2x128xf32>
      %1589 = arith.mulf %1587, %1588 : vector<2x128xf32>
      %1590 = vector.extract_strided_slice %1444 {offsets = [0, 28], sizes = [2, 1], strides = [1, 1]} : vector<2x32xf32> to vector<2x1xf32>
      %1591 = vector.extract_strided_slice %478 {offsets = [28, 0], sizes = [1, 128], strides = [1, 1]} : vector<32x128xf32> to vector<1x128xf32>
      %1592 = vector.broadcast %1590 : vector<2x1xf32> to vector<2x128xf32>
      %1593 = vector.broadcast %1591 : vector<1x128xf32> to vector<2x128xf32>
      %1594 = arith.mulf %1592, %1593 : vector<2x128xf32>
      %1595 = vector.extract_strided_slice %1444 {offsets = [0, 29], sizes = [2, 1], strides = [1, 1]} : vector<2x32xf32> to vector<2x1xf32>
      %1596 = vector.extract_strided_slice %478 {offsets = [29, 0], sizes = [1, 128], strides = [1, 1]} : vector<32x128xf32> to vector<1x128xf32>
      %1597 = vector.broadcast %1595 : vector<2x1xf32> to vector<2x128xf32>
      %1598 = vector.broadcast %1596 : vector<1x128xf32> to vector<2x128xf32>
      %1599 = arith.mulf %1597, %1598 : vector<2x128xf32>
      %1600 = vector.extract_strided_slice %1444 {offsets = [0, 30], sizes = [2, 1], strides = [1, 1]} : vector<2x32xf32> to vector<2x1xf32>
      %1601 = vector.extract_strided_slice %478 {offsets = [30, 0], sizes = [1, 128], strides = [1, 1]} : vector<32x128xf32> to vector<1x128xf32>
      %1602 = vector.broadcast %1600 : vector<2x1xf32> to vector<2x128xf32>
      %1603 = vector.broadcast %1601 : vector<1x128xf32> to vector<2x128xf32>
      %1604 = arith.mulf %1602, %1603 : vector<2x128xf32>
      %1605 = vector.extract_strided_slice %1444 {offsets = [0, 31], sizes = [2, 1], strides = [1, 1]} : vector<2x32xf32> to vector<2x1xf32>
      %1606 = vector.extract_strided_slice %478 {offsets = [31, 0], sizes = [1, 128], strides = [1, 1]} : vector<32x128xf32> to vector<1x128xf32>
      %1607 = vector.broadcast %1605 : vector<2x1xf32> to vector<2x128xf32>
      %1608 = vector.broadcast %1606 : vector<1x128xf32> to vector<2x128xf32>
      %1609 = arith.mulf %1607, %1608 : vector<2x128xf32>
      %1610 = arith.addf %1454, %1459 : vector<2x128xf32>
      %1611 = arith.addf %1464, %1469 : vector<2x128xf32>
      %1612 = arith.addf %1474, %1479 : vector<2x128xf32>
      %1613 = arith.addf %1484, %1489 : vector<2x128xf32>
      %1614 = arith.addf %1494, %1499 : vector<2x128xf32>
      %1615 = arith.addf %1504, %1509 : vector<2x128xf32>
      %1616 = arith.addf %1514, %1519 : vector<2x128xf32>
      %1617 = arith.addf %1524, %1529 : vector<2x128xf32>
      %1618 = arith.addf %1534, %1539 : vector<2x128xf32>
      %1619 = arith.addf %1544, %1549 : vector<2x128xf32>
      %1620 = arith.addf %1554, %1559 : vector<2x128xf32>
      %1621 = arith.addf %1564, %1569 : vector<2x128xf32>
      %1622 = arith.addf %1574, %1579 : vector<2x128xf32>
      %1623 = arith.addf %1584, %1589 : vector<2x128xf32>
      %1624 = arith.addf %1594, %1599 : vector<2x128xf32>
      %1625 = arith.addf %1604, %1609 : vector<2x128xf32>
      %1626 = arith.addf %1610, %1611 : vector<2x128xf32>
      %1627 = arith.addf %1612, %1613 : vector<2x128xf32>
      %1628 = arith.addf %1614, %1615 : vector<2x128xf32>
      %1629 = arith.addf %1616, %1617 : vector<2x128xf32>
      %1630 = arith.addf %1618, %1619 : vector<2x128xf32>
      %1631 = arith.addf %1620, %1621 : vector<2x128xf32>
      %1632 = arith.addf %1622, %1623 : vector<2x128xf32>
      %1633 = arith.addf %1624, %1625 : vector<2x128xf32>
      %1634 = arith.addf %1626, %1627 : vector<2x128xf32>
      %1635 = arith.addf %1628, %1629 : vector<2x128xf32>
      %1636 = arith.addf %1630, %1631 : vector<2x128xf32>
      %1637 = arith.addf %1632, %1633 : vector<2x128xf32>
      %1638 = arith.addf %1634, %1635 : vector<2x128xf32>
      %1639 = arith.addf %1636, %1637 : vector<2x128xf32>
      %1640 = arith.addf %1638, %1639 : vector<2x128xf32>
      %1641 = arith.addf %1449, %1640 : vector<2x128xf32>
      %1642 = vector.broadcast %479 : vector<1x128xf32> to vector<2x128xf32>
      %1643 = arith.addf %1641, %1642 : vector<2x128xf32>
      %1644 = arith.negf %1643 : vector<2x128xf32>
      %1645 = math.exp %1644 : vector<2x128xf32>
      %cst_235 = arith.constant 1.000000e+00 : f32
      %1646 = vector.broadcast %cst_235 : f32 to vector<2x128xf32>
      %1647 = arith.addf %1646, %1645 : vector<2x128xf32>
      %1648 = arith.divf %1646, %1647 : vector<2x128xf32>
      %1649 = math.tanh %1643 : vector<2x128xf32>
      %1650 = vector.extract_strided_slice %1648 {offsets = [0, 0], sizes = [2, 32], strides = [1, 1]} : vector<2x128xf32> to vector<2x32xf32>
      %1651 = vector.extract_strided_slice %1648 {offsets = [0, 32], sizes = [2, 32], strides = [1, 1]} : vector<2x128xf32> to vector<2x32xf32>
      %1652 = vector.extract_strided_slice %1649 {offsets = [0, 64], sizes = [2, 32], strides = [1, 1]} : vector<2x128xf32> to vector<2x32xf32>
      %1653 = vector.extract_strided_slice %1648 {offsets = [0, 96], sizes = [2, 32], strides = [1, 1]} : vector<2x128xf32> to vector<2x32xf32>
      %1654 = arith.mulf %1651, %1442 : vector<2x32xf32>
      %1655 = arith.mulf %1650, %1652 : vector<2x32xf32>
      %1656 = arith.addf %1654, %1655 : vector<2x32xf32>
      %1657 = math.tanh %1656 : vector<2x32xf32>
      %1658 = arith.mulf %1653, %1657 : vector<2x32xf32>
      %1659 = vector.extract_strided_slice %560 {offsets = [0, 5], sizes = [2, 1], strides = [1, 1]} : vector<2x8xf32> to vector<2x1xf32>
      %1660 = vector.extract_strided_slice %450 {offsets = [0, 5, 0], sizes = [2, 1, 128], strides = [1, 1, 1]} : vector<2x8x128xf32> to vector<2x1x128xf32>
      %1661 = vector.shape_cast %1660 : vector<2x1x128xf32> to vector<2x128xf32>
      %1662 = vector.broadcast %1659 : vector<2x1xf32> to vector<2x128xf32>
      %1663 = arith.mulf %1662, %1661 : vector<2x128xf32>
      %1664 = vector.extract_strided_slice %1658 {offsets = [0, 0], sizes = [2, 1], strides = [1, 1]} : vector<2x32xf32> to vector<2x1xf32>
      %1665 = vector.extract_strided_slice %478 {offsets = [0, 0], sizes = [1, 128], strides = [1, 1]} : vector<32x128xf32> to vector<1x128xf32>
      %1666 = vector.broadcast %1664 : vector<2x1xf32> to vector<2x128xf32>
      %1667 = vector.broadcast %1665 : vector<1x128xf32> to vector<2x128xf32>
      %1668 = arith.mulf %1666, %1667 : vector<2x128xf32>
      %1669 = vector.extract_strided_slice %1658 {offsets = [0, 1], sizes = [2, 1], strides = [1, 1]} : vector<2x32xf32> to vector<2x1xf32>
      %1670 = vector.extract_strided_slice %478 {offsets = [1, 0], sizes = [1, 128], strides = [1, 1]} : vector<32x128xf32> to vector<1x128xf32>
      %1671 = vector.broadcast %1669 : vector<2x1xf32> to vector<2x128xf32>
      %1672 = vector.broadcast %1670 : vector<1x128xf32> to vector<2x128xf32>
      %1673 = arith.mulf %1671, %1672 : vector<2x128xf32>
      %1674 = vector.extract_strided_slice %1658 {offsets = [0, 2], sizes = [2, 1], strides = [1, 1]} : vector<2x32xf32> to vector<2x1xf32>
      %1675 = vector.extract_strided_slice %478 {offsets = [2, 0], sizes = [1, 128], strides = [1, 1]} : vector<32x128xf32> to vector<1x128xf32>
      %1676 = vector.broadcast %1674 : vector<2x1xf32> to vector<2x128xf32>
      %1677 = vector.broadcast %1675 : vector<1x128xf32> to vector<2x128xf32>
      %1678 = arith.mulf %1676, %1677 : vector<2x128xf32>
      %1679 = vector.extract_strided_slice %1658 {offsets = [0, 3], sizes = [2, 1], strides = [1, 1]} : vector<2x32xf32> to vector<2x1xf32>
      %1680 = vector.extract_strided_slice %478 {offsets = [3, 0], sizes = [1, 128], strides = [1, 1]} : vector<32x128xf32> to vector<1x128xf32>
      %1681 = vector.broadcast %1679 : vector<2x1xf32> to vector<2x128xf32>
      %1682 = vector.broadcast %1680 : vector<1x128xf32> to vector<2x128xf32>
      %1683 = arith.mulf %1681, %1682 : vector<2x128xf32>
      %1684 = vector.extract_strided_slice %1658 {offsets = [0, 4], sizes = [2, 1], strides = [1, 1]} : vector<2x32xf32> to vector<2x1xf32>
      %1685 = vector.extract_strided_slice %478 {offsets = [4, 0], sizes = [1, 128], strides = [1, 1]} : vector<32x128xf32> to vector<1x128xf32>
      %1686 = vector.broadcast %1684 : vector<2x1xf32> to vector<2x128xf32>
      %1687 = vector.broadcast %1685 : vector<1x128xf32> to vector<2x128xf32>
      %1688 = arith.mulf %1686, %1687 : vector<2x128xf32>
      %1689 = vector.extract_strided_slice %1658 {offsets = [0, 5], sizes = [2, 1], strides = [1, 1]} : vector<2x32xf32> to vector<2x1xf32>
      %1690 = vector.extract_strided_slice %478 {offsets = [5, 0], sizes = [1, 128], strides = [1, 1]} : vector<32x128xf32> to vector<1x128xf32>
      %1691 = vector.broadcast %1689 : vector<2x1xf32> to vector<2x128xf32>
      %1692 = vector.broadcast %1690 : vector<1x128xf32> to vector<2x128xf32>
      %1693 = arith.mulf %1691, %1692 : vector<2x128xf32>
      %1694 = vector.extract_strided_slice %1658 {offsets = [0, 6], sizes = [2, 1], strides = [1, 1]} : vector<2x32xf32> to vector<2x1xf32>
      %1695 = vector.extract_strided_slice %478 {offsets = [6, 0], sizes = [1, 128], strides = [1, 1]} : vector<32x128xf32> to vector<1x128xf32>
      %1696 = vector.broadcast %1694 : vector<2x1xf32> to vector<2x128xf32>
      %1697 = vector.broadcast %1695 : vector<1x128xf32> to vector<2x128xf32>
      %1698 = arith.mulf %1696, %1697 : vector<2x128xf32>
      %1699 = vector.extract_strided_slice %1658 {offsets = [0, 7], sizes = [2, 1], strides = [1, 1]} : vector<2x32xf32> to vector<2x1xf32>
      %1700 = vector.extract_strided_slice %478 {offsets = [7, 0], sizes = [1, 128], strides = [1, 1]} : vector<32x128xf32> to vector<1x128xf32>
      %1701 = vector.broadcast %1699 : vector<2x1xf32> to vector<2x128xf32>
      %1702 = vector.broadcast %1700 : vector<1x128xf32> to vector<2x128xf32>
      %1703 = arith.mulf %1701, %1702 : vector<2x128xf32>
      %1704 = vector.extract_strided_slice %1658 {offsets = [0, 8], sizes = [2, 1], strides = [1, 1]} : vector<2x32xf32> to vector<2x1xf32>
      %1705 = vector.extract_strided_slice %478 {offsets = [8, 0], sizes = [1, 128], strides = [1, 1]} : vector<32x128xf32> to vector<1x128xf32>
      %1706 = vector.broadcast %1704 : vector<2x1xf32> to vector<2x128xf32>
      %1707 = vector.broadcast %1705 : vector<1x128xf32> to vector<2x128xf32>
      %1708 = arith.mulf %1706, %1707 : vector<2x128xf32>
      %1709 = vector.extract_strided_slice %1658 {offsets = [0, 9], sizes = [2, 1], strides = [1, 1]} : vector<2x32xf32> to vector<2x1xf32>
      %1710 = vector.extract_strided_slice %478 {offsets = [9, 0], sizes = [1, 128], strides = [1, 1]} : vector<32x128xf32> to vector<1x128xf32>
      %1711 = vector.broadcast %1709 : vector<2x1xf32> to vector<2x128xf32>
      %1712 = vector.broadcast %1710 : vector<1x128xf32> to vector<2x128xf32>
      %1713 = arith.mulf %1711, %1712 : vector<2x128xf32>
      %1714 = vector.extract_strided_slice %1658 {offsets = [0, 10], sizes = [2, 1], strides = [1, 1]} : vector<2x32xf32> to vector<2x1xf32>
      %1715 = vector.extract_strided_slice %478 {offsets = [10, 0], sizes = [1, 128], strides = [1, 1]} : vector<32x128xf32> to vector<1x128xf32>
      %1716 = vector.broadcast %1714 : vector<2x1xf32> to vector<2x128xf32>
      %1717 = vector.broadcast %1715 : vector<1x128xf32> to vector<2x128xf32>
      %1718 = arith.mulf %1716, %1717 : vector<2x128xf32>
      %1719 = vector.extract_strided_slice %1658 {offsets = [0, 11], sizes = [2, 1], strides = [1, 1]} : vector<2x32xf32> to vector<2x1xf32>
      %1720 = vector.extract_strided_slice %478 {offsets = [11, 0], sizes = [1, 128], strides = [1, 1]} : vector<32x128xf32> to vector<1x128xf32>
      %1721 = vector.broadcast %1719 : vector<2x1xf32> to vector<2x128xf32>
      %1722 = vector.broadcast %1720 : vector<1x128xf32> to vector<2x128xf32>
      %1723 = arith.mulf %1721, %1722 : vector<2x128xf32>
      %1724 = vector.extract_strided_slice %1658 {offsets = [0, 12], sizes = [2, 1], strides = [1, 1]} : vector<2x32xf32> to vector<2x1xf32>
      %1725 = vector.extract_strided_slice %478 {offsets = [12, 0], sizes = [1, 128], strides = [1, 1]} : vector<32x128xf32> to vector<1x128xf32>
      %1726 = vector.broadcast %1724 : vector<2x1xf32> to vector<2x128xf32>
      %1727 = vector.broadcast %1725 : vector<1x128xf32> to vector<2x128xf32>
      %1728 = arith.mulf %1726, %1727 : vector<2x128xf32>
      %1729 = vector.extract_strided_slice %1658 {offsets = [0, 13], sizes = [2, 1], strides = [1, 1]} : vector<2x32xf32> to vector<2x1xf32>
      %1730 = vector.extract_strided_slice %478 {offsets = [13, 0], sizes = [1, 128], strides = [1, 1]} : vector<32x128xf32> to vector<1x128xf32>
      %1731 = vector.broadcast %1729 : vector<2x1xf32> to vector<2x128xf32>
      %1732 = vector.broadcast %1730 : vector<1x128xf32> to vector<2x128xf32>
      %1733 = arith.mulf %1731, %1732 : vector<2x128xf32>
      %1734 = vector.extract_strided_slice %1658 {offsets = [0, 14], sizes = [2, 1], strides = [1, 1]} : vector<2x32xf32> to vector<2x1xf32>
      %1735 = vector.extract_strided_slice %478 {offsets = [14, 0], sizes = [1, 128], strides = [1, 1]} : vector<32x128xf32> to vector<1x128xf32>
      %1736 = vector.broadcast %1734 : vector<2x1xf32> to vector<2x128xf32>
      %1737 = vector.broadcast %1735 : vector<1x128xf32> to vector<2x128xf32>
      %1738 = arith.mulf %1736, %1737 : vector<2x128xf32>
      %1739 = vector.extract_strided_slice %1658 {offsets = [0, 15], sizes = [2, 1], strides = [1, 1]} : vector<2x32xf32> to vector<2x1xf32>
      %1740 = vector.extract_strided_slice %478 {offsets = [15, 0], sizes = [1, 128], strides = [1, 1]} : vector<32x128xf32> to vector<1x128xf32>
      %1741 = vector.broadcast %1739 : vector<2x1xf32> to vector<2x128xf32>
      %1742 = vector.broadcast %1740 : vector<1x128xf32> to vector<2x128xf32>
      %1743 = arith.mulf %1741, %1742 : vector<2x128xf32>
      %1744 = vector.extract_strided_slice %1658 {offsets = [0, 16], sizes = [2, 1], strides = [1, 1]} : vector<2x32xf32> to vector<2x1xf32>
      %1745 = vector.extract_strided_slice %478 {offsets = [16, 0], sizes = [1, 128], strides = [1, 1]} : vector<32x128xf32> to vector<1x128xf32>
      %1746 = vector.broadcast %1744 : vector<2x1xf32> to vector<2x128xf32>
      %1747 = vector.broadcast %1745 : vector<1x128xf32> to vector<2x128xf32>
      %1748 = arith.mulf %1746, %1747 : vector<2x128xf32>
      %1749 = vector.extract_strided_slice %1658 {offsets = [0, 17], sizes = [2, 1], strides = [1, 1]} : vector<2x32xf32> to vector<2x1xf32>
      %1750 = vector.extract_strided_slice %478 {offsets = [17, 0], sizes = [1, 128], strides = [1, 1]} : vector<32x128xf32> to vector<1x128xf32>
      %1751 = vector.broadcast %1749 : vector<2x1xf32> to vector<2x128xf32>
      %1752 = vector.broadcast %1750 : vector<1x128xf32> to vector<2x128xf32>
      %1753 = arith.mulf %1751, %1752 : vector<2x128xf32>
      %1754 = vector.extract_strided_slice %1658 {offsets = [0, 18], sizes = [2, 1], strides = [1, 1]} : vector<2x32xf32> to vector<2x1xf32>
      %1755 = vector.extract_strided_slice %478 {offsets = [18, 0], sizes = [1, 128], strides = [1, 1]} : vector<32x128xf32> to vector<1x128xf32>
      %1756 = vector.broadcast %1754 : vector<2x1xf32> to vector<2x128xf32>
      %1757 = vector.broadcast %1755 : vector<1x128xf32> to vector<2x128xf32>
      %1758 = arith.mulf %1756, %1757 : vector<2x128xf32>
      %1759 = vector.extract_strided_slice %1658 {offsets = [0, 19], sizes = [2, 1], strides = [1, 1]} : vector<2x32xf32> to vector<2x1xf32>
      %1760 = vector.extract_strided_slice %478 {offsets = [19, 0], sizes = [1, 128], strides = [1, 1]} : vector<32x128xf32> to vector<1x128xf32>
      %1761 = vector.broadcast %1759 : vector<2x1xf32> to vector<2x128xf32>
      %1762 = vector.broadcast %1760 : vector<1x128xf32> to vector<2x128xf32>
      %1763 = arith.mulf %1761, %1762 : vector<2x128xf32>
      %1764 = vector.extract_strided_slice %1658 {offsets = [0, 20], sizes = [2, 1], strides = [1, 1]} : vector<2x32xf32> to vector<2x1xf32>
      %1765 = vector.extract_strided_slice %478 {offsets = [20, 0], sizes = [1, 128], strides = [1, 1]} : vector<32x128xf32> to vector<1x128xf32>
      %1766 = vector.broadcast %1764 : vector<2x1xf32> to vector<2x128xf32>
      %1767 = vector.broadcast %1765 : vector<1x128xf32> to vector<2x128xf32>
      %1768 = arith.mulf %1766, %1767 : vector<2x128xf32>
      %1769 = vector.extract_strided_slice %1658 {offsets = [0, 21], sizes = [2, 1], strides = [1, 1]} : vector<2x32xf32> to vector<2x1xf32>
      %1770 = vector.extract_strided_slice %478 {offsets = [21, 0], sizes = [1, 128], strides = [1, 1]} : vector<32x128xf32> to vector<1x128xf32>
      %1771 = vector.broadcast %1769 : vector<2x1xf32> to vector<2x128xf32>
      %1772 = vector.broadcast %1770 : vector<1x128xf32> to vector<2x128xf32>
      %1773 = arith.mulf %1771, %1772 : vector<2x128xf32>
      %1774 = vector.extract_strided_slice %1658 {offsets = [0, 22], sizes = [2, 1], strides = [1, 1]} : vector<2x32xf32> to vector<2x1xf32>
      %1775 = vector.extract_strided_slice %478 {offsets = [22, 0], sizes = [1, 128], strides = [1, 1]} : vector<32x128xf32> to vector<1x128xf32>
      %1776 = vector.broadcast %1774 : vector<2x1xf32> to vector<2x128xf32>
      %1777 = vector.broadcast %1775 : vector<1x128xf32> to vector<2x128xf32>
      %1778 = arith.mulf %1776, %1777 : vector<2x128xf32>
      %1779 = vector.extract_strided_slice %1658 {offsets = [0, 23], sizes = [2, 1], strides = [1, 1]} : vector<2x32xf32> to vector<2x1xf32>
      %1780 = vector.extract_strided_slice %478 {offsets = [23, 0], sizes = [1, 128], strides = [1, 1]} : vector<32x128xf32> to vector<1x128xf32>
      %1781 = vector.broadcast %1779 : vector<2x1xf32> to vector<2x128xf32>
      %1782 = vector.broadcast %1780 : vector<1x128xf32> to vector<2x128xf32>
      %1783 = arith.mulf %1781, %1782 : vector<2x128xf32>
      %1784 = vector.extract_strided_slice %1658 {offsets = [0, 24], sizes = [2, 1], strides = [1, 1]} : vector<2x32xf32> to vector<2x1xf32>
      %1785 = vector.extract_strided_slice %478 {offsets = [24, 0], sizes = [1, 128], strides = [1, 1]} : vector<32x128xf32> to vector<1x128xf32>
      %1786 = vector.broadcast %1784 : vector<2x1xf32> to vector<2x128xf32>
      %1787 = vector.broadcast %1785 : vector<1x128xf32> to vector<2x128xf32>
      %1788 = arith.mulf %1786, %1787 : vector<2x128xf32>
      %1789 = vector.extract_strided_slice %1658 {offsets = [0, 25], sizes = [2, 1], strides = [1, 1]} : vector<2x32xf32> to vector<2x1xf32>
      %1790 = vector.extract_strided_slice %478 {offsets = [25, 0], sizes = [1, 128], strides = [1, 1]} : vector<32x128xf32> to vector<1x128xf32>
      %1791 = vector.broadcast %1789 : vector<2x1xf32> to vector<2x128xf32>
      %1792 = vector.broadcast %1790 : vector<1x128xf32> to vector<2x128xf32>
      %1793 = arith.mulf %1791, %1792 : vector<2x128xf32>
      %1794 = vector.extract_strided_slice %1658 {offsets = [0, 26], sizes = [2, 1], strides = [1, 1]} : vector<2x32xf32> to vector<2x1xf32>
      %1795 = vector.extract_strided_slice %478 {offsets = [26, 0], sizes = [1, 128], strides = [1, 1]} : vector<32x128xf32> to vector<1x128xf32>
      %1796 = vector.broadcast %1794 : vector<2x1xf32> to vector<2x128xf32>
      %1797 = vector.broadcast %1795 : vector<1x128xf32> to vector<2x128xf32>
      %1798 = arith.mulf %1796, %1797 : vector<2x128xf32>
      %1799 = vector.extract_strided_slice %1658 {offsets = [0, 27], sizes = [2, 1], strides = [1, 1]} : vector<2x32xf32> to vector<2x1xf32>
      %1800 = vector.extract_strided_slice %478 {offsets = [27, 0], sizes = [1, 128], strides = [1, 1]} : vector<32x128xf32> to vector<1x128xf32>
      %1801 = vector.broadcast %1799 : vector<2x1xf32> to vector<2x128xf32>
      %1802 = vector.broadcast %1800 : vector<1x128xf32> to vector<2x128xf32>
      %1803 = arith.mulf %1801, %1802 : vector<2x128xf32>
      %1804 = vector.extract_strided_slice %1658 {offsets = [0, 28], sizes = [2, 1], strides = [1, 1]} : vector<2x32xf32> to vector<2x1xf32>
      %1805 = vector.extract_strided_slice %478 {offsets = [28, 0], sizes = [1, 128], strides = [1, 1]} : vector<32x128xf32> to vector<1x128xf32>
      %1806 = vector.broadcast %1804 : vector<2x1xf32> to vector<2x128xf32>
      %1807 = vector.broadcast %1805 : vector<1x128xf32> to vector<2x128xf32>
      %1808 = arith.mulf %1806, %1807 : vector<2x128xf32>
      %1809 = vector.extract_strided_slice %1658 {offsets = [0, 29], sizes = [2, 1], strides = [1, 1]} : vector<2x32xf32> to vector<2x1xf32>
      %1810 = vector.extract_strided_slice %478 {offsets = [29, 0], sizes = [1, 128], strides = [1, 1]} : vector<32x128xf32> to vector<1x128xf32>
      %1811 = vector.broadcast %1809 : vector<2x1xf32> to vector<2x128xf32>
      %1812 = vector.broadcast %1810 : vector<1x128xf32> to vector<2x128xf32>
      %1813 = arith.mulf %1811, %1812 : vector<2x128xf32>
      %1814 = vector.extract_strided_slice %1658 {offsets = [0, 30], sizes = [2, 1], strides = [1, 1]} : vector<2x32xf32> to vector<2x1xf32>
      %1815 = vector.extract_strided_slice %478 {offsets = [30, 0], sizes = [1, 128], strides = [1, 1]} : vector<32x128xf32> to vector<1x128xf32>
      %1816 = vector.broadcast %1814 : vector<2x1xf32> to vector<2x128xf32>
      %1817 = vector.broadcast %1815 : vector<1x128xf32> to vector<2x128xf32>
      %1818 = arith.mulf %1816, %1817 : vector<2x128xf32>
      %1819 = vector.extract_strided_slice %1658 {offsets = [0, 31], sizes = [2, 1], strides = [1, 1]} : vector<2x32xf32> to vector<2x1xf32>
      %1820 = vector.extract_strided_slice %478 {offsets = [31, 0], sizes = [1, 128], strides = [1, 1]} : vector<32x128xf32> to vector<1x128xf32>
      %1821 = vector.broadcast %1819 : vector<2x1xf32> to vector<2x128xf32>
      %1822 = vector.broadcast %1820 : vector<1x128xf32> to vector<2x128xf32>
      %1823 = arith.mulf %1821, %1822 : vector<2x128xf32>
      %1824 = arith.addf %1668, %1673 : vector<2x128xf32>
      %1825 = arith.addf %1678, %1683 : vector<2x128xf32>
      %1826 = arith.addf %1688, %1693 : vector<2x128xf32>
      %1827 = arith.addf %1698, %1703 : vector<2x128xf32>
      %1828 = arith.addf %1708, %1713 : vector<2x128xf32>
      %1829 = arith.addf %1718, %1723 : vector<2x128xf32>
      %1830 = arith.addf %1728, %1733 : vector<2x128xf32>
      %1831 = arith.addf %1738, %1743 : vector<2x128xf32>
      %1832 = arith.addf %1748, %1753 : vector<2x128xf32>
      %1833 = arith.addf %1758, %1763 : vector<2x128xf32>
      %1834 = arith.addf %1768, %1773 : vector<2x128xf32>
      %1835 = arith.addf %1778, %1783 : vector<2x128xf32>
      %1836 = arith.addf %1788, %1793 : vector<2x128xf32>
      %1837 = arith.addf %1798, %1803 : vector<2x128xf32>
      %1838 = arith.addf %1808, %1813 : vector<2x128xf32>
      %1839 = arith.addf %1818, %1823 : vector<2x128xf32>
      %1840 = arith.addf %1824, %1825 : vector<2x128xf32>
      %1841 = arith.addf %1826, %1827 : vector<2x128xf32>
      %1842 = arith.addf %1828, %1829 : vector<2x128xf32>
      %1843 = arith.addf %1830, %1831 : vector<2x128xf32>
      %1844 = arith.addf %1832, %1833 : vector<2x128xf32>
      %1845 = arith.addf %1834, %1835 : vector<2x128xf32>
      %1846 = arith.addf %1836, %1837 : vector<2x128xf32>
      %1847 = arith.addf %1838, %1839 : vector<2x128xf32>
      %1848 = arith.addf %1840, %1841 : vector<2x128xf32>
      %1849 = arith.addf %1842, %1843 : vector<2x128xf32>
      %1850 = arith.addf %1844, %1845 : vector<2x128xf32>
      %1851 = arith.addf %1846, %1847 : vector<2x128xf32>
      %1852 = arith.addf %1848, %1849 : vector<2x128xf32>
      %1853 = arith.addf %1850, %1851 : vector<2x128xf32>
      %1854 = arith.addf %1852, %1853 : vector<2x128xf32>
      %1855 = arith.addf %1663, %1854 : vector<2x128xf32>
      %1856 = vector.broadcast %479 : vector<1x128xf32> to vector<2x128xf32>
      %1857 = arith.addf %1855, %1856 : vector<2x128xf32>
      %1858 = arith.negf %1857 : vector<2x128xf32>
      %1859 = math.exp %1858 : vector<2x128xf32>
      %cst_236 = arith.constant 1.000000e+00 : f32
      %1860 = vector.broadcast %cst_236 : f32 to vector<2x128xf32>
      %1861 = arith.addf %1860, %1859 : vector<2x128xf32>
      %1862 = arith.divf %1860, %1861 : vector<2x128xf32>
      %1863 = math.tanh %1857 : vector<2x128xf32>
      %1864 = vector.extract_strided_slice %1862 {offsets = [0, 0], sizes = [2, 32], strides = [1, 1]} : vector<2x128xf32> to vector<2x32xf32>
      %1865 = vector.extract_strided_slice %1862 {offsets = [0, 32], sizes = [2, 32], strides = [1, 1]} : vector<2x128xf32> to vector<2x32xf32>
      %1866 = vector.extract_strided_slice %1863 {offsets = [0, 64], sizes = [2, 32], strides = [1, 1]} : vector<2x128xf32> to vector<2x32xf32>
      %1867 = vector.extract_strided_slice %1862 {offsets = [0, 96], sizes = [2, 32], strides = [1, 1]} : vector<2x128xf32> to vector<2x32xf32>
      %1868 = arith.mulf %1865, %1656 : vector<2x32xf32>
      %1869 = arith.mulf %1864, %1866 : vector<2x32xf32>
      %1870 = arith.addf %1868, %1869 : vector<2x32xf32>
      %1871 = math.tanh %1870 : vector<2x32xf32>
      %1872 = arith.mulf %1867, %1871 : vector<2x32xf32>
      %1873 = vector.extract_strided_slice %560 {offsets = [0, 6], sizes = [2, 1], strides = [1, 1]} : vector<2x8xf32> to vector<2x1xf32>
      %1874 = vector.extract_strided_slice %450 {offsets = [0, 6, 0], sizes = [2, 1, 128], strides = [1, 1, 1]} : vector<2x8x128xf32> to vector<2x1x128xf32>
      %1875 = vector.shape_cast %1874 : vector<2x1x128xf32> to vector<2x128xf32>
      %1876 = vector.broadcast %1873 : vector<2x1xf32> to vector<2x128xf32>
      %1877 = arith.mulf %1876, %1875 : vector<2x128xf32>
      %1878 = vector.extract_strided_slice %1872 {offsets = [0, 0], sizes = [2, 1], strides = [1, 1]} : vector<2x32xf32> to vector<2x1xf32>
      %1879 = vector.extract_strided_slice %478 {offsets = [0, 0], sizes = [1, 128], strides = [1, 1]} : vector<32x128xf32> to vector<1x128xf32>
      %1880 = vector.broadcast %1878 : vector<2x1xf32> to vector<2x128xf32>
      %1881 = vector.broadcast %1879 : vector<1x128xf32> to vector<2x128xf32>
      %1882 = arith.mulf %1880, %1881 : vector<2x128xf32>
      %1883 = vector.extract_strided_slice %1872 {offsets = [0, 1], sizes = [2, 1], strides = [1, 1]} : vector<2x32xf32> to vector<2x1xf32>
      %1884 = vector.extract_strided_slice %478 {offsets = [1, 0], sizes = [1, 128], strides = [1, 1]} : vector<32x128xf32> to vector<1x128xf32>
      %1885 = vector.broadcast %1883 : vector<2x1xf32> to vector<2x128xf32>
      %1886 = vector.broadcast %1884 : vector<1x128xf32> to vector<2x128xf32>
      %1887 = arith.mulf %1885, %1886 : vector<2x128xf32>
      %1888 = vector.extract_strided_slice %1872 {offsets = [0, 2], sizes = [2, 1], strides = [1, 1]} : vector<2x32xf32> to vector<2x1xf32>
      %1889 = vector.extract_strided_slice %478 {offsets = [2, 0], sizes = [1, 128], strides = [1, 1]} : vector<32x128xf32> to vector<1x128xf32>
      %1890 = vector.broadcast %1888 : vector<2x1xf32> to vector<2x128xf32>
      %1891 = vector.broadcast %1889 : vector<1x128xf32> to vector<2x128xf32>
      %1892 = arith.mulf %1890, %1891 : vector<2x128xf32>
      %1893 = vector.extract_strided_slice %1872 {offsets = [0, 3], sizes = [2, 1], strides = [1, 1]} : vector<2x32xf32> to vector<2x1xf32>
      %1894 = vector.extract_strided_slice %478 {offsets = [3, 0], sizes = [1, 128], strides = [1, 1]} : vector<32x128xf32> to vector<1x128xf32>
      %1895 = vector.broadcast %1893 : vector<2x1xf32> to vector<2x128xf32>
      %1896 = vector.broadcast %1894 : vector<1x128xf32> to vector<2x128xf32>
      %1897 = arith.mulf %1895, %1896 : vector<2x128xf32>
      %1898 = vector.extract_strided_slice %1872 {offsets = [0, 4], sizes = [2, 1], strides = [1, 1]} : vector<2x32xf32> to vector<2x1xf32>
      %1899 = vector.extract_strided_slice %478 {offsets = [4, 0], sizes = [1, 128], strides = [1, 1]} : vector<32x128xf32> to vector<1x128xf32>
      %1900 = vector.broadcast %1898 : vector<2x1xf32> to vector<2x128xf32>
      %1901 = vector.broadcast %1899 : vector<1x128xf32> to vector<2x128xf32>
      %1902 = arith.mulf %1900, %1901 : vector<2x128xf32>
      %1903 = vector.extract_strided_slice %1872 {offsets = [0, 5], sizes = [2, 1], strides = [1, 1]} : vector<2x32xf32> to vector<2x1xf32>
      %1904 = vector.extract_strided_slice %478 {offsets = [5, 0], sizes = [1, 128], strides = [1, 1]} : vector<32x128xf32> to vector<1x128xf32>
      %1905 = vector.broadcast %1903 : vector<2x1xf32> to vector<2x128xf32>
      %1906 = vector.broadcast %1904 : vector<1x128xf32> to vector<2x128xf32>
      %1907 = arith.mulf %1905, %1906 : vector<2x128xf32>
      %1908 = vector.extract_strided_slice %1872 {offsets = [0, 6], sizes = [2, 1], strides = [1, 1]} : vector<2x32xf32> to vector<2x1xf32>
      %1909 = vector.extract_strided_slice %478 {offsets = [6, 0], sizes = [1, 128], strides = [1, 1]} : vector<32x128xf32> to vector<1x128xf32>
      %1910 = vector.broadcast %1908 : vector<2x1xf32> to vector<2x128xf32>
      %1911 = vector.broadcast %1909 : vector<1x128xf32> to vector<2x128xf32>
      %1912 = arith.mulf %1910, %1911 : vector<2x128xf32>
      %1913 = vector.extract_strided_slice %1872 {offsets = [0, 7], sizes = [2, 1], strides = [1, 1]} : vector<2x32xf32> to vector<2x1xf32>
      %1914 = vector.extract_strided_slice %478 {offsets = [7, 0], sizes = [1, 128], strides = [1, 1]} : vector<32x128xf32> to vector<1x128xf32>
      %1915 = vector.broadcast %1913 : vector<2x1xf32> to vector<2x128xf32>
      %1916 = vector.broadcast %1914 : vector<1x128xf32> to vector<2x128xf32>
      %1917 = arith.mulf %1915, %1916 : vector<2x128xf32>
      %1918 = vector.extract_strided_slice %1872 {offsets = [0, 8], sizes = [2, 1], strides = [1, 1]} : vector<2x32xf32> to vector<2x1xf32>
      %1919 = vector.extract_strided_slice %478 {offsets = [8, 0], sizes = [1, 128], strides = [1, 1]} : vector<32x128xf32> to vector<1x128xf32>
      %1920 = vector.broadcast %1918 : vector<2x1xf32> to vector<2x128xf32>
      %1921 = vector.broadcast %1919 : vector<1x128xf32> to vector<2x128xf32>
      %1922 = arith.mulf %1920, %1921 : vector<2x128xf32>
      %1923 = vector.extract_strided_slice %1872 {offsets = [0, 9], sizes = [2, 1], strides = [1, 1]} : vector<2x32xf32> to vector<2x1xf32>
      %1924 = vector.extract_strided_slice %478 {offsets = [9, 0], sizes = [1, 128], strides = [1, 1]} : vector<32x128xf32> to vector<1x128xf32>
      %1925 = vector.broadcast %1923 : vector<2x1xf32> to vector<2x128xf32>
      %1926 = vector.broadcast %1924 : vector<1x128xf32> to vector<2x128xf32>
      %1927 = arith.mulf %1925, %1926 : vector<2x128xf32>
      %1928 = vector.extract_strided_slice %1872 {offsets = [0, 10], sizes = [2, 1], strides = [1, 1]} : vector<2x32xf32> to vector<2x1xf32>
      %1929 = vector.extract_strided_slice %478 {offsets = [10, 0], sizes = [1, 128], strides = [1, 1]} : vector<32x128xf32> to vector<1x128xf32>
      %1930 = vector.broadcast %1928 : vector<2x1xf32> to vector<2x128xf32>
      %1931 = vector.broadcast %1929 : vector<1x128xf32> to vector<2x128xf32>
      %1932 = arith.mulf %1930, %1931 : vector<2x128xf32>
      %1933 = vector.extract_strided_slice %1872 {offsets = [0, 11], sizes = [2, 1], strides = [1, 1]} : vector<2x32xf32> to vector<2x1xf32>
      %1934 = vector.extract_strided_slice %478 {offsets = [11, 0], sizes = [1, 128], strides = [1, 1]} : vector<32x128xf32> to vector<1x128xf32>
      %1935 = vector.broadcast %1933 : vector<2x1xf32> to vector<2x128xf32>
      %1936 = vector.broadcast %1934 : vector<1x128xf32> to vector<2x128xf32>
      %1937 = arith.mulf %1935, %1936 : vector<2x128xf32>
      %1938 = vector.extract_strided_slice %1872 {offsets = [0, 12], sizes = [2, 1], strides = [1, 1]} : vector<2x32xf32> to vector<2x1xf32>
      %1939 = vector.extract_strided_slice %478 {offsets = [12, 0], sizes = [1, 128], strides = [1, 1]} : vector<32x128xf32> to vector<1x128xf32>
      %1940 = vector.broadcast %1938 : vector<2x1xf32> to vector<2x128xf32>
      %1941 = vector.broadcast %1939 : vector<1x128xf32> to vector<2x128xf32>
      %1942 = arith.mulf %1940, %1941 : vector<2x128xf32>
      %1943 = vector.extract_strided_slice %1872 {offsets = [0, 13], sizes = [2, 1], strides = [1, 1]} : vector<2x32xf32> to vector<2x1xf32>
      %1944 = vector.extract_strided_slice %478 {offsets = [13, 0], sizes = [1, 128], strides = [1, 1]} : vector<32x128xf32> to vector<1x128xf32>
      %1945 = vector.broadcast %1943 : vector<2x1xf32> to vector<2x128xf32>
      %1946 = vector.broadcast %1944 : vector<1x128xf32> to vector<2x128xf32>
      %1947 = arith.mulf %1945, %1946 : vector<2x128xf32>
      %1948 = vector.extract_strided_slice %1872 {offsets = [0, 14], sizes = [2, 1], strides = [1, 1]} : vector<2x32xf32> to vector<2x1xf32>
      %1949 = vector.extract_strided_slice %478 {offsets = [14, 0], sizes = [1, 128], strides = [1, 1]} : vector<32x128xf32> to vector<1x128xf32>
      %1950 = vector.broadcast %1948 : vector<2x1xf32> to vector<2x128xf32>
      %1951 = vector.broadcast %1949 : vector<1x128xf32> to vector<2x128xf32>
      %1952 = arith.mulf %1950, %1951 : vector<2x128xf32>
      %1953 = vector.extract_strided_slice %1872 {offsets = [0, 15], sizes = [2, 1], strides = [1, 1]} : vector<2x32xf32> to vector<2x1xf32>
      %1954 = vector.extract_strided_slice %478 {offsets = [15, 0], sizes = [1, 128], strides = [1, 1]} : vector<32x128xf32> to vector<1x128xf32>
      %1955 = vector.broadcast %1953 : vector<2x1xf32> to vector<2x128xf32>
      %1956 = vector.broadcast %1954 : vector<1x128xf32> to vector<2x128xf32>
      %1957 = arith.mulf %1955, %1956 : vector<2x128xf32>
      %1958 = vector.extract_strided_slice %1872 {offsets = [0, 16], sizes = [2, 1], strides = [1, 1]} : vector<2x32xf32> to vector<2x1xf32>
      %1959 = vector.extract_strided_slice %478 {offsets = [16, 0], sizes = [1, 128], strides = [1, 1]} : vector<32x128xf32> to vector<1x128xf32>
      %1960 = vector.broadcast %1958 : vector<2x1xf32> to vector<2x128xf32>
      %1961 = vector.broadcast %1959 : vector<1x128xf32> to vector<2x128xf32>
      %1962 = arith.mulf %1960, %1961 : vector<2x128xf32>
      %1963 = vector.extract_strided_slice %1872 {offsets = [0, 17], sizes = [2, 1], strides = [1, 1]} : vector<2x32xf32> to vector<2x1xf32>
      %1964 = vector.extract_strided_slice %478 {offsets = [17, 0], sizes = [1, 128], strides = [1, 1]} : vector<32x128xf32> to vector<1x128xf32>
      %1965 = vector.broadcast %1963 : vector<2x1xf32> to vector<2x128xf32>
      %1966 = vector.broadcast %1964 : vector<1x128xf32> to vector<2x128xf32>
      %1967 = arith.mulf %1965, %1966 : vector<2x128xf32>
      %1968 = vector.extract_strided_slice %1872 {offsets = [0, 18], sizes = [2, 1], strides = [1, 1]} : vector<2x32xf32> to vector<2x1xf32>
      %1969 = vector.extract_strided_slice %478 {offsets = [18, 0], sizes = [1, 128], strides = [1, 1]} : vector<32x128xf32> to vector<1x128xf32>
      %1970 = vector.broadcast %1968 : vector<2x1xf32> to vector<2x128xf32>
      %1971 = vector.broadcast %1969 : vector<1x128xf32> to vector<2x128xf32>
      %1972 = arith.mulf %1970, %1971 : vector<2x128xf32>
      %1973 = vector.extract_strided_slice %1872 {offsets = [0, 19], sizes = [2, 1], strides = [1, 1]} : vector<2x32xf32> to vector<2x1xf32>
      %1974 = vector.extract_strided_slice %478 {offsets = [19, 0], sizes = [1, 128], strides = [1, 1]} : vector<32x128xf32> to vector<1x128xf32>
      %1975 = vector.broadcast %1973 : vector<2x1xf32> to vector<2x128xf32>
      %1976 = vector.broadcast %1974 : vector<1x128xf32> to vector<2x128xf32>
      %1977 = arith.mulf %1975, %1976 : vector<2x128xf32>
      %1978 = vector.extract_strided_slice %1872 {offsets = [0, 20], sizes = [2, 1], strides = [1, 1]} : vector<2x32xf32> to vector<2x1xf32>
      %1979 = vector.extract_strided_slice %478 {offsets = [20, 0], sizes = [1, 128], strides = [1, 1]} : vector<32x128xf32> to vector<1x128xf32>
      %1980 = vector.broadcast %1978 : vector<2x1xf32> to vector<2x128xf32>
      %1981 = vector.broadcast %1979 : vector<1x128xf32> to vector<2x128xf32>
      %1982 = arith.mulf %1980, %1981 : vector<2x128xf32>
      %1983 = vector.extract_strided_slice %1872 {offsets = [0, 21], sizes = [2, 1], strides = [1, 1]} : vector<2x32xf32> to vector<2x1xf32>
      %1984 = vector.extract_strided_slice %478 {offsets = [21, 0], sizes = [1, 128], strides = [1, 1]} : vector<32x128xf32> to vector<1x128xf32>
      %1985 = vector.broadcast %1983 : vector<2x1xf32> to vector<2x128xf32>
      %1986 = vector.broadcast %1984 : vector<1x128xf32> to vector<2x128xf32>
      %1987 = arith.mulf %1985, %1986 : vector<2x128xf32>
      %1988 = vector.extract_strided_slice %1872 {offsets = [0, 22], sizes = [2, 1], strides = [1, 1]} : vector<2x32xf32> to vector<2x1xf32>
      %1989 = vector.extract_strided_slice %478 {offsets = [22, 0], sizes = [1, 128], strides = [1, 1]} : vector<32x128xf32> to vector<1x128xf32>
      %1990 = vector.broadcast %1988 : vector<2x1xf32> to vector<2x128xf32>
      %1991 = vector.broadcast %1989 : vector<1x128xf32> to vector<2x128xf32>
      %1992 = arith.mulf %1990, %1991 : vector<2x128xf32>
      %1993 = vector.extract_strided_slice %1872 {offsets = [0, 23], sizes = [2, 1], strides = [1, 1]} : vector<2x32xf32> to vector<2x1xf32>
      %1994 = vector.extract_strided_slice %478 {offsets = [23, 0], sizes = [1, 128], strides = [1, 1]} : vector<32x128xf32> to vector<1x128xf32>
      %1995 = vector.broadcast %1993 : vector<2x1xf32> to vector<2x128xf32>
      %1996 = vector.broadcast %1994 : vector<1x128xf32> to vector<2x128xf32>
      %1997 = arith.mulf %1995, %1996 : vector<2x128xf32>
      %1998 = vector.extract_strided_slice %1872 {offsets = [0, 24], sizes = [2, 1], strides = [1, 1]} : vector<2x32xf32> to vector<2x1xf32>
      %1999 = vector.extract_strided_slice %478 {offsets = [24, 0], sizes = [1, 128], strides = [1, 1]} : vector<32x128xf32> to vector<1x128xf32>
      %2000 = vector.broadcast %1998 : vector<2x1xf32> to vector<2x128xf32>
      %2001 = vector.broadcast %1999 : vector<1x128xf32> to vector<2x128xf32>
      %2002 = arith.mulf %2000, %2001 : vector<2x128xf32>
      %2003 = vector.extract_strided_slice %1872 {offsets = [0, 25], sizes = [2, 1], strides = [1, 1]} : vector<2x32xf32> to vector<2x1xf32>
      %2004 = vector.extract_strided_slice %478 {offsets = [25, 0], sizes = [1, 128], strides = [1, 1]} : vector<32x128xf32> to vector<1x128xf32>
      %2005 = vector.broadcast %2003 : vector<2x1xf32> to vector<2x128xf32>
      %2006 = vector.broadcast %2004 : vector<1x128xf32> to vector<2x128xf32>
      %2007 = arith.mulf %2005, %2006 : vector<2x128xf32>
      %2008 = vector.extract_strided_slice %1872 {offsets = [0, 26], sizes = [2, 1], strides = [1, 1]} : vector<2x32xf32> to vector<2x1xf32>
      %2009 = vector.extract_strided_slice %478 {offsets = [26, 0], sizes = [1, 128], strides = [1, 1]} : vector<32x128xf32> to vector<1x128xf32>
      %2010 = vector.broadcast %2008 : vector<2x1xf32> to vector<2x128xf32>
      %2011 = vector.broadcast %2009 : vector<1x128xf32> to vector<2x128xf32>
      %2012 = arith.mulf %2010, %2011 : vector<2x128xf32>
      %2013 = vector.extract_strided_slice %1872 {offsets = [0, 27], sizes = [2, 1], strides = [1, 1]} : vector<2x32xf32> to vector<2x1xf32>
      %2014 = vector.extract_strided_slice %478 {offsets = [27, 0], sizes = [1, 128], strides = [1, 1]} : vector<32x128xf32> to vector<1x128xf32>
      %2015 = vector.broadcast %2013 : vector<2x1xf32> to vector<2x128xf32>
      %2016 = vector.broadcast %2014 : vector<1x128xf32> to vector<2x128xf32>
      %2017 = arith.mulf %2015, %2016 : vector<2x128xf32>
      %2018 = vector.extract_strided_slice %1872 {offsets = [0, 28], sizes = [2, 1], strides = [1, 1]} : vector<2x32xf32> to vector<2x1xf32>
      %2019 = vector.extract_strided_slice %478 {offsets = [28, 0], sizes = [1, 128], strides = [1, 1]} : vector<32x128xf32> to vector<1x128xf32>
      %2020 = vector.broadcast %2018 : vector<2x1xf32> to vector<2x128xf32>
      %2021 = vector.broadcast %2019 : vector<1x128xf32> to vector<2x128xf32>
      %2022 = arith.mulf %2020, %2021 : vector<2x128xf32>
      %2023 = vector.extract_strided_slice %1872 {offsets = [0, 29], sizes = [2, 1], strides = [1, 1]} : vector<2x32xf32> to vector<2x1xf32>
      %2024 = vector.extract_strided_slice %478 {offsets = [29, 0], sizes = [1, 128], strides = [1, 1]} : vector<32x128xf32> to vector<1x128xf32>
      %2025 = vector.broadcast %2023 : vector<2x1xf32> to vector<2x128xf32>
      %2026 = vector.broadcast %2024 : vector<1x128xf32> to vector<2x128xf32>
      %2027 = arith.mulf %2025, %2026 : vector<2x128xf32>
      %2028 = vector.extract_strided_slice %1872 {offsets = [0, 30], sizes = [2, 1], strides = [1, 1]} : vector<2x32xf32> to vector<2x1xf32>
      %2029 = vector.extract_strided_slice %478 {offsets = [30, 0], sizes = [1, 128], strides = [1, 1]} : vector<32x128xf32> to vector<1x128xf32>
      %2030 = vector.broadcast %2028 : vector<2x1xf32> to vector<2x128xf32>
      %2031 = vector.broadcast %2029 : vector<1x128xf32> to vector<2x128xf32>
      %2032 = arith.mulf %2030, %2031 : vector<2x128xf32>
      %2033 = vector.extract_strided_slice %1872 {offsets = [0, 31], sizes = [2, 1], strides = [1, 1]} : vector<2x32xf32> to vector<2x1xf32>
      %2034 = vector.extract_strided_slice %478 {offsets = [31, 0], sizes = [1, 128], strides = [1, 1]} : vector<32x128xf32> to vector<1x128xf32>
      %2035 = vector.broadcast %2033 : vector<2x1xf32> to vector<2x128xf32>
      %2036 = vector.broadcast %2034 : vector<1x128xf32> to vector<2x128xf32>
      %2037 = arith.mulf %2035, %2036 : vector<2x128xf32>
      %2038 = arith.addf %1882, %1887 : vector<2x128xf32>
      %2039 = arith.addf %1892, %1897 : vector<2x128xf32>
      %2040 = arith.addf %1902, %1907 : vector<2x128xf32>
      %2041 = arith.addf %1912, %1917 : vector<2x128xf32>
      %2042 = arith.addf %1922, %1927 : vector<2x128xf32>
      %2043 = arith.addf %1932, %1937 : vector<2x128xf32>
      %2044 = arith.addf %1942, %1947 : vector<2x128xf32>
      %2045 = arith.addf %1952, %1957 : vector<2x128xf32>
      %2046 = arith.addf %1962, %1967 : vector<2x128xf32>
      %2047 = arith.addf %1972, %1977 : vector<2x128xf32>
      %2048 = arith.addf %1982, %1987 : vector<2x128xf32>
      %2049 = arith.addf %1992, %1997 : vector<2x128xf32>
      %2050 = arith.addf %2002, %2007 : vector<2x128xf32>
      %2051 = arith.addf %2012, %2017 : vector<2x128xf32>
      %2052 = arith.addf %2022, %2027 : vector<2x128xf32>
      %2053 = arith.addf %2032, %2037 : vector<2x128xf32>
      %2054 = arith.addf %2038, %2039 : vector<2x128xf32>
      %2055 = arith.addf %2040, %2041 : vector<2x128xf32>
      %2056 = arith.addf %2042, %2043 : vector<2x128xf32>
      %2057 = arith.addf %2044, %2045 : vector<2x128xf32>
      %2058 = arith.addf %2046, %2047 : vector<2x128xf32>
      %2059 = arith.addf %2048, %2049 : vector<2x128xf32>
      %2060 = arith.addf %2050, %2051 : vector<2x128xf32>
      %2061 = arith.addf %2052, %2053 : vector<2x128xf32>
      %2062 = arith.addf %2054, %2055 : vector<2x128xf32>
      %2063 = arith.addf %2056, %2057 : vector<2x128xf32>
      %2064 = arith.addf %2058, %2059 : vector<2x128xf32>
      %2065 = arith.addf %2060, %2061 : vector<2x128xf32>
      %2066 = arith.addf %2062, %2063 : vector<2x128xf32>
      %2067 = arith.addf %2064, %2065 : vector<2x128xf32>
      %2068 = arith.addf %2066, %2067 : vector<2x128xf32>
      %2069 = arith.addf %1877, %2068 : vector<2x128xf32>
      %2070 = vector.broadcast %479 : vector<1x128xf32> to vector<2x128xf32>
      %2071 = arith.addf %2069, %2070 : vector<2x128xf32>
      %2072 = arith.negf %2071 : vector<2x128xf32>
      %2073 = math.exp %2072 : vector<2x128xf32>
      %cst_237 = arith.constant 1.000000e+00 : f32
      %2074 = vector.broadcast %cst_237 : f32 to vector<2x128xf32>
      %2075 = arith.addf %2074, %2073 : vector<2x128xf32>
      %2076 = arith.divf %2074, %2075 : vector<2x128xf32>
      %2077 = math.tanh %2071 : vector<2x128xf32>
      %2078 = vector.extract_strided_slice %2076 {offsets = [0, 0], sizes = [2, 32], strides = [1, 1]} : vector<2x128xf32> to vector<2x32xf32>
      %2079 = vector.extract_strided_slice %2076 {offsets = [0, 32], sizes = [2, 32], strides = [1, 1]} : vector<2x128xf32> to vector<2x32xf32>
      %2080 = vector.extract_strided_slice %2077 {offsets = [0, 64], sizes = [2, 32], strides = [1, 1]} : vector<2x128xf32> to vector<2x32xf32>
      %2081 = vector.extract_strided_slice %2076 {offsets = [0, 96], sizes = [2, 32], strides = [1, 1]} : vector<2x128xf32> to vector<2x32xf32>
      %2082 = arith.mulf %2079, %1870 : vector<2x32xf32>
      %2083 = arith.mulf %2078, %2080 : vector<2x32xf32>
      %2084 = arith.addf %2082, %2083 : vector<2x32xf32>
      %2085 = math.tanh %2084 : vector<2x32xf32>
      %2086 = arith.mulf %2081, %2085 : vector<2x32xf32>
      %2087 = vector.extract_strided_slice %560 {offsets = [0, 7], sizes = [2, 1], strides = [1, 1]} : vector<2x8xf32> to vector<2x1xf32>
      %2088 = vector.extract_strided_slice %450 {offsets = [0, 7, 0], sizes = [2, 1, 128], strides = [1, 1, 1]} : vector<2x8x128xf32> to vector<2x1x128xf32>
      %2089 = vector.shape_cast %2088 : vector<2x1x128xf32> to vector<2x128xf32>
      %2090 = vector.broadcast %2087 : vector<2x1xf32> to vector<2x128xf32>
      %2091 = arith.mulf %2090, %2089 : vector<2x128xf32>
      %2092 = vector.extract_strided_slice %2086 {offsets = [0, 0], sizes = [2, 1], strides = [1, 1]} : vector<2x32xf32> to vector<2x1xf32>
      %2093 = vector.extract_strided_slice %478 {offsets = [0, 0], sizes = [1, 128], strides = [1, 1]} : vector<32x128xf32> to vector<1x128xf32>
      %2094 = vector.broadcast %2092 : vector<2x1xf32> to vector<2x128xf32>
      %2095 = vector.broadcast %2093 : vector<1x128xf32> to vector<2x128xf32>
      %2096 = arith.mulf %2094, %2095 : vector<2x128xf32>
      %2097 = vector.extract_strided_slice %2086 {offsets = [0, 1], sizes = [2, 1], strides = [1, 1]} : vector<2x32xf32> to vector<2x1xf32>
      %2098 = vector.extract_strided_slice %478 {offsets = [1, 0], sizes = [1, 128], strides = [1, 1]} : vector<32x128xf32> to vector<1x128xf32>
      %2099 = vector.broadcast %2097 : vector<2x1xf32> to vector<2x128xf32>
      %2100 = vector.broadcast %2098 : vector<1x128xf32> to vector<2x128xf32>
      %2101 = arith.mulf %2099, %2100 : vector<2x128xf32>
      %2102 = vector.extract_strided_slice %2086 {offsets = [0, 2], sizes = [2, 1], strides = [1, 1]} : vector<2x32xf32> to vector<2x1xf32>
      %2103 = vector.extract_strided_slice %478 {offsets = [2, 0], sizes = [1, 128], strides = [1, 1]} : vector<32x128xf32> to vector<1x128xf32>
      %2104 = vector.broadcast %2102 : vector<2x1xf32> to vector<2x128xf32>
      %2105 = vector.broadcast %2103 : vector<1x128xf32> to vector<2x128xf32>
      %2106 = arith.mulf %2104, %2105 : vector<2x128xf32>
      %2107 = vector.extract_strided_slice %2086 {offsets = [0, 3], sizes = [2, 1], strides = [1, 1]} : vector<2x32xf32> to vector<2x1xf32>
      %2108 = vector.extract_strided_slice %478 {offsets = [3, 0], sizes = [1, 128], strides = [1, 1]} : vector<32x128xf32> to vector<1x128xf32>
      %2109 = vector.broadcast %2107 : vector<2x1xf32> to vector<2x128xf32>
      %2110 = vector.broadcast %2108 : vector<1x128xf32> to vector<2x128xf32>
      %2111 = arith.mulf %2109, %2110 : vector<2x128xf32>
      %2112 = vector.extract_strided_slice %2086 {offsets = [0, 4], sizes = [2, 1], strides = [1, 1]} : vector<2x32xf32> to vector<2x1xf32>
      %2113 = vector.extract_strided_slice %478 {offsets = [4, 0], sizes = [1, 128], strides = [1, 1]} : vector<32x128xf32> to vector<1x128xf32>
      %2114 = vector.broadcast %2112 : vector<2x1xf32> to vector<2x128xf32>
      %2115 = vector.broadcast %2113 : vector<1x128xf32> to vector<2x128xf32>
      %2116 = arith.mulf %2114, %2115 : vector<2x128xf32>
      %2117 = vector.extract_strided_slice %2086 {offsets = [0, 5], sizes = [2, 1], strides = [1, 1]} : vector<2x32xf32> to vector<2x1xf32>
      %2118 = vector.extract_strided_slice %478 {offsets = [5, 0], sizes = [1, 128], strides = [1, 1]} : vector<32x128xf32> to vector<1x128xf32>
      %2119 = vector.broadcast %2117 : vector<2x1xf32> to vector<2x128xf32>
      %2120 = vector.broadcast %2118 : vector<1x128xf32> to vector<2x128xf32>
      %2121 = arith.mulf %2119, %2120 : vector<2x128xf32>
      %2122 = vector.extract_strided_slice %2086 {offsets = [0, 6], sizes = [2, 1], strides = [1, 1]} : vector<2x32xf32> to vector<2x1xf32>
      %2123 = vector.extract_strided_slice %478 {offsets = [6, 0], sizes = [1, 128], strides = [1, 1]} : vector<32x128xf32> to vector<1x128xf32>
      %2124 = vector.broadcast %2122 : vector<2x1xf32> to vector<2x128xf32>
      %2125 = vector.broadcast %2123 : vector<1x128xf32> to vector<2x128xf32>
      %2126 = arith.mulf %2124, %2125 : vector<2x128xf32>
      %2127 = vector.extract_strided_slice %2086 {offsets = [0, 7], sizes = [2, 1], strides = [1, 1]} : vector<2x32xf32> to vector<2x1xf32>
      %2128 = vector.extract_strided_slice %478 {offsets = [7, 0], sizes = [1, 128], strides = [1, 1]} : vector<32x128xf32> to vector<1x128xf32>
      %2129 = vector.broadcast %2127 : vector<2x1xf32> to vector<2x128xf32>
      %2130 = vector.broadcast %2128 : vector<1x128xf32> to vector<2x128xf32>
      %2131 = arith.mulf %2129, %2130 : vector<2x128xf32>
      %2132 = vector.extract_strided_slice %2086 {offsets = [0, 8], sizes = [2, 1], strides = [1, 1]} : vector<2x32xf32> to vector<2x1xf32>
      %2133 = vector.extract_strided_slice %478 {offsets = [8, 0], sizes = [1, 128], strides = [1, 1]} : vector<32x128xf32> to vector<1x128xf32>
      %2134 = vector.broadcast %2132 : vector<2x1xf32> to vector<2x128xf32>
      %2135 = vector.broadcast %2133 : vector<1x128xf32> to vector<2x128xf32>
      %2136 = arith.mulf %2134, %2135 : vector<2x128xf32>
      %2137 = vector.extract_strided_slice %2086 {offsets = [0, 9], sizes = [2, 1], strides = [1, 1]} : vector<2x32xf32> to vector<2x1xf32>
      %2138 = vector.extract_strided_slice %478 {offsets = [9, 0], sizes = [1, 128], strides = [1, 1]} : vector<32x128xf32> to vector<1x128xf32>
      %2139 = vector.broadcast %2137 : vector<2x1xf32> to vector<2x128xf32>
      %2140 = vector.broadcast %2138 : vector<1x128xf32> to vector<2x128xf32>
      %2141 = arith.mulf %2139, %2140 : vector<2x128xf32>
      %2142 = vector.extract_strided_slice %2086 {offsets = [0, 10], sizes = [2, 1], strides = [1, 1]} : vector<2x32xf32> to vector<2x1xf32>
      %2143 = vector.extract_strided_slice %478 {offsets = [10, 0], sizes = [1, 128], strides = [1, 1]} : vector<32x128xf32> to vector<1x128xf32>
      %2144 = vector.broadcast %2142 : vector<2x1xf32> to vector<2x128xf32>
      %2145 = vector.broadcast %2143 : vector<1x128xf32> to vector<2x128xf32>
      %2146 = arith.mulf %2144, %2145 : vector<2x128xf32>
      %2147 = vector.extract_strided_slice %2086 {offsets = [0, 11], sizes = [2, 1], strides = [1, 1]} : vector<2x32xf32> to vector<2x1xf32>
      %2148 = vector.extract_strided_slice %478 {offsets = [11, 0], sizes = [1, 128], strides = [1, 1]} : vector<32x128xf32> to vector<1x128xf32>
      %2149 = vector.broadcast %2147 : vector<2x1xf32> to vector<2x128xf32>
      %2150 = vector.broadcast %2148 : vector<1x128xf32> to vector<2x128xf32>
      %2151 = arith.mulf %2149, %2150 : vector<2x128xf32>
      %2152 = vector.extract_strided_slice %2086 {offsets = [0, 12], sizes = [2, 1], strides = [1, 1]} : vector<2x32xf32> to vector<2x1xf32>
      %2153 = vector.extract_strided_slice %478 {offsets = [12, 0], sizes = [1, 128], strides = [1, 1]} : vector<32x128xf32> to vector<1x128xf32>
      %2154 = vector.broadcast %2152 : vector<2x1xf32> to vector<2x128xf32>
      %2155 = vector.broadcast %2153 : vector<1x128xf32> to vector<2x128xf32>
      %2156 = arith.mulf %2154, %2155 : vector<2x128xf32>
      %2157 = vector.extract_strided_slice %2086 {offsets = [0, 13], sizes = [2, 1], strides = [1, 1]} : vector<2x32xf32> to vector<2x1xf32>
      %2158 = vector.extract_strided_slice %478 {offsets = [13, 0], sizes = [1, 128], strides = [1, 1]} : vector<32x128xf32> to vector<1x128xf32>
      %2159 = vector.broadcast %2157 : vector<2x1xf32> to vector<2x128xf32>
      %2160 = vector.broadcast %2158 : vector<1x128xf32> to vector<2x128xf32>
      %2161 = arith.mulf %2159, %2160 : vector<2x128xf32>
      %2162 = vector.extract_strided_slice %2086 {offsets = [0, 14], sizes = [2, 1], strides = [1, 1]} : vector<2x32xf32> to vector<2x1xf32>
      %2163 = vector.extract_strided_slice %478 {offsets = [14, 0], sizes = [1, 128], strides = [1, 1]} : vector<32x128xf32> to vector<1x128xf32>
      %2164 = vector.broadcast %2162 : vector<2x1xf32> to vector<2x128xf32>
      %2165 = vector.broadcast %2163 : vector<1x128xf32> to vector<2x128xf32>
      %2166 = arith.mulf %2164, %2165 : vector<2x128xf32>
      %2167 = vector.extract_strided_slice %2086 {offsets = [0, 15], sizes = [2, 1], strides = [1, 1]} : vector<2x32xf32> to vector<2x1xf32>
      %2168 = vector.extract_strided_slice %478 {offsets = [15, 0], sizes = [1, 128], strides = [1, 1]} : vector<32x128xf32> to vector<1x128xf32>
      %2169 = vector.broadcast %2167 : vector<2x1xf32> to vector<2x128xf32>
      %2170 = vector.broadcast %2168 : vector<1x128xf32> to vector<2x128xf32>
      %2171 = arith.mulf %2169, %2170 : vector<2x128xf32>
      %2172 = vector.extract_strided_slice %2086 {offsets = [0, 16], sizes = [2, 1], strides = [1, 1]} : vector<2x32xf32> to vector<2x1xf32>
      %2173 = vector.extract_strided_slice %478 {offsets = [16, 0], sizes = [1, 128], strides = [1, 1]} : vector<32x128xf32> to vector<1x128xf32>
      %2174 = vector.broadcast %2172 : vector<2x1xf32> to vector<2x128xf32>
      %2175 = vector.broadcast %2173 : vector<1x128xf32> to vector<2x128xf32>
      %2176 = arith.mulf %2174, %2175 : vector<2x128xf32>
      %2177 = vector.extract_strided_slice %2086 {offsets = [0, 17], sizes = [2, 1], strides = [1, 1]} : vector<2x32xf32> to vector<2x1xf32>
      %2178 = vector.extract_strided_slice %478 {offsets = [17, 0], sizes = [1, 128], strides = [1, 1]} : vector<32x128xf32> to vector<1x128xf32>
      %2179 = vector.broadcast %2177 : vector<2x1xf32> to vector<2x128xf32>
      %2180 = vector.broadcast %2178 : vector<1x128xf32> to vector<2x128xf32>
      %2181 = arith.mulf %2179, %2180 : vector<2x128xf32>
      %2182 = vector.extract_strided_slice %2086 {offsets = [0, 18], sizes = [2, 1], strides = [1, 1]} : vector<2x32xf32> to vector<2x1xf32>
      %2183 = vector.extract_strided_slice %478 {offsets = [18, 0], sizes = [1, 128], strides = [1, 1]} : vector<32x128xf32> to vector<1x128xf32>
      %2184 = vector.broadcast %2182 : vector<2x1xf32> to vector<2x128xf32>
      %2185 = vector.broadcast %2183 : vector<1x128xf32> to vector<2x128xf32>
      %2186 = arith.mulf %2184, %2185 : vector<2x128xf32>
      %2187 = vector.extract_strided_slice %2086 {offsets = [0, 19], sizes = [2, 1], strides = [1, 1]} : vector<2x32xf32> to vector<2x1xf32>
      %2188 = vector.extract_strided_slice %478 {offsets = [19, 0], sizes = [1, 128], strides = [1, 1]} : vector<32x128xf32> to vector<1x128xf32>
      %2189 = vector.broadcast %2187 : vector<2x1xf32> to vector<2x128xf32>
      %2190 = vector.broadcast %2188 : vector<1x128xf32> to vector<2x128xf32>
      %2191 = arith.mulf %2189, %2190 : vector<2x128xf32>
      %2192 = vector.extract_strided_slice %2086 {offsets = [0, 20], sizes = [2, 1], strides = [1, 1]} : vector<2x32xf32> to vector<2x1xf32>
      %2193 = vector.extract_strided_slice %478 {offsets = [20, 0], sizes = [1, 128], strides = [1, 1]} : vector<32x128xf32> to vector<1x128xf32>
      %2194 = vector.broadcast %2192 : vector<2x1xf32> to vector<2x128xf32>
      %2195 = vector.broadcast %2193 : vector<1x128xf32> to vector<2x128xf32>
      %2196 = arith.mulf %2194, %2195 : vector<2x128xf32>
      %2197 = vector.extract_strided_slice %2086 {offsets = [0, 21], sizes = [2, 1], strides = [1, 1]} : vector<2x32xf32> to vector<2x1xf32>
      %2198 = vector.extract_strided_slice %478 {offsets = [21, 0], sizes = [1, 128], strides = [1, 1]} : vector<32x128xf32> to vector<1x128xf32>
      %2199 = vector.broadcast %2197 : vector<2x1xf32> to vector<2x128xf32>
      %2200 = vector.broadcast %2198 : vector<1x128xf32> to vector<2x128xf32>
      %2201 = arith.mulf %2199, %2200 : vector<2x128xf32>
      %2202 = vector.extract_strided_slice %2086 {offsets = [0, 22], sizes = [2, 1], strides = [1, 1]} : vector<2x32xf32> to vector<2x1xf32>
      %2203 = vector.extract_strided_slice %478 {offsets = [22, 0], sizes = [1, 128], strides = [1, 1]} : vector<32x128xf32> to vector<1x128xf32>
      %2204 = vector.broadcast %2202 : vector<2x1xf32> to vector<2x128xf32>
      %2205 = vector.broadcast %2203 : vector<1x128xf32> to vector<2x128xf32>
      %2206 = arith.mulf %2204, %2205 : vector<2x128xf32>
      %2207 = vector.extract_strided_slice %2086 {offsets = [0, 23], sizes = [2, 1], strides = [1, 1]} : vector<2x32xf32> to vector<2x1xf32>
      %2208 = vector.extract_strided_slice %478 {offsets = [23, 0], sizes = [1, 128], strides = [1, 1]} : vector<32x128xf32> to vector<1x128xf32>
      %2209 = vector.broadcast %2207 : vector<2x1xf32> to vector<2x128xf32>
      %2210 = vector.broadcast %2208 : vector<1x128xf32> to vector<2x128xf32>
      %2211 = arith.mulf %2209, %2210 : vector<2x128xf32>
      %2212 = vector.extract_strided_slice %2086 {offsets = [0, 24], sizes = [2, 1], strides = [1, 1]} : vector<2x32xf32> to vector<2x1xf32>
      %2213 = vector.extract_strided_slice %478 {offsets = [24, 0], sizes = [1, 128], strides = [1, 1]} : vector<32x128xf32> to vector<1x128xf32>
      %2214 = vector.broadcast %2212 : vector<2x1xf32> to vector<2x128xf32>
      %2215 = vector.broadcast %2213 : vector<1x128xf32> to vector<2x128xf32>
      %2216 = arith.mulf %2214, %2215 : vector<2x128xf32>
      %2217 = vector.extract_strided_slice %2086 {offsets = [0, 25], sizes = [2, 1], strides = [1, 1]} : vector<2x32xf32> to vector<2x1xf32>
      %2218 = vector.extract_strided_slice %478 {offsets = [25, 0], sizes = [1, 128], strides = [1, 1]} : vector<32x128xf32> to vector<1x128xf32>
      %2219 = vector.broadcast %2217 : vector<2x1xf32> to vector<2x128xf32>
      %2220 = vector.broadcast %2218 : vector<1x128xf32> to vector<2x128xf32>
      %2221 = arith.mulf %2219, %2220 : vector<2x128xf32>
      %2222 = vector.extract_strided_slice %2086 {offsets = [0, 26], sizes = [2, 1], strides = [1, 1]} : vector<2x32xf32> to vector<2x1xf32>
      %2223 = vector.extract_strided_slice %478 {offsets = [26, 0], sizes = [1, 128], strides = [1, 1]} : vector<32x128xf32> to vector<1x128xf32>
      %2224 = vector.broadcast %2222 : vector<2x1xf32> to vector<2x128xf32>
      %2225 = vector.broadcast %2223 : vector<1x128xf32> to vector<2x128xf32>
      %2226 = arith.mulf %2224, %2225 : vector<2x128xf32>
      %2227 = vector.extract_strided_slice %2086 {offsets = [0, 27], sizes = [2, 1], strides = [1, 1]} : vector<2x32xf32> to vector<2x1xf32>
      %2228 = vector.extract_strided_slice %478 {offsets = [27, 0], sizes = [1, 128], strides = [1, 1]} : vector<32x128xf32> to vector<1x128xf32>
      %2229 = vector.broadcast %2227 : vector<2x1xf32> to vector<2x128xf32>
      %2230 = vector.broadcast %2228 : vector<1x128xf32> to vector<2x128xf32>
      %2231 = arith.mulf %2229, %2230 : vector<2x128xf32>
      %2232 = vector.extract_strided_slice %2086 {offsets = [0, 28], sizes = [2, 1], strides = [1, 1]} : vector<2x32xf32> to vector<2x1xf32>
      %2233 = vector.extract_strided_slice %478 {offsets = [28, 0], sizes = [1, 128], strides = [1, 1]} : vector<32x128xf32> to vector<1x128xf32>
      %2234 = vector.broadcast %2232 : vector<2x1xf32> to vector<2x128xf32>
      %2235 = vector.broadcast %2233 : vector<1x128xf32> to vector<2x128xf32>
      %2236 = arith.mulf %2234, %2235 : vector<2x128xf32>
      %2237 = vector.extract_strided_slice %2086 {offsets = [0, 29], sizes = [2, 1], strides = [1, 1]} : vector<2x32xf32> to vector<2x1xf32>
      %2238 = vector.extract_strided_slice %478 {offsets = [29, 0], sizes = [1, 128], strides = [1, 1]} : vector<32x128xf32> to vector<1x128xf32>
      %2239 = vector.broadcast %2237 : vector<2x1xf32> to vector<2x128xf32>
      %2240 = vector.broadcast %2238 : vector<1x128xf32> to vector<2x128xf32>
      %2241 = arith.mulf %2239, %2240 : vector<2x128xf32>
      %2242 = vector.extract_strided_slice %2086 {offsets = [0, 30], sizes = [2, 1], strides = [1, 1]} : vector<2x32xf32> to vector<2x1xf32>
      %2243 = vector.extract_strided_slice %478 {offsets = [30, 0], sizes = [1, 128], strides = [1, 1]} : vector<32x128xf32> to vector<1x128xf32>
      %2244 = vector.broadcast %2242 : vector<2x1xf32> to vector<2x128xf32>
      %2245 = vector.broadcast %2243 : vector<1x128xf32> to vector<2x128xf32>
      %2246 = arith.mulf %2244, %2245 : vector<2x128xf32>
      %2247 = vector.extract_strided_slice %2086 {offsets = [0, 31], sizes = [2, 1], strides = [1, 1]} : vector<2x32xf32> to vector<2x1xf32>
      %2248 = vector.extract_strided_slice %478 {offsets = [31, 0], sizes = [1, 128], strides = [1, 1]} : vector<32x128xf32> to vector<1x128xf32>
      %2249 = vector.broadcast %2247 : vector<2x1xf32> to vector<2x128xf32>
      %2250 = vector.broadcast %2248 : vector<1x128xf32> to vector<2x128xf32>
      %2251 = arith.mulf %2249, %2250 : vector<2x128xf32>
      %2252 = arith.addf %2096, %2101 : vector<2x128xf32>
      %2253 = arith.addf %2106, %2111 : vector<2x128xf32>
      %2254 = arith.addf %2116, %2121 : vector<2x128xf32>
      %2255 = arith.addf %2126, %2131 : vector<2x128xf32>
      %2256 = arith.addf %2136, %2141 : vector<2x128xf32>
      %2257 = arith.addf %2146, %2151 : vector<2x128xf32>
      %2258 = arith.addf %2156, %2161 : vector<2x128xf32>
      %2259 = arith.addf %2166, %2171 : vector<2x128xf32>
      %2260 = arith.addf %2176, %2181 : vector<2x128xf32>
      %2261 = arith.addf %2186, %2191 : vector<2x128xf32>
      %2262 = arith.addf %2196, %2201 : vector<2x128xf32>
      %2263 = arith.addf %2206, %2211 : vector<2x128xf32>
      %2264 = arith.addf %2216, %2221 : vector<2x128xf32>
      %2265 = arith.addf %2226, %2231 : vector<2x128xf32>
      %2266 = arith.addf %2236, %2241 : vector<2x128xf32>
      %2267 = arith.addf %2246, %2251 : vector<2x128xf32>
      %2268 = arith.addf %2252, %2253 : vector<2x128xf32>
      %2269 = arith.addf %2254, %2255 : vector<2x128xf32>
      %2270 = arith.addf %2256, %2257 : vector<2x128xf32>
      %2271 = arith.addf %2258, %2259 : vector<2x128xf32>
      %2272 = arith.addf %2260, %2261 : vector<2x128xf32>
      %2273 = arith.addf %2262, %2263 : vector<2x128xf32>
      %2274 = arith.addf %2264, %2265 : vector<2x128xf32>
      %2275 = arith.addf %2266, %2267 : vector<2x128xf32>
      %2276 = arith.addf %2268, %2269 : vector<2x128xf32>
      %2277 = arith.addf %2270, %2271 : vector<2x128xf32>
      %2278 = arith.addf %2272, %2273 : vector<2x128xf32>
      %2279 = arith.addf %2274, %2275 : vector<2x128xf32>
      %2280 = arith.addf %2276, %2277 : vector<2x128xf32>
      %2281 = arith.addf %2278, %2279 : vector<2x128xf32>
      %2282 = arith.addf %2280, %2281 : vector<2x128xf32>
      %2283 = arith.addf %2091, %2282 : vector<2x128xf32>
      %2284 = vector.broadcast %479 : vector<1x128xf32> to vector<2x128xf32>
      %2285 = arith.addf %2283, %2284 : vector<2x128xf32>
      %2286 = arith.negf %2285 : vector<2x128xf32>
      %2287 = math.exp %2286 : vector<2x128xf32>
      %cst_238 = arith.constant 1.000000e+00 : f32
      %2288 = vector.broadcast %cst_238 : f32 to vector<2x128xf32>
      %2289 = arith.addf %2288, %2287 : vector<2x128xf32>
      %2290 = arith.divf %2288, %2289 : vector<2x128xf32>
      %2291 = math.tanh %2285 : vector<2x128xf32>
      %2292 = vector.extract_strided_slice %2290 {offsets = [0, 0], sizes = [2, 32], strides = [1, 1]} : vector<2x128xf32> to vector<2x32xf32>
      %2293 = vector.extract_strided_slice %2290 {offsets = [0, 32], sizes = [2, 32], strides = [1, 1]} : vector<2x128xf32> to vector<2x32xf32>
      %2294 = vector.extract_strided_slice %2291 {offsets = [0, 64], sizes = [2, 32], strides = [1, 1]} : vector<2x128xf32> to vector<2x32xf32>
      %2295 = vector.extract_strided_slice %2290 {offsets = [0, 96], sizes = [2, 32], strides = [1, 1]} : vector<2x128xf32> to vector<2x32xf32>
      %2296 = arith.mulf %2293, %2084 : vector<2x32xf32>
      %2297 = arith.mulf %2292, %2294 : vector<2x32xf32>
      %2298 = arith.addf %2296, %2297 : vector<2x32xf32>
      %2299 = math.tanh %2298 : vector<2x32xf32>
      %2300 = arith.mulf %2295, %2299 : vector<2x32xf32>
      %2301 = vector.extract_strided_slice %560 {offsets = [0, 7], sizes = [2, 1], strides = [1, 1]} : vector<2x8xf32> to vector<2x1xf32>
      %2302 = vector.broadcast %2301 : vector<2x1xf32> to vector<2x128xf32>
      %2303 = arith.mulf %2302, %454 : vector<2x128xf32>
      %2304 = vector.broadcast %480 : vector<1x128xf32> to vector<2x128xf32>
      %2305 = arith.addf %2303, %2304 : vector<2x128xf32>
      %2306 = arith.negf %2305 : vector<2x128xf32>
      %2307 = math.exp %2306 : vector<2x128xf32>
      %cst_239 = arith.constant 1.000000e+00 : f32
      %2308 = vector.broadcast %cst_239 : f32 to vector<2x128xf32>
      %2309 = arith.addf %2308, %2307 : vector<2x128xf32>
      %2310 = arith.divf %2308, %2309 : vector<2x128xf32>
      %2311 = math.tanh %2305 : vector<2x128xf32>
      %2312 = vector.extract_strided_slice %2310 {offsets = [0, 0], sizes = [2, 32], strides = [1, 1]} : vector<2x128xf32> to vector<2x32xf32>
      %2313 = vector.extract_strided_slice %2310 {offsets = [0, 32], sizes = [2, 32], strides = [1, 1]} : vector<2x128xf32> to vector<2x32xf32>
      %2314 = vector.extract_strided_slice %2311 {offsets = [0, 64], sizes = [2, 32], strides = [1, 1]} : vector<2x128xf32> to vector<2x32xf32>
      %2315 = vector.extract_strided_slice %2310 {offsets = [0, 96], sizes = [2, 32], strides = [1, 1]} : vector<2x128xf32> to vector<2x32xf32>
      %2316 = arith.mulf %2312, %2314 : vector<2x32xf32>
      %2317 = math.tanh %2316 : vector<2x32xf32>
      %2318 = arith.mulf %2315, %2317 : vector<2x32xf32>
      %cst_240 = arith.constant dense<0.000000e+00> : vector<2x32xf32>
      %2319 = tpu.matmul %2300, %481, %cst_240 {dimension_numbers = #tpu.dot_dimension_numbers<[1], [0], [0], [1], [0, 0, 1, 1], [], []>} : vector<2x32xf32>, vector<32x32xf32>, vector<2x32xf32> -> vector<2x32xf32>
      %cst_241 = arith.constant dense<0.000000e+00> : vector<2x32xf32>
      %2320 = tpu.matmul %2318, %482, %cst_241 {dimension_numbers = #tpu.dot_dimension_numbers<[1], [0], [0], [1], [0, 0, 1, 1], [], []>} : vector<2x32xf32>, vector<32x32xf32>, vector<2x32xf32> -> vector<2x32xf32>
      %2321 = arith.addf %2319, %2320 : vector<2x32xf32>
      %2322 = vector.broadcast %483 : vector<1x32xf32> to vector<2x32xf32>
      %2323 = arith.addf %2321, %2322 : vector<2x32xf32>
      %2324 = vector.shape_cast %538 : vector<2x16xf32> to vector<2x1x16xf32>
      %2325 = vector.broadcast %2324 : vector<2x1x16xf32> to vector<2x9x16xf32>
      %2326 = arith.addf %446, %2325 : vector<2x9x16xf32>
      %cst_242 = arith.constant 0.000000e+00 : f32
      %2327 = vector.broadcast %cst_242 : f32 to vector<2x9x16xf32>
      %2328 = arith.maximumf %2326, %2327 : vector<2x9x16xf32>
      %2329 = vector.broadcast %472 : vector<1x1x16xf32> to vector<2x9x16xf32>
      %2330 = arith.mulf %2328, %2329 : vector<2x9x16xf32>
      %cst_243 = arith.constant dense<0.000000e+00> : vector<2x9xf32>
      %2331 = vector.multi_reduction <add>, %2330, %cst_243 [2] : vector<2x9x16xf32> to vector<2x9xf32>
      %2332 = vector.broadcast %473 : vector<1x1xf32> to vector<2x9xf32>
      %2333 = arith.addf %2331, %2332 : vector<2x9xf32>
      %cst_244 = arith.constant dense<0xFF800000> : vector<2xf32>
      %2334 = vector.multi_reduction <maximumf>, %2333, %cst_244 [1] : vector<2x9xf32> to vector<2xf32>
      %2335 = vector.shape_cast %2334 : vector<2xf32> to vector<2x1xf32>
      %2336 = vector.broadcast %2335 : vector<2x1xf32> to vector<2x9xf32>
      %2337 = arith.subf %2333, %2336 : vector<2x9xf32>
      %2338 = math.exp %2337 : vector<2x9xf32>
      %cst_245 = arith.constant dense<0.000000e+00> : vector<2xf32>
      %2339 = vector.multi_reduction <add>, %2338, %cst_245 [1] : vector<2x9xf32> to vector<2xf32>
      %2340 = vector.shape_cast %2339 : vector<2xf32> to vector<2x1xf32>
      %2341 = vector.broadcast %2340 : vector<2x1xf32> to vector<2x9xf32>
      %2342 = arith.divf %2338, %2341 : vector<2x9xf32>
      %2343 = vector.shape_cast %2342 : vector<2x9xf32> to vector<2x9x1xf32>
      %2344 = vector.broadcast %2343 : vector<2x9x1xf32> to vector<2x9x64xf32>
      %2345 = arith.mulf %421, %2344 : vector<2x9x64xf32>
      %cst_246 = arith.constant dense<0.000000e+00> : vector<2x64xf32>
      %2346 = vector.multi_reduction <add>, %2345, %cst_246 [1] : vector<2x9x64xf32> to vector<2x64xf32>
      %cst_247 = arith.constant dense<0xFF800000> : vector<2xf32>
      %2347 = vector.multi_reduction <maximumf>, %560, %cst_247 [1] : vector<2x8xf32> to vector<2xf32>
      %2348 = vector.shape_cast %2347 : vector<2xf32> to vector<2x1xf32>
      %2349 = vector.broadcast %2348 : vector<2x1xf32> to vector<2x8xf32>
      %2350 = arith.cmpf oeq, %560, %2349 : vector<2x8xf32>
      %c8_i32 = arith.constant 8 : i32
      %2351 = vector.broadcast %c8_i32 : i32 to vector<2x8xi32>
      %2352 = arith.select %2350, %495, %2351 : vector<2x8xi1>, vector<2x8xi32>
      %cst_248 = arith.constant dense<2147483647> : vector<2xi32>
      %2353 = vector.multi_reduction <minsi>, %2352, %cst_248 [1] : vector<2x8xi32> to vector<2xi32>
      %2354 = vector.shape_cast %2353 : vector<2xi32> to vector<2x1xi32>
      %2355 = vector.broadcast %2354 : vector<2x1xi32> to vector<2x8xi32>
      %2356 = arith.cmpi eq, %495, %2355 : vector<2x8xi32>
      %2357 = arith.extui %2356 : vector<2x8xi1> to vector<2x8xi32>
      %2358 = arith.sitofp %2357 : vector<2x8xi32> to vector<2x8xf32>
      %2359 = vector.shape_cast %2358 : vector<2x8xf32> to vector<2x8x1xf32>
      %2360 = vector.broadcast %2359 : vector<2x8x1xf32> to vector<2x8x32xf32>
      %2361 = arith.mulf %414, %2360 : vector<2x8x32xf32>
      %cst_249 = arith.constant dense<0.000000e+00> : vector<2x32xf32>
      %2362 = vector.multi_reduction <add>, %2361, %cst_249 [1] : vector<2x8x32xf32> to vector<2x32xf32>
      %cst_250 = arith.constant dense<0.000000e+00> : vector<2x128xf32>
      %2363 = tpu.matmul %533, %484, %cst_250 {dimension_numbers = #tpu.dot_dimension_numbers<[1], [0], [0], [1], [0, 0, 1, 1], [], []>} : vector<2x32xf32>, vector<32x128xf32>, vector<2x128xf32> -> vector<2x128xf32>
      %cst_251 = arith.constant dense<0.000000e+00> : vector<2x128xf32>
      %2364 = tpu.matmul %586, %485, %cst_251 {dimension_numbers = #tpu.dot_dimension_numbers<[1], [0], [0], [1], [0, 0, 1, 1], [], []>} : vector<2x32xf32>, vector<32x128xf32>, vector<2x128xf32> -> vector<2x128xf32>
      %2365 = arith.addf %2363, %2364 : vector<2x128xf32>
      %cst_252 = arith.constant dense<0.000000e+00> : vector<2x128xf32>
      %2366 = tpu.matmul %2346, %486, %cst_252 {dimension_numbers = #tpu.dot_dimension_numbers<[1], [0], [0], [1], [0, 0, 1, 1], [], []>} : vector<2x64xf32>, vector<64x128xf32>, vector<2x128xf32> -> vector<2x128xf32>
      %2367 = arith.addf %2365, %2366 : vector<2x128xf32>
      %cst_253 = arith.constant dense<0.000000e+00> : vector<2x128xf32>
      %2368 = tpu.matmul %arg60, %487, %cst_253 {dimension_numbers = #tpu.dot_dimension_numbers<[1], [0], [0], [1], [0, 0, 1, 1], [], []>} : vector<2x32xf32>, vector<32x128xf32>, vector<2x128xf32> -> vector<2x128xf32>
      %2369 = arith.addf %2367, %2368 : vector<2x128xf32>
      %cst_254 = arith.constant dense<0.000000e+00> : vector<2x128xf32>
      %2370 = tpu.matmul %2323, %488, %cst_254 {dimension_numbers = #tpu.dot_dimension_numbers<[1], [0], [0], [1], [0, 0, 1, 1], [], []>} : vector<2x32xf32>, vector<32x128xf32>, vector<2x128xf32> -> vector<2x128xf32>
      %2371 = arith.addf %2369, %2370 : vector<2x128xf32>
      %2372 = vector.broadcast %489 : vector<1x128xf32> to vector<2x128xf32>
      %2373 = arith.addf %2371, %2372 : vector<2x128xf32>
      %2374 = arith.negf %2373 : vector<2x128xf32>
      %2375 = math.exp %2374 : vector<2x128xf32>
      %cst_255 = arith.constant 1.000000e+00 : f32
      %2376 = vector.broadcast %cst_255 : f32 to vector<2x128xf32>
      %2377 = arith.addf %2376, %2375 : vector<2x128xf32>
      %2378 = arith.divf %2376, %2377 : vector<2x128xf32>
      %2379 = math.tanh %2373 : vector<2x128xf32>
      %2380 = vector.extract_strided_slice %2378 {offsets = [0, 0], sizes = [2, 32], strides = [1, 1]} : vector<2x128xf32> to vector<2x32xf32>
      %2381 = vector.extract_strided_slice %2378 {offsets = [0, 32], sizes = [2, 32], strides = [1, 1]} : vector<2x128xf32> to vector<2x32xf32>
      %2382 = vector.extract_strided_slice %2379 {offsets = [0, 64], sizes = [2, 32], strides = [1, 1]} : vector<2x128xf32> to vector<2x32xf32>
      %2383 = vector.extract_strided_slice %2378 {offsets = [0, 96], sizes = [2, 32], strides = [1, 1]} : vector<2x128xf32> to vector<2x32xf32>
      %2384 = arith.mulf %2381, %arg61 : vector<2x32xf32>
      %2385 = arith.mulf %2380, %2382 : vector<2x32xf32>
      %2386 = arith.addf %2384, %2385 : vector<2x32xf32>
      %cst_256 = arith.constant dense<0.000000e+00> : vector<2x32xf32>
      %2387 = tpu.matmul %2386, %490, %cst_256 {dimension_numbers = #tpu.dot_dimension_numbers<[1], [0], [0], [1], [0, 0, 1, 1], [], []>} : vector<2x32xf32>, vector<32x32xf32>, vector<2x32xf32> -> vector<2x32xf32>
      %cst_257 = arith.constant dense<0.000000e+00> : vector<2x32xf32>
      %2388 = tpu.matmul %2362, %491, %cst_257 {dimension_numbers = #tpu.dot_dimension_numbers<[1], [0], [0], [1], [0, 0, 1, 1], [], []>} : vector<2x32xf32>, vector<32x32xf32>, vector<2x32xf32> -> vector<2x32xf32>
      %2389 = arith.addf %2387, %2388 : vector<2x32xf32>
      %2390 = vector.broadcast %492 : vector<1x32xf32> to vector<2x32xf32>
      %2391 = arith.addf %2389, %2390 : vector<2x32xf32>
      %2392 = arith.negf %2391 : vector<2x32xf32>
      %2393 = math.exp %2392 : vector<2x32xf32>
      %cst_258 = arith.constant 1.000000e+00 : f32
      %2394 = vector.broadcast %cst_258 : f32 to vector<2x32xf32>
      %2395 = arith.addf %2394, %2393 : vector<2x32xf32>
      %2396 = arith.divf %2394, %2395 : vector<2x32xf32>
      %2397 = arith.mulf %2396, %2362 : vector<2x32xf32>
      %cst_259 = arith.constant 1.000000e+00 : f32
      %2398 = vector.broadcast %cst_259 : f32 to vector<2x32xf32>
      %2399 = arith.subf %2398, %2396 : vector<2x32xf32>
      %2400 = arith.mulf %2399, %2386 : vector<2x32xf32>
      %2401 = arith.addf %2397, %2400 : vector<2x32xf32>
      %2402 = math.tanh %2401 : vector<2x32xf32>
      %2403 = arith.mulf %2383, %2402 : vector<2x32xf32>
      %cst_260 = arith.constant dense<0.000000e+00> : vector<2x32xf32>
      %2404 = tpu.matmul %2403, %493, %cst_260 {dimension_numbers = #tpu.dot_dimension_numbers<[1], [0], [0], [1], [0, 0, 1, 1], [], []>} : vector<2x32xf32>, vector<32x32xf32>, vector<2x32xf32> -> vector<2x32xf32>
      %2405 = vector.broadcast %494 : vector<1x32xf32> to vector<2x32xf32>
      %2406 = arith.addf %2404, %2405 : vector<2x32xf32>
      %cst_261 = arith.constant dense<0xFF800000> : vector<2xf32>
      %2407 = vector.multi_reduction <maximumf>, %2406, %cst_261 [1] : vector<2x32xf32> to vector<2xf32>
      %2408 = vector.shape_cast %2407 : vector<2xf32> to vector<2x1xf32>
      %2409 = vector.broadcast %2408 : vector<2x1xf32> to vector<2x32xf32>
      %2410 = arith.subf %2406, %2409 : vector<2x32xf32>
      %2411 = math.exp %2410 : vector<2x32xf32>
      %cst_262 = arith.constant dense<0.000000e+00> : vector<2xf32>
      %2412 = vector.multi_reduction <add>, %2411, %cst_262 [1] : vector<2x32xf32> to vector<2xf32>
      %2413 = vector.shape_cast %2412 : vector<2xf32> to vector<2x1xf32>
      %2414 = math.log %2413 : vector<2x1xf32>
      %cst_263 = arith.constant 0.000000e+00 : f32
      %2415 = vector.broadcast %cst_263 : f32 to vector<2x1xf32>
      %2416 = arith.subf %2415, %2414 : vector<2x1xf32>
      %2417 = vector.broadcast %2408 : vector<2x1xf32> to vector<2x32xf32>
      %2418 = arith.cmpf oeq, %2406, %2417 : vector<2x32xf32>
      %c32_i32 = arith.constant 32 : i32
      %2419 = vector.broadcast %c32_i32 : i32 to vector<2x32xi32>
      %2420 = arith.select %2418, %496, %2419 : vector<2x32xi1>, vector<2x32xi32>
      %cst_264 = arith.constant dense<2147483647> : vector<2xi32>
      %2421 = vector.multi_reduction <minsi>, %2420, %cst_264 [1] : vector<2x32xi32> to vector<2xi32>
      %2422 = vector.shape_cast %2421 : vector<2xi32> to vector<2x1xi32>
      %c2_i32 = arith.constant 2 : i32
      %2423 = vector.broadcast %c2_i32 : i32 to vector<2x1xi32>
      %2424 = arith.cmpi eq, %2422, %2423 : vector<2x1xi32>
      %c0_i32_265 = arith.constant 0 : i32
      %2425 = vector.broadcast %c0_i32_265 : i32 to vector<2x1xi32>
      %2426 = arith.select %2424, %2425, %2422 : vector<2x1xi1>, vector<2x1xi32>
      %c0_i32_266 = arith.constant 0 : i32
      %2427 = vector.broadcast %c0_i32_266 : i32 to vector<2x1xi32>
      %2428 = arith.cmpi sgt, %2426, %2427 : vector<2x1xi32>
      %2429 = arith.extui %2428 : vector<2x1xi1> to vector<2x1xi32>
      %2430 = arith.sitofp %2429 : vector<2x1xi32> to vector<2x1xf32>
      %2431 = arith.mulf %arg62, %2430 : vector<2x1xf32>
      %2432 = arith.fptosi %2431 : vector<2x1xf32> to vector<2x1xi32>
      %2433 = arith.muli %2426, %2432 : vector<2x1xi32>
      %2434 = vector.broadcast %arg55 : i32 to vector<2x18xi32>
      %2435 = arith.cmpi eq, %497, %2434 : vector<2x18xi32>
      %2436 = vector.shape_cast %2433 : vector<2x1xi32> to vector<2x1xi32>
      %2437 = vector.broadcast %2436 : vector<2x1xi32> to vector<2x18xi32>
      %2438 = arith.select %2435, %2437, %arg63 : vector<2x18xi1>, vector<2x18xi32>
      %2439 = vector.shape_cast %2416 : vector<2x1xf32> to vector<2x1xf32>
      %2440 = vector.broadcast %2439 : vector<2x1xf32> to vector<2x18xf32>
      %2441 = arith.select %2435, %2440, %arg64 : vector<2x18xi1>, vector<2x18xf32>
      %2442 = vector.shape_cast %2431 : vector<2x1xf32> to vector<1x2x1xf32>
      %cst_267 = arith.constant dense<0.000000e+00> : vector<1xf32>
      %2443 = vector.multi_reduction <add>, %2442, %cst_267 [1, 2] : vector<1x2x1xf32> to vector<1xf32>
      %2444 = vector.shape_cast %2443 : vector<1xf32> to vector<1x1x1xf32>
      %2445 = vector.extract %2444[0, 0, 0] : f32 from vector<1x1x1xf32>
      %cst_268 = arith.constant 0.000000e+00 : f32
      %2446 = arith.cmpf ogt, %2445, %cst_268 : f32
      %2447 = arith.extui %2446 : i1 to i32
      %c1_i32_269 = arith.constant 1 : i32
      %2448 = arith.addi %arg55, %c1_i32_269 : i32
      scf.yield %2448, %2447, %2433, %533, %531, %2403, %2401, %2431, %2438, %2441 : i32, i32, vector<2x1xi32>, vector<2x32xf32>, vector<2x32xf32>, vector<2x32xf32>, vector<2x32xf32>, vector<2x1xf32>, vector<2x18xi32>, vector<2x18xf32>
    }
    %c0_207 = arith.constant 0 : index
    %c0_208 = arith.constant 0 : index
    %504 = vector.load %arg51[%c0_207, %c0_208] : memref<2x18xi32, #tpu.memory_space<vmem>>, vector<2x18xi32>
    tpu.vector_store %arg51[%c0_207, %c0_208], %503#8 {strides = array<i32>} : memref<2x18xi32, #tpu.memory_space<vmem>>, vector<2x18xi32>,
    %c0_209 = arith.constant 0 : index
    %c0_210 = arith.constant 0 : index
    %505 = vector.load %arg52[%c0_209, %c0_210] : memref<2x18xf32, #tpu.memory_space<vmem>>, vector<2x18xf32>
    tpu.vector_store %arg52[%c0_209, %c0_210], %503#9 {strides = array<i32>} : memref<2x18xf32, #tpu.memory_space<vmem>>, vector<2x18xf32>,
    return
  }
}

</mosaic_0001>

<llo_original>
// kernel: _lambda_.1
$region0: #{_lambda_.1}
  #allocation0 [shape = 'u32[]', space=smem, size = 0x4, offset = 0x4, fixed_abs, tag = 'smem constant byte address 0x4 - core index']
  #allocation1 [shape = 'u32[72,128]{1,0:T(1,128)}', space=vmem, size = 0x9000, scoped, tag = 'internal scratch']
  #allocation2 [shape = 'f32[2,8,32]{2,1,0:T(8,128)}', space=vmem, size = 0x2000, scoped, tag = 'scratch operand']
  #allocation3 [shape = 'f32[2,8,32]{2,1,0:T(8,128)}', space=vmem, size = 0x2000, scoped, tag = 'scratch operand']
  #allocation4 [shape = 'f32[1,1]{1,0:T(1,128)S(1)}', space=vmem, size = 0x200, scoped, tag = 'scoped memory for _lambda_.1']
  #allocation5 [shape = 'f32[1,1]{1,0:T(1,128)S(1)}', space=vmem, size = 0x200, scoped, tag = 'scoped memory for _lambda_.1']
  %s0 = inlined_call_operand.smem [shape: u32[53], index: -1, kind: input, shape index: {}]
  %s1 = sld [smem:[%s0]]
  %s2 = scalar_lea.smem %s0, 1
  %s3 = sld [smem:[%s2]]
  %s4 = scalar_lea.smem %s0, 2
  %s5 = sld [smem:[%s4]]
  %s6 = scalar_lea.smem %s0, 3
  %s7 = sld [smem:[%s6]]
  %s8 = scalar_lea.smem %s0, 4
  %s9 = sld [smem:[%s8]]
  %s10 = scalar_lea.smem %s0, 5
  %s11 = sld [smem:[%s10]]
  %s12 = scalar_lea.smem %s0, 6
  %s13 = sld [smem:[%s12]]
  %s14 = scalar_lea.smem %s0, 7
  %s15 = sld [smem:[%s14]]
  %s16 = scalar_lea.smem %s0, 8
  %s17 = sld [smem:[%s16]]
  %s18 = scalar_lea.smem %s0, 9
  %s19 = sld [smem:[%s18]]
  %s20 = scalar_lea.smem %s0, 10
  %s21 = sld [smem:[%s20]]
  %s22 = scalar_lea.smem %s0, 11
  %s23 = sld [smem:[%s22]]
  %s24 = scalar_lea.smem %s0, 12
  %s25 = sld [smem:[%s24]]
  %s26 = scalar_lea.smem %s0, 13
  %s27 = sld [smem:[%s26]]
  %s28 = scalar_lea.smem %s0, 14
  %s29 = sld [smem:[%s28]]
  %s30 = scalar_lea.smem %s0, 15
  %s31 = sld [smem:[%s30]]
  %s32 = scalar_lea.smem %s0, 16
  %s33 = sld [smem:[%s32]]
  %s34 = scalar_lea.smem %s0, 17
  %s35 = sld [smem:[%s34]]
  %s36 = scalar_lea.smem %s0, 18
  %s37 = sld [smem:[%s36]]
  %s38 = scalar_lea.smem %s0, 19
  %s39 = sld [smem:[%s38]]
  %s40 = scalar_lea.smem %s0, 20
  %s41 = sld [smem:[%s40]]
  %s42 = scalar_lea.smem %s0, 21
  %s43 = sld [smem:[%s42]]
  %s44 = scalar_lea.smem %s0, 22
  %s45 = sld [smem:[%s44]]
  %s46 = scalar_lea.smem %s0, 23
  %s47 = sld [smem:[%s46]]
  %s48 = scalar_lea.smem %s0, 24
  %s49 = sld [smem:[%s48]]
  %s50 = scalar_lea.smem %s0, 25
  %s51 = sld [smem:[%s50]]
  %s52 = scalar_lea.smem %s0, 26
  %s53 = sld [smem:[%s52]]
  %s54 = scalar_lea.smem %s0, 27
  %s55 = sld [smem:[%s54]]
  %s56 = scalar_lea.smem %s0, 28
  %s57 = sld [smem:[%s56]]
  %s58 = scalar_lea.smem %s0, 29
  %s59 = sld [smem:[%s58]]
  %s60 = scalar_lea.smem %s0, 30
  %s61 = sld [smem:[%s60]]
  %s62 = scalar_lea.smem %s0, 31
  %s63 = sld [smem:[%s62]]
  %s64 = scalar_lea.smem %s0, 32
  %s65 = sld [smem:[%s64]]
  %s66 = scalar_lea.smem %s0, 33
  %s67 = sld [smem:[%s66]]
  %s68 = scalar_lea.smem %s0, 34
  %s69 = sld [smem:[%s68]]
  %s70 = scalar_lea.smem %s0, 35
  %s71 = sld [smem:[%s70]]
  %s72 = scalar_lea.smem %s0, 36
  %s73 = sld [smem:[%s72]]
  %s74 = scalar_lea.smem %s0, 37
  %s75 = sld [smem:[%s74]]
  %s76 = scalar_lea.smem %s0, 38
  %s77 = sld [smem:[%s76]]
  %s78 = scalar_lea.smem %s0, 39
  %s79 = sld [smem:[%s78]]
  %s80 = scalar_lea.smem %s0, 40
  %s81 = sld [smem:[%s80]]
  %s82 = scalar_lea.smem %s0, 41
  %s83 = sld [smem:[%s82]]
  %s84 = scalar_lea.smem %s0, 42
  %s85 = sld [smem:[%s84]]
  %s86 = scalar_lea.smem %s0, 43
  %s87 = sld [smem:[%s86]]
  %s88 = scalar_lea.smem %s0, 44
  %s89 = sld [smem:[%s88]]
  %s90 = scalar_lea.smem %s0, 45
  %s91 = sld [smem:[%s90]]
  %s92 = scalar_lea.smem %s0, 46
  %s93 = sld [smem:[%s92]]
  %s94 = scalar_lea.smem %s0, 47
  %s95 = sld [smem:[%s94]]
  %s96 = scalar_lea.smem %s0, 48
  %s97 = sld [smem:[%s96]]
  %s98 = scalar_lea.smem %s0, 49
  %s99 = sld [smem:[%s98]]
  %s100 = scalar_lea.smem %s0, 50
  %s101 = sld [smem:[%s100]]
  %s102 = scalar_lea.smem %s0, 51
  %s103 = sld [smem:[%s102]]
  %s104 = scalar_lea.smem %s0, 52
  %s105 = sld [smem:[%s104]]
  %106 = xla_tuple %s103, %s105
  %s107 = sld [smem:[#allocation0]]
  $region245: #{_lambda_.1} parent=0
    _
  %s109 = ssub.s32 1, %s107
  %s110 = scalar_select 0, %s109, %s107
  %v111 = vstv %s31
  %112 = vst [vmem:[#allocation4] sm:$0x1] %v111
  %v113 = vstv %s51
  %114 = vst [vmem:[#allocation5] sm:$0x1] %v113
  $region1: #{_lambda_.1} parent=0
    #allocation6 [shape = 'u8[512]{0}', space=vmem, size = 0x400, scoped, tag = 'input window, operand 23, single buffered']
    #allocation7 [shape = 's32[1]{0}', space=sflag, size = 0x4, scoped, tag = 'scoped memory for _lambda_.1']
    #allocation8 [shape = 's32[1]{0}', space=sflag, size = 0x4, scoped, tag = 'scoped memory for _lambda_.1']
    #allocation9 [shape = 'u8[512]{0}', space=vmem, size = 0x400, scoped, tag = 'input window, operand 24, single buffered']
    #allocation10 [shape = 's32[1]{0}', space=sflag, size = 0x4, scoped, tag = 'scoped memory for _lambda_.1']
    #allocation11 [shape = 'u8[512]{0}', space=vmem, size = 0x400, scoped, tag = 'input window, operand 48, single buffered']
    #allocation12 [shape = 'u8[512]{0}', space=vmem, size = 0x400, scoped, tag = 'input window, operand 50, single buffered']
    #allocation13 [shape = 's32[1]{0}', space=sflag, size = 0x4, scoped, tag = 'scoped memory for _lambda_.1']
    #allocation14 [shape = 'u8[1024]{0}', space=vmem, size = 0x400, scoped, tag = 'output window, operand 0, single buffered']
    #allocation15 [shape = 'u8[1024]{0}', space=vmem, size = 0x400, scoped, tag = 'output window, operand 1, single buffered']
    #allocation16 [shape = 's32[1]{0}', space=sflag, size = 0x4, scoped, tag = 'scoped memory for _lambda_.1']
    %115 = vsyncpa [#allocation7], 0
    %116 = vsyncpa [#allocation10], 0
    %117 = vsyncpa [#allocation13], 0
    %118 = vsyncpa [#allocation8], 0
    %119 = vsyncpa [#allocation16], 0
    // Predicated region
    $region2: #{_lambda_.1} parent=1 // pred_check
      _
    $region3: #{_lambda_.1} parent=1 // pred_check_branch
      %121 = sbr.rel (0) target = $region5
    $region4: #{_lambda_.1} parent=1 // pred_region
      _
    $region5: #{_lambda_.1} parent=1 // pred_fallthru
      _
    // Predicated region
    $region6: #{_lambda_.1} parent=1 // pred_check
      _
    $region7: #{_lambda_.1} parent=1 // pred_check_branch
      %123 = sbr.rel (0) target = $region9
    $region8: #{_lambda_.1} parent=1 // pred_region
      _
    $region9: #{_lambda_.1} parent=1 // pred_fallthru
      _
    // Predicated region
    $region10: #{_lambda_.1} parent=1 // pred_check
      _
    $region11: #{_lambda_.1} parent=1 // pred_check_branch
      %125 = sbr.rel (0) target = $region13
    $region12: #{_lambda_.1} parent=1 // pred_region
      _
    $region13: #{_lambda_.1} parent=1 // pred_fallthru
      _
    // Predicated region
    $region14: #{_lambda_.1} parent=1 // pred_check
      _
    $region15: #{_lambda_.1} parent=1 // pred_check_branch
      %127 = sbr.rel (0) target = $region17
    $region16: #{_lambda_.1} parent=1 // pred_region
      _
    $region17: #{_lambda_.1} parent=1 // pred_fallthru
      _
    // Predicated region
    $region18: #{_lambda_.1} parent=1 // pred_check
      _
    $region19: #{_lambda_.1} parent=1 // pred_check_branch
      %129 = sbr.rel (0) target = $region21
    $region20: #{_lambda_.1} parent=1 // pred_region
      _
    $region21: #{_lambda_.1} parent=1 // pred_fallthru
      _
    // Predicated region
    $region22: #{_lambda_.1} parent=1 // pred_check
      _
    $region23: #{_lambda_.1} parent=1 // pred_check_branch
      %131 = sbr.rel (0) target = $region25
    $region24: #{_lambda_.1} parent=1 // pred_region
      _
    $region25: #{_lambda_.1} parent=1 // pred_fallthru
      _
    // Predicated region
    $region26: #{_lambda_.1} parent=1 // pred_check
      _
    $region27: #{_lambda_.1} parent=1 // pred_check_branch
      %133 = sbr.rel (0) target = $region29
    $region28: #{_lambda_.1} parent=1 // pred_region
      _
    $region29: #{_lambda_.1} parent=1 // pred_fallthru
      _
    // Predicated region
    $region30: #{_lambda_.1} parent=1 // pred_check
      _
    $region31: #{_lambda_.1} parent=1 // pred_check_branch
      %135 = sbr.rel (0) target = $region33
    $region32: #{_lambda_.1} parent=1 // pred_region
      _
    $region33: #{_lambda_.1} parent=1 // pred_fallthru
      _
    // Predicated region
    $region34: #{_lambda_.1} parent=1 // pred_check
      _
    $region35: #{_lambda_.1} parent=1 // pred_check_branch
      %137 = sbr.rel (0) target = $region37
    $region36: #{_lambda_.1} parent=1 // pred_region
      _
    $region37: #{_lambda_.1} parent=1 // pred_fallthru
      _
    // Predicated region
    $region38: #{_lambda_.1} parent=1 // pred_check
      _
    $region39: #{_lambda_.1} parent=1 // pred_check_branch
      %139 = sbr.rel (0) target = $region41
    $region40: #{_lambda_.1} parent=1 // pred_region
      _
    $region41: #{_lambda_.1} parent=1 // pred_fallthru
      _
    // Predicated region
    $region42: #{_lambda_.1} parent=1 // pred_check
      _
    $region43: #{_lambda_.1} parent=1 // pred_check_branch
      %141 = sbr.rel (0) target = $region45
    $region44: #{_lambda_.1} parent=1 // pred_region
      _
    $region45: #{_lambda_.1} parent=1 // pred_fallthru
      _
    // Predicated region
    $region46: #{_lambda_.1} parent=1 // pred_check
      _
    $region47: #{_lambda_.1} parent=1 // pred_check_branch
      %143 = sbr.rel (0) target = $region49
    $region48: #{_lambda_.1} parent=1 // pred_region
      _
    $region49: #{_lambda_.1} parent=1 // pred_fallthru
      _
    // Predicated region
    $region50: #{_lambda_.1} parent=1 // pred_check
      _
    $region51: #{_lambda_.1} parent=1 // pred_check_branch
      %145 = sbr.rel (0) target = $region53
    $region52: #{_lambda_.1} parent=1 // pred_region
      _
    $region53: #{_lambda_.1} parent=1 // pred_fallthru
      _
    // Predicated region
    $region54: #{_lambda_.1} parent=1 // pred_check
      _
    $region55: #{_lambda_.1} parent=1 // pred_check_branch
      %147 = sbr.rel (0) target = $region57
    $region56: #{_lambda_.1} parent=1 // pred_region
      _
    $region57: #{_lambda_.1} parent=1 // pred_fallthru
      _
    // Predicated region
    $region58: #{_lambda_.1} parent=1 // pred_check
      _
    $region59: #{_lambda_.1} parent=1 // pred_check_branch
      %149 = sbr.rel (0) target = $region61
    $region60: #{_lambda_.1} parent=1 // pred_region
      _
    $region61: #{_lambda_.1} parent=1 // pred_fallthru
      _
    // Predicated region
    $region62: #{_lambda_.1} parent=1 // pred_check
      _
    $region63: #{_lambda_.1} parent=1 // pred_check_branch
      %151 = sbr.rel (0) target = $region65
    $region64: #{_lambda_.1} parent=1 // pred_region
      _
    $region65: #{_lambda_.1} parent=1 // pred_fallthru
      _
    // Predicated region
    $region66: #{_lambda_.1} parent=1 // pred_check
      _
    $region67: #{_lambda_.1} parent=1 // pred_check_branch
      %153 = sbr.rel (0) target = $region69
    $region68: #{_lambda_.1} parent=1 // pred_region
      _
    $region69: #{_lambda_.1} parent=1 // pred_fallthru
      _
    // Predicated region
    $region70: #{_lambda_.1} parent=1 // pred_check
      _
    $region71: #{_lambda_.1} parent=1 // pred_check_branch
      %155 = sbr.rel (0) target = $region73
    $region72: #{_lambda_.1} parent=1 // pred_region
      _
    $region73: #{_lambda_.1} parent=1 // pred_fallthru
      _
    // Predicated region
    $region74: #{_lambda_.1} parent=1 // pred_check
      _
    $region75: #{_lambda_.1} parent=1 // pred_check_branch
      %157 = sbr.rel (0) target = $region77
    $region76: #{_lambda_.1} parent=1 // pred_region
      _
    $region77: #{_lambda_.1} parent=1 // pred_fallthru
      _
    // Predicated region
    $region78: #{_lambda_.1} parent=1 // pred_check
      _
    $region79: #{_lambda_.1} parent=1 // pred_check_branch
      %159 = sbr.rel (0) target = $region81
    $region80: #{_lambda_.1} parent=1 // pred_region
      _
    $region81: #{_lambda_.1} parent=1 // pred_fallthru
      _
    // Predicated region
    $region82: #{_lambda_.1} parent=1 // pred_check
      _
    $region83: #{_lambda_.1} parent=1 // pred_check_branch
      %161 = sbr.rel (0) target = $region85
    $region84: #{_lambda_.1} parent=1 // pred_region
      _
    $region85: #{_lambda_.1} parent=1 // pred_fallthru
      _
    // Predicated region
    $region86: #{_lambda_.1} parent=1 // pred_check
      _
    $region87: #{_lambda_.1} parent=1 // pred_check_branch
      %163 = sbr.rel (0) target = $region89
    $region88: #{_lambda_.1} parent=1 // pred_region
      _
    $region89: #{_lambda_.1} parent=1 // pred_fallthru
      _
    // Predicated region
    $region90: #{_lambda_.1} parent=1 // pred_check
      _
    $region91: #{_lambda_.1} parent=1 // pred_check_branch
      %165 = sbr.rel (0) target = $region93
    $region92: #{_lambda_.1} parent=1 // pred_region
      _
    $region93: #{_lambda_.1} parent=1 // pred_fallthru
      _
    // Predicated region
    $region94: #{_lambda_.1} parent=1 // pred_check
      _
    $region95: #{_lambda_.1} parent=1 // pred_check_branch
      %167 = sbr.rel (0) target = $region97
    $region96: #{_lambda_.1} parent=1 // pred_region
      %169 = vsyncadd [#allocation7], 0
      %s171 = sshll.u32 %s47, 4
      %s172 = int_to_ptr.hbm [resolvable:$true] %s171
      %s173 = sshll.u32 [#allocation6], 4
      %s174 = int_to_ptr.vmem [resolvable:$true] %s173
      %176 = dma.hbm_to_vmem [thread:$0]  %s172, 16, %s174, [#allocation7]
    $region97: #{_lambda_.1} parent=1 // pred_fallthru
      _
    // Predicated region
    $region98: #{_lambda_.1} parent=1 // pred_check
      _
    $region99: #{_lambda_.1} parent=1 // pred_check_branch
      %178 = sbr.rel (0) target = $region101
    $region100: #{_lambda_.1} parent=1 // pred_region
      %180 = vsyncadd [#allocation10], 0
      %s182 = sshll.u32 %s49, 4
      %s183 = int_to_ptr.hbm [resolvable:$true] %s182
      %s184 = sshll.u32 [#allocation9], 4
      %s185 = int_to_ptr.vmem [resolvable:$true] %s184
      %187 = dma.hbm_to_vmem [thread:$0]  %s183, 16, %s185, [#allocation10]
    $region101: #{_lambda_.1} parent=1 // pred_fallthru
      _
    // Predicated region
    $region102: #{_lambda_.1} parent=1 // pred_check
      _
    $region103: #{_lambda_.1} parent=1 // pred_check_branch
      %189 = sbr.rel (0) target = $region105
    $region104: #{_lambda_.1} parent=1 // pred_region
      _
    $region105: #{_lambda_.1} parent=1 // pred_fallthru
      _
    // Predicated region
    $region106: #{_lambda_.1} parent=1 // pred_check
      _
    $region107: #{_lambda_.1} parent=1 // pred_check_branch
      %191 = sbr.rel (0) target = $region109
    $region108: #{_lambda_.1} parent=1 // pred_region
      _
    $region109: #{_lambda_.1} parent=1 // pred_fallthru
      _
    // Predicated region
    $region110: #{_lambda_.1} parent=1 // pred_check
      _
    $region111: #{_lambda_.1} parent=1 // pred_check_branch
      %193 = sbr.rel (0) target = $region113
    $region112: #{_lambda_.1} parent=1 // pred_region
      _
    $region113: #{_lambda_.1} parent=1 // pred_fallthru
      _
    // Predicated region
    $region114: #{_lambda_.1} parent=1 // pred_check
      _
    $region115: #{_lambda_.1} parent=1 // pred_check_branch
      %195 = sbr.rel (0) target = $region117
    $region116: #{_lambda_.1} parent=1 // pred_region
      _
    $region117: #{_lambda_.1} parent=1 // pred_fallthru
      _
    // Predicated region
    $region118: #{_lambda_.1} parent=1 // pred_check
      _
    $region119: #{_lambda_.1} parent=1 // pred_check_branch
      %197 = sbr.rel (0) target = $region121
    $region120: #{_lambda_.1} parent=1 // pred_region
      _
    $region121: #{_lambda_.1} parent=1 // pred_fallthru
      _
    // Predicated region
    $region122: #{_lambda_.1} parent=1 // pred_check
      _
    $region123: #{_lambda_.1} parent=1 // pred_check_branch
      %199 = sbr.rel (0) target = $region125
    $region124: #{_lambda_.1} parent=1 // pred_region
      _
    $region125: #{_lambda_.1} parent=1 // pred_fallthru
      _
    // Predicated region
    $region126: #{_lambda_.1} parent=1 // pred_check
      _
    $region127: #{_lambda_.1} parent=1 // pred_check_branch
      %201 = sbr.rel (0) target = $region129
    $region128: #{_lambda_.1} parent=1 // pred_region
      _
    $region129: #{_lambda_.1} parent=1 // pred_fallthru
      _
    // Predicated region
    $region130: #{_lambda_.1} parent=1 // pred_check
      _
    $region131: #{_lambda_.1} parent=1 // pred_check_branch
      %203 = sbr.rel (0) target = $region133
    $region132: #{_lambda_.1} parent=1 // pred_region
      _
    $region133: #{_lambda_.1} parent=1 // pred_fallthru
      _
    // Predicated region
    $region134: #{_lambda_.1} parent=1 // pred_check
      _
    $region135: #{_lambda_.1} parent=1 // pred_check_branch
      %205 = sbr.rel (0) target = $region137
    $region136: #{_lambda_.1} parent=1 // pred_region
      _
    $region137: #{_lambda_.1} parent=1 // pred_fallthru
      _
    // Predicated region
    $region138: #{_lambda_.1} parent=1 // pred_check
      _
    $region139: #{_lambda_.1} parent=1 // pred_check_branch
      %207 = sbr.rel (0) target = $region141
    $region140: #{_lambda_.1} parent=1 // pred_region
      _
    $region141: #{_lambda_.1} parent=1 // pred_fallthru
      _
    // Predicated region
    $region142: #{_lambda_.1} parent=1 // pred_check
      _
    $region143: #{_lambda_.1} parent=1 // pred_check_branch
      %209 = sbr.rel (0) target = $region145
    $region144: #{_lambda_.1} parent=1 // pred_region
      _
    $region145: #{_lambda_.1} parent=1 // pred_fallthru
      _
    // Predicated region
    $region146: #{_lambda_.1} parent=1 // pred_check
      _
    $region147: #{_lambda_.1} parent=1 // pred_check_branch
      %211 = sbr.rel (0) target = $region149
    $region148: #{_lambda_.1} parent=1 // pred_region
      _
    $region149: #{_lambda_.1} parent=1 // pred_fallthru
      _
    // Predicated region
    $region150: #{_lambda_.1} parent=1 // pred_check
      _
    $region151: #{_lambda_.1} parent=1 // pred_check_branch
      %213 = sbr.rel (0) target = $region153
    $region152: #{_lambda_.1} parent=1 // pred_region
      _
    $region153: #{_lambda_.1} parent=1 // pred_fallthru
      _
    // Predicated region
    $region154: #{_lambda_.1} parent=1 // pred_check
      _
    $region155: #{_lambda_.1} parent=1 // pred_check_branch
      %215 = sbr.rel (0) target = $region157
    $region156: #{_lambda_.1} parent=1 // pred_region
      _
    $region157: #{_lambda_.1} parent=1 // pred_fallthru
      _
    // Predicated region
    $region158: #{_lambda_.1} parent=1 // pred_check
      _
    $region159: #{_lambda_.1} parent=1 // pred_check_branch
      %217 = sbr.rel (0) target = $region161
    $region160: #{_lambda_.1} parent=1 // pred_region
      _
    $region161: #{_lambda_.1} parent=1 // pred_fallthru
      _
    // Predicated region
    $region162: #{_lambda_.1} parent=1 // pred_check
      _
    $region163: #{_lambda_.1} parent=1 // pred_check_branch
      %219 = sbr.rel (0) target = $region165
    $region164: #{_lambda_.1} parent=1 // pred_region
      _
    $region165: #{_lambda_.1} parent=1 // pred_fallthru
      _
    // Predicated region
    $region166: #{_lambda_.1} parent=1 // pred_check
      _
    $region167: #{_lambda_.1} parent=1 // pred_check_branch
      %221 = sbr.rel (0) target = $region169
    $region168: #{_lambda_.1} parent=1 // pred_region
      _
    $region169: #{_lambda_.1} parent=1 // pred_fallthru
      _
    // Predicated region
    $region170: #{_lambda_.1} parent=1 // pred_check
      _
    $region171: #{_lambda_.1} parent=1 // pred_check_branch
      %223 = sbr.rel (0) target = $region173
    $region172: #{_lambda_.1} parent=1 // pred_region
      _
    $region173: #{_lambda_.1} parent=1 // pred_fallthru
      _
    // Predicated region
    $region174: #{_lambda_.1} parent=1 // pred_check
      _
    $region175: #{_lambda_.1} parent=1 // pred_check_branch
      %225 = sbr.rel (0) target = $region177
    $region176: #{_lambda_.1} parent=1 // pred_region
      _
    $region177: #{_lambda_.1} parent=1 // pred_fallthru
      _
    // Predicated region
    $region178: #{_lambda_.1} parent=1 // pred_check
      _
    $region179: #{_lambda_.1} parent=1 // pred_check_branch
      %227 = sbr.rel (0) target = $region181
    $region180: #{_lambda_.1} parent=1 // pred_region
      _
    $region181: #{_lambda_.1} parent=1 // pred_fallthru
      _
    // Predicated region
    $region182: #{_lambda_.1} parent=1 // pred_check
      _
    $region183: #{_lambda_.1} parent=1 // pred_check_branch
      %229 = sbr.rel (0) target = $region185
    $region184: #{_lambda_.1} parent=1 // pred_region
      _
    $region185: #{_lambda_.1} parent=1 // pred_fallthru
      _
    // Predicated region
    $region186: #{_lambda_.1} parent=1 // pred_check
      _
    $region187: #{_lambda_.1} parent=1 // pred_check_branch
      %231 = sbr.rel (0) target = $region189
    $region188: #{_lambda_.1} parent=1 // pred_region
      _
    $region189: #{_lambda_.1} parent=1 // pred_fallthru
      _
    // Predicated region
    $region190: #{_lambda_.1} parent=1 // pred_check
      _
    $region191: #{_lambda_.1} parent=1 // pred_check_branch
      %233 = sbr.rel (0) target = $region193
    $region192: #{_lambda_.1} parent=1 // pred_region
      _
    $region193: #{_lambda_.1} parent=1 // pred_fallthru
      _
    // Predicated region
    $region194: #{_lambda_.1} parent=1 // pred_check
      _
    $region195: #{_lambda_.1} parent=1 // pred_check_branch
      %235 = sbr.rel (0) target = $region197
    $region196: #{_lambda_.1} parent=1 // pred_region
      %237 = vsyncadd [#allocation10], 0
      %s239 = sshll.u32 %s97, 4
      %s240 = int_to_ptr.hbm [resolvable:$true] %s239
      %s241 = sshll.u32 [#allocation11], 4
      %s242 = int_to_ptr.vmem [resolvable:$true] %s241
      %244 = dma.hbm_to_vmem [thread:$0]  %s240, 16, %s242, [#allocation10]
    $region197: #{_lambda_.1} parent=1 // pred_fallthru
      _
    // Predicated region
    $region198: #{_lambda_.1} parent=1 // pred_check
      _
    $region199: #{_lambda_.1} parent=1 // pred_check_branch
      %246 = sbr.rel (0) target = $region201
    $region200: #{_lambda_.1} parent=1 // pred_region
      _
    $region201: #{_lambda_.1} parent=1 // pred_fallthru
      _
    // Predicated region
    $region202: #{_lambda_.1} parent=1 // pred_check
      _
    $region203: #{_lambda_.1} parent=1 // pred_check_branch
      %248 = sbr.rel (0) target = $region205
    $region204: #{_lambda_.1} parent=1 // pred_region
      %250 = vsyncadd [#allocation13], 0
      %s252 = sshll.u32 %s101, 4
      %s253 = int_to_ptr.hbm [resolvable:$true] %s252
      %s254 = sshll.u32 [#allocation12], 4
      %s255 = int_to_ptr.vmem [resolvable:$true] %s254
      %257 = dma.hbm_to_vmem [thread:$0]  %s253, 16, %s255, [#allocation13]
    $region205: #{_lambda_.1} parent=1 // pred_fallthru
      _
    // Predicated region
    $region206: #{_lambda_.1} parent=1 // pred_check
      _
    $region207: #{_lambda_.1} parent=1 // pred_check_branch
      %259 = sbr.rel (0) target = $region209
    $region208: #{_lambda_.1} parent=1 // pred_region
      %261 = dma.done [#allocation7], 16
    $region209: #{_lambda_.1} parent=1 // pred_fallthru
      _
    // Predicated region
    $region210: #{_lambda_.1} parent=1 // pred_check
      _
    $region211: #{_lambda_.1} parent=1 // pred_check_branch
      %263 = sbr.rel (0) target = $region213
    $region212: #{_lambda_.1} parent=1 // pred_region
      %265 = dma.done [#allocation10], 16
    $region213: #{_lambda_.1} parent=1 // pred_fallthru
      _
    // Predicated region
    $region214: #{_lambda_.1} parent=1 // pred_check
      _
    $region215: #{_lambda_.1} parent=1 // pred_check_branch
      %267 = sbr.rel (0) target = $region217
    $region216: #{_lambda_.1} parent=1 // pred_region
      %269 = dma.done [#allocation10], 16
    $region217: #{_lambda_.1} parent=1 // pred_fallthru
      _
    // Predicated region
    $region218: #{_lambda_.1} parent=1 // pred_check
      _
    $region219: #{_lambda_.1} parent=1 // pred_check_branch
      %271 = sbr.rel (0) target = $region221
    $region220: #{_lambda_.1} parent=1 // pred_region
      %273 = dma.done [#allocation13], 16
    $region221: #{_lambda_.1} parent=1 // pred_fallthru
      _
    %v274 = vld [vmem:[%s1] sm:$0xff]
    %v275 = vld [vmem:[%s1 + $0x8] sm:$0xff]
    %v276 = vlaneseq
    %v277 = vand.u32 %v276, 127
    %v278 = vld [vmem:[%s3] sm:$0x3]
    %279 = vset.pattern.permute.xlu0 0
    %280 = vperm.xlu0 %279, %v278
    %v281 = vpop.permute.xlu0 %280
    %vm282 = vcmp.lt.s32.totalorder %v277, %v281
    %v283 = vsel %vm282, 1, 0
    %v284 = vcvt.s32.f32 %v283
    %v285 = vld [vmem:[%s9] sm:$0xff]
    %v286 = vld [vmem:[%s9 + $0x8] sm:$0xff]
    %v287 = vld [vmem:[%s9 + $0x10] sm:$0xff]
    %v288 = vld [vmem:[%s9 + $0x18] sm:$0xff]
    %v289 = vld [vmem:[%s11] sm:$0x1]
    %v291 = vperm.slane %v289, 0
    %vm293 = vcmask 261120
    %v295 = vsel %vm293, %v274, 0
    %v298 = vsel %vm293, %v275, 0
    %300 = vmatpush.msra.mxu0 0.0
    %301 = vmatpush.msra.mxu0 0.0
    %302 = vmatpush.msra.mxu0 0.0
    %303 = vmatpush.msra.mxu0 0.0
    %304 = vmatpush.msra.mxu0 0.0
    %305 = vmatpush.msra.mxu0 0.0
    %306 = vmatpush.msra.mxu0 0.0
    %307 = vmatpush.msra.mxu0 0.0
    %308 = vmatpush.msra.mxu0 0.0
    %309 = vmatpush.msra.mxu0 0.0
    %310 = vmatpush.msra.mxu0 0.0
    %311 = vmatpush.msra.mxu0 0.0
    %312 = vmatpush.msra.mxu0 %v288
    %313 = vmatpush.msra.mxu0 %v287
    %314 = vmatpush.msra.mxu0 %v286
    %315 = vmatpush.msra.mxu0 %v285
    %316 = vmatmul.f32.gmra.mxu0 %v295
    %v317 = vpop.f32.mrf.mxu0
    %v318 = vadd.f32 %v291, %v317
    %319 = vmatmul.f32.gmra.mxu0 %v298
    %v320 = vpop.f32.mrf.mxu0
    %v321 = vadd.f32 %v291, %v320
    %322 = vdwg.mxu0
    %v323 = vld [vmem:[%s13] sm:$0xff]
    %v324 = vld [vmem:[%s13 + $0x8] sm:$0xff]
    %v325 = vld [vmem:[%s13 + $0x10] sm:$0xff]
    %v326 = vld [vmem:[%s13 + $0x18] sm:$0xff]
    %v327 = vld [vmem:[%s15] sm:$0x1]
    %v329 = vsel %vm293, 0.0, 0
    %331 = vmatpush.msra.mxu0 0.0
    %332 = vmatpush.msra.mxu0 0.0
    %333 = vmatpush.msra.mxu0 0.0
    %334 = vmatpush.msra.mxu0 0.0
    %335 = vmatpush.msra.mxu0 0.0
    %336 = vmatpush.msra.mxu0 0.0
    %337 = vmatpush.msra.mxu0 0.0
    %338 = vmatpush.msra.mxu0 0.0
    %339 = vmatpush.msra.mxu0 0.0
    %340 = vmatpush.msra.mxu0 0.0
    %341 = vmatpush.msra.mxu0 0.0
    %342 = vmatpush.msra.mxu0 0.0
    %343 = vmatpush.msra.mxu0 %v326
    %344 = vmatpush.msra.mxu0 %v325
    %345 = vmatpush.msra.mxu0 %v324
    %346 = vmatpush.msra.mxu0 %v323
    %347 = vmatmul.f32.gmra.mxu0 %v329
    %v348 = vpop.f32.mrf.mxu0
    %v349 = vadd.f32 0.0, %v348
    %350 = vdwg.mxu0
    %v352 = vrot.slane %v349, 1
    %v355 = vadd.f32 %v318, %v349
    %v356 = vadd.f32 %v321, %v352
    %v358 = vperm.slane %v327, 0
    %v360 = vadd.f32 %v355, %v358
    %v361 = vadd.f32 %v356, %v358
    %v362 = vxor.u32 %v360, 2147483648
    %v363 = vxor.u32 %v361, 2147483648
    %v364 = vmul.f32 %v362, 1.442695
    %v365 = vpow.pop %v364
    %v366 = vmul.f32 %v363, 1.442695
    %v367 = vpow.pop %v366
    %v368 = vadd.f32 %v365, 1.0
    %v369 = vadd.f32 %v367, 1.0
    %v370 = vrcp.pop %v368
    %v371 = vmul.f32 %v368, %v370
    %v372 = vsub.f32 1.0, %v371
    %v373 = vmul.f32 %v370, %v372
    %v374 = vadd.f32 %v370, %v373
    %vm375 = vweird.f32 %v368
    %vm376 = vweird.f32 %v370
    %vm377 = vmor %vm375, %vm376
    %v378 = vsel %vm377, %v370, %v374
    %v379 = vand.u32 2147483647, %v368
    %vm380 = vcmp.eq.f32.partialorder %v379, 8.507059e+37
    %v381 = vand.u32 %v368, 2147483648
    %v382 = vor.u32 1.1754944e-38, %v381
    %v383 = vsel %vm380, %v382, %v378
    %v384 = vmul.f32 1.0, %v383
    %v385 = vrcp.pop %v369
    %v386 = vmul.f32 %v369, %v385
    %v387 = vsub.f32 1.0, %v386
    %v388 = vmul.f32 %v385, %v387
    %v389 = vadd.f32 %v385, %v388
    %vm390 = vweird.f32 %v369
    %vm391 = vweird.f32 %v385
    %vm392 = vmor %vm390, %vm391
    %v393 = vsel %vm392, %v385, %v389
    %v394 = vand.u32 2147483647, %v369
    %vm395 = vcmp.eq.f32.partialorder %v394, 8.507059e+37
    %v396 = vand.u32 %v369, 2147483648
    %v397 = vor.u32 1.1754944e-38, %v396
    %v398 = vsel %vm395, %v397, %v393
    %v399 = vmul.f32 1.0, %v398
    %v400 = vtanh.pop %v360
    %v401 = vtanh.pop %v361
    %v402 = vmul.f32 %v384, 0.0
    %v403 = vmul.f32 %v399, 0.0
    %406 = vrot.lane.b32.xlu0 %v400, 64
    %v407 = vpop.permute.xlu0 %406
    %408 = vrot.lane.b32.xlu0 %v401, 64
    %v409 = vpop.permute.xlu0 %408
    %v412 = vmul.f32 %v384, %v407
    %v413 = vmul.f32 %v399, %v409
    %416 = vrot.lane.b32.xlu0 %v412, 32
    %v417 = vpop.permute.xlu0 %416
    %418 = vrot.lane.b32.xlu0 %v413, 32
    %v419 = vpop.permute.xlu0 %418
    %v422 = vadd.f32 %v402, %v417
    %v423 = vadd.f32 %v403, %v419
    %v424 = vtanh.pop %v422
    %v425 = vtanh.pop %v423
    %428 = vrot.lane.b32.xlu0 %v424, 64
    %v429 = vpop.permute.xlu0 %428
    %430 = vrot.lane.b32.xlu0 %v425, 64
    %v431 = vpop.permute.xlu0 %430
    %v434 = vmul.f32 %v384, %v429
    %v435 = vmul.f32 %v399, %v431
    %437 = vset.pattern.permute.xlu0 0
    %438 = vperm.xlu0 %437, %v284
    %v439 = vpop.permute.xlu0 %438
    %v443 = vrot.slane %v435, 7
    %vm444 = vcmask 1041409
    %v445 = vsel %vm444, %v443, %v434
    %446 = vrot.lane.b32.xlu0 %v445, 32
    %v447 = vpop.permute.xlu0 %446
    %v449 = vmul.f32 %v439, %v447
    %v450 = vsub.f32 1.0, %v284
    %452 = vset.pattern.permute.xlu0 0
    %453 = vperm.xlu0 %452, %v450
    %v454 = vpop.permute.xlu0 %453
    %v456 = vmul.f32 %v454, 0.0
    %v457 = vadd.f32 %v449, %v456
    %v460 = vrot.slane %v423, 7
    %v461 = vsel %vm444, %v460, %v422
    %462 = vrot.lane.b32.xlu0 %v461, 96
    %v463 = vpop.permute.xlu0 %462
    %v465 = vmul.f32 %v439, %v463
    %v466 = vadd.f32 %v465, %v456
    %v468 = vrot.slane %v449, 1
    %vm470 = vcmask 253952
    %471 = vst.msk [vmem:[#allocation2] sm:$0x1] %vm470, %v449
    %472 = vst.msk [vmem:[#allocation2 + $0x8] sm:$0x1] %vm470, %v468
    %v474 = vrot.slane %v465, 1
    %476 = vst.msk [vmem:[#allocation3] sm:$0x1] %vm470, %v465
    %477 = vst.msk [vmem:[#allocation3 + $0x8] sm:$0x1] %vm470, %v474
    %v479 = vsel %vm293, %v457, 0
    %481 = vmatpush.msra.mxu0 0.0
    %482 = vmatpush.msra.mxu0 0.0
    %483 = vmatpush.msra.mxu0 0.0
    %484 = vmatpush.msra.mxu0 0.0
    %485 = vmatpush.msra.mxu0 0.0
    %486 = vmatpush.msra.mxu0 0.0
    %487 = vmatpush.msra.mxu0 0.0
    %488 = vmatpush.msra.mxu0 0.0
    %489 = vmatpush.msra.mxu0 0.0
    %490 = vmatpush.msra.mxu0 0.0
    %491 = vmatpush.msra.mxu0 0.0
    %492 = vmatpush.msra.mxu0 0.0
    %493 = vmatpush.msra.mxu0 %v326
    %494 = vmatpush.msra.mxu0 %v325
    %495 = vmatpush.msra.mxu0 %v324
    %496 = vmatpush.msra.mxu0 %v323
    %497 = vmatmul.f32.gmra.mxu0 %v479
    %v498 = vpop.f32.mrf.mxu0
    %v499 = vadd.f32 0.0, %v498
    %500 = vdwg.mxu0
    %v502 = vrot.slane %v499, 7
    %v505 = vadd.f32 %v318, %v502
    %v506 = vadd.f32 %v321, %v499
    %v507 = vadd.f32 %v505, %v358
    %v508 = vadd.f32 %v506, %v358
    %v509 = vxor.u32 %v507, 2147483648
    %v510 = vxor.u32 %v508, 2147483648
    %v511 = vmul.f32 %v509, 1.442695
    %v512 = vpow.pop %v511
    %v513 = vmul.f32 %v510, 1.442695
    %v514 = vpow.pop %v513
    %v515 = vadd.f32 %v512, 1.0
    %v516 = vadd.f32 %v514, 1.0
    %v517 = vrcp.pop %v515
    %v518 = vmul.f32 %v515, %v517
    %v519 = vsub.f32 1.0, %v518
    %v520 = vmul.f32 %v517, %v519
    %v521 = vadd.f32 %v517, %v520
    %vm522 = vweird.f32 %v515
    %vm523 = vweird.f32 %v517
    %vm524 = vmor %vm522, %vm523
    %v525 = vsel %vm524, %v517, %v521
    %v526 = vand.u32 2147483647, %v515
    %vm527 = vcmp.eq.f32.partialorder %v526, 8.507059e+37
    %v528 = vand.u32 %v515, 2147483648
    %v529 = vor.u32 1.1754944e-38, %v528
    %v530 = vsel %vm527, %v529, %v525
    %v531 = vmul.f32 1.0, %v530
    %v532 = vrcp.pop %v516
    %v533 = vmul.f32 %v516, %v532
    %v534 = vsub.f32 1.0, %v533
    %v535 = vmul.f32 %v532, %v534
    %v536 = vadd.f32 %v532, %v535
    %vm537 = vweird.f32 %v516
    %vm538 = vweird.f32 %v532
    %vm539 = vmor %vm537, %vm538
    %v540 = vsel %vm539, %v532, %v536
    %v541 = vand.u32 2147483647, %v516
    %vm542 = vcmp.eq.f32.partialorder %v541, 8.507059e+37
    %v543 = vand.u32 %v516, 2147483648
    %v544 = vor.u32 1.1754944e-38, %v543
    %v545 = vsel %vm542, %v544, %v540
    %v546 = vmul.f32 1.0, %v545
    %v547 = vtanh.pop %v507
    %v548 = vtanh.pop %v508
    %v550 = vrot.slane %v466, 7
    %551 = vrot.lane.b32.xlu0 %v550, 32
    %v552 = vpop.permute.xlu0 %551
    %553 = vrot.lane.b32.xlu0 %v466, 32
    %v554 = vpop.permute.xlu0 %553
    %v557 = vmul.f32 %v531, %v552
    %v558 = vmul.f32 %v546, %v554
    %561 = vrot.lane.b32.xlu0 %v547, 64
    %v562 = vpop.permute.xlu0 %561
    %563 = vrot.lane.b32.xlu0 %v548, 64
    %v564 = vpop.permute.xlu0 %563
    %v567 = vmul.f32 %v531, %v562
    %v568 = vmul.f32 %v546, %v564
    %571 = vrot.lane.b32.xlu0 %v567, 32
    %v572 = vpop.permute.xlu0 %571
    %573 = vrot.lane.b32.xlu0 %v568, 32
    %v574 = vpop.permute.xlu0 %573
    %v577 = vadd.f32 %v557, %v572
    %v578 = vadd.f32 %v558, %v574
    %v579 = vtanh.pop %v577
    %v580 = vtanh.pop %v578
    %583 = vrot.lane.b32.xlu0 %v579, 64
    %v584 = vpop.permute.xlu0 %583
    %585 = vrot.lane.b32.xlu0 %v580, 64
    %v586 = vpop.permute.xlu0 %585
    %v589 = vmul.f32 %v531, %v584
    %v590 = vmul.f32 %v546, %v586
    %591 = vset.pattern.permute.xlu0 1
    %592 = vperm.xlu0 %591, %v284
    %v593 = vpop.permute.xlu0 %592
    %v597 = vrot.slane %v589, 1
    %v598 = vsel %vm444, %v590, %v597
    %599 = vrot.lane.b32.xlu0 %v598, 32
    %v600 = vpop.permute.xlu0 %599
    %v602 = vmul.f32 %v593, %v600
    %603 = vset.pattern.permute.xlu0 1
    %604 = vperm.xlu0 %603, %v450
    %v605 = vpop.permute.xlu0 %604
    %v607 = vmul.f32 %v605, %v457
    %v608 = vadd.f32 %v602, %v607
    %v611 = vrot.slane %v577, 1
    %v612 = vsel %vm444, %v578, %v611
    %613 = vrot.lane.b32.xlu0 %v612, 96
    %v614 = vpop.permute.xlu0 %613
    %v616 = vmul.f32 %v593, %v614
    %v617 = vmul.f32 %v605, %v466
    %v618 = vadd.f32 %v616, %v617
    %v620 = vrot.slane %v602, 1
    %622 = vst.msk [vmem:[#allocation2 + $0x1] sm:$0x1] %vm470, %v602
    %623 = vst.msk [vmem:[#allocation2 + $0x9] sm:$0x1] %vm470, %v620
    %v625 = vrot.slane %v616, 1
    %627 = vst.msk [vmem:[#allocation3 + $0x1] sm:$0x1] %vm470, %v616
    %628 = vst.msk [vmem:[#allocation3 + $0x9] sm:$0x1] %vm470, %v625
    %v630 = vsel %vm293, %v608, 0
    %632 = vmatpush.msra.mxu0 0.0
    %633 = vmatpush.msra.mxu0 0.0
    %634 = vmatpush.msra.mxu0 0.0
    %635 = vmatpush.msra.mxu0 0.0
    %636 = vmatpush.msra.mxu0 0.0
    %637 = vmatpush.msra.mxu0 0.0
    %638 = vmatpush.msra.mxu0 0.0
    %639 = vmatpush.msra.mxu0 0.0
    %640 = vmatpush.msra.mxu0 0.0
    %641 = vmatpush.msra.mxu0 0.0
    %642 = vmatpush.msra.mxu0 0.0
    %643 = vmatpush.msra.mxu0 0.0
    %644 = vmatpush.msra.mxu0 %v326
    %645 = vmatpush.msra.mxu0 %v325
    %646 = vmatpush.msra.mxu0 %v324
    %647 = vmatpush.msra.mxu0 %v323
    %648 = vmatmul.f32.gmra.mxu0 %v630
    %v649 = vpop.f32.mrf.mxu0
    %v650 = vadd.f32 0.0, %v649
    %651 = vdwg.mxu0
    %v653 = vrot.slane %v650, 6
    %v654 = vrot.slane %v650, 7
    %v657 = vadd.f32 %v318, %v653
    %v658 = vadd.f32 %v321, %v654
    %v659 = vadd.f32 %v657, %v358
    %v660 = vadd.f32 %v658, %v358
    %v661 = vxor.u32 %v659, 2147483648
    %v662 = vxor.u32 %v660, 2147483648
    %v663 = vmul.f32 %v661, 1.442695
    %v664 = vpow.pop %v663
    %v665 = vmul.f32 %v662, 1.442695
    %v666 = vpow.pop %v665
    %v667 = vadd.f32 %v664, 1.0
    %v668 = vadd.f32 %v666, 1.0
    %v669 = vrcp.pop %v667
    %v670 = vmul.f32 %v667, %v669
    %v671 = vsub.f32 1.0, %v670
    %v672 = vmul.f32 %v669, %v671
    %v673 = vadd.f32 %v669, %v672
    %vm674 = vweird.f32 %v667
    %vm675 = vweird.f32 %v669
    %vm676 = vmor %vm674, %vm675
    %v677 = vsel %vm676, %v669, %v673
    %v678 = vand.u32 2147483647, %v667
    %vm679 = vcmp.eq.f32.partialorder %v678, 8.507059e+37
    %v680 = vand.u32 %v667, 2147483648
    %v681 = vor.u32 1.1754944e-38, %v680
    %v682 = vsel %vm679, %v681, %v677
    %v683 = vmul.f32 1.0, %v682
    %v684 = vrcp.pop %v668
    %v685 = vmul.f32 %v668, %v684
    %v686 = vsub.f32 1.0, %v685
    %v687 = vmul.f32 %v684, %v686
    %v688 = vadd.f32 %v684, %v687
    %vm689 = vweird.f32 %v668
    %vm690 = vweird.f32 %v684
    %vm691 = vmor %vm689, %vm690
    %v692 = vsel %vm691, %v684, %v688
    %v693 = vand.u32 2147483647, %v668
    %vm694 = vcmp.eq.f32.partialorder %v693, 8.507059e+37
    %v695 = vand.u32 %v668, 2147483648
    %v696 = vor.u32 1.1754944e-38, %v695
    %v697 = vsel %vm694, %v696, %v692
    %v698 = vmul.f32 1.0, %v697
    %v699 = vtanh.pop %v659
    %v700 = vtanh.pop %v660
    %v702 = vrot.slane %v618, 6
    %v703 = vrot.slane %v618, 7
    %704 = vrot.lane.b32.xlu0 %v702, 32
    %v705 = vpop.permute.xlu0 %704
    %706 = vrot.lane.b32.xlu0 %v703, 32
    %v707 = vpop.permute.xlu0 %706
    %v710 = vmul.f32 %v683, %v705
    %v711 = vmul.f32 %v698, %v707
    %714 = vrot.lane.b32.xlu0 %v699, 64
    %v715 = vpop.permute.xlu0 %714
    %716 = vrot.lane.b32.xlu0 %v700, 64
    %v717 = vpop.permute.xlu0 %716
    %v720 = vmul.f32 %v683, %v715
    %v721 = vmul.f32 %v698, %v717
    %724 = vrot.lane.b32.xlu0 %v720, 32
    %v725 = vpop.permute.xlu0 %724
    %726 = vrot.lane.b32.xlu0 %v721, 32
    %v727 = vpop.permute.xlu0 %726
    %v730 = vadd.f32 %v710, %v725
    %v731 = vadd.f32 %v711, %v727
    %v732 = vtanh.pop %v730
    %v733 = vtanh.pop %v731
    %736 = vrot.lane.b32.xlu0 %v732, 64
    %v737 = vpop.permute.xlu0 %736
    %738 = vrot.lane.b32.xlu0 %v733, 64
    %v739 = vpop.permute.xlu0 %738
    %v742 = vmul.f32 %v683, %v737
    %v743 = vmul.f32 %v698, %v739
    %744 = vset.pattern.permute.xlu0 2
    %745 = vperm.xlu0 %744, %v284
    %v746 = vpop.permute.xlu0 %745
    %v750 = vrot.slane %v742, 2
    %v751 = vrot.slane %v743, 1
    %v752 = vsel %vm444, %v751, %v750
    %753 = vrot.lane.b32.xlu0 %v752, 32
    %v754 = vpop.permute.xlu0 %753
    %v756 = vmul.f32 %v746, %v754
    %757 = vset.pattern.permute.xlu0 2
    %758 = vperm.xlu0 %757, %v450
    %v759 = vpop.permute.xlu0 %758
    %v761 = vmul.f32 %v759, %v608
    %v762 = vadd.f32 %v756, %v761
    %v765 = vrot.slane %v730, 2
    %v766 = vrot.slane %v731, 1
    %v767 = vsel %vm444, %v766, %v765
    %768 = vrot.lane.b32.xlu0 %v767, 96
    %v769 = vpop.permute.xlu0 %768
    %v771 = vmul.f32 %v746, %v769
    %v772 = vmul.f32 %v759, %v618
    %v773 = vadd.f32 %v771, %v772
    %v775 = vrot.slane %v756, 1
    %777 = vst.msk [vmem:[#allocation2 + $0x2] sm:$0x1] %vm470, %v756
    %778 = vst.msk [vmem:[#allocation2 + $0xa] sm:$0x1] %vm470, %v775
    %v780 = vrot.slane %v771, 1
    %782 = vst.msk [vmem:[#allocation3 + $0x2] sm:$0x1] %vm470, %v771
    %783 = vst.msk [vmem:[#allocation3 + $0xa] sm:$0x1] %vm470, %v780
    %v785 = vsel %vm293, %v762, 0
    %787 = vmatpush.msra.mxu0 0.0
    %788 = vmatpush.msra.mxu0 0.0
    %789 = vmatpush.msra.mxu0 0.0
    %790 = vmatpush.msra.mxu0 0.0
    %791 = vmatpush.msra.mxu0 0.0
    %792 = vmatpush.msra.mxu0 0.0
    %793 = vmatpush.msra.mxu0 0.0
    %794 = vmatpush.msra.mxu0 0.0
    %795 = vmatpush.msra.mxu0 0.0
    %796 = vmatpush.msra.mxu0 0.0
    %797 = vmatpush.msra.mxu0 0.0
    %798 = vmatpush.msra.mxu0 0.0
    %799 = vmatpush.msra.mxu0 %v326
    %800 = vmatpush.msra.mxu0 %v325
    %801 = vmatpush.msra.mxu0 %v324
    %802 = vmatpush.msra.mxu0 %v323
    %803 = vmatmul.f32.gmra.mxu0 %v785
    %v804 = vpop.f32.mrf.mxu0
    %v805 = vadd.f32 0.0, %v804
    %806 = vdwg.mxu0
    %v808 = vrot.slane %v805, 5
    %v809 = vrot.slane %v805, 6
    %v812 = vadd.f32 %v318, %v808
    %v813 = vadd.f32 %v321, %v809
    %v814 = vadd.f32 %v812, %v358
    %v815 = vadd.f32 %v813, %v358
    %v816 = vxor.u32 %v814, 2147483648
    %v817 = vxor.u32 %v815, 2147483648
    %v818 = vmul.f32 %v816, 1.442695
    %v819 = vpow.pop %v818
    %v820 = vmul.f32 %v817, 1.442695
    %v821 = vpow.pop %v820
    %v822 = vadd.f32 %v819, 1.0
    %v823 = vadd.f32 %v821, 1.0
    %v824 = vrcp.pop %v822
    %v825 = vmul.f32 %v822, %v824
    %v826 = vsub.f32 1.0, %v825
    %v827 = vmul.f32 %v824, %v826
    %v828 = vadd.f32 %v824, %v827
    %vm829 = vweird.f32 %v822
    %vm830 = vweird.f32 %v824
    %vm831 = vmor %vm829, %vm830
    %v832 = vsel %vm831, %v824, %v828
    %v833 = vand.u32 2147483647, %v822
    %vm834 = vcmp.eq.f32.partialorder %v833, 8.507059e+37
    %v835 = vand.u32 %v822, 2147483648
    %v836 = vor.u32 1.1754944e-38, %v835
    %v837 = vsel %vm834, %v836, %v832
    %v838 = vmul.f32 1.0, %v837
    %v839 = vrcp.pop %v823
    %v840 = vmul.f32 %v823, %v839
    %v841 = vsub.f32 1.0, %v840
    %v842 = vmul.f32 %v839, %v841
    %v843 = vadd.f32 %v839, %v842
    %vm844 = vweird.f32 %v823
    %vm845 = vweird.f32 %v839
    %vm846 = vmor %vm844, %vm845
    %v847 = vsel %vm846, %v839, %v843
    %v848 = vand.u32 2147483647, %v823
    %vm849 = vcmp.eq.f32.partialorder %v848, 8.507059e+37
    %v850 = vand.u32 %v823, 2147483648
    %v851 = vor.u32 1.1754944e-38, %v850
    %v852 = vsel %vm849, %v851, %v847
    %v853 = vmul.f32 1.0, %v852
    %v854 = vtanh.pop %v814
    %v855 = vtanh.pop %v815
    %v857 = vrot.slane %v773, 5
    %v858 = vrot.slane %v773, 6
    %859 = vrot.lane.b32.xlu0 %v857, 32
    %v860 = vpop.permute.xlu0 %859
    %861 = vrot.lane.b32.xlu0 %v858, 32
    %v862 = vpop.permute.xlu0 %861
    %v865 = vmul.f32 %v838, %v860
    %v866 = vmul.f32 %v853, %v862
    %869 = vrot.lane.b32.xlu0 %v854, 64
    %v870 = vpop.permute.xlu0 %869
    %871 = vrot.lane.b32.xlu0 %v855, 64
    %v872 = vpop.permute.xlu0 %871
    %v875 = vmul.f32 %v838, %v870
    %v876 = vmul.f32 %v853, %v872
    %879 = vrot.lane.b32.xlu0 %v875, 32
    %v880 = vpop.permute.xlu0 %879
    %881 = vrot.lane.b32.xlu0 %v876, 32
    %v882 = vpop.permute.xlu0 %881
    %v885 = vadd.f32 %v865, %v880
    %v886 = vadd.f32 %v866, %v882
    %v887 = vtanh.pop %v885
    %v888 = vtanh.pop %v886
    %891 = vrot.lane.b32.xlu0 %v887, 64
    %v892 = vpop.permute.xlu0 %891
    %893 = vrot.lane.b32.xlu0 %v888, 64
    %v894 = vpop.permute.xlu0 %893
    %v897 = vmul.f32 %v838, %v892
    %v898 = vmul.f32 %v853, %v894
    %899 = vset.pattern.permute.xlu0 3
    %900 = vperm.xlu0 %899, %v284
    %v901 = vpop.permute.xlu0 %900
    %v905 = vrot.slane %v897, 3
    %v906 = vrot.slane %v898, 2
    %v907 = vsel %vm444, %v906, %v905
    %908 = vrot.lane.b32.xlu0 %v907, 32
    %v909 = vpop.permute.xlu0 %908
    %v911 = vmul.f32 %v901, %v909
    %912 = vset.pattern.permute.xlu0 3
    %913 = vperm.xlu0 %912, %v450
    %v914 = vpop.permute.xlu0 %913
    %v916 = vmul.f32 %v914, %v762
    %v917 = vadd.f32 %v911, %v916
    %v920 = vrot.slane %v885, 3
    %v921 = vrot.slane %v886, 2
    %v922 = vsel %vm444, %v921, %v920
    %923 = vrot.lane.b32.xlu0 %v922, 96
    %v924 = vpop.permute.xlu0 %923
    %v926 = vmul.f32 %v901, %v924
    %v927 = vmul.f32 %v914, %v773
    %v928 = vadd.f32 %v926, %v927
    %v930 = vrot.slane %v911, 1
    %932 = vst.msk [vmem:[#allocation2 + $0x3] sm:$0x1] %vm470, %v911
    %933 = vst.msk [vmem:[#allocation2 + $0xb] sm:$0x1] %vm470, %v930
    %v935 = vrot.slane %v926, 1
    %937 = vst.msk [vmem:[#allocation3 + $0x3] sm:$0x1] %vm470, %v926
    %938 = vst.msk [vmem:[#allocation3 + $0xb] sm:$0x1] %vm470, %v935
    %v940 = vsel %vm293, %v917, 0
    %942 = vmatpush.msra.mxu0 0.0
    %943 = vmatpush.msra.mxu0 0.0
    %944 = vmatpush.msra.mxu0 0.0
    %945 = vmatpush.msra.mxu0 0.0
    %946 = vmatpush.msra.mxu0 0.0
    %947 = vmatpush.msra.mxu0 0.0
    %948 = vmatpush.msra.mxu0 0.0
    %949 = vmatpush.msra.mxu0 0.0
    %950 = vmatpush.msra.mxu0 0.0
    %951 = vmatpush.msra.mxu0 0.0
    %952 = vmatpush.msra.mxu0 0.0
    %953 = vmatpush.msra.mxu0 0.0
    %954 = vmatpush.msra.mxu0 %v326
    %955 = vmatpush.msra.mxu0 %v325
    %956 = vmatpush.msra.mxu0 %v324
    %957 = vmatpush.msra.mxu0 %v323
    %958 = vmatmul.f32.gmra.mxu0 %v940
    %v959 = vpop.f32.mrf.mxu0
    %v960 = vadd.f32 0.0, %v959
    %961 = vdwg.mxu0
    %v963 = vrot.slane %v960, 4
    %v964 = vrot.slane %v960, 5
    %v967 = vadd.f32 %v318, %v963
    %v968 = vadd.f32 %v321, %v964
    %v969 = vadd.f32 %v967, %v358
    %v970 = vadd.f32 %v968, %v358
    %v971 = vxor.u32 %v969, 2147483648
    %v972 = vxor.u32 %v970, 2147483648
    %v973 = vmul.f32 %v971, 1.442695
    %v974 = vpow.pop %v973
    %v975 = vmul.f32 %v972, 1.442695
    %v976 = vpow.pop %v975
    %v977 = vadd.f32 %v974, 1.0
    %v978 = vadd.f32 %v976, 1.0
    %v979 = vrcp.pop %v977
    %v980 = vmul.f32 %v977, %v979
    %v981 = vsub.f32 1.0, %v980
    %v982 = vmul.f32 %v979, %v981
    %v983 = vadd.f32 %v979, %v982
    %vm984 = vweird.f32 %v977
    %vm985 = vweird.f32 %v979
    %vm986 = vmor %vm984, %vm985
    %v987 = vsel %vm986, %v979, %v983
    %v988 = vand.u32 2147483647, %v977
    %vm989 = vcmp.eq.f32.partialorder %v988, 8.507059e+37
    %v990 = vand.u32 %v977, 2147483648
    %v991 = vor.u32 1.1754944e-38, %v990
    %v992 = vsel %vm989, %v991, %v987
    %v993 = vmul.f32 1.0, %v992
    %v994 = vrcp.pop %v978
    %v995 = vmul.f32 %v978, %v994
    %v996 = vsub.f32 1.0, %v995
    %v997 = vmul.f32 %v994, %v996
    %v998 = vadd.f32 %v994, %v997
    %vm999 = vweird.f32 %v978
    %vm1000 = vweird.f32 %v994
    %vm1001 = vmor %vm999, %vm1000
    %v1002 = vsel %vm1001, %v994, %v998
    %v1003 = vand.u32 2147483647, %v978
    %vm1004 = vcmp.eq.f32.partialorder %v1003, 8.507059e+37
    %v1005 = vand.u32 %v978, 2147483648
    %v1006 = vor.u32 1.1754944e-38, %v1005
    %v1007 = vsel %vm1004, %v1006, %v1002
    %v1008 = vmul.f32 1.0, %v1007
    %v1009 = vtanh.pop %v969
    %v1010 = vtanh.pop %v970
    %v1012 = vrot.slane %v928, 4
    %v1013 = vrot.slane %v928, 5
    %1014 = vrot.lane.b32.xlu0 %v1012, 32
    %v1015 = vpop.permute.xlu0 %1014
    %1016 = vrot.lane.b32.xlu0 %v1013, 32
    %v1017 = vpop.permute.xlu0 %1016
    %v1020 = vmul.f32 %v993, %v1015
    %v1021 = vmul.f32 %v1008, %v1017
    %1024 = vrot.lane.b32.xlu0 %v1009, 64
    %v1025 = vpop.permute.xlu0 %1024
    %1026 = vrot.lane.b32.xlu0 %v1010, 64
    %v1027 = vpop.permute.xlu0 %1026
    %v1030 = vmul.f32 %v993, %v1025
    %v1031 = vmul.f32 %v1008, %v1027
    %1034 = vrot.lane.b32.xlu0 %v1030, 32
    %v1035 = vpop.permute.xlu0 %1034
    %1036 = vrot.lane.b32.xlu0 %v1031, 32
    %v1037 = vpop.permute.xlu0 %1036
    %v1040 = vadd.f32 %v1020, %v1035
    %v1041 = vadd.f32 %v1021, %v1037
    %v1042 = vtanh.pop %v1040
    %v1043 = vtanh.pop %v1041
    %1046 = vrot.lane.b32.xlu0 %v1042, 64
    %v1047 = vpop.permute.xlu0 %1046
    %1048 = vrot.lane.b32.xlu0 %v1043, 64
    %v1049 = vpop.permute.xlu0 %1048
    %v1052 = vmul.f32 %v993, %v1047
    %v1053 = vmul.f32 %v1008, %v1049
    %1054 = vset.pattern.permute.xlu0 4
    %1055 = vperm.xlu0 %1054, %v284
    %v1056 = vpop.permute.xlu0 %1055
    %v1060 = vrot.slane %v1052, 4
    %v1061 = vrot.slane %v1053, 3
    %v1062 = vsel %vm444, %v1061, %v1060
    %1063 = vrot.lane.b32.xlu0 %v1062, 32
    %v1064 = vpop.permute.xlu0 %1063
    %v1066 = vmul.f32 %v1056, %v1064
    %1067 = vset.pattern.permute.xlu0 4
    %1068 = vperm.xlu0 %1067, %v450
    %v1069 = vpop.permute.xlu0 %1068
    %v1071 = vmul.f32 %v1069, %v917
    %v1072 = vadd.f32 %v1066, %v1071
    %v1075 = vrot.slane %v1040, 4
    %v1076 = vrot.slane %v1041, 3
    %v1077 = vsel %vm444, %v1076, %v1075
    %1078 = vrot.lane.b32.xlu0 %v1077, 96
    %v1079 = vpop.permute.xlu0 %1078
    %v1081 = vmul.f32 %v1056, %v1079
    %v1082 = vmul.f32 %v1069, %v928
    %v1083 = vadd.f32 %v1081, %v1082
    %v1085 = vrot.slane %v1066, 1
    %1087 = vst.msk [vmem:[#allocation2 + $0x4] sm:$0x1] %vm470, %v1066
    %1088 = vst.msk [vmem:[#allocation2 + $0xc] sm:$0x1] %vm470, %v1085
    %v1090 = vrot.slane %v1081, 1
    %1092 = vst.msk [vmem:[#allocation3 + $0x4] sm:$0x1] %vm470, %v1081
    %1093 = vst.msk [vmem:[#allocation3 + $0xc] sm:$0x1] %vm470, %v1090
    %v1095 = vsel %vm293, %v1072, 0
    %1097 = vmatpush.msra.mxu0 0.0
    %1098 = vmatpush.msra.mxu0 0.0
    %1099 = vmatpush.msra.mxu0 0.0
    %1100 = vmatpush.msra.mxu0 0.0
    %1101 = vmatpush.msra.mxu0 0.0
    %1102 = vmatpush.msra.mxu0 0.0
    %1103 = vmatpush.msra.mxu0 0.0
    %1104 = vmatpush.msra.mxu0 0.0
    %1105 = vmatpush.msra.mxu0 0.0
    %1106 = vmatpush.msra.mxu0 0.0
    %1107 = vmatpush.msra.mxu0 0.0
    %1108 = vmatpush.msra.mxu0 0.0
    %1109 = vmatpush.msra.mxu0 %v326
    %1110 = vmatpush.msra.mxu0 %v325
    %1111 = vmatpush.msra.mxu0 %v324
    %1112 = vmatpush.msra.mxu0 %v323
    %1113 = vmatmul.f32.gmra.mxu0 %v1095
    %v1114 = vpop.f32.mrf.mxu0
    %v1115 = vadd.f32 0.0, %v1114
    %1116 = vdwg.mxu0
    %v1118 = vrot.slane %v1115, 3
    %v1119 = vrot.slane %v1115, 4
    %v1122 = vadd.f32 %v318, %v1118
    %v1123 = vadd.f32 %v321, %v1119
    %v1124 = vadd.f32 %v1122, %v358
    %v1125 = vadd.f32 %v1123, %v358
    %v1126 = vxor.u32 %v1124, 2147483648
    %v1127 = vxor.u32 %v1125, 2147483648
    %v1128 = vmul.f32 %v1126, 1.442695
    %v1129 = vpow.pop %v1128
    %v1130 = vmul.f32 %v1127, 1.442695
    %v1131 = vpow.pop %v1130
    %v1132 = vadd.f32 %v1129, 1.0
    %v1133 = vadd.f32 %v1131, 1.0
    %v1134 = vrcp.pop %v1132
    %v1135 = vmul.f32 %v1132, %v1134
    %v1136 = vsub.f32 1.0, %v1135
    %v1137 = vmul.f32 %v1134, %v1136
    %v1138 = vadd.f32 %v1134, %v1137
    %vm1139 = vweird.f32 %v1132
    %vm1140 = vweird.f32 %v1134
    %vm1141 = vmor %vm1139, %vm1140
    %v1142 = vsel %vm1141, %v1134, %v1138
    %v1143 = vand.u32 2147483647, %v1132
    %vm1144 = vcmp.eq.f32.partialorder %v1143, 8.507059e+37
    %v1145 = vand.u32 %v1132, 2147483648
    %v1146 = vor.u32 1.1754944e-38, %v1145
    %v1147 = vsel %vm1144, %v1146, %v1142
    %v1148 = vmul.f32 1.0, %v1147
    %v1149 = vrcp.pop %v1133
    %v1150 = vmul.f32 %v1133, %v1149
    %v1151 = vsub.f32 1.0, %v1150
    %v1152 = vmul.f32 %v1149, %v1151
    %v1153 = vadd.f32 %v1149, %v1152
    %vm1154 = vweird.f32 %v1133
    %vm1155 = vweird.f32 %v1149
    %vm1156 = vmor %vm1154, %vm1155
    %v1157 = vsel %vm1156, %v1149, %v1153
    %v1158 = vand.u32 2147483647, %v1133
    %vm1159 = vcmp.eq.f32.partialorder %v1158, 8.507059e+37
    %v1160 = vand.u32 %v1133, 2147483648
    %v1161 = vor.u32 1.1754944e-38, %v1160
    %v1162 = vsel %vm1159, %v1161, %v1157
    %v1163 = vmul.f32 1.0, %v1162
    %v1164 = vtanh.pop %v1124
    %v1165 = vtanh.pop %v1125
    %v1167 = vrot.slane %v1083, 3
    %v1168 = vrot.slane %v1083, 4
    %1169 = vrot.lane.b32.xlu0 %v1167, 32
    %v1170 = vpop.permute.xlu0 %1169
    %1171 = vrot.lane.b32.xlu0 %v1168, 32
    %v1172 = vpop.permute.xlu0 %1171
    %v1175 = vmul.f32 %v1148, %v1170
    %v1176 = vmul.f32 %v1163, %v1172
    %1179 = vrot.lane.b32.xlu0 %v1164, 64
    %v1180 = vpop.permute.xlu0 %1179
    %1181 = vrot.lane.b32.xlu0 %v1165, 64
    %v1182 = vpop.permute.xlu0 %1181
    %v1185 = vmul.f32 %v1148, %v1180
    %v1186 = vmul.f32 %v1163, %v1182
    %1189 = vrot.lane.b32.xlu0 %v1185, 32
    %v1190 = vpop.permute.xlu0 %1189
    %1191 = vrot.lane.b32.xlu0 %v1186, 32
    %v1192 = vpop.permute.xlu0 %1191
    %v1195 = vadd.f32 %v1175, %v1190
    %v1196 = vadd.f32 %v1176, %v1192
    %v1197 = vtanh.pop %v1195
    %v1198 = vtanh.pop %v1196
    %1201 = vrot.lane.b32.xlu0 %v1197, 64
    %v1202 = vpop.permute.xlu0 %1201
    %1203 = vrot.lane.b32.xlu0 %v1198, 64
    %v1204 = vpop.permute.xlu0 %1203
    %v1207 = vmul.f32 %v1148, %v1202
    %v1208 = vmul.f32 %v1163, %v1204
    %1209 = vset.pattern.permute.xlu0 5
    %1210 = vperm.xlu0 %1209, %v284
    %v1211 = vpop.permute.xlu0 %1210
    %v1215 = vrot.slane %v1207, 5
    %v1216 = vrot.slane %v1208, 4
    %v1217 = vsel %vm444, %v1216, %v1215
    %1218 = vrot.lane.b32.xlu0 %v1217, 32
    %v1219 = vpop.permute.xlu0 %1218
    %v1221 = vmul.f32 %v1211, %v1219
    %1222 = vset.pattern.permute.xlu0 5
    %1223 = vperm.xlu0 %1222, %v450
    %v1224 = vpop.permute.xlu0 %1223
    %v1226 = vmul.f32 %v1224, %v1072
    %v1227 = vadd.f32 %v1221, %v1226
    %v1230 = vrot.slane %v1195, 5
    %v1231 = vrot.slane %v1196, 4
    %v1232 = vsel %vm444, %v1231, %v1230
    %1233 = vrot.lane.b32.xlu0 %v1232, 96
    %v1234 = vpop.permute.xlu0 %1233
    %v1236 = vmul.f32 %v1211, %v1234
    %v1237 = vmul.f32 %v1224, %v1083
    %v1238 = vadd.f32 %v1236, %v1237
    %v1240 = vrot.slane %v1221, 1
    %1242 = vst.msk [vmem:[#allocation2 + $0x5] sm:$0x1] %vm470, %v1221
    %1243 = vst.msk [vmem:[#allocation2 + $0xd] sm:$0x1] %vm470, %v1240
    %v1245 = vrot.slane %v1236, 1
    %1247 = vst.msk [vmem:[#allocation3 + $0x5] sm:$0x1] %vm470, %v1236
    %1248 = vst.msk [vmem:[#allocation3 + $0xd] sm:$0x1] %vm470, %v1245
    %v1250 = vsel %vm293, %v1227, 0
    %1252 = vmatpush.msra.mxu0 0.0
    %1253 = vmatpush.msra.mxu0 0.0
    %1254 = vmatpush.msra.mxu0 0.0
    %1255 = vmatpush.msra.mxu0 0.0
    %1256 = vmatpush.msra.mxu0 0.0
    %1257 = vmatpush.msra.mxu0 0.0
    %1258 = vmatpush.msra.mxu0 0.0
    %1259 = vmatpush.msra.mxu0 0.0
    %1260 = vmatpush.msra.mxu0 0.0
    %1261 = vmatpush.msra.mxu0 0.0
    %1262 = vmatpush.msra.mxu0 0.0
    %1263 = vmatpush.msra.mxu0 0.0
    %1264 = vmatpush.msra.mxu0 %v326
    %1265 = vmatpush.msra.mxu0 %v325
    %1266 = vmatpush.msra.mxu0 %v324
    %1267 = vmatpush.msra.mxu0 %v323
    %1268 = vmatmul.f32.gmra.mxu0 %v1250
    %v1269 = vpop.f32.mrf.mxu0
    %v1270 = vadd.f32 0.0, %v1269
    %1271 = vdwg.mxu0
    %v1273 = vrot.slane %v1270, 2
    %v1274 = vrot.slane %v1270, 3
    %v1277 = vadd.f32 %v318, %v1273
    %v1278 = vadd.f32 %v321, %v1274
    %v1279 = vadd.f32 %v1277, %v358
    %v1280 = vadd.f32 %v1278, %v358
    %v1281 = vxor.u32 %v1279, 2147483648
    %v1282 = vxor.u32 %v1280, 2147483648
    %v1283 = vmul.f32 %v1281, 1.442695
    %v1284 = vpow.pop %v1283
    %v1285 = vmul.f32 %v1282, 1.442695
    %v1286 = vpow.pop %v1285
    %v1287 = vadd.f32 %v1284, 1.0
    %v1288 = vadd.f32 %v1286, 1.0
    %v1289 = vrcp.pop %v1287
    %v1290 = vmul.f32 %v1287, %v1289
    %v1291 = vsub.f32 1.0, %v1290
    %v1292 = vmul.f32 %v1289, %v1291
    %v1293 = vadd.f32 %v1289, %v1292
    %vm1294 = vweird.f32 %v1287
    %vm1295 = vweird.f32 %v1289
    %vm1296 = vmor %vm1294, %vm1295
    %v1297 = vsel %vm1296, %v1289, %v1293
    %v1298 = vand.u32 2147483647, %v1287
    %vm1299 = vcmp.eq.f32.partialorder %v1298, 8.507059e+37
    %v1300 = vand.u32 %v1287, 2147483648
    %v1301 = vor.u32 1.1754944e-38, %v1300
    %v1302 = vsel %vm1299, %v1301, %v1297
    %v1303 = vmul.f32 1.0, %v1302
    %v1304 = vrcp.pop %v1288
    %v1305 = vmul.f32 %v1288, %v1304
    %v1306 = vsub.f32 1.0, %v1305
    %v1307 = vmul.f32 %v1304, %v1306
    %v1308 = vadd.f32 %v1304, %v1307
    %vm1309 = vweird.f32 %v1288
    %vm1310 = vweird.f32 %v1304
    %vm1311 = vmor %vm1309, %vm1310
    %v1312 = vsel %vm1311, %v1304, %v1308
    %v1313 = vand.u32 2147483647, %v1288
    %vm1314 = vcmp.eq.f32.partialorder %v1313, 8.507059e+37
    %v1315 = vand.u32 %v1288, 2147483648
    %v1316 = vor.u32 1.1754944e-38, %v1315
    %v1317 = vsel %vm1314, %v1316, %v1312
    %v1318 = vmul.f32 1.0, %v1317
    %v1319 = vtanh.pop %v1279
    %v1320 = vtanh.pop %v1280
    %v1322 = vrot.slane %v1238, 2
    %v1323 = vrot.slane %v1238, 3
    %1324 = vrot.lane.b32.xlu0 %v1322, 32
    %v1325 = vpop.permute.xlu0 %1324
    %1326 = vrot.lane.b32.xlu0 %v1323, 32
    %v1327 = vpop.permute.xlu0 %1326
    %v1330 = vmul.f32 %v1303, %v1325
    %v1331 = vmul.f32 %v1318, %v1327
    %1334 = vrot.lane.b32.xlu0 %v1319, 64
    %v1335 = vpop.permute.xlu0 %1334
    %1336 = vrot.lane.b32.xlu0 %v1320, 64
    %v1337 = vpop.permute.xlu0 %1336
    %v1340 = vmul.f32 %v1303, %v1335
    %v1341 = vmul.f32 %v1318, %v1337
    %1344 = vrot.lane.b32.xlu0 %v1340, 32
    %v1345 = vpop.permute.xlu0 %1344
    %1346 = vrot.lane.b32.xlu0 %v1341, 32
    %v1347 = vpop.permute.xlu0 %1346
    %v1350 = vadd.f32 %v1330, %v1345
    %v1351 = vadd.f32 %v1331, %v1347
    %v1352 = vtanh.pop %v1350
    %v1353 = vtanh.pop %v1351
    %1356 = vrot.lane.b32.xlu0 %v1352, 64
    %v1357 = vpop.permute.xlu0 %1356
    %1358 = vrot.lane.b32.xlu0 %v1353, 64
    %v1359 = vpop.permute.xlu0 %1358
    %v1362 = vmul.f32 %v1303, %v1357
    %v1363 = vmul.f32 %v1318, %v1359
    %1364 = vset.pattern.permute.xlu0 6
    %1365 = vperm.xlu0 %1364, %v284
    %v1366 = vpop.permute.xlu0 %1365
    %v1370 = vrot.slane %v1362, 6
    %v1371 = vrot.slane %v1363, 5
    %v1372 = vsel %vm444, %v1371, %v1370
    %1373 = vrot.lane.b32.xlu0 %v1372, 32
    %v1374 = vpop.permute.xlu0 %1373
    %v1376 = vmul.f32 %v1366, %v1374
    %1377 = vset.pattern.permute.xlu0 6
    %1378 = vperm.xlu0 %1377, %v450
    %v1379 = vpop.permute.xlu0 %1378
    %v1381 = vmul.f32 %v1379, %v1227
    %v1382 = vadd.f32 %v1376, %v1381
    %v1385 = vrot.slane %v1350, 6
    %v1386 = vrot.slane %v1351, 5
    %v1387 = vsel %vm444, %v1386, %v1385
    %1388 = vrot.lane.b32.xlu0 %v1387, 96
    %v1389 = vpop.permute.xlu0 %1388
    %v1391 = vmul.f32 %v1366, %v1389
    %v1392 = vmul.f32 %v1379, %v1238
    %v1393 = vadd.f32 %v1391, %v1392
    %v1395 = vrot.slane %v1376, 1
    %1397 = vst.msk [vmem:[#allocation2 + $0x6] sm:$0x1] %vm470, %v1376
    %1398 = vst.msk [vmem:[#allocation2 + $0xe] sm:$0x1] %vm470, %v1395
    %v1400 = vrot.slane %v1391, 1
    %1402 = vst.msk [vmem:[#allocation3 + $0x6] sm:$0x1] %vm470, %v1391
    %1403 = vst.msk [vmem:[#allocation3 + $0xe] sm:$0x1] %vm470, %v1400
    %v1405 = vsel %vm293, %v1382, 0
    %1407 = vmatpush.msra.mxu0 0.0
    %1408 = vmatpush.msra.mxu0 0.0
    %1409 = vmatpush.msra.mxu0 0.0
    %1410 = vmatpush.msra.mxu0 0.0
    %1411 = vmatpush.msra.mxu0 0.0
    %1412 = vmatpush.msra.mxu0 0.0
    %1413 = vmatpush.msra.mxu0 0.0
    %1414 = vmatpush.msra.mxu0 0.0
    %1415 = vmatpush.msra.mxu0 0.0
    %1416 = vmatpush.msra.mxu0 0.0
    %1417 = vmatpush.msra.mxu0 0.0
    %1418 = vmatpush.msra.mxu0 0.0
    %1419 = vmatpush.msra.mxu0 %v326
    %1420 = vmatpush.msra.mxu0 %v325
    %1421 = vmatpush.msra.mxu0 %v324
    %1422 = vmatpush.msra.mxu0 %v323
    %1423 = vmatmul.f32.gmra.mxu0 %v1405
    %v1424 = vpop.f32.mrf.mxu0
    %v1425 = vadd.f32 0.0, %v1424
    %1426 = vdwg.mxu0
    %v1428 = vrot.slane %v1425, 1
    %v1429 = vrot.slane %v1425, 2
    %v1432 = vadd.f32 %v318, %v1428
    %v1433 = vadd.f32 %v321, %v1429
    %v1434 = vadd.f32 %v1432, %v358
    %v1435 = vadd.f32 %v1433, %v358
    %v1436 = vxor.u32 %v1434, 2147483648
    %v1437 = vxor.u32 %v1435, 2147483648
    %v1438 = vmul.f32 %v1436, 1.442695
    %v1439 = vpow.pop %v1438
    %v1440 = vmul.f32 %v1437, 1.442695
    %v1441 = vpow.pop %v1440
    %v1442 = vadd.f32 %v1439, 1.0
    %v1443 = vadd.f32 %v1441, 1.0
    %v1444 = vrcp.pop %v1442
    %v1445 = vmul.f32 %v1442, %v1444
    %v1446 = vsub.f32 1.0, %v1445
    %v1447 = vmul.f32 %v1444, %v1446
    %v1448 = vadd.f32 %v1444, %v1447
    %vm1449 = vweird.f32 %v1442
    %vm1450 = vweird.f32 %v1444
    %vm1451 = vmor %vm1449, %vm1450
    %v1452 = vsel %vm1451, %v1444, %v1448
    %v1453 = vand.u32 2147483647, %v1442
    %vm1454 = vcmp.eq.f32.partialorder %v1453, 8.507059e+37
    %v1455 = vand.u32 %v1442, 2147483648
    %v1456 = vor.u32 1.1754944e-38, %v1455
    %v1457 = vsel %vm1454, %v1456, %v1452
    %v1458 = vmul.f32 1.0, %v1457
    %v1459 = vrcp.pop %v1443
    %v1460 = vmul.f32 %v1443, %v1459
    %v1461 = vsub.f32 1.0, %v1460
    %v1462 = vmul.f32 %v1459, %v1461
    %v1463 = vadd.f32 %v1459, %v1462
    %vm1464 = vweird.f32 %v1443
    %vm1465 = vweird.f32 %v1459
    %vm1466 = vmor %vm1464, %vm1465
    %v1467 = vsel %vm1466, %v1459, %v1463
    %v1468 = vand.u32 2147483647, %v1443
    %vm1469 = vcmp.eq.f32.partialorder %v1468, 8.507059e+37
    %v1470 = vand.u32 %v1443, 2147483648
    %v1471 = vor.u32 1.1754944e-38, %v1470
    %v1472 = vsel %vm1469, %v1471, %v1467
    %v1473 = vmul.f32 1.0, %v1472
    %v1474 = vtanh.pop %v1434
    %v1475 = vtanh.pop %v1435
    %v1477 = vrot.slane %v1393, 1
    %v1478 = vrot.slane %v1393, 2
    %1479 = vrot.lane.b32.xlu0 %v1477, 32
    %v1480 = vpop.permute.xlu0 %1479
    %1481 = vrot.lane.b32.xlu0 %v1478, 32
    %v1482 = vpop.permute.xlu0 %1481
    %v1485 = vmul.f32 %v1458, %v1480
    %v1486 = vmul.f32 %v1473, %v1482
    %1489 = vrot.lane.b32.xlu0 %v1474, 64
    %v1490 = vpop.permute.xlu0 %1489
    %1491 = vrot.lane.b32.xlu0 %v1475, 64
    %v1492 = vpop.permute.xlu0 %1491
    %v1495 = vmul.f32 %v1458, %v1490
    %v1496 = vmul.f32 %v1473, %v1492
    %1499 = vrot.lane.b32.xlu0 %v1495, 32
    %v1500 = vpop.permute.xlu0 %1499
    %1501 = vrot.lane.b32.xlu0 %v1496, 32
    %v1502 = vpop.permute.xlu0 %1501
    %v1505 = vadd.f32 %v1485, %v1500
    %v1506 = vadd.f32 %v1486, %v1502
    %v1507 = vtanh.pop %v1505
    %v1508 = vtanh.pop %v1506
    %1511 = vrot.lane.b32.xlu0 %v1507, 64
    %v1512 = vpop.permute.xlu0 %1511
    %1513 = vrot.lane.b32.xlu0 %v1508, 64
    %v1514 = vpop.permute.xlu0 %1513
    %v1517 = vmul.f32 %v1458, %v1512
    %v1518 = vmul.f32 %v1473, %v1514
    %1519 = vset.pattern.permute.xlu0 7
    %1520 = vperm.xlu0 %1519, %v284
    %v1521 = vpop.permute.xlu0 %1520
    %v1525 = vrot.slane %v1517, 7
    %v1526 = vrot.slane %v1518, 6
    %v1527 = vsel %vm444, %v1526, %v1525
    %1528 = vrot.lane.b32.xlu0 %v1527, 32
    %v1529 = vpop.permute.xlu0 %1528
    %v1531 = vmul.f32 %v1521, %v1529
    %1532 = vset.pattern.permute.xlu0 7
    %1533 = vperm.xlu0 %1532, %v450
    %v1534 = vpop.permute.xlu0 %1533
    %v1536 = vmul.f32 %v1534, %v1382
    %v1537 = vadd.f32 %v1531, %v1536
    %v1539 = vrot.slane %v1531, 1
    %1541 = vst.msk [vmem:[#allocation2 + $0x7] sm:$0x1] %vm470, %v1531
    %1542 = vst.msk [vmem:[#allocation2 + $0xf] sm:$0x1] %vm470, %v1539
    %v1545 = vrot.slane %v1505, 7
    %v1546 = vrot.slane %v1506, 6
    %v1547 = vsel %vm444, %v1546, %v1545
    %1548 = vrot.lane.b32.xlu0 %v1547, 96
    %v1549 = vpop.permute.xlu0 %1548
    %v1551 = vmul.f32 %v1521, %v1549
    %v1553 = vrot.slane %v1551, 1
    %1555 = vst.msk [vmem:[#allocation3 + $0x7] sm:$0x1] %vm470, %v1551
    %1556 = vst.msk [vmem:[#allocation3 + $0xf] sm:$0x1] %vm470, %v1553
    %v1557 = vld [vmem:[#allocation2] sm:$0xff]
    %v1558 = vld [vmem:[#allocation2 + $0x8] sm:$0xff]
    %v1559 = vld [vmem:[#allocation3] sm:$0xff]
    %v1560 = vld [vmem:[#allocation3 + $0x8] sm:$0xff]
    %v1561 = vld [vmem:[%s17] sm:$0xff]
    %v1562 = vld [vmem:[%s17 + $0x8] sm:$0xff]
    %v1563 = vld [vmem:[%s17 + $0x10] sm:$0xff]
    %v1564 = vld [vmem:[%s17 + $0x18] sm:$0xff]
    %v1565 = vld [vmem:[%s19] sm:$0x1]
    %v1567 = vperm.slane %v1565, 0
    %v1570 = vsel %vm293, %v1537, 0
    %1572 = vmatpush.msra.mxu0 0.0
    %1573 = vmatpush.msra.mxu0 0.0
    %1574 = vmatpush.msra.mxu0 0.0
    %1575 = vmatpush.msra.mxu0 0.0
    %1576 = vmatpush.msra.mxu0 0.0
    %1577 = vmatpush.msra.mxu0 0.0
    %1578 = vmatpush.msra.mxu0 0.0
    %1579 = vmatpush.msra.mxu0 0.0
    %1580 = vmatpush.msra.mxu0 0.0
    %1581 = vmatpush.msra.mxu0 0.0
    %1582 = vmatpush.msra.mxu0 0.0
    %1583 = vmatpush.msra.mxu0 0.0
    %1584 = vmatpush.msra.mxu0 %v1564
    %1585 = vmatpush.msra.mxu0 %v1563
    %1586 = vmatpush.msra.mxu0 %v1562
    %1587 = vmatpush.msra.mxu0 %v1561
    %1588 = vmatmul.f32.gmra.mxu0 %v1570
    %v1589 = vpop.f32.mrf.mxu0
    %v1590 = vadd.f32 %v1567, %v1589
    %1591 = vdwg.mxu0
    %v1592 = vtanh.pop %v1590
    %v1593 = vld [vmem:[%s5] sm:$0xff]
    %v1594 = vld [vmem:[%s5 + $0x8] sm:$0x1]
    %v1595 = vld [vmem:[%s5 + $0x10] sm:$0xff]
    %v1596 = vld [vmem:[%s5 + $0x18] sm:$0x1]
    %vm1597 = vcmask 523264
    %v1598 = vsel %vm1597, %v1593, 0.0
    %vm1599 = vcmask 516096
    %v1600 = vsel %vm1599, %v1594, 0.0
    %v1601 = vadd.f32 %v1598, %v1600
    %v1602 = vrot.slane %v1601, 4
    %v1603 = vadd.f32 %v1601, %v1602
    %v1604 = vrot.slane %v1603, 2
    %v1605 = vadd.f32 %v1603, %v1604
    %v1606 = vrot.slane %v1605, 1
    %v1607 = vadd.f32 %v1605, %v1606
    %v1608 = vsel %vm1597, %v1595, 0.0
    %v1609 = vsel %vm1599, %v1596, 0.0
    %v1610 = vadd.f32 %v1608, %v1609
    %v1611 = vrot.slane %v1610, 4
    %v1612 = vadd.f32 %v1610, %v1611
    %v1613 = vrot.slane %v1612, 2
    %v1614 = vadd.f32 %v1612, %v1613
    %v1615 = vrot.slane %v1614, 1
    %v1616 = vadd.f32 %v1614, %v1615
    %v1617 = vrcp.pop 9.0
    %v1618 = vmul.f32 9.0, %v1617
    %v1619 = vsub.f32 1.0, %v1618
    %v1620 = vmul.f32 %v1617, %v1619
    %v1621 = vadd.f32 %v1617, %v1620
    %vm1622 = vweird.f32 %v1617
    %v1623 = vsel %vm1622, %v1617, %v1621
    %v1624 = vmul.f32 %v1607, %v1623
    %v1625 = vmul.f32 %v1616, %v1623
    %v1626 = vld [vmem:[%s7] sm:$0xff]
    %v1627 = vld [vmem:[%s7 + $0x8] sm:$0xff]
    %v1628 = vld [vmem:[%s7 + $0x10] sm:$0xff]
    %v1629 = vld [vmem:[%s7 + $0x18] sm:$0xff]
    %v1630 = vld [vmem:[%s21] sm:$0xff]
    %v1631 = vld [vmem:[%s21 + $0x8] sm:$0xff]
    %v1632 = vld [vmem:[%s21 + $0x10] sm:$0xff]
    %v1633 = vld [vmem:[%s21 + $0x18] sm:$0xff]
    %v1634 = vld [vmem:[%s23] sm:$0x1]
    %v1636 = vperm.slane %v1634, 0
    %v1639 = vsel %vm293, %v1557, 0
    %v1642 = vsel %vm293, %v1558, 0
    %1644 = vmatpush.msra.mxu0 0.0
    %1645 = vmatpush.msra.mxu0 0.0
    %1646 = vmatpush.msra.mxu0 0.0
    %1647 = vmatpush.msra.mxu0 0.0
    %1648 = vmatpush.msra.mxu0 0.0
    %1649 = vmatpush.msra.mxu0 0.0
    %1650 = vmatpush.msra.mxu0 0.0
    %1651 = vmatpush.msra.mxu0 0.0
    %1652 = vmatpush.msra.mxu0 0.0
    %1653 = vmatpush.msra.mxu0 0.0
    %1654 = vmatpush.msra.mxu0 0.0
    %1655 = vmatpush.msra.mxu0 0.0
    %1656 = vmatpush.msra.mxu0 %v1633
    %1657 = vmatpush.msra.mxu0 %v1632
    %1658 = vmatpush.msra.mxu0 %v1631
    %1659 = vmatpush.msra.mxu0 %v1630
    %1660 = vmatmul.f32.gmra.mxu0 %v1639
    %v1661 = vpop.f32.mrf.mxu0
    %v1662 = vadd.f32 %v1636, %v1661
    %1663 = vmatmul.f32.gmra.mxu0 %v1642
    %v1664 = vpop.f32.mrf.mxu0
    %v1665 = vadd.f32 %v1636, %v1664
    %1666 = vdwg.mxu0
    %v1671 = vrot.slane %v1593, 1
    %v1672 = vrot.slane %v1593, 2
    %v1673 = vrot.slane %v1593, 3
    %v1674 = vrot.slane %v1593, 4
    %v1675 = vrot.slane %v1593, 5
    %v1676 = vrot.slane %v1593, 6
    %v1677 = vrot.slane %v1593, 7
    %v1678 = vrot.slane %v1595, 1
    %v1679 = vrot.slane %v1595, 2
    %v1680 = vrot.slane %v1595, 3
    %v1681 = vrot.slane %v1595, 4
    %v1682 = vrot.slane %v1595, 5
    %v1683 = vrot.slane %v1595, 6
    %v1684 = vrot.slane %v1595, 7
    %v1685 = vld [vmem:[%s41] sm:$0xff]
    %v1686 = vld [vmem:[%s41 + $0x8] sm:$0xff]
    %v1687 = vld [vmem:[%s41 + $0x10] sm:$0xff]
    %v1688 = vld [vmem:[%s41 + $0x18] sm:$0xff]
    %v1689 = vld [vmem:[%s41 + $0x20] sm:$0xff]
    %v1690 = vld [vmem:[%s41 + $0x28] sm:$0xff]
    %v1691 = vld [vmem:[%s41 + $0x30] sm:$0xff]
    %v1692 = vld [vmem:[%s41 + $0x38] sm:$0xff]
    %v1693 = vld [vmem:[%s43] sm:$0x1]
    %v1695 = vperm.slane %v1693, 0
    %1697 = vst [vmem:[#allocation1] ss:$9 sm:$0xff] %v1593
    %s1698 = scalar_lea.vmem [#allocation1], 1
    %1699 = vst [vmem:[%s1698] ss:$9 sm:$0xff] %v1671
    %s1700 = scalar_lea.vmem [#allocation1], 2
    %1701 = vst [vmem:[%s1700] ss:$9 sm:$0xff] %v1672
    %s1702 = scalar_lea.vmem [#allocation1], 3
    %1703 = vst [vmem:[%s1702] ss:$9 sm:$0xff] %v1673
    %s1704 = scalar_lea.vmem [#allocation1], 4
    %1705 = vst [vmem:[%s1704] ss:$9 sm:$0xff] %v1674
    %s1706 = scalar_lea.vmem [#allocation1], 5
    %1707 = vst [vmem:[%s1706] ss:$9 sm:$0xff] %v1675
    %s1708 = scalar_lea.vmem [#allocation1], 6
    %1709 = vst [vmem:[%s1708] ss:$9 sm:$0xff] %v1676
    %s1710 = scalar_lea.vmem [#allocation1], 7
    %1711 = vst [vmem:[%s1710] ss:$9 sm:$0xff] %v1677
    %v1712 = vld [vmem:[#allocation1] sm:$0xff]
    %1713 = vst [vmem:[#allocation1] ss:$9 sm:$0xff] %v1594
    %1714 = vst [vmem:[%s1698] ss:$9 sm:$0xff] %v1595
    %1715 = vst [vmem:[%s1700] ss:$9 sm:$0xff] %v1678
    %1716 = vst [vmem:[%s1702] ss:$9 sm:$0xff] %v1679
    %1717 = vst [vmem:[%s1704] ss:$9 sm:$0xff] %v1680
    %1718 = vst [vmem:[%s1706] ss:$9 sm:$0xff] %v1681
    %1719 = vst [vmem:[%s1708] ss:$9 sm:$0xff] %v1682
    %1720 = vst [vmem:[%s1710] ss:$9 sm:$0xff] %v1683
    %v1721 = vld [vmem:[#allocation1] sm:$0xff]
    %1722 = vst [vmem:[#allocation1] ss:$9 sm:$0xff] %v1684
    %1723 = vst [vmem:[%s1698] ss:$9 sm:$0xff] %v1596
    %v1724 = vld [vmem:[#allocation1] sm:$0xff]
    %v1725 = vsel %vm1597, %v1712, 0
    %v1727 = vsel %vm1597, %v1721, 0
    %v1729 = vsel %vm1597, %v1724, 0
    %1731 = vmatpush.msra.mxu0 0.0
    %1732 = vmatpush.msra.mxu0 0.0
    %1733 = vmatpush.msra.mxu0 0.0
    %1734 = vmatpush.msra.mxu0 0.0
    %1735 = vmatpush.msra.mxu0 0.0
    %1736 = vmatpush.msra.mxu0 0.0
    %1737 = vmatpush.msra.mxu0 0.0
    %1738 = vmatpush.msra.mxu0 0.0
    %1739 = vmatpush.msra.mxu0 %v1692
    %1740 = vmatpush.msra.mxu0 %v1691
    %1741 = vmatpush.msra.mxu0 %v1690
    %1742 = vmatpush.msra.mxu0 %v1689
    %1743 = vmatpush.msra.mxu0 %v1688
    %1744 = vmatpush.msra.mxu0 %v1687
    %1745 = vmatpush.msra.mxu0 %v1686
    %1746 = vmatpush.msra.mxu0 %v1685
    %1747 = vmatmul.f32.gmra.mxu0 %v1725
    %v1748 = vpop.f32.mrf.mxu0
    %v1749 = vadd.f32 %v1695, %v1748
    %1750 = vmatmul.f32.gmra.mxu0 %v1727
    %v1751 = vpop.f32.mrf.mxu0
    %v1752 = vadd.f32 %v1695, %v1751
    %1753 = vmatmul.f32.gmra.mxu0 %v1729
    %v1754 = vpop.f32.mrf.mxu0
    %v1755 = vadd.f32 %v1695, %v1754
    %1756 = vdwg.mxu0
    %v1757 = vmax.f32 %v1749, 0.0
    %v1758 = vmax.f32 %v1752, 0.0
    %v1759 = vmax.f32 %v1755, 0.0
    %v1760 = vld [vmem:[%s45] sm:$0xff]
    %v1761 = vld [vmem:[%s45 + $0x8] sm:$0xff]
    %v1762 = vld [vmem:[%s45 + $0x10] sm:$0xff]
    %v1763 = vld [vmem:[%s45 + $0x18] sm:$0xff]
    %v1764 = vld [vmem:[#allocation6] sm:$0x1]
    %v1766 = vperm.slane %v1764, 0
    %v1769 = vsel %vm293, %v1757, 0
    %v1772 = vsel %vm293, %v1758, 0
    %v1775 = vsel %vm293, %v1759, 0
    %1777 = vmatpush.msra.mxu0 0.0
    %1778 = vmatpush.msra.mxu0 0.0
    %1779 = vmatpush.msra.mxu0 0.0
    %1780 = vmatpush.msra.mxu0 0.0
    %1781 = vmatpush.msra.mxu0 0.0
    %1782 = vmatpush.msra.mxu0 0.0
    %1783 = vmatpush.msra.mxu0 0.0
    %1784 = vmatpush.msra.mxu0 0.0
    %1785 = vmatpush.msra.mxu0 0.0
    %1786 = vmatpush.msra.mxu0 0.0
    %1787 = vmatpush.msra.mxu0 0.0
    %1788 = vmatpush.msra.mxu0 0.0
    %1789 = vmatpush.msra.mxu0 %v1763
    %1790 = vmatpush.msra.mxu0 %v1762
    %1791 = vmatpush.msra.mxu0 %v1761
    %1792 = vmatpush.msra.mxu0 %v1760
    %1793 = vmatmul.f32.gmra.mxu0 %v1769
    %v1794 = vpop.f32.mrf.mxu0
    %v1795 = vadd.f32 %v1766, %v1794
    %1796 = vmatmul.f32.gmra.mxu0 %v1772
    %v1797 = vpop.f32.mrf.mxu0
    %v1798 = vadd.f32 %v1766, %v1797
    %1799 = vmatmul.f32.gmra.mxu0 %v1775
    %v1800 = vpop.f32.mrf.mxu0
    %v1801 = vadd.f32 %v1766, %v1800
    %1802 = vdwg.mxu0
    %v1806 = vrot.slane %v1795, 1
    %v1807 = vrot.slane %v1795, 2
    %v1808 = vrot.slane %v1795, 3
    %v1809 = vrot.slane %v1795, 4
    %v1810 = vrot.slane %v1795, 5
    %v1811 = vrot.slane %v1795, 6
    %v1812 = vrot.slane %v1795, 7
    %v1813 = vrot.slane %v1798, 1
    %v1814 = vrot.slane %v1798, 2
    %v1815 = vrot.slane %v1798, 3
    %v1816 = vrot.slane %v1798, 4
    %v1817 = vrot.slane %v1798, 5
    %v1818 = vrot.slane %v1798, 6
    %v1819 = vrot.slane %v1798, 7
    %v1820 = vrot.slane %v1801, 1
    %v1836 = vld [vmem:[%s83] sm:$0xff]
    %v1837 = vld [vmem:[%s83 + $0x8] sm:$0xff]
    %v1838 = vld [vmem:[%s83 + $0x10] sm:$0xff]
    %v1839 = vld [vmem:[%s83 + $0x18] sm:$0xff]
    %1840 = vmatpush.msra.mxu0 0.0
    %1841 = vmatpush.msra.mxu0 0.0
    %1842 = vmatpush.msra.mxu0 0.0
    %1843 = vmatpush.msra.mxu0 0.0
    %1844 = vmatpush.msra.mxu0 0.0
    %1845 = vmatpush.msra.mxu0 0.0
    %1846 = vmatpush.msra.mxu0 0.0
    %1847 = vmatpush.msra.mxu0 0.0
    %1848 = vmatpush.msra.mxu0 0.0
    %1849 = vmatpush.msra.mxu0 0.0
    %1850 = vmatpush.msra.mxu0 0.0
    %1851 = vmatpush.msra.mxu0 0.0
    %1852 = vmatpush.msra.mxu0 %v1839
    %1853 = vmatpush.msra.mxu0 %v1838
    %1854 = vmatpush.msra.mxu0 %v1837
    %1855 = vmatpush.msra.mxu0 %v1836
    %1856 = vmatmul.f32.gmra.mxu0 %v1639
    %v1857 = vpop.f32.mrf.mxu0
    %v1858 = vadd.f32 0.0, %v1857
    %1859 = vmatmul.f32.gmra.mxu0 %v1642
    %v1860 = vpop.f32.mrf.mxu0
    %v1861 = vadd.f32 0.0, %v1860
    %1862 = vdwg.mxu0
    %v1863 = vld [vmem:[%s89] sm:$0xff]
    %v1864 = vld [vmem:[%s89 + $0x8] sm:$0xff]
    %v1865 = vld [vmem:[%s89 + $0x10] sm:$0xff]
    %v1866 = vld [vmem:[%s89 + $0x18] sm:$0xff]
    %v1867 = vrot.slane %v1557, 7
    %v1868 = vrot.slane %v1558, 6
    %v1869 = vsel %vm444, %v1868, %v1867
    %v1870 = vsel %vm293, %v1869, 0
    %1872 = vmatpush.msra.mxu0 0.0
    %1873 = vmatpush.msra.mxu0 0.0
    %1874 = vmatpush.msra.mxu0 0.0
    %1875 = vmatpush.msra.mxu0 0.0
    %1876 = vmatpush.msra.mxu0 0.0
    %1877 = vmatpush.msra.mxu0 0.0
    %1878 = vmatpush.msra.mxu0 0.0
    %1879 = vmatpush.msra.mxu0 0.0
    %1880 = vmatpush.msra.mxu0 0.0
    %1881 = vmatpush.msra.mxu0 0.0
    %1882 = vmatpush.msra.mxu0 0.0
    %1883 = vmatpush.msra.mxu0 0.0
    %1884 = vmatpush.msra.mxu0 %v1866
    %1885 = vmatpush.msra.mxu0 %v1865
    %1886 = vmatpush.msra.mxu0 %v1864
    %1887 = vmatpush.msra.mxu0 %v1863
    %1888 = vmatmul.f32.gmra.mxu0 %v1870
    %v1889 = vpop.f32.mrf.mxu0
    %v1890 = vadd.f32 0.0, %v1889
    %1891 = vdwg.mxu0
    %v1892 = vld [vmem:[%s55] sm:$0xff]
    %v1893 = vld [vmem:[%s55 + $0x8] sm:$0xff]
    %v1894 = vld [vmem:[%s55 + $0x10] sm:$0xff]
    %v1895 = vld [vmem:[%s55 + $0x18] sm:$0xff]
    %v1896 = vld [vmem:[%s59] sm:$0xff]
    %v1897 = vld [vmem:[%s59 + $0x8] sm:$0xff]
    %v1898 = vld [vmem:[%s59 + $0x10] sm:$0xff]
    %v1899 = vld [vmem:[%s59 + $0x18] sm:$0xff]
    %v1900 = vld [vmem:[%s59 + $0x20] sm:$0xff]
    %v1901 = vld [vmem:[%s59 + $0x28] sm:$0xff]
    %v1902 = vld [vmem:[%s59 + $0x30] sm:$0xff]
    %v1903 = vld [vmem:[%s59 + $0x38] sm:$0xff]
    %v1906 = vsel %vm444, %v1625, %v1624
    %v1907 = vsel %vm1597, %v1906, 0
    %1909 = vmatpush.msra.mxu0 0.0
    %1910 = vmatpush.msra.mxu0 0.0
    %1911 = vmatpush.msra.mxu0 0.0
    %1912 = vmatpush.msra.mxu0 0.0
    %1913 = vmatpush.msra.mxu0 0.0
    %1914 = vmatpush.msra.mxu0 0.0
    %1915 = vmatpush.msra.mxu0 0.0
    %1916 = vmatpush.msra.mxu0 0.0
    %1917 = vmatpush.msra.mxu0 %v1903
    %1918 = vmatpush.msra.mxu0 %v1902
    %1919 = vmatpush.msra.mxu0 %v1901
    %1920 = vmatpush.msra.mxu0 %v1900
    %1921 = vmatpush.msra.mxu0 %v1899
    %1922 = vmatpush.msra.mxu0 %v1898
    %1923 = vmatpush.msra.mxu0 %v1897
    %1924 = vmatpush.msra.mxu0 %v1896
    %1925 = vmatmul.f32.gmra.mxu0 %v1907
    %v1926 = vpop.f32.mrf.mxu0
    %v1927 = vadd.f32 0.0, %v1926
    %1928 = vdwg.mxu0
    %v1930 = vsel %vm293, %v1592, 0
    %1932 = vmatpush.msra.mxu0 0.0
    %1933 = vmatpush.msra.mxu0 0.0
    %1934 = vmatpush.msra.mxu0 0.0
    %1935 = vmatpush.msra.mxu0 0.0
    %1936 = vmatpush.msra.mxu0 0.0
    %1937 = vmatpush.msra.mxu0 0.0
    %1938 = vmatpush.msra.mxu0 0.0
    %1939 = vmatpush.msra.mxu0 0.0
    %1940 = vmatpush.msra.mxu0 0.0
    %1941 = vmatpush.msra.mxu0 0.0
    %1942 = vmatpush.msra.mxu0 0.0
    %1943 = vmatpush.msra.mxu0 0.0
    %1944 = vmatpush.msra.mxu0 %v1895
    %1945 = vmatpush.msra.mxu0 %v1894
    %1946 = vmatpush.msra.mxu0 %v1893
    %1947 = vmatpush.msra.mxu0 %v1892
    %1948 = vmatmul.f32.gmra.mxu0 %v1930
    %v1949 = vpop.f32.mrf.mxu0
    %v1950 = vadd.f32 %v1927, %v1949
    %1951 = vdwg.mxu0
    %v1952 = vld [vmem:[%s63] sm:$0x1]
    %v1954 = vperm.slane %v1952, 0
    %v1956 = vadd.f32 %v1950, %v1954
    %v1957 = vld [vmem:[%s53] sm:$0xff]
    %v1958 = vld [vmem:[%s53 + $0x8] sm:$0xff]
    %v1959 = vld [vmem:[%s53 + $0x10] sm:$0xff]
    %v1960 = vld [vmem:[%s53 + $0x18] sm:$0xff]
    %v1961 = vld [vmem:[%s57] sm:$0xff]
    %v1962 = vld [vmem:[%s57 + $0x8] sm:$0xff]
    %v1963 = vld [vmem:[%s57 + $0x10] sm:$0xff]
    %v1964 = vld [vmem:[%s57 + $0x18] sm:$0xff]
    %v1965 = vld [vmem:[%s61] sm:$0xff]
    %v1966 = vld [vmem:[%s61 + $0x8] sm:$0xff]
    %v1967 = vld [vmem:[%s61 + $0x10] sm:$0xff]
    %v1968 = vld [vmem:[%s61 + $0x18] sm:$0xff]
    %v1969 = vld [vmem:[%s25] sm:$0xff]
    %v1970 = vld [vmem:[%s25 + $0x8] sm:$0xff]
    %v1971 = vld [vmem:[%s25 + $0x10] sm:$0xff]
    %v1972 = vld [vmem:[%s25 + $0x18] sm:$0xff]
    %v1973 = vld [vmem:[%s27] sm:$0x1]
    %v1974 = vld [vmem:[%s29] sm:$0x1]
    %v1975 = vld [vmem:[#allocation4] sm:$0x1]
    %v1976 = vld [vmem:[#allocation9] sm:$0x1]
    %v1977 = vld [vmem:[#allocation5] sm:$0x1]
    %v1978 = vld [vmem:[%s33] sm:$0xff]
    %v1979 = vld [vmem:[%s33 + $0x8] sm:$0xff]
    %v1980 = vld [vmem:[%s33 + $0x10] sm:$0xff]
    %v1981 = vld [vmem:[%s33 + $0x18] sm:$0xff]
    %v1982 = vld [vmem:[%s35] sm:$0xff]
    %v1983 = vld [vmem:[%s35 + $0x8] sm:$0xff]
    %v1984 = vld [vmem:[%s35 + $0x10] sm:$0xff]
    %v1985 = vld [vmem:[%s35 + $0x18] sm:$0xff]
    %v1986 = vld [vmem:[%s37] sm:$0xff]
    %v1987 = vld [vmem:[%s37 + $0x8] sm:$0xff]
    %v1988 = vld [vmem:[%s37 + $0x10] sm:$0xff]
    %v1989 = vld [vmem:[%s37 + $0x18] sm:$0xff]
    %v1990 = vld [vmem:[%s39] sm:$0x1]
    %v1991 = vld [vmem:[%s85] sm:$0xff]
    %v1992 = vld [vmem:[%s85 + $0x8] sm:$0xff]
    %v1993 = vld [vmem:[%s85 + $0x10] sm:$0xff]
    %v1994 = vld [vmem:[%s85 + $0x18] sm:$0xff]
    %v1995 = vld [vmem:[%s87] sm:$0x1]
    %v1996 = vld [vmem:[%s91] sm:$0x1]
    %v1997 = vld [vmem:[%s93] sm:$0xff]
    %v1998 = vld [vmem:[%s93 + $0x8] sm:$0xff]
    %v1999 = vld [vmem:[%s93 + $0x10] sm:$0xff]
    %v2000 = vld [vmem:[%s93 + $0x18] sm:$0xff]
    %v2001 = vld [vmem:[%s95] sm:$0xff]
    %v2002 = vld [vmem:[%s95 + $0x8] sm:$0xff]
    %v2003 = vld [vmem:[%s95 + $0x10] sm:$0xff]
    %v2004 = vld [vmem:[%s95 + $0x18] sm:$0xff]
    %v2005 = vld [vmem:[#allocation11] sm:$0x1]
    %v2006 = vld [vmem:[%s65] sm:$0xff]
    %v2007 = vld [vmem:[%s65 + $0x8] sm:$0xff]
    %v2008 = vld [vmem:[%s65 + $0x10] sm:$0xff]
    %v2009 = vld [vmem:[%s65 + $0x18] sm:$0xff]
    %v2010 = vld [vmem:[%s67] sm:$0xff]
    %v2011 = vld [vmem:[%s67 + $0x8] sm:$0xff]
    %v2012 = vld [vmem:[%s67 + $0x10] sm:$0xff]
    %v2013 = vld [vmem:[%s67 + $0x18] sm:$0xff]
    %v2014 = vld [vmem:[%s69] sm:$0xff]
    %v2015 = vld [vmem:[%s69 + $0x8] sm:$0xff]
    %v2016 = vld [vmem:[%s69 + $0x10] sm:$0xff]
    %v2017 = vld [vmem:[%s69 + $0x18] sm:$0xff]
    %v2018 = vld [vmem:[%s69 + $0x20] sm:$0xff]
    %v2019 = vld [vmem:[%s69 + $0x28] sm:$0xff]
    %v2020 = vld [vmem:[%s69 + $0x30] sm:$0xff]
    %v2021 = vld [vmem:[%s69 + $0x38] sm:$0xff]
    %v2022 = vld [vmem:[%s71] sm:$0xff]
    %v2023 = vld [vmem:[%s71 + $0x8] sm:$0xff]
    %v2024 = vld [vmem:[%s71 + $0x10] sm:$0xff]
    %v2025 = vld [vmem:[%s71 + $0x18] sm:$0xff]
    %v2026 = vld [vmem:[%s73] sm:$0xff]
    %v2027 = vld [vmem:[%s73 + $0x8] sm:$0xff]
    %v2028 = vld [vmem:[%s73 + $0x10] sm:$0xff]
    %v2029 = vld [vmem:[%s73 + $0x18] sm:$0xff]
    %v2030 = vld [vmem:[%s75] sm:$0x1]
    %v2031 = vld [vmem:[%s77] sm:$0xff]
    %v2032 = vld [vmem:[%s77 + $0x8] sm:$0xff]
    %v2033 = vld [vmem:[%s77 + $0x10] sm:$0xff]
    %v2034 = vld [vmem:[%s77 + $0x18] sm:$0xff]
    %v2035 = vld [vmem:[%s79] sm:$0xff]
    %v2036 = vld [vmem:[%s79 + $0x8] sm:$0xff]
    %v2037 = vld [vmem:[%s79 + $0x10] sm:$0xff]
    %v2038 = vld [vmem:[%s79 + $0x18] sm:$0xff]
    %v2039 = vld [vmem:[%s81] sm:$0x1]
    %v2040 = vld [vmem:[%s99] sm:$0xff]
    %v2041 = vld [vmem:[%s99 + $0x8] sm:$0xff]
    %v2042 = vld [vmem:[%s99 + $0x10] sm:$0xff]
    %v2043 = vld [vmem:[%s99 + $0x18] sm:$0xff]
    %v2044 = vld [vmem:[#allocation12] sm:$0x1]
    // While loop
    $region222: #{_lambda_.1} parent=1 // loop_pre_header
      _
    $region223: #{_lambda_.1} parent=1 // loop_header
      %s2046 = sphi 0, %s5062
      %s2047 = sphi 1, %s5061
      %v2048 = vphi 1, %v5044
      %v2049 = vphi 0.0, %v2200
      %v2050 = vphi 0.0, %v2194
      %v2051 = vphi 0.0, %v4978
      %v2052 = vphi 0.0, %v4972
      %v2053 = vphi 1.0, %v5042
      %v2054 = vphi 0, %v5047
      %v2055 = vphi 0.0, %v5048
      %p2056 = scmp.lt.s32.totalorder %s2046, 18
      %p2057 = scmp.gt.s32.totalorder %s2047, 0
      %p2058 = pnand %p2056, %p2057
      %p2059 = pneg %p2058
    $region224: #{_lambda_.1} parent=1 // loop_header_branch
      %2061 = sbr.rel (%p2058) target = $region228
    $region225: #{_lambda_.1} parent=1 // loop_body
      %vm2062 = vcmp.eq.s32.totalorder %v277, %v2048
      %v2063 = vsel %vm2062, 1, 0
      %v2064 = vcvt.s32.f32 %v2063
      %v2066 = vsel %vm293, %v2064, 0
      %2068 = vmatpush.msra.mxu0 0.0
      %2069 = vmatpush.msra.mxu0 0.0
      %2070 = vmatpush.msra.mxu0 0.0
      %2071 = vmatpush.msra.mxu0 0.0
      %2072 = vmatpush.msra.mxu0 0.0
      %2073 = vmatpush.msra.mxu0 0.0
      %2074 = vmatpush.msra.mxu0 0.0
      %2075 = vmatpush.msra.mxu0 0.0
      %2076 = vmatpush.msra.mxu0 0.0
      %2077 = vmatpush.msra.mxu0 0.0
      %2078 = vmatpush.msra.mxu0 0.0
      %2079 = vmatpush.msra.mxu0 0.0
      %2080 = vmatpush.msra.mxu0 %v1629
      %2081 = vmatpush.msra.mxu0 %v1628
      %2082 = vmatpush.msra.mxu0 %v1627
      %2083 = vmatpush.msra.mxu0 %v1626
      %2084 = vmatmul.f32.gmra.mxu0 %v2066
      %v2085 = vpop.f32.mrf.mxu0
      %v2086 = vadd.f32 0.0, %v2085
      %2087 = vdwg.mxu0
      %v2088 = vmax.f32 %v2086, 0.0
      %2090 = vrot.lane.b32.xlu0 %v2051, 32
      %v2091 = vpop.permute.xlu0 %2090
      %v2092 = vsel %vm293, %v2091, 0
      %2094 = vmatpush.msra.mxu0 0.0
      %2095 = vmatpush.msra.mxu0 0.0
      %2096 = vmatpush.msra.mxu0 0.0
      %2097 = vmatpush.msra.mxu0 0.0
      %2098 = vmatpush.msra.mxu0 0.0
      %2099 = vmatpush.msra.mxu0 0.0
      %2100 = vmatpush.msra.mxu0 0.0
      %2101 = vmatpush.msra.mxu0 0.0
      %2102 = vmatpush.msra.mxu0 0.0
      %2103 = vmatpush.msra.mxu0 0.0
      %2104 = vmatpush.msra.mxu0 0.0
      %2105 = vmatpush.msra.mxu0 0.0
      %2106 = vmatpush.msra.mxu0 %v1964
      %2107 = vmatpush.msra.mxu0 %v1963
      %2108 = vmatpush.msra.mxu0 %v1962
      %2109 = vmatpush.msra.mxu0 %v1961
      %2110 = vmatmul.f32.gmra.mxu0 %v2092
      %v2111 = vpop.f32.mrf.mxu0
      %v2112 = vadd.f32 0.0, %v2111
      %2113 = vdwg.mxu0
      %v2115 = vsel %vm293, %v2088, 0
      %2117 = vmatpush.msra.mxu0 0.0
      %2118 = vmatpush.msra.mxu0 0.0
      %2119 = vmatpush.msra.mxu0 0.0
      %2120 = vmatpush.msra.mxu0 0.0
      %2121 = vmatpush.msra.mxu0 0.0
      %2122 = vmatpush.msra.mxu0 0.0
      %2123 = vmatpush.msra.mxu0 0.0
      %2124 = vmatpush.msra.mxu0 0.0
      %2125 = vmatpush.msra.mxu0 0.0
      %2126 = vmatpush.msra.mxu0 0.0
      %2127 = vmatpush.msra.mxu0 0.0
      %2128 = vmatpush.msra.mxu0 0.0
      %2129 = vmatpush.msra.mxu0 %v1960
      %2130 = vmatpush.msra.mxu0 %v1959
      %2131 = vmatpush.msra.mxu0 %v1958
      %2132 = vmatpush.msra.mxu0 %v1957
      %2133 = vmatmul.f32.gmra.mxu0 %v2115
      %v2134 = vpop.f32.mrf.mxu0
      %v2135 = vadd.f32 %v2112, %v2134
      %2136 = vdwg.mxu0
      %2138 = vrot.lane.b32.xlu0 %v2049, 32
      %v2139 = vpop.permute.xlu0 %2138
      %v2140 = vsel %vm293, %v2139, 0
      %2142 = vmatpush.msra.mxu0 0.0
      %2143 = vmatpush.msra.mxu0 0.0
      %2144 = vmatpush.msra.mxu0 0.0
      %2145 = vmatpush.msra.mxu0 0.0
      %2146 = vmatpush.msra.mxu0 0.0
      %2147 = vmatpush.msra.mxu0 0.0
      %2148 = vmatpush.msra.mxu0 0.0
      %2149 = vmatpush.msra.mxu0 0.0
      %2150 = vmatpush.msra.mxu0 0.0
      %2151 = vmatpush.msra.mxu0 0.0
      %2152 = vmatpush.msra.mxu0 0.0
      %2153 = vmatpush.msra.mxu0 0.0
      %2154 = vmatpush.msra.mxu0 %v1968
      %2155 = vmatpush.msra.mxu0 %v1967
      %2156 = vmatpush.msra.mxu0 %v1966
      %2157 = vmatpush.msra.mxu0 %v1965
      %2158 = vmatmul.f32.gmra.mxu0 %v2140
      %v2159 = vpop.f32.mrf.mxu0
      %v2160 = vadd.f32 0.0, %v2159
      %2161 = vdwg.mxu0
      %v2162 = vadd.f32 %v2135, %v2160
      %v2163 = vadd.f32 %v2162, %v1956
      %v2164 = vxor.u32 %v2163, 2147483648
      %v2165 = vmul.f32 %v2164, 1.442695
      %v2166 = vpow.pop %v2165
      %v2167 = vadd.f32 %v2166, 1.0
      %v2168 = vrcp.pop %v2167
      %v2169 = vmul.f32 %v2167, %v2168
      %v2170 = vsub.f32 1.0, %v2169
      %v2171 = vmul.f32 %v2168, %v2170
      %v2172 = vadd.f32 %v2168, %v2171
      %vm2173 = vweird.f32 %v2167
      %vm2174 = vweird.f32 %v2168
      %vm2175 = vmor %vm2173, %vm2174
      %v2176 = vsel %vm2175, %v2168, %v2172
      %v2177 = vand.u32 2147483647, %v2167
      %vm2178 = vcmp.eq.f32.partialorder %v2177, 8.507059e+37
      %v2179 = vand.u32 %v2167, 2147483648
      %v2180 = vor.u32 1.1754944e-38, %v2179
      %v2181 = vsel %vm2178, %v2180, %v2176
      %v2182 = vmul.f32 1.0, %v2181
      %v2183 = vtanh.pop %v2163
      %v2184 = vmul.f32 %v2182, %v2050
      %2186 = vrot.lane.b32.xlu0 %v2183, 64
      %v2187 = vpop.permute.xlu0 %2186
      %v2189 = vmul.f32 %v2182, %v2187
      %2191 = vrot.lane.b32.xlu0 %v2189, 32
      %v2192 = vpop.permute.xlu0 %2191
      %v2194 = vadd.f32 %v2184, %v2192
      %v2195 = vtanh.pop %v2194
      %2197 = vrot.lane.b32.xlu0 %v2195, 64
      %v2198 = vpop.permute.xlu0 %2197
      %v2200 = vmul.f32 %v2182, %v2198
      %v2202 = vperm.slane %v1973, 0
      %2205 = vrot.lane.b32.xlu0 %v2200, 32
      %v2206 = vpop.permute.xlu0 %2205
      %v2207 = vsel %vm293, %v2206, 0
      %2209 = vmatpush.msra.mxu0 0.0
      %2210 = vmatpush.msra.mxu0 0.0
      %2211 = vmatpush.msra.mxu0 0.0
      %2212 = vmatpush.msra.mxu0 0.0
      %2213 = vmatpush.msra.mxu0 0.0
      %2214 = vmatpush.msra.mxu0 0.0
      %2215 = vmatpush.msra.mxu0 0.0
      %2216 = vmatpush.msra.mxu0 0.0
      %2217 = vmatpush.msra.mxu0 0.0
      %2218 = vmatpush.msra.mxu0 0.0
      %2219 = vmatpush.msra.mxu0 0.0
      %2220 = vmatpush.msra.mxu0 0.0
      %2221 = vmatpush.msra.mxu0 %v1972
      %2222 = vmatpush.msra.mxu0 %v1971
      %2223 = vmatpush.msra.mxu0 %v1970
      %2224 = vmatpush.msra.mxu0 %v1969
      %2225 = vmatmul.f32.gmra.mxu0 %v2207
      %v2226 = vpop.f32.mrf.mxu0
      %v2227 = vadd.f32 %v2202, %v2226
      %2228 = vdwg.mxu0
      %v2230 = vrot.slane %v2227, 1
      %v2231 = vperm.slane %v2227, 0
      %v2232 = vperm.slane %v2230, 0
      %v2235 = vadd.f32 %v1662, %v2231
      %v2236 = vadd.f32 %v1665, %v2232
      %v2237 = vtanh.pop %v2235
      %v2238 = vtanh.pop %v2236
      %v2240 = vperm.slane %v1974, 0
      %v2242 = vmul.f32 %v2237, %v2240
      %v2243 = vmul.f32 %v2238, %v2240
      %vm2244 = vcmask 130048
      %v2245 = vsel %vm2244, %v2242, 0.0
      %2246 = vadd.xlane.f32.xlu0 %v2245
      %v2247 = vpop.xlane.xlu0 %2246
      %v2248 = vsel %vm2244, %v2243, 0.0
      %2249 = vadd.xlane.f32.xlu0 %v2248
      %v2250 = vpop.xlane.xlu0 %2249
      %v2252 = vperm.slane %v1975, 0
      %2253 = vset.pattern.permute.xlu0 0
      %2254 = vperm.xlu0 %2253, %v2252
      %v2255 = vpop.permute.xlu0 %2254
      %v2257 = vadd.f32 %v2247, %v2255
      %v2258 = vadd.f32 %v2250, %v2255
      %vm2259 = vcmp.eq.f32.partialorder %v284, 0.0
      %v2262 = vperm.slane %v2257, %v277
      %v2263 = vperm.slane %v2258, %v277
      %v2264 = vsel %vm444, %v2263, %v2262
      %v2266 = vsel %vm2259, -1e+10, %v2264
      %vm2267 = vcmask 58368
      %v2268 = vsel %vm2267, %v2266, -inf
      %2269 = vmax.xlane.f32.xlu0 %v2268
      %v2270 = vpop.xlane.xlu0 %2269
      %v2271 = vsub.f32 %v2266, %v2270
      %v2272 = vmul.f32 %v2271, 1.442695
      %v2273 = vpow.pop %v2272
      %v2274 = vsel %vm2267, %v2273, 0.0
      %2275 = vadd.xlane.f32.xlu0 %v2274
      %v2276 = vpop.xlane.xlu0 %2275
      %v2277 = vrcp.pop %v2276
      %v2278 = vmul.f32 %v2276, %v2277
      %v2279 = vsub.f32 1.0, %v2278
      %v2280 = vmul.f32 %v2277, %v2279
      %v2281 = vadd.f32 %v2277, %v2280
      %vm2282 = vweird.f32 %v2276
      %vm2283 = vweird.f32 %v2277
      %vm2284 = vmor %vm2282, %vm2283
      %v2285 = vsel %vm2284, %v2277, %v2281
      %v2286 = vand.u32 2147483647, %v2276
      %vm2287 = vcmp.eq.f32.partialorder %v2286, 8.507059e+37
      %v2288 = vand.u32 %v2276, 2147483648
      %v2289 = vor.u32 1.1754944e-38, %v2288
      %v2290 = vsel %vm2287, %v2289, %v2285
      %v2291 = vmul.f32 %v2273, %v2290
      %v2292 = vperm.slane %v2291, 0
      %v2293 = vlaneseq
      %v2294 = vshrl.u32 %v2293, 7
      %2296 = vset.pattern.permute.xlu0 %v2294
      %2297 = vperm.xlu0 %2296, %v2292
      %v2298 = vpop.permute.xlu0 %2297
      %v2299 = vperm.slane %v2291, 1
      %v2300 = vlaneseq
      %v2301 = vshrl.u32 %v2300, 7
      %2303 = vset.pattern.permute.xlu0 %v2301
      %2304 = vperm.xlu0 %2303, %v2299
      %v2305 = vpop.permute.xlu0 %2304
      %v2306 = vmul.f32 %v1557, %v2298
      %v2307 = vmul.f32 %v1558, %v2305
      %v2308 = vsel %vm293, %v2306, 0.0
      %v2309 = vrot.slane %v2308, 4
      %v2310 = vadd.f32 %v2308, %v2309
      %v2311 = vrot.slane %v2310, 2
      %v2312 = vadd.f32 %v2310, %v2311
      %v2313 = vrot.slane %v2312, 1
      %v2314 = vadd.f32 %v2312, %v2313
      %v2315 = vsel %vm293, %v2307, 0.0
      %v2316 = vrot.slane %v2315, 4
      %v2317 = vadd.f32 %v2315, %v2316
      %v2318 = vrot.slane %v2317, 2
      %v2319 = vadd.f32 %v2317, %v2318
      %v2320 = vrot.slane %v2319, 1
      %v2321 = vadd.f32 %v2319, %v2320
      %2322 = vmatpush.msra.mxu0 0.0
      %2323 = vmatpush.msra.mxu0 0.0
      %2324 = vmatpush.msra.mxu0 0.0
      %2325 = vmatpush.msra.mxu0 0.0
      %2326 = vmatpush.msra.mxu0 0.0
      %2327 = vmatpush.msra.mxu0 0.0
      %2328 = vmatpush.msra.mxu0 0.0
      %2329 = vmatpush.msra.mxu0 0.0
      %2330 = vmatpush.msra.mxu0 0.0
      %2331 = vmatpush.msra.mxu0 0.0
      %2332 = vmatpush.msra.mxu0 0.0
      %2333 = vmatpush.msra.mxu0 0.0
      %2334 = vmatpush.msra.mxu0 %v1985
      %2335 = vmatpush.msra.mxu0 %v1984
      %2336 = vmatpush.msra.mxu0 %v1983
      %2337 = vmatpush.msra.mxu0 %v1982
      %2338 = vmatmul.f32.gmra.mxu0 %v2207
      %v2339 = vpop.f32.mrf.mxu0
      %v2340 = vadd.f32 0.0, %v2339
      %2341 = vdwg.mxu0
      %2342 = vmatpush.msra.mxu0 0.0
      %2343 = vmatpush.msra.mxu0 0.0
      %2344 = vmatpush.msra.mxu0 0.0
      %2345 = vmatpush.msra.mxu0 0.0
      %2346 = vmatpush.msra.mxu0 0.0
      %2347 = vmatpush.msra.mxu0 0.0
      %2348 = vmatpush.msra.mxu0 0.0
      %2349 = vmatpush.msra.mxu0 0.0
      %2350 = vmatpush.msra.mxu0 0.0
      %2351 = vmatpush.msra.mxu0 0.0
      %2352 = vmatpush.msra.mxu0 0.0
      %2353 = vmatpush.msra.mxu0 0.0
      %2354 = vmatpush.msra.mxu0 %v1981
      %2355 = vmatpush.msra.mxu0 %v1980
      %2356 = vmatpush.msra.mxu0 %v1979
      %2357 = vmatpush.msra.mxu0 %v1978
      %2358 = vmatmul.f32.gmra.mxu0 %v2115
      %v2359 = vpop.f32.mrf.mxu0
      %v2360 = vadd.f32 %v2340, %v2359
      %2361 = vdwg.mxu0
      %v2364 = vsel %vm444, %v2321, %v2314
      %v2365 = vsel %vm293, %v2364, 0
      %2367 = vmatpush.msra.mxu0 0.0
      %2368 = vmatpush.msra.mxu0 0.0
      %2369 = vmatpush.msra.mxu0 0.0
      %2370 = vmatpush.msra.mxu0 0.0
      %2371 = vmatpush.msra.mxu0 0.0
      %2372 = vmatpush.msra.mxu0 0.0
      %2373 = vmatpush.msra.mxu0 0.0
      %2374 = vmatpush.msra.mxu0 0.0
      %2375 = vmatpush.msra.mxu0 0.0
      %2376 = vmatpush.msra.mxu0 0.0
      %2377 = vmatpush.msra.mxu0 0.0
      %2378 = vmatpush.msra.mxu0 0.0
      %2379 = vmatpush.msra.mxu0 %v1989
      %2380 = vmatpush.msra.mxu0 %v1988
      %2381 = vmatpush.msra.mxu0 %v1987
      %2382 = vmatpush.msra.mxu0 %v1986
      %2383 = vmatmul.f32.gmra.mxu0 %v2365
      %v2384 = vpop.f32.mrf.mxu0
      %v2385 = vadd.f32 0.0, %v2384
      %2386 = vdwg.mxu0
      %v2387 = vadd.f32 %v2360, %v2385
      %v2389 = vperm.slane %v1990, 0
      %v2391 = vadd.f32 %v2387, %v2389
      %v2392 = vxor.u32 %v2391, 2147483648
      %v2393 = vmul.f32 %v2392, 1.442695
      %v2394 = vpow.pop %v2393
      %v2395 = vadd.f32 %v2394, 1.0
      %v2396 = vrcp.pop %v2395
      %v2397 = vmul.f32 %v2395, %v2396
      %v2398 = vsub.f32 1.0, %v2397
      %v2399 = vmul.f32 %v2396, %v2398
      %v2400 = vadd.f32 %v2396, %v2399
      %vm2401 = vweird.f32 %v2395
      %vm2402 = vweird.f32 %v2396
      %vm2403 = vmor %vm2401, %vm2402
      %v2404 = vsel %vm2403, %v2396, %v2400
      %v2405 = vand.u32 2147483647, %v2395
      %vm2406 = vcmp.eq.f32.partialorder %v2405, 8.507059e+37
      %v2407 = vand.u32 %v2395, 2147483648
      %v2408 = vor.u32 1.1754944e-38, %v2407
      %v2409 = vsel %vm2406, %v2408, %v2404
      %v2410 = vmul.f32 1.0, %v2409
      %v2411 = vtanh.pop %v2391
      %2413 = vrot.lane.b32.xlu0 %v2411, 96
      %v2414 = vpop.permute.xlu0 %2413
      %v2416 = vmul.f32 %v2410, %v2414
      %v2417 = vsub.f32 1.0, %v2410
      %2418 = vrot.lane.b32.xlu0 %v2411, 64
      %v2419 = vpop.permute.xlu0 %2418
      %v2421 = vmul.f32 %v2417, %v2419
      %v2422 = vadd.f32 %v2416, %v2421
      %2424 = vset.pattern.permute.xlu0 0
      %2425 = vperm.xlu0 %2424, %v2291
      %v2426 = vpop.permute.xlu0 %2425
      %v2430 = vrot.slane %v1861, 7
      %v2431 = vsel %vm444, %v2430, %v1858
      %v2433 = vmul.f32 %v2426, %v2431
      %v2434 = vperm.slane %v1991, 0
      %v2435 = vmul.f32 %v2434, 0.0
      %v2436 = vperm.slane %v1991, 1
      %v2437 = vmul.f32 %v2436, 0.0
      %v2438 = vperm.slane %v1991, 2
      %v2439 = vmul.f32 %v2438, 0.0
      %v2440 = vperm.slane %v1991, 3
      %v2441 = vmul.f32 %v2440, 0.0
      %v2442 = vperm.slane %v1991, 4
      %v2443 = vmul.f32 %v2442, 0.0
      %v2444 = vperm.slane %v1991, 5
      %v2445 = vmul.f32 %v2444, 0.0
      %v2446 = vperm.slane %v1991, 6
      %v2447 = vmul.f32 %v2446, 0.0
      %v2448 = vperm.slane %v1991, 7
      %v2449 = vmul.f32 %v2448, 0.0
      %v2450 = vperm.slane %v1992, 0
      %v2451 = vmul.f32 %v2450, 0.0
      %v2452 = vperm.slane %v1992, 1
      %v2453 = vmul.f32 %v2452, 0.0
      %v2454 = vperm.slane %v1992, 2
      %v2455 = vmul.f32 %v2454, 0.0
      %v2456 = vperm.slane %v1992, 3
      %v2457 = vmul.f32 %v2456, 0.0
      %v2458 = vperm.slane %v1992, 4
      %v2459 = vmul.f32 %v2458, 0.0
      %v2460 = vperm.slane %v1992, 5
      %v2461 = vmul.f32 %v2460, 0.0
      %v2462 = vperm.slane %v1992, 6
      %v2463 = vmul.f32 %v2462, 0.0
      %v2464 = vperm.slane %v1992, 7
      %v2465 = vmul.f32 %v2464, 0.0
      %v2466 = vperm.slane %v1993, 0
      %v2467 = vmul.f32 %v2466, 0.0
      %v2468 = vperm.slane %v1993, 1
      %v2469 = vmul.f32 %v2468, 0.0
      %v2470 = vperm.slane %v1993, 2
      %v2471 = vmul.f32 %v2470, 0.0
      %v2472 = vperm.slane %v1993, 3
      %v2473 = vmul.f32 %v2472, 0.0
      %v2474 = vperm.slane %v1993, 4
      %v2475 = vmul.f32 %v2474, 0.0
      %v2476 = vperm.slane %v1993, 5
      %v2477 = vmul.f32 %v2476, 0.0
      %v2478 = vperm.slane %v1993, 6
      %v2479 = vmul.f32 %v2478, 0.0
      %v2480 = vperm.slane %v1993, 7
      %v2481 = vmul.f32 %v2480, 0.0
      %v2482 = vperm.slane %v1994, 0
      %v2483 = vmul.f32 %v2482, 0.0
      %v2484 = vperm.slane %v1994, 1
      %v2485 = vmul.f32 %v2484, 0.0
      %v2486 = vperm.slane %v1994, 2
      %v2487 = vmul.f32 %v2486, 0.0
      %v2488 = vperm.slane %v1994, 3
      %v2489 = vmul.f32 %v2488, 0.0
      %v2490 = vperm.slane %v1994, 4
      %v2491 = vmul.f32 %v2490, 0.0
      %v2492 = vperm.slane %v1994, 5
      %v2493 = vmul.f32 %v2492, 0.0
      %v2494 = vperm.slane %v1994, 6
      %v2495 = vmul.f32 %v2494, 0.0
      %v2496 = vperm.slane %v1994, 7
      %v2497 = vmul.f32 %v2496, 0.0
      %v2498 = vadd.f32 %v2435, %v2437
      %v2499 = vadd.f32 %v2439, %v2441
      %v2500 = vadd.f32 %v2443, %v2445
      %v2501 = vadd.f32 %v2447, %v2449
      %v2502 = vadd.f32 %v2451, %v2453
      %v2503 = vadd.f32 %v2455, %v2457
      %v2504 = vadd.f32 %v2459, %v2461
      %v2505 = vadd.f32 %v2463, %v2465
      %v2506 = vadd.f32 %v2467, %v2469
      %v2507 = vadd.f32 %v2471, %v2473
      %v2508 = vadd.f32 %v2475, %v2477
      %v2509 = vadd.f32 %v2479, %v2481
      %v2510 = vadd.f32 %v2483, %v2485
      %v2511 = vadd.f32 %v2487, %v2489
      %v2512 = vadd.f32 %v2491, %v2493
      %v2513 = vadd.f32 %v2495, %v2497
      %v2514 = vadd.f32 %v2498, %v2499
      %v2515 = vadd.f32 %v2500, %v2501
      %v2516 = vadd.f32 %v2502, %v2503
      %v2517 = vadd.f32 %v2504, %v2505
      %v2518 = vadd.f32 %v2506, %v2507
      %v2519 = vadd.f32 %v2508, %v2509
      %v2520 = vadd.f32 %v2510, %v2511
      %v2521 = vadd.f32 %v2512, %v2513
      %v2522 = vadd.f32 %v2514, %v2515
      %v2523 = vadd.f32 %v2516, %v2517
      %v2524 = vadd.f32 %v2518, %v2519
      %v2525 = vadd.f32 %v2520, %v2521
      %v2526 = vadd.f32 %v2522, %v2523
      %v2527 = vadd.f32 %v2524, %v2525
      %v2528 = vadd.f32 %v2526, %v2527
      %v2529 = vadd.f32 %v2433, %v2528
      %v2531 = vperm.slane %v1995, 0
      %v2533 = vadd.f32 %v2529, %v2531
      %v2534 = vxor.u32 %v2533, 2147483648
      %v2535 = vmul.f32 %v2534, 1.442695
      %v2536 = vpow.pop %v2535
      %v2537 = vadd.f32 %v2536, 1.0
      %v2538 = vrcp.pop %v2537
      %v2539 = vmul.f32 %v2537, %v2538
      %v2540 = vsub.f32 1.0, %v2539
      %v2541 = vmul.f32 %v2538, %v2540
      %v2542 = vadd.f32 %v2538, %v2541
      %vm2543 = vweird.f32 %v2537
      %vm2544 = vweird.f32 %v2538
      %vm2545 = vmor %vm2543, %vm2544
      %v2546 = vsel %vm2545, %v2538, %v2542
      %v2547 = vand.u32 2147483647, %v2537
      %vm2548 = vcmp.eq.f32.partialorder %v2547, 8.507059e+37
      %v2549 = vand.u32 %v2537, 2147483648
      %v2550 = vor.u32 1.1754944e-38, %v2549
      %v2551 = vsel %vm2548, %v2550, %v2546
      %v2552 = vmul.f32 1.0, %v2551
      %v2553 = vtanh.pop %v2533
      %v2554 = vmul.f32 %v2552, 0.0
      %2556 = vrot.lane.b32.xlu0 %v2553, 64
      %v2557 = vpop.permute.xlu0 %2556
      %v2559 = vmul.f32 %v2552, %v2557
      %2561 = vrot.lane.b32.xlu0 %v2559, 32
      %v2562 = vpop.permute.xlu0 %2561
      %v2564 = vadd.f32 %v2554, %v2562
      %v2565 = vtanh.pop %v2564
      %2567 = vrot.lane.b32.xlu0 %v2565, 64
      %v2568 = vpop.permute.xlu0 %2567
      %v2570 = vmul.f32 %v2552, %v2568
      %2571 = vset.pattern.permute.xlu0 1
      %2572 = vperm.xlu0 %2571, %v2291
      %v2573 = vpop.permute.xlu0 %2572
      %v2575 = vrot.slane %v1858, 1
      %v2576 = vsel %vm444, %v1861, %v2575
      %v2578 = vmul.f32 %v2573, %v2576
      %2580 = vset.pattern.permute.xlu0 96
      %2581 = vperm.xlu0 %2580, %v2570
      %v2582 = vpop.permute.xlu0 %2581
      %v2584 = vmul.f32 %v2582, %v2434
      %2585 = vset.pattern.permute.xlu0 97
      %2586 = vperm.xlu0 %2585, %v2570
      %v2587 = vpop.permute.xlu0 %2586
      %v2589 = vmul.f32 %v2587, %v2436
      %2590 = vset.pattern.permute.xlu0 98
      %2591 = vperm.xlu0 %2590, %v2570
      %v2592 = vpop.permute.xlu0 %2591
      %v2594 = vmul.f32 %v2592, %v2438
      %2595 = vset.pattern.permute.xlu0 99
      %2596 = vperm.xlu0 %2595, %v2570
      %v2597 = vpop.permute.xlu0 %2596
      %v2599 = vmul.f32 %v2597, %v2440
      %2600 = vset.pattern.permute.xlu0 100
      %2601 = vperm.xlu0 %2600, %v2570
      %v2602 = vpop.permute.xlu0 %2601
      %v2604 = vmul.f32 %v2602, %v2442
      %2605 = vset.pattern.permute.xlu0 101
      %2606 = vperm.xlu0 %2605, %v2570
      %v2607 = vpop.permute.xlu0 %2606
      %v2609 = vmul.f32 %v2607, %v2444
      %2610 = vset.pattern.permute.xlu0 102
      %2611 = vperm.xlu0 %2610, %v2570
      %v2612 = vpop.permute.xlu0 %2611
      %v2614 = vmul.f32 %v2612, %v2446
      %2615 = vset.pattern.permute.xlu0 103
      %2616 = vperm.xlu0 %2615, %v2570
      %v2617 = vpop.permute.xlu0 %2616
      %v2619 = vmul.f32 %v2617, %v2448
      %2620 = vset.pattern.permute.xlu0 104
      %2621 = vperm.xlu0 %2620, %v2570
      %v2622 = vpop.permute.xlu0 %2621
      %v2624 = vmul.f32 %v2622, %v2450
      %2625 = vset.pattern.permute.xlu0 105
      %2626 = vperm.xlu0 %2625, %v2570
      %v2627 = vpop.permute.xlu0 %2626
      %v2629 = vmul.f32 %v2627, %v2452
      %2630 = vset.pattern.permute.xlu0 106
      %2631 = vperm.xlu0 %2630, %v2570
      %v2632 = vpop.permute.xlu0 %2631
      %v2634 = vmul.f32 %v2632, %v2454
      %2635 = vset.pattern.permute.xlu0 107
      %2636 = vperm.xlu0 %2635, %v2570
      %v2637 = vpop.permute.xlu0 %2636
      %v2639 = vmul.f32 %v2637, %v2456
      %2640 = vset.pattern.permute.xlu0 108
      %2641 = vperm.xlu0 %2640, %v2570
      %v2642 = vpop.permute.xlu0 %2641
      %v2644 = vmul.f32 %v2642, %v2458
      %2645 = vset.pattern.permute.xlu0 109
      %2646 = vperm.xlu0 %2645, %v2570
      %v2647 = vpop.permute.xlu0 %2646
      %v2649 = vmul.f32 %v2647, %v2460
      %2650 = vset.pattern.permute.xlu0 110
      %2651 = vperm.xlu0 %2650, %v2570
      %v2652 = vpop.permute.xlu0 %2651
      %v2654 = vmul.f32 %v2652, %v2462
      %2655 = vset.pattern.permute.xlu0 111
      %2656 = vperm.xlu0 %2655, %v2570
      %v2657 = vpop.permute.xlu0 %2656
      %v2659 = vmul.f32 %v2657, %v2464
      %2660 = vset.pattern.permute.xlu0 112
      %2661 = vperm.xlu0 %2660, %v2570
      %v2662 = vpop.permute.xlu0 %2661
      %v2664 = vmul.f32 %v2662, %v2466
      %2665 = vset.pattern.permute.xlu0 113
      %2666 = vperm.xlu0 %2665, %v2570
      %v2667 = vpop.permute.xlu0 %2666
      %v2669 = vmul.f32 %v2667, %v2468
      %2670 = vset.pattern.permute.xlu0 114
      %2671 = vperm.xlu0 %2670, %v2570
      %v2672 = vpop.permute.xlu0 %2671
      %v2674 = vmul.f32 %v2672, %v2470
      %2675 = vset.pattern.permute.xlu0 115
      %2676 = vperm.xlu0 %2675, %v2570
      %v2677 = vpop.permute.xlu0 %2676
      %v2679 = vmul.f32 %v2677, %v2472
      %2680 = vset.pattern.permute.xlu0 116
      %2681 = vperm.xlu0 %2680, %v2570
      %v2682 = vpop.permute.xlu0 %2681
      %v2684 = vmul.f32 %v2682, %v2474
      %2685 = vset.pattern.permute.xlu0 117
      %2686 = vperm.xlu0 %2685, %v2570
      %v2687 = vpop.permute.xlu0 %2686
      %v2689 = vmul.f32 %v2687, %v2476
      %2690 = vset.pattern.permute.xlu0 118
      %2691 = vperm.xlu0 %2690, %v2570
      %v2692 = vpop.permute.xlu0 %2691
      %v2694 = vmul.f32 %v2692, %v2478
      %2695 = vset.pattern.permute.xlu0 119
      %2696 = vperm.xlu0 %2695, %v2570
      %v2697 = vpop.permute.xlu0 %2696
      %v2699 = vmul.f32 %v2697, %v2480
      %2700 = vset.pattern.permute.xlu0 120
      %2701 = vperm.xlu0 %2700, %v2570
      %v2702 = vpop.permute.xlu0 %2701
      %v2704 = vmul.f32 %v2702, %v2482
      %2705 = vset.pattern.permute.xlu0 121
      %2706 = vperm.xlu0 %2705, %v2570
      %v2707 = vpop.permute.xlu0 %2706
      %v2709 = vmul.f32 %v2707, %v2484
      %2710 = vset.pattern.permute.xlu0 122
      %2711 = vperm.xlu0 %2710, %v2570
      %v2712 = vpop.permute.xlu0 %2711
      %v2714 = vmul.f32 %v2712, %v2486
      %2715 = vset.pattern.permute.xlu0 123
      %2716 = vperm.xlu0 %2715, %v2570
      %v2717 = vpop.permute.xlu0 %2716
      %v2719 = vmul.f32 %v2717, %v2488
      %2720 = vset.pattern.permute.xlu0 124
      %2721 = vperm.xlu0 %2720, %v2570
      %v2722 = vpop.permute.xlu0 %2721
      %v2724 = vmul.f32 %v2722, %v2490
      %2725 = vset.pattern.permute.xlu0 125
      %2726 = vperm.xlu0 %2725, %v2570
      %v2727 = vpop.permute.xlu0 %2726
      %v2729 = vmul.f32 %v2727, %v2492
      %2730 = vset.pattern.permute.xlu0 126
      %2731 = vperm.xlu0 %2730, %v2570
      %v2732 = vpop.permute.xlu0 %2731
      %v2734 = vmul.f32 %v2732, %v2494
      %2735 = vset.pattern.permute.xlu0 127
      %2736 = vperm.xlu0 %2735, %v2570
      %v2737 = vpop.permute.xlu0 %2736
      %v2739 = vmul.f32 %v2737, %v2496
      %v2740 = vadd.f32 %v2584, %v2589
      %v2741 = vadd.f32 %v2594, %v2599
      %v2742 = vadd.f32 %v2604, %v2609
      %v2743 = vadd.f32 %v2614, %v2619
      %v2744 = vadd.f32 %v2624, %v2629
      %v2745 = vadd.f32 %v2634, %v2639
      %v2746 = vadd.f32 %v2644, %v2649
      %v2747 = vadd.f32 %v2654, %v2659
      %v2748 = vadd.f32 %v2664, %v2669
      %v2749 = vadd.f32 %v2674, %v2679
      %v2750 = vadd.f32 %v2684, %v2689
      %v2751 = vadd.f32 %v2694, %v2699
      %v2752 = vadd.f32 %v2704, %v2709
      %v2753 = vadd.f32 %v2714, %v2719
      %v2754 = vadd.f32 %v2724, %v2729
      %v2755 = vadd.f32 %v2734, %v2739
      %v2756 = vadd.f32 %v2740, %v2741
      %v2757 = vadd.f32 %v2742, %v2743
      %v2758 = vadd.f32 %v2744, %v2745
      %v2759 = vadd.f32 %v2746, %v2747
      %v2760 = vadd.f32 %v2748, %v2749
      %v2761 = vadd.f32 %v2750, %v2751
      %v2762 = vadd.f32 %v2752, %v2753
      %v2763 = vadd.f32 %v2754, %v2755
      %v2764 = vadd.f32 %v2756, %v2757
      %v2765 = vadd.f32 %v2758, %v2759
      %v2766 = vadd.f32 %v2760, %v2761
      %v2767 = vadd.f32 %v2762, %v2763
      %v2768 = vadd.f32 %v2764, %v2765
      %v2769 = vadd.f32 %v2766, %v2767
      %v2770 = vadd.f32 %v2768, %v2769
      %v2771 = vadd.f32 %v2578, %v2770
      %v2772 = vadd.f32 %v2771, %v2531
      %v2773 = vxor.u32 %v2772, 2147483648
      %v2774 = vmul.f32 %v2773, 1.442695
      %v2775 = vpow.pop %v2774
      %v2776 = vadd.f32 %v2775, 1.0
      %v2777 = vrcp.pop %v2776
      %v2778 = vmul.f32 %v2776, %v2777
      %v2779 = vsub.f32 1.0, %v2778
      %v2780 = vmul.f32 %v2777, %v2779
      %v2781 = vadd.f32 %v2777, %v2780
      %vm2782 = vweird.f32 %v2776
      %vm2783 = vweird.f32 %v2777
      %vm2784 = vmor %vm2782, %vm2783
      %v2785 = vsel %vm2784, %v2777, %v2781
      %v2786 = vand.u32 2147483647, %v2776
      %vm2787 = vcmp.eq.f32.partialorder %v2786, 8.507059e+37
      %v2788 = vand.u32 %v2776, 2147483648
      %v2789 = vor.u32 1.1754944e-38, %v2788
      %v2790 = vsel %vm2787, %v2789, %v2785
      %v2791 = vmul.f32 1.0, %v2790
      %v2792 = vtanh.pop %v2772
      %v2793 = vmul.f32 %v2791, %v2564
      %2795 = vrot.lane.b32.xlu0 %v2792, 64
      %v2796 = vpop.permute.xlu0 %2795
      %v2798 = vmul.f32 %v2791, %v2796
      %2800 = vrot.lane.b32.xlu0 %v2798, 32
      %v2801 = vpop.permute.xlu0 %2800
      %v2803 = vadd.f32 %v2793, %v2801
      %v2804 = vtanh.pop %v2803
      %2806 = vrot.lane.b32.xlu0 %v2804, 64
      %v2807 = vpop.permute.xlu0 %2806
      %v2809 = vmul.f32 %v2791, %v2807
      %2810 = vset.pattern.permute.xlu0 2
      %2811 = vperm.xlu0 %2810, %v2291
      %v2812 = vpop.permute.xlu0 %2811
      %v2814 = vrot.slane %v1858, 2
      %v2815 = vrot.slane %v1861, 1
      %v2816 = vsel %vm444, %v2815, %v2814
      %v2818 = vmul.f32 %v2812, %v2816
      %2820 = vset.pattern.permute.xlu0 96
      %2821 = vperm.xlu0 %2820, %v2809
      %v2822 = vpop.permute.xlu0 %2821
      %v2824 = vmul.f32 %v2822, %v2434
      %2825 = vset.pattern.permute.xlu0 97
      %2826 = vperm.xlu0 %2825, %v2809
      %v2827 = vpop.permute.xlu0 %2826
      %v2829 = vmul.f32 %v2827, %v2436
      %2830 = vset.pattern.permute.xlu0 98
      %2831 = vperm.xlu0 %2830, %v2809
      %v2832 = vpop.permute.xlu0 %2831
      %v2834 = vmul.f32 %v2832, %v2438
      %2835 = vset.pattern.permute.xlu0 99
      %2836 = vperm.xlu0 %2835, %v2809
      %v2837 = vpop.permute.xlu0 %2836
      %v2839 = vmul.f32 %v2837, %v2440
      %2840 = vset.pattern.permute.xlu0 100
      %2841 = vperm.xlu0 %2840, %v2809
      %v2842 = vpop.permute.xlu0 %2841
      %v2844 = vmul.f32 %v2842, %v2442
      %2845 = vset.pattern.permute.xlu0 101
      %2846 = vperm.xlu0 %2845, %v2809
      %v2847 = vpop.permute.xlu0 %2846
      %v2849 = vmul.f32 %v2847, %v2444
      %2850 = vset.pattern.permute.xlu0 102
      %2851 = vperm.xlu0 %2850, %v2809
      %v2852 = vpop.permute.xlu0 %2851
      %v2854 = vmul.f32 %v2852, %v2446
      %2855 = vset.pattern.permute.xlu0 103
      %2856 = vperm.xlu0 %2855, %v2809
      %v2857 = vpop.permute.xlu0 %2856
      %v2859 = vmul.f32 %v2857, %v2448
      %2860 = vset.pattern.permute.xlu0 104
      %2861 = vperm.xlu0 %2860, %v2809
      %v2862 = vpop.permute.xlu0 %2861
      %v2864 = vmul.f32 %v2862, %v2450
      %2865 = vset.pattern.permute.xlu0 105
      %2866 = vperm.xlu0 %2865, %v2809
      %v2867 = vpop.permute.xlu0 %2866
      %v2869 = vmul.f32 %v2867, %v2452
      %2870 = vset.pattern.permute.xlu0 106
      %2871 = vperm.xlu0 %2870, %v2809
      %v2872 = vpop.permute.xlu0 %2871
      %v2874 = vmul.f32 %v2872, %v2454
      %2875 = vset.pattern.permute.xlu0 107
      %2876 = vperm.xlu0 %2875, %v2809
      %v2877 = vpop.permute.xlu0 %2876
      %v2879 = vmul.f32 %v2877, %v2456
      %2880 = vset.pattern.permute.xlu0 108
      %2881 = vperm.xlu0 %2880, %v2809
      %v2882 = vpop.permute.xlu0 %2881
      %v2884 = vmul.f32 %v2882, %v2458
      %2885 = vset.pattern.permute.xlu0 109
      %2886 = vperm.xlu0 %2885, %v2809
      %v2887 = vpop.permute.xlu0 %2886
      %v2889 = vmul.f32 %v2887, %v2460
      %2890 = vset.pattern.permute.xlu0 110
      %2891 = vperm.xlu0 %2890, %v2809
      %v2892 = vpop.permute.xlu0 %2891
      %v2894 = vmul.f32 %v2892, %v2462
      %2895 = vset.pattern.permute.xlu0 111
      %2896 = vperm.xlu0 %2895, %v2809
      %v2897 = vpop.permute.xlu0 %2896
      %v2899 = vmul.f32 %v2897, %v2464
      %2900 = vset.pattern.permute.xlu0 112
      %2901 = vperm.xlu0 %2900, %v2809
      %v2902 = vpop.permute.xlu0 %2901
      %v2904 = vmul.f32 %v2902, %v2466
      %2905 = vset.pattern.permute.xlu0 113
      %2906 = vperm.xlu0 %2905, %v2809
      %v2907 = vpop.permute.xlu0 %2906
      %v2909 = vmul.f32 %v2907, %v2468
      %2910 = vset.pattern.permute.xlu0 114
      %2911 = vperm.xlu0 %2910, %v2809
      %v2912 = vpop.permute.xlu0 %2911
      %v2914 = vmul.f32 %v2912, %v2470
      %2915 = vset.pattern.permute.xlu0 115
      %2916 = vperm.xlu0 %2915, %v2809
      %v2917 = vpop.permute.xlu0 %2916
      %v2919 = vmul.f32 %v2917, %v2472
      %2920 = vset.pattern.permute.xlu0 116
      %2921 = vperm.xlu0 %2920, %v2809
      %v2922 = vpop.permute.xlu0 %2921
      %v2924 = vmul.f32 %v2922, %v2474
      %2925 = vset.pattern.permute.xlu0 117
      %2926 = vperm.xlu0 %2925, %v2809
      %v2927 = vpop.permute.xlu0 %2926
      %v2929 = vmul.f32 %v2927, %v2476
      %2930 = vset.pattern.permute.xlu0 118
      %2931 = vperm.xlu0 %2930, %v2809
      %v2932 = vpop.permute.xlu0 %2931
      %v2934 = vmul.f32 %v2932, %v2478
      %2935 = vset.pattern.permute.xlu0 119
      %2936 = vperm.xlu0 %2935, %v2809
      %v2937 = vpop.permute.xlu0 %2936
      %v2939 = vmul.f32 %v2937, %v2480
      %2940 = vset.pattern.permute.xlu0 120
      %2941 = vperm.xlu0 %2940, %v2809
      %v2942 = vpop.permute.xlu0 %2941
      %v2944 = vmul.f32 %v2942, %v2482
      %2945 = vset.pattern.permute.xlu0 121
      %2946 = vperm.xlu0 %2945, %v2809
      %v2947 = vpop.permute.xlu0 %2946
      %v2949 = vmul.f32 %v2947, %v2484
      %2950 = vset.pattern.permute.xlu0 122
      %2951 = vperm.xlu0 %2950, %v2809
      %v2952 = vpop.permute.xlu0 %2951
      %v2954 = vmul.f32 %v2952, %v2486
      %2955 = vset.pattern.permute.xlu0 123
      %2956 = vperm.xlu0 %2955, %v2809
      %v2957 = vpop.permute.xlu0 %2956
      %v2959 = vmul.f32 %v2957, %v2488
      %2960 = vset.pattern.permute.xlu0 124
      %2961 = vperm.xlu0 %2960, %v2809
      %v2962 = vpop.permute.xlu0 %2961
      %v2964 = vmul.f32 %v2962, %v2490
      %2965 = vset.pattern.permute.xlu0 125
      %2966 = vperm.xlu0 %2965, %v2809
      %v2967 = vpop.permute.xlu0 %2966
      %v2969 = vmul.f32 %v2967, %v2492
      %2970 = vset.pattern.permute.xlu0 126
      %2971 = vperm.xlu0 %2970, %v2809
      %v2972 = vpop.permute.xlu0 %2971
      %v2974 = vmul.f32 %v2972, %v2494
      %2975 = vset.pattern.permute.xlu0 127
      %2976 = vperm.xlu0 %2975, %v2809
      %v2977 = vpop.permute.xlu0 %2976
      %v2979 = vmul.f32 %v2977, %v2496
      %v2980 = vadd.f32 %v2824, %v2829
      %v2981 = vadd.f32 %v2834, %v2839
      %v2982 = vadd.f32 %v2844, %v2849
      %v2983 = vadd.f32 %v2854, %v2859
      %v2984 = vadd.f32 %v2864, %v2869
      %v2985 = vadd.f32 %v2874, %v2879
      %v2986 = vadd.f32 %v2884, %v2889
      %v2987 = vadd.f32 %v2894, %v2899
      %v2988 = vadd.f32 %v2904, %v2909
      %v2989 = vadd.f32 %v2914, %v2919
      %v2990 = vadd.f32 %v2924, %v2929
      %v2991 = vadd.f32 %v2934, %v2939
      %v2992 = vadd.f32 %v2944, %v2949
      %v2993 = vadd.f32 %v2954, %v2959
      %v2994 = vadd.f32 %v2964, %v2969
      %v2995 = vadd.f32 %v2974, %v2979
      %v2996 = vadd.f32 %v2980, %v2981
      %v2997 = vadd.f32 %v2982, %v2983
      %v2998 = vadd.f32 %v2984, %v2985
      %v2999 = vadd.f32 %v2986, %v2987
      %v3000 = vadd.f32 %v2988, %v2989
      %v3001 = vadd.f32 %v2990, %v2991
      %v3002 = vadd.f32 %v2992, %v2993
      %v3003 = vadd.f32 %v2994, %v2995
      %v3004 = vadd.f32 %v2996, %v2997
      %v3005 = vadd.f32 %v2998, %v2999
      %v3006 = vadd.f32 %v3000, %v3001
      %v3007 = vadd.f32 %v3002, %v3003
      %v3008 = vadd.f32 %v3004, %v3005
      %v3009 = vadd.f32 %v3006, %v3007
      %v3010 = vadd.f32 %v3008, %v3009
      %v3011 = vadd.f32 %v2818, %v3010
      %v3012 = vadd.f32 %v3011, %v2531
      %v3013 = vxor.u32 %v3012, 2147483648
      %v3014 = vmul.f32 %v3013, 1.442695
      %v3015 = vpow.pop %v3014
      %v3016 = vadd.f32 %v3015, 1.0
      %v3017 = vrcp.pop %v3016
      %v3018 = vmul.f32 %v3016, %v3017
      %v3019 = vsub.f32 1.0, %v3018
      %v3020 = vmul.f32 %v3017, %v3019
      %v3021 = vadd.f32 %v3017, %v3020
      %vm3022 = vweird.f32 %v3016
      %vm3023 = vweird.f32 %v3017
      %vm3024 = vmor %vm3022, %vm3023
      %v3025 = vsel %vm3024, %v3017, %v3021
      %v3026 = vand.u32 2147483647, %v3016
      %vm3027 = vcmp.eq.f32.partialorder %v3026, 8.507059e+37
      %v3028 = vand.u32 %v3016, 2147483648
      %v3029 = vor.u32 1.1754944e-38, %v3028
      %v3030 = vsel %vm3027, %v3029, %v3025
      %v3031 = vmul.f32 1.0, %v3030
      %v3032 = vtanh.pop %v3012
      %v3033 = vmul.f32 %v3031, %v2803
      %3035 = vrot.lane.b32.xlu0 %v3032, 64
      %v3036 = vpop.permute.xlu0 %3035
      %v3038 = vmul.f32 %v3031, %v3036
      %3040 = vrot.lane.b32.xlu0 %v3038, 32
      %v3041 = vpop.permute.xlu0 %3040
      %v3043 = vadd.f32 %v3033, %v3041
      %v3044 = vtanh.pop %v3043
      %3046 = vrot.lane.b32.xlu0 %v3044, 64
      %v3047 = vpop.permute.xlu0 %3046
      %v3049 = vmul.f32 %v3031, %v3047
      %3050 = vset.pattern.permute.xlu0 3
      %3051 = vperm.xlu0 %3050, %v2291
      %v3052 = vpop.permute.xlu0 %3051
      %v3054 = vrot.slane %v1858, 3
      %v3055 = vrot.slane %v1861, 2
      %v3056 = vsel %vm444, %v3055, %v3054
      %v3058 = vmul.f32 %v3052, %v3056
      %3060 = vset.pattern.permute.xlu0 96
      %3061 = vperm.xlu0 %3060, %v3049
      %v3062 = vpop.permute.xlu0 %3061
      %v3064 = vmul.f32 %v3062, %v2434
      %3065 = vset.pattern.permute.xlu0 97
      %3066 = vperm.xlu0 %3065, %v3049
      %v3067 = vpop.permute.xlu0 %3066
      %v3069 = vmul.f32 %v3067, %v2436
      %3070 = vset.pattern.permute.xlu0 98
      %3071 = vperm.xlu0 %3070, %v3049
      %v3072 = vpop.permute.xlu0 %3071
      %v3074 = vmul.f32 %v3072, %v2438
      %3075 = vset.pattern.permute.xlu0 99
      %3076 = vperm.xlu0 %3075, %v3049
      %v3077 = vpop.permute.xlu0 %3076
      %v3079 = vmul.f32 %v3077, %v2440
      %3080 = vset.pattern.permute.xlu0 100
      %3081 = vperm.xlu0 %3080, %v3049
      %v3082 = vpop.permute.xlu0 %3081
      %v3084 = vmul.f32 %v3082, %v2442
      %3085 = vset.pattern.permute.xlu0 101
      %3086 = vperm.xlu0 %3085, %v3049
      %v3087 = vpop.permute.xlu0 %3086
      %v3089 = vmul.f32 %v3087, %v2444
      %3090 = vset.pattern.permute.xlu0 102
      %3091 = vperm.xlu0 %3090, %v3049
      %v3092 = vpop.permute.xlu0 %3091
      %v3094 = vmul.f32 %v3092, %v2446
      %3095 = vset.pattern.permute.xlu0 103
      %3096 = vperm.xlu0 %3095, %v3049
      %v3097 = vpop.permute.xlu0 %3096
      %v3099 = vmul.f32 %v3097, %v2448
      %3100 = vset.pattern.permute.xlu0 104
      %3101 = vperm.xlu0 %3100, %v3049
      %v3102 = vpop.permute.xlu0 %3101
      %v3104 = vmul.f32 %v3102, %v2450
      %3105 = vset.pattern.permute.xlu0 105
      %3106 = vperm.xlu0 %3105, %v3049
      %v3107 = vpop.permute.xlu0 %3106
      %v3109 = vmul.f32 %v3107, %v2452
      %3110 = vset.pattern.permute.xlu0 106
      %3111 = vperm.xlu0 %3110, %v3049
      %v3112 = vpop.permute.xlu0 %3111
      %v3114 = vmul.f32 %v3112, %v2454
      %3115 = vset.pattern.permute.xlu0 107
      %3116 = vperm.xlu0 %3115, %v3049
      %v3117 = vpop.permute.xlu0 %3116
      %v3119 = vmul.f32 %v3117, %v2456
      %3120 = vset.pattern.permute.xlu0 108
      %3121 = vperm.xlu0 %3120, %v3049
      %v3122 = vpop.permute.xlu0 %3121
      %v3124 = vmul.f32 %v3122, %v2458
      %3125 = vset.pattern.permute.xlu0 109
      %3126 = vperm.xlu0 %3125, %v3049
      %v3127 = vpop.permute.xlu0 %3126
      %v3129 = vmul.f32 %v3127, %v2460
      %3130 = vset.pattern.permute.xlu0 110
      %3131 = vperm.xlu0 %3130, %v3049
      %v3132 = vpop.permute.xlu0 %3131
      %v3134 = vmul.f32 %v3132, %v2462
      %3135 = vset.pattern.permute.xlu0 111
      %3136 = vperm.xlu0 %3135, %v3049
      %v3137 = vpop.permute.xlu0 %3136
      %v3139 = vmul.f32 %v3137, %v2464
      %3140 = vset.pattern.permute.xlu0 112
      %3141 = vperm.xlu0 %3140, %v3049
      %v3142 = vpop.permute.xlu0 %3141
      %v3144 = vmul.f32 %v3142, %v2466
      %3145 = vset.pattern.permute.xlu0 113
      %3146 = vperm.xlu0 %3145, %v3049
      %v3147 = vpop.permute.xlu0 %3146
      %v3149 = vmul.f32 %v3147, %v2468
      %3150 = vset.pattern.permute.xlu0 114
      %3151 = vperm.xlu0 %3150, %v3049
      %v3152 = vpop.permute.xlu0 %3151
      %v3154 = vmul.f32 %v3152, %v2470
      %3155 = vset.pattern.permute.xlu0 115
      %3156 = vperm.xlu0 %3155, %v3049
      %v3157 = vpop.permute.xlu0 %3156
      %v3159 = vmul.f32 %v3157, %v2472
      %3160 = vset.pattern.permute.xlu0 116
      %3161 = vperm.xlu0 %3160, %v3049
      %v3162 = vpop.permute.xlu0 %3161
      %v3164 = vmul.f32 %v3162, %v2474
      %3165 = vset.pattern.permute.xlu0 117
      %3166 = vperm.xlu0 %3165, %v3049
      %v3167 = vpop.permute.xlu0 %3166
      %v3169 = vmul.f32 %v3167, %v2476
      %3170 = vset.pattern.permute.xlu0 118
      %3171 = vperm.xlu0 %3170, %v3049
      %v3172 = vpop.permute.xlu0 %3171
      %v3174 = vmul.f32 %v3172, %v2478
      %3175 = vset.pattern.permute.xlu0 119
      %3176 = vperm.xlu0 %3175, %v3049
      %v3177 = vpop.permute.xlu0 %3176
      %v3179 = vmul.f32 %v3177, %v2480
      %3180 = vset.pattern.permute.xlu0 120
      %3181 = vperm.xlu0 %3180, %v3049
      %v3182 = vpop.permute.xlu0 %3181
      %v3184 = vmul.f32 %v3182, %v2482
      %3185 = vset.pattern.permute.xlu0 121
      %3186 = vperm.xlu0 %3185, %v3049
      %v3187 = vpop.permute.xlu0 %3186
      %v3189 = vmul.f32 %v3187, %v2484
      %3190 = vset.pattern.permute.xlu0 122
      %3191 = vperm.xlu0 %3190, %v3049
      %v3192 = vpop.permute.xlu0 %3191
      %v3194 = vmul.f32 %v3192, %v2486
      %3195 = vset.pattern.permute.xlu0 123
      %3196 = vperm.xlu0 %3195, %v3049
      %v3197 = vpop.permute.xlu0 %3196
      %v3199 = vmul.f32 %v3197, %v2488
      %3200 = vset.pattern.permute.xlu0 124
      %3201 = vperm.xlu0 %3200, %v3049
      %v3202 = vpop.permute.xlu0 %3201
      %v3204 = vmul.f32 %v3202, %v2490
      %3205 = vset.pattern.permute.xlu0 125
      %3206 = vperm.xlu0 %3205, %v3049
      %v3207 = vpop.permute.xlu0 %3206
      %v3209 = vmul.f32 %v3207, %v2492
      %3210 = vset.pattern.permute.xlu0 126
      %3211 = vperm.xlu0 %3210, %v3049
      %v3212 = vpop.permute.xlu0 %3211
      %v3214 = vmul.f32 %v3212, %v2494
      %3215 = vset.pattern.permute.xlu0 127
      %3216 = vperm.xlu0 %3215, %v3049
      %v3217 = vpop.permute.xlu0 %3216
      %v3219 = vmul.f32 %v3217, %v2496
      %v3220 = vadd.f32 %v3064, %v3069
      %v3221 = vadd.f32 %v3074, %v3079
      %v3222 = vadd.f32 %v3084, %v3089
      %v3223 = vadd.f32 %v3094, %v3099
      %v3224 = vadd.f32 %v3104, %v3109
      %v3225 = vadd.f32 %v3114, %v3119
      %v3226 = vadd.f32 %v3124, %v3129
      %v3227 = vadd.f32 %v3134, %v3139
      %v3228 = vadd.f32 %v3144, %v3149
      %v3229 = vadd.f32 %v3154, %v3159
      %v3230 = vadd.f32 %v3164, %v3169
      %v3231 = vadd.f32 %v3174, %v3179
      %v3232 = vadd.f32 %v3184, %v3189
      %v3233 = vadd.f32 %v3194, %v3199
      %v3234 = vadd.f32 %v3204, %v3209
      %v3235 = vadd.f32 %v3214, %v3219
      %v3236 = vadd.f32 %v3220, %v3221
      %v3237 = vadd.f32 %v3222, %v3223
      %v3238 = vadd.f32 %v3224, %v3225
      %v3239 = vadd.f32 %v3226, %v3227
      %v3240 = vadd.f32 %v3228, %v3229
      %v3241 = vadd.f32 %v3230, %v3231
      %v3242 = vadd.f32 %v3232, %v3233
      %v3243 = vadd.f32 %v3234, %v3235
      %v3244 = vadd.f32 %v3236, %v3237
      %v3245 = vadd.f32 %v3238, %v3239
      %v3246 = vadd.f32 %v3240, %v3241
      %v3247 = vadd.f32 %v3242, %v3243
      %v3248 = vadd.f32 %v3244, %v3245
      %v3249 = vadd.f32 %v3246, %v3247
      %v3250 = vadd.f32 %v3248, %v3249
      %v3251 = vadd.f32 %v3058, %v3250
      %v3252 = vadd.f32 %v3251, %v2531
      %v3253 = vxor.u32 %v3252, 2147483648
      %v3254 = vmul.f32 %v3253, 1.442695
      %v3255 = vpow.pop %v3254
      %v3256 = vadd.f32 %v3255, 1.0
      %v3257 = vrcp.pop %v3256
      %v3258 = vmul.f32 %v3256, %v3257
      %v3259 = vsub.f32 1.0, %v3258
      %v3260 = vmul.f32 %v3257, %v3259
      %v3261 = vadd.f32 %v3257, %v3260
      %vm3262 = vweird.f32 %v3256
      %vm3263 = vweird.f32 %v3257
      %vm3264 = vmor %vm3262, %vm3263
      %v3265 = vsel %vm3264, %v3257, %v3261
      %v3266 = vand.u32 2147483647, %v3256
      %vm3267 = vcmp.eq.f32.partialorder %v3266, 8.507059e+37
      %v3268 = vand.u32 %v3256, 2147483648
      %v3269 = vor.u32 1.1754944e-38, %v3268
      %v3270 = vsel %vm3267, %v3269, %v3265
      %v3271 = vmul.f32 1.0, %v3270
      %v3272 = vtanh.pop %v3252
      %v3273 = vmul.f32 %v3271, %v3043
      %3275 = vrot.lane.b32.xlu0 %v3272, 64
      %v3276 = vpop.permute.xlu0 %3275
      %v3278 = vmul.f32 %v3271, %v3276
      %3280 = vrot.lane.b32.xlu0 %v3278, 32
      %v3281 = vpop.permute.xlu0 %3280
      %v3283 = vadd.f32 %v3273, %v3281
      %v3284 = vtanh.pop %v3283
      %3286 = vrot.lane.b32.xlu0 %v3284, 64
      %v3287 = vpop.permute.xlu0 %3286
      %v3289 = vmul.f32 %v3271, %v3287
      %3290 = vset.pattern.permute.xlu0 4
      %3291 = vperm.xlu0 %3290, %v2291
      %v3292 = vpop.permute.xlu0 %3291
      %v3294 = vrot.slane %v1858, 4
      %v3295 = vrot.slane %v1861, 3
      %v3296 = vsel %vm444, %v3295, %v3294
      %v3298 = vmul.f32 %v3292, %v3296
      %3300 = vset.pattern.permute.xlu0 96
      %3301 = vperm.xlu0 %3300, %v3289
      %v3302 = vpop.permute.xlu0 %3301
      %v3304 = vmul.f32 %v3302, %v2434
      %3305 = vset.pattern.permute.xlu0 97
      %3306 = vperm.xlu0 %3305, %v3289
      %v3307 = vpop.permute.xlu0 %3306
      %v3309 = vmul.f32 %v3307, %v2436
      %3310 = vset.pattern.permute.xlu0 98
      %3311 = vperm.xlu0 %3310, %v3289
      %v3312 = vpop.permute.xlu0 %3311
      %v3314 = vmul.f32 %v3312, %v2438
      %3315 = vset.pattern.permute.xlu0 99
      %3316 = vperm.xlu0 %3315, %v3289
      %v3317 = vpop.permute.xlu0 %3316
      %v3319 = vmul.f32 %v3317, %v2440
      %3320 = vset.pattern.permute.xlu0 100
      %3321 = vperm.xlu0 %3320, %v3289
      %v3322 = vpop.permute.xlu0 %3321
      %v3324 = vmul.f32 %v3322, %v2442
      %3325 = vset.pattern.permute.xlu0 101
      %3326 = vperm.xlu0 %3325, %v3289
      %v3327 = vpop.permute.xlu0 %3326
      %v3329 = vmul.f32 %v3327, %v2444
      %3330 = vset.pattern.permute.xlu0 102
      %3331 = vperm.xlu0 %3330, %v3289
      %v3332 = vpop.permute.xlu0 %3331
      %v3334 = vmul.f32 %v3332, %v2446
      %3335 = vset.pattern.permute.xlu0 103
      %3336 = vperm.xlu0 %3335, %v3289
      %v3337 = vpop.permute.xlu0 %3336
      %v3339 = vmul.f32 %v3337, %v2448
      %3340 = vset.pattern.permute.xlu0 104
      %3341 = vperm.xlu0 %3340, %v3289
      %v3342 = vpop.permute.xlu0 %3341
      %v3344 = vmul.f32 %v3342, %v2450
      %3345 = vset.pattern.permute.xlu0 105
      %3346 = vperm.xlu0 %3345, %v3289
      %v3347 = vpop.permute.xlu0 %3346
      %v3349 = vmul.f32 %v3347, %v2452
      %3350 = vset.pattern.permute.xlu0 106
      %3351 = vperm.xlu0 %3350, %v3289
      %v3352 = vpop.permute.xlu0 %3351
      %v3354 = vmul.f32 %v3352, %v2454
      %3355 = vset.pattern.permute.xlu0 107
      %3356 = vperm.xlu0 %3355, %v3289
      %v3357 = vpop.permute.xlu0 %3356
      %v3359 = vmul.f32 %v3357, %v2456
      %3360 = vset.pattern.permute.xlu0 108
      %3361 = vperm.xlu0 %3360, %v3289
      %v3362 = vpop.permute.xlu0 %3361
      %v3364 = vmul.f32 %v3362, %v2458
      %3365 = vset.pattern.permute.xlu0 109
      %3366 = vperm.xlu0 %3365, %v3289
      %v3367 = vpop.permute.xlu0 %3366
      %v3369 = vmul.f32 %v3367, %v2460
      %3370 = vset.pattern.permute.xlu0 110
      %3371 = vperm.xlu0 %3370, %v3289
      %v3372 = vpop.permute.xlu0 %3371
      %v3374 = vmul.f32 %v3372, %v2462
      %3375 = vset.pattern.permute.xlu0 111
      %3376 = vperm.xlu0 %3375, %v3289
      %v3377 = vpop.permute.xlu0 %3376
      %v3379 = vmul.f32 %v3377, %v2464
      %3380 = vset.pattern.permute.xlu0 112
      %3381 = vperm.xlu0 %3380, %v3289
      %v3382 = vpop.permute.xlu0 %3381
      %v3384 = vmul.f32 %v3382, %v2466
      %3385 = vset.pattern.permute.xlu0 113
      %3386 = vperm.xlu0 %3385, %v3289
      %v3387 = vpop.permute.xlu0 %3386
      %v3389 = vmul.f32 %v3387, %v2468
      %3390 = vset.pattern.permute.xlu0 114
      %3391 = vperm.xlu0 %3390, %v3289
      %v3392 = vpop.permute.xlu0 %3391
      %v3394 = vmul.f32 %v3392, %v2470
      %3395 = vset.pattern.permute.xlu0 115
      %3396 = vperm.xlu0 %3395, %v3289
      %v3397 = vpop.permute.xlu0 %3396
      %v3399 = vmul.f32 %v3397, %v2472
      %3400 = vset.pattern.permute.xlu0 116
      %3401 = vperm.xlu0 %3400, %v3289
      %v3402 = vpop.permute.xlu0 %3401
      %v3404 = vmul.f32 %v3402, %v2474
      %3405 = vset.pattern.permute.xlu0 117
      %3406 = vperm.xlu0 %3405, %v3289
      %v3407 = vpop.permute.xlu0 %3406
      %v3409 = vmul.f32 %v3407, %v2476
      %3410 = vset.pattern.permute.xlu0 118
      %3411 = vperm.xlu0 %3410, %v3289
      %v3412 = vpop.permute.xlu0 %3411
      %v3414 = vmul.f32 %v3412, %v2478
      %3415 = vset.pattern.permute.xlu0 119
      %3416 = vperm.xlu0 %3415, %v3289
      %v3417 = vpop.permute.xlu0 %3416
      %v3419 = vmul.f32 %v3417, %v2480
      %3420 = vset.pattern.permute.xlu0 120
      %3421 = vperm.xlu0 %3420, %v3289
      %v3422 = vpop.permute.xlu0 %3421
      %v3424 = vmul.f32 %v3422, %v2482
      %3425 = vset.pattern.permute.xlu0 121
      %3426 = vperm.xlu0 %3425, %v3289
      %v3427 = vpop.permute.xlu0 %3426
      %v3429 = vmul.f32 %v3427, %v2484
      %3430 = vset.pattern.permute.xlu0 122
      %3431 = vperm.xlu0 %3430, %v3289
      %v3432 = vpop.permute.xlu0 %3431
      %v3434 = vmul.f32 %v3432, %v2486
      %3435 = vset.pattern.permute.xlu0 123
      %3436 = vperm.xlu0 %3435, %v3289
      %v3437 = vpop.permute.xlu0 %3436
      %v3439 = vmul.f32 %v3437, %v2488
      %3440 = vset.pattern.permute.xlu0 124
      %3441 = vperm.xlu0 %3440, %v3289
      %v3442 = vpop.permute.xlu0 %3441
      %v3444 = vmul.f32 %v3442, %v2490
      %3445 = vset.pattern.permute.xlu0 125
      %3446 = vperm.xlu0 %3445, %v3289
      %v3447 = vpop.permute.xlu0 %3446
      %v3449 = vmul.f32 %v3447, %v2492
      %3450 = vset.pattern.permute.xlu0 126
      %3451 = vperm.xlu0 %3450, %v3289
      %v3452 = vpop.permute.xlu0 %3451
      %v3454 = vmul.f32 %v3452, %v2494
      %3455 = vset.pattern.permute.xlu0 127
      %3456 = vperm.xlu0 %3455, %v3289
      %v3457 = vpop.permute.xlu0 %3456
      %v3459 = vmul.f32 %v3457, %v2496
      %v3460 = vadd.f32 %v3304, %v3309
      %v3461 = vadd.f32 %v3314, %v3319
      %v3462 = vadd.f32 %v3324, %v3329
      %v3463 = vadd.f32 %v3334, %v3339
      %v3464 = vadd.f32 %v3344, %v3349
      %v3465 = vadd.f32 %v3354, %v3359
      %v3466 = vadd.f32 %v3364, %v3369
      %v3467 = vadd.f32 %v3374, %v3379
      %v3468 = vadd.f32 %v3384, %v3389
      %v3469 = vadd.f32 %v3394, %v3399
      %v3470 = vadd.f32 %v3404, %v3409
      %v3471 = vadd.f32 %v3414, %v3419
      %v3472 = vadd.f32 %v3424, %v3429
      %v3473 = vadd.f32 %v3434, %v3439
      %v3474 = vadd.f32 %v3444, %v3449
      %v3475 = vadd.f32 %v3454, %v3459
      %v3476 = vadd.f32 %v3460, %v3461
      %v3477 = vadd.f32 %v3462, %v3463
      %v3478 = vadd.f32 %v3464, %v3465
      %v3479 = vadd.f32 %v3466, %v3467
      %v3480 = vadd.f32 %v3468, %v3469
      %v3481 = vadd.f32 %v3470, %v3471
      %v3482 = vadd.f32 %v3472, %v3473
      %v3483 = vadd.f32 %v3474, %v3475
      %v3484 = vadd.f32 %v3476, %v3477
      %v3485 = vadd.f32 %v3478, %v3479
      %v3486 = vadd.f32 %v3480, %v3481
      %v3487 = vadd.f32 %v3482, %v3483
      %v3488 = vadd.f32 %v3484, %v3485
      %v3489 = vadd.f32 %v3486, %v3487
      %v3490 = vadd.f32 %v3488, %v3489
      %v3491 = vadd.f32 %v3298, %v3490
      %v3492 = vadd.f32 %v3491, %v2531
      %v3493 = vxor.u32 %v3492, 2147483648
      %v3494 = vmul.f32 %v3493, 1.442695
      %v3495 = vpow.pop %v3494
      %v3496 = vadd.f32 %v3495, 1.0
      %v3497 = vrcp.pop %v3496
      %v3498 = vmul.f32 %v3496, %v3497
      %v3499 = vsub.f32 1.0, %v3498
      %v3500 = vmul.f32 %v3497, %v3499
      %v3501 = vadd.f32 %v3497, %v3500
      %vm3502 = vweird.f32 %v3496
      %vm3503 = vweird.f32 %v3497
      %vm3504 = vmor %vm3502, %vm3503
      %v3505 = vsel %vm3504, %v3497, %v3501
      %v3506 = vand.u32 2147483647, %v3496
      %vm3507 = vcmp.eq.f32.partialorder %v3506, 8.507059e+37
      %v3508 = vand.u32 %v3496, 2147483648
      %v3509 = vor.u32 1.1754944e-38, %v3508
      %v3510 = vsel %vm3507, %v3509, %v3505
      %v3511 = vmul.f32 1.0, %v3510
      %v3512 = vtanh.pop %v3492
      %v3513 = vmul.f32 %v3511, %v3283
      %3515 = vrot.lane.b32.xlu0 %v3512, 64
      %v3516 = vpop.permute.xlu0 %3515
      %v3518 = vmul.f32 %v3511, %v3516
      %3520 = vrot.lane.b32.xlu0 %v3518, 32
      %v3521 = vpop.permute.xlu0 %3520
      %v3523 = vadd.f32 %v3513, %v3521
      %v3524 = vtanh.pop %v3523
      %3526 = vrot.lane.b32.xlu0 %v3524, 64
      %v3527 = vpop.permute.xlu0 %3526
      %v3529 = vmul.f32 %v3511, %v3527
      %3530 = vset.pattern.permute.xlu0 5
      %3531 = vperm.xlu0 %3530, %v2291
      %v3532 = vpop.permute.xlu0 %3531
      %v3534 = vrot.slane %v1858, 5
      %v3535 = vrot.slane %v1861, 4
      %v3536 = vsel %vm444, %v3535, %v3534
      %v3538 = vmul.f32 %v3532, %v3536
      %3540 = vset.pattern.permute.xlu0 96
      %3541 = vperm.xlu0 %3540, %v3529
      %v3542 = vpop.permute.xlu0 %3541
      %v3544 = vmul.f32 %v3542, %v2434
      %3545 = vset.pattern.permute.xlu0 97
      %3546 = vperm.xlu0 %3545, %v3529
      %v3547 = vpop.permute.xlu0 %3546
      %v3549 = vmul.f32 %v3547, %v2436
      %3550 = vset.pattern.permute.xlu0 98
      %3551 = vperm.xlu0 %3550, %v3529
      %v3552 = vpop.permute.xlu0 %3551
      %v3554 = vmul.f32 %v3552, %v2438
      %3555 = vset.pattern.permute.xlu0 99
      %3556 = vperm.xlu0 %3555, %v3529
      %v3557 = vpop.permute.xlu0 %3556
      %v3559 = vmul.f32 %v3557, %v2440
      %3560 = vset.pattern.permute.xlu0 100
      %3561 = vperm.xlu0 %3560, %v3529
      %v3562 = vpop.permute.xlu0 %3561
      %v3564 = vmul.f32 %v3562, %v2442
      %3565 = vset.pattern.permute.xlu0 101
      %3566 = vperm.xlu0 %3565, %v3529
      %v3567 = vpop.permute.xlu0 %3566
      %v3569 = vmul.f32 %v3567, %v2444
      %3570 = vset.pattern.permute.xlu0 102
      %3571 = vperm.xlu0 %3570, %v3529
      %v3572 = vpop.permute.xlu0 %3571
      %v3574 = vmul.f32 %v3572, %v2446
      %3575 = vset.pattern.permute.xlu0 103
      %3576 = vperm.xlu0 %3575, %v3529
      %v3577 = vpop.permute.xlu0 %3576
      %v3579 = vmul.f32 %v3577, %v2448
      %3580 = vset.pattern.permute.xlu0 104
      %3581 = vperm.xlu0 %3580, %v3529
      %v3582 = vpop.permute.xlu0 %3581
      %v3584 = vmul.f32 %v3582, %v2450
      %3585 = vset.pattern.permute.xlu0 105
      %3586 = vperm.xlu0 %3585, %v3529
      %v3587 = vpop.permute.xlu0 %3586
      %v3589 = vmul.f32 %v3587, %v2452
      %3590 = vset.pattern.permute.xlu0 106
      %3591 = vperm.xlu0 %3590, %v3529
      %v3592 = vpop.permute.xlu0 %3591
      %v3594 = vmul.f32 %v3592, %v2454
      %3595 = vset.pattern.permute.xlu0 107
      %3596 = vperm.xlu0 %3595, %v3529
      %v3597 = vpop.permute.xlu0 %3596
      %v3599 = vmul.f32 %v3597, %v2456
      %3600 = vset.pattern.permute.xlu0 108
      %3601 = vperm.xlu0 %3600, %v3529
      %v3602 = vpop.permute.xlu0 %3601
      %v3604 = vmul.f32 %v3602, %v2458
      %3605 = vset.pattern.permute.xlu0 109
      %3606 = vperm.xlu0 %3605, %v3529
      %v3607 = vpop.permute.xlu0 %3606
      %v3609 = vmul.f32 %v3607, %v2460
      %3610 = vset.pattern.permute.xlu0 110
      %3611 = vperm.xlu0 %3610, %v3529
      %v3612 = vpop.permute.xlu0 %3611
      %v3614 = vmul.f32 %v3612, %v2462
      %3615 = vset.pattern.permute.xlu0 111
      %3616 = vperm.xlu0 %3615, %v3529
      %v3617 = vpop.permute.xlu0 %3616
      %v3619 = vmul.f32 %v3617, %v2464
      %3620 = vset.pattern.permute.xlu0 112
      %3621 = vperm.xlu0 %3620, %v3529
      %v3622 = vpop.permute.xlu0 %3621
      %v3624 = vmul.f32 %v3622, %v2466
      %3625 = vset.pattern.permute.xlu0 113
      %3626 = vperm.xlu0 %3625, %v3529
      %v3627 = vpop.permute.xlu0 %3626
      %v3629 = vmul.f32 %v3627, %v2468
      %3630 = vset.pattern.permute.xlu0 114
      %3631 = vperm.xlu0 %3630, %v3529
      %v3632 = vpop.permute.xlu0 %3631
      %v3634 = vmul.f32 %v3632, %v2470
      %3635 = vset.pattern.permute.xlu0 115
      %3636 = vperm.xlu0 %3635, %v3529
      %v3637 = vpop.permute.xlu0 %3636
      %v3639 = vmul.f32 %v3637, %v2472
      %3640 = vset.pattern.permute.xlu0 116
      %3641 = vperm.xlu0 %3640, %v3529
      %v3642 = vpop.permute.xlu0 %3641
      %v3644 = vmul.f32 %v3642, %v2474
      %3645 = vset.pattern.permute.xlu0 117
      %3646 = vperm.xlu0 %3645, %v3529
      %v3647 = vpop.permute.xlu0 %3646
      %v3649 = vmul.f32 %v3647, %v2476
      %3650 = vset.pattern.permute.xlu0 118
      %3651 = vperm.xlu0 %3650, %v3529
      %v3652 = vpop.permute.xlu0 %3651
      %v3654 = vmul.f32 %v3652, %v2478
      %3655 = vset.pattern.permute.xlu0 119
      %3656 = vperm.xlu0 %3655, %v3529
      %v3657 = vpop.permute.xlu0 %3656
      %v3659 = vmul.f32 %v3657, %v2480
      %3660 = vset.pattern.permute.xlu0 120
      %3661 = vperm.xlu0 %3660, %v3529
      %v3662 = vpop.permute.xlu0 %3661
      %v3664 = vmul.f32 %v3662, %v2482
      %3665 = vset.pattern.permute.xlu0 121
      %3666 = vperm.xlu0 %3665, %v3529
      %v3667 = vpop.permute.xlu0 %3666
      %v3669 = vmul.f32 %v3667, %v2484
      %3670 = vset.pattern.permute.xlu0 122
      %3671 = vperm.xlu0 %3670, %v3529
      %v3672 = vpop.permute.xlu0 %3671
      %v3674 = vmul.f32 %v3672, %v2486
      %3675 = vset.pattern.permute.xlu0 123
      %3676 = vperm.xlu0 %3675, %v3529
      %v3677 = vpop.permute.xlu0 %3676
      %v3679 = vmul.f32 %v3677, %v2488
      %3680 = vset.pattern.permute.xlu0 124
      %3681 = vperm.xlu0 %3680, %v3529
      %v3682 = vpop.permute.xlu0 %3681
      %v3684 = vmul.f32 %v3682, %v2490
      %3685 = vset.pattern.permute.xlu0 125
      %3686 = vperm.xlu0 %3685, %v3529
      %v3687 = vpop.permute.xlu0 %3686
      %v3689 = vmul.f32 %v3687, %v2492
      %3690 = vset.pattern.permute.xlu0 126
      %3691 = vperm.xlu0 %3690, %v3529
      %v3692 = vpop.permute.xlu0 %3691
      %v3694 = vmul.f32 %v3692, %v2494
      %3695 = vset.pattern.permute.xlu0 127
      %3696 = vperm.xlu0 %3695, %v3529
      %v3697 = vpop.permute.xlu0 %3696
      %v3699 = vmul.f32 %v3697, %v2496
      %v3700 = vadd.f32 %v3544, %v3549
      %v3701 = vadd.f32 %v3554, %v3559
      %v3702 = vadd.f32 %v3564, %v3569
      %v3703 = vadd.f32 %v3574, %v3579
      %v3704 = vadd.f32 %v3584, %v3589
      %v3705 = vadd.f32 %v3594, %v3599
      %v3706 = vadd.f32 %v3604, %v3609
      %v3707 = vadd.f32 %v3614, %v3619
      %v3708 = vadd.f32 %v3624, %v3629
      %v3709 = vadd.f32 %v3634, %v3639
      %v3710 = vadd.f32 %v3644, %v3649
      %v3711 = vadd.f32 %v3654, %v3659
      %v3712 = vadd.f32 %v3664, %v3669
      %v3713 = vadd.f32 %v3674, %v3679
      %v3714 = vadd.f32 %v3684, %v3689
      %v3715 = vadd.f32 %v3694, %v3699
      %v3716 = vadd.f32 %v3700, %v3701
      %v3717 = vadd.f32 %v3702, %v3703
      %v3718 = vadd.f32 %v3704, %v3705
      %v3719 = vadd.f32 %v3706, %v3707
      %v3720 = vadd.f32 %v3708, %v3709
      %v3721 = vadd.f32 %v3710, %v3711
      %v3722 = vadd.f32 %v3712, %v3713
      %v3723 = vadd.f32 %v3714, %v3715
      %v3724 = vadd.f32 %v3716, %v3717
      %v3725 = vadd.f32 %v3718, %v3719
      %v3726 = vadd.f32 %v3720, %v3721
      %v3727 = vadd.f32 %v3722, %v3723
      %v3728 = vadd.f32 %v3724, %v3725
      %v3729 = vadd.f32 %v3726, %v3727
      %v3730 = vadd.f32 %v3728, %v3729
      %v3731 = vadd.f32 %v3538, %v3730
      %v3732 = vadd.f32 %v3731, %v2531
      %v3733 = vxor.u32 %v3732, 2147483648
      %v3734 = vmul.f32 %v3733, 1.442695
      %v3735 = vpow.pop %v3734
      %v3736 = vadd.f32 %v3735, 1.0
      %v3737 = vrcp.pop %v3736
      %v3738 = vmul.f32 %v3736, %v3737
      %v3739 = vsub.f32 1.0, %v3738
      %v3740 = vmul.f32 %v3737, %v3739
      %v3741 = vadd.f32 %v3737, %v3740
      %vm3742 = vweird.f32 %v3736
      %vm3743 = vweird.f32 %v3737
      %vm3744 = vmor %vm3742, %vm3743
      %v3745 = vsel %vm3744, %v3737, %v3741
      %v3746 = vand.u32 2147483647, %v3736
      %vm3747 = vcmp.eq.f32.partialorder %v3746, 8.507059e+37
      %v3748 = vand.u32 %v3736, 2147483648
      %v3749 = vor.u32 1.1754944e-38, %v3748
      %v3750 = vsel %vm3747, %v3749, %v3745
      %v3751 = vmul.f32 1.0, %v3750
      %v3752 = vtanh.pop %v3732
      %v3753 = vmul.f32 %v3751, %v3523
      %3755 = vrot.lane.b32.xlu0 %v3752, 64
      %v3756 = vpop.permute.xlu0 %3755
      %v3758 = vmul.f32 %v3751, %v3756
      %3760 = vrot.lane.b32.xlu0 %v3758, 32
      %v3761 = vpop.permute.xlu0 %3760
      %v3763 = vadd.f32 %v3753, %v3761
      %v3764 = vtanh.pop %v3763
      %3766 = vrot.lane.b32.xlu0 %v3764, 64
      %v3767 = vpop.permute.xlu0 %3766
      %v3769 = vmul.f32 %v3751, %v3767
      %3770 = vset.pattern.permute.xlu0 6
      %3771 = vperm.xlu0 %3770, %v2291
      %v3772 = vpop.permute.xlu0 %3771
      %v3774 = vrot.slane %v1858, 6
      %v3775 = vrot.slane %v1861, 5
      %v3776 = vsel %vm444, %v3775, %v3774
      %v3778 = vmul.f32 %v3772, %v3776
      %3780 = vset.pattern.permute.xlu0 96
      %3781 = vperm.xlu0 %3780, %v3769
      %v3782 = vpop.permute.xlu0 %3781
      %v3784 = vmul.f32 %v3782, %v2434
      %3785 = vset.pattern.permute.xlu0 97
      %3786 = vperm.xlu0 %3785, %v3769
      %v3787 = vpop.permute.xlu0 %3786
      %v3789 = vmul.f32 %v3787, %v2436
      %3790 = vset.pattern.permute.xlu0 98
      %3791 = vperm.xlu0 %3790, %v3769
      %v3792 = vpop.permute.xlu0 %3791
      %v3794 = vmul.f32 %v3792, %v2438
      %3795 = vset.pattern.permute.xlu0 99
      %3796 = vperm.xlu0 %3795, %v3769
      %v3797 = vpop.permute.xlu0 %3796
      %v3799 = vmul.f32 %v3797, %v2440
      %3800 = vset.pattern.permute.xlu0 100
      %3801 = vperm.xlu0 %3800, %v3769
      %v3802 = vpop.permute.xlu0 %3801
      %v3804 = vmul.f32 %v3802, %v2442
      %3805 = vset.pattern.permute.xlu0 101
      %3806 = vperm.xlu0 %3805, %v3769
      %v3807 = vpop.permute.xlu0 %3806
      %v3809 = vmul.f32 %v3807, %v2444
      %3810 = vset.pattern.permute.xlu0 102
      %3811 = vperm.xlu0 %3810, %v3769
      %v3812 = vpop.permute.xlu0 %3811
      %v3814 = vmul.f32 %v3812, %v2446
      %3815 = vset.pattern.permute.xlu0 103
      %3816 = vperm.xlu0 %3815, %v3769
      %v3817 = vpop.permute.xlu0 %3816
      %v3819 = vmul.f32 %v3817, %v2448
      %3820 = vset.pattern.permute.xlu0 104
      %3821 = vperm.xlu0 %3820, %v3769
      %v3822 = vpop.permute.xlu0 %3821
      %v3824 = vmul.f32 %v3822, %v2450
      %3825 = vset.pattern.permute.xlu0 105
      %3826 = vperm.xlu0 %3825, %v3769
      %v3827 = vpop.permute.xlu0 %3826
      %v3829 = vmul.f32 %v3827, %v2452
      %3830 = vset.pattern.permute.xlu0 106
      %3831 = vperm.xlu0 %3830, %v3769
      %v3832 = vpop.permute.xlu0 %3831
      %v3834 = vmul.f32 %v3832, %v2454
      %3835 = vset.pattern.permute.xlu0 107
      %3836 = vperm.xlu0 %3835, %v3769
      %v3837 = vpop.permute.xlu0 %3836
      %v3839 = vmul.f32 %v3837, %v2456
      %3840 = vset.pattern.permute.xlu0 108
      %3841 = vperm.xlu0 %3840, %v3769
      %v3842 = vpop.permute.xlu0 %3841
      %v3844 = vmul.f32 %v3842, %v2458
      %3845 = vset.pattern.permute.xlu0 109
      %3846 = vperm.xlu0 %3845, %v3769
      %v3847 = vpop.permute.xlu0 %3846
      %v3849 = vmul.f32 %v3847, %v2460
      %3850 = vset.pattern.permute.xlu0 110
      %3851 = vperm.xlu0 %3850, %v3769
      %v3852 = vpop.permute.xlu0 %3851
      %v3854 = vmul.f32 %v3852, %v2462
      %3855 = vset.pattern.permute.xlu0 111
      %3856 = vperm.xlu0 %3855, %v3769
      %v3857 = vpop.permute.xlu0 %3856
      %v3859 = vmul.f32 %v3857, %v2464
      %3860 = vset.pattern.permute.xlu0 112
      %3861 = vperm.xlu0 %3860, %v3769
      %v3862 = vpop.permute.xlu0 %3861
      %v3864 = vmul.f32 %v3862, %v2466
      %3865 = vset.pattern.permute.xlu0 113
      %3866 = vperm.xlu0 %3865, %v3769
      %v3867 = vpop.permute.xlu0 %3866
      %v3869 = vmul.f32 %v3867, %v2468
      %3870 = vset.pattern.permute.xlu0 114
      %3871 = vperm.xlu0 %3870, %v3769
      %v3872 = vpop.permute.xlu0 %3871
      %v3874 = vmul.f32 %v3872, %v2470
      %3875 = vset.pattern.permute.xlu0 115
      %3876 = vperm.xlu0 %3875, %v3769
      %v3877 = vpop.permute.xlu0 %3876
      %v3879 = vmul.f32 %v3877, %v2472
      %3880 = vset.pattern.permute.xlu0 116
      %3881 = vperm.xlu0 %3880, %v3769
      %v3882 = vpop.permute.xlu0 %3881
      %v3884 = vmul.f32 %v3882, %v2474
      %3885 = vset.pattern.permute.xlu0 117
      %3886 = vperm.xlu0 %3885, %v3769
      %v3887 = vpop.permute.xlu0 %3886
      %v3889 = vmul.f32 %v3887, %v2476
      %3890 = vset.pattern.permute.xlu0 118
      %3891 = vperm.xlu0 %3890, %v3769
      %v3892 = vpop.permute.xlu0 %3891
      %v3894 = vmul.f32 %v3892, %v2478
      %3895 = vset.pattern.permute.xlu0 119
      %3896 = vperm.xlu0 %3895, %v3769
      %v3897 = vpop.permute.xlu0 %3896
      %v3899 = vmul.f32 %v3897, %v2480
      %3900 = vset.pattern.permute.xlu0 120
      %3901 = vperm.xlu0 %3900, %v3769
      %v3902 = vpop.permute.xlu0 %3901
      %v3904 = vmul.f32 %v3902, %v2482
      %3905 = vset.pattern.permute.xlu0 121
      %3906 = vperm.xlu0 %3905, %v3769
      %v3907 = vpop.permute.xlu0 %3906
      %v3909 = vmul.f32 %v3907, %v2484
      %3910 = vset.pattern.permute.xlu0 122
      %3911 = vperm.xlu0 %3910, %v3769
      %v3912 = vpop.permute.xlu0 %3911
      %v3914 = vmul.f32 %v3912, %v2486
      %3915 = vset.pattern.permute.xlu0 123
      %3916 = vperm.xlu0 %3915, %v3769
      %v3917 = vpop.permute.xlu0 %3916
      %v3919 = vmul.f32 %v3917, %v2488
      %3920 = vset.pattern.permute.xlu0 124
      %3921 = vperm.xlu0 %3920, %v3769
      %v3922 = vpop.permute.xlu0 %3921
      %v3924 = vmul.f32 %v3922, %v2490
      %3925 = vset.pattern.permute.xlu0 125
      %3926 = vperm.xlu0 %3925, %v3769
      %v3927 = vpop.permute.xlu0 %3926
      %v3929 = vmul.f32 %v3927, %v2492
      %3930 = vset.pattern.permute.xlu0 126
      %3931 = vperm.xlu0 %3930, %v3769
      %v3932 = vpop.permute.xlu0 %3931
      %v3934 = vmul.f32 %v3932, %v2494
      %3935 = vset.pattern.permute.xlu0 127
      %3936 = vperm.xlu0 %3935, %v3769
      %v3937 = vpop.permute.xlu0 %3936
      %v3939 = vmul.f32 %v3937, %v2496
      %v3940 = vadd.f32 %v3784, %v3789
      %v3941 = vadd.f32 %v3794, %v3799
      %v3942 = vadd.f32 %v3804, %v3809
      %v3943 = vadd.f32 %v3814, %v3819
      %v3944 = vadd.f32 %v3824, %v3829
      %v3945 = vadd.f32 %v3834, %v3839
      %v3946 = vadd.f32 %v3844, %v3849
      %v3947 = vadd.f32 %v3854, %v3859
      %v3948 = vadd.f32 %v3864, %v3869
      %v3949 = vadd.f32 %v3874, %v3879
      %v3950 = vadd.f32 %v3884, %v3889
      %v3951 = vadd.f32 %v3894, %v3899
      %v3952 = vadd.f32 %v3904, %v3909
      %v3953 = vadd.f32 %v3914, %v3919
      %v3954 = vadd.f32 %v3924, %v3929
      %v3955 = vadd.f32 %v3934, %v3939
      %v3956 = vadd.f32 %v3940, %v3941
      %v3957 = vadd.f32 %v3942, %v3943
      %v3958 = vadd.f32 %v3944, %v3945
      %v3959 = vadd.f32 %v3946, %v3947
      %v3960 = vadd.f32 %v3948, %v3949
      %v3961 = vadd.f32 %v3950, %v3951
      %v3962 = vadd.f32 %v3952, %v3953
      %v3963 = vadd.f32 %v3954, %v3955
      %v3964 = vadd.f32 %v3956, %v3957
      %v3965 = vadd.f32 %v3958, %v3959
      %v3966 = vadd.f32 %v3960, %v3961
      %v3967 = vadd.f32 %v3962, %v3963
      %v3968 = vadd.f32 %v3964, %v3965
      %v3969 = vadd.f32 %v3966, %v3967
      %v3970 = vadd.f32 %v3968, %v3969
      %v3971 = vadd.f32 %v3778, %v3970
      %v3972 = vadd.f32 %v3971, %v2531
      %v3973 = vxor.u32 %v3972, 2147483648
      %v3974 = vmul.f32 %v3973, 1.442695
      %v3975 = vpow.pop %v3974
      %v3976 = vadd.f32 %v3975, 1.0
      %v3977 = vrcp.pop %v3976
      %v3978 = vmul.f32 %v3976, %v3977
      %v3979 = vsub.f32 1.0, %v3978
      %v3980 = vmul.f32 %v3977, %v3979
      %v3981 = vadd.f32 %v3977, %v3980
      %vm3982 = vweird.f32 %v3976
      %vm3983 = vweird.f32 %v3977
      %vm3984 = vmor %vm3982, %vm3983
      %v3985 = vsel %vm3984, %v3977, %v3981
      %v3986 = vand.u32 2147483647, %v3976
      %vm3987 = vcmp.eq.f32.partialorder %v3986, 8.507059e+37
      %v3988 = vand.u32 %v3976, 2147483648
      %v3989 = vor.u32 1.1754944e-38, %v3988
      %v3990 = vsel %vm3987, %v3989, %v3985
      %v3991 = vmul.f32 1.0, %v3990
      %v3992 = vtanh.pop %v3972
      %v3993 = vmul.f32 %v3991, %v3763
      %3995 = vrot.lane.b32.xlu0 %v3992, 64
      %v3996 = vpop.permute.xlu0 %3995
      %v3998 = vmul.f32 %v3991, %v3996
      %4000 = vrot.lane.b32.xlu0 %v3998, 32
      %v4001 = vpop.permute.xlu0 %4000
      %v4003 = vadd.f32 %v3993, %v4001
      %v4004 = vtanh.pop %v4003
      %4006 = vrot.lane.b32.xlu0 %v4004, 64
      %v4007 = vpop.permute.xlu0 %4006
      %v4009 = vmul.f32 %v3991, %v4007
      %4010 = vset.pattern.permute.xlu0 7
      %4011 = vperm.xlu0 %4010, %v2291
      %v4012 = vpop.permute.xlu0 %4011
      %v4014 = vrot.slane %v1858, 7
      %v4015 = vrot.slane %v1861, 6
      %v4016 = vsel %vm444, %v4015, %v4014
      %v4018 = vmul.f32 %v4012, %v4016
      %4020 = vset.pattern.permute.xlu0 96
      %4021 = vperm.xlu0 %4020, %v4009
      %v4022 = vpop.permute.xlu0 %4021
      %v4024 = vmul.f32 %v4022, %v2434
      %4025 = vset.pattern.permute.xlu0 97
      %4026 = vperm.xlu0 %4025, %v4009
      %v4027 = vpop.permute.xlu0 %4026
      %v4029 = vmul.f32 %v4027, %v2436
      %4030 = vset.pattern.permute.xlu0 98
      %4031 = vperm.xlu0 %4030, %v4009
      %v4032 = vpop.permute.xlu0 %4031
      %v4034 = vmul.f32 %v4032, %v2438
      %4035 = vset.pattern.permute.xlu0 99
      %4036 = vperm.xlu0 %4035, %v4009
      %v4037 = vpop.permute.xlu0 %4036
      %v4039 = vmul.f32 %v4037, %v2440
      %4040 = vset.pattern.permute.xlu0 100
      %4041 = vperm.xlu0 %4040, %v4009
      %v4042 = vpop.permute.xlu0 %4041
      %v4044 = vmul.f32 %v4042, %v2442
      %4045 = vset.pattern.permute.xlu0 101
      %4046 = vperm.xlu0 %4045, %v4009
      %v4047 = vpop.permute.xlu0 %4046
      %v4049 = vmul.f32 %v4047, %v2444
      %4050 = vset.pattern.permute.xlu0 102
      %4051 = vperm.xlu0 %4050, %v4009
      %v4052 = vpop.permute.xlu0 %4051
      %v4054 = vmul.f32 %v4052, %v2446
      %4055 = vset.pattern.permute.xlu0 103
      %4056 = vperm.xlu0 %4055, %v4009
      %v4057 = vpop.permute.xlu0 %4056
      %v4059 = vmul.f32 %v4057, %v2448
      %4060 = vset.pattern.permute.xlu0 104
      %4061 = vperm.xlu0 %4060, %v4009
      %v4062 = vpop.permute.xlu0 %4061
      %v4064 = vmul.f32 %v4062, %v2450
      %4065 = vset.pattern.permute.xlu0 105
      %4066 = vperm.xlu0 %4065, %v4009
      %v4067 = vpop.permute.xlu0 %4066
      %v4069 = vmul.f32 %v4067, %v2452
      %4070 = vset.pattern.permute.xlu0 106
      %4071 = vperm.xlu0 %4070, %v4009
      %v4072 = vpop.permute.xlu0 %4071
      %v4074 = vmul.f32 %v4072, %v2454
      %4075 = vset.pattern.permute.xlu0 107
      %4076 = vperm.xlu0 %4075, %v4009
      %v4077 = vpop.permute.xlu0 %4076
      %v4079 = vmul.f32 %v4077, %v2456
      %4080 = vset.pattern.permute.xlu0 108
      %4081 = vperm.xlu0 %4080, %v4009
      %v4082 = vpop.permute.xlu0 %4081
      %v4084 = vmul.f32 %v4082, %v2458
      %4085 = vset.pattern.permute.xlu0 109
      %4086 = vperm.xlu0 %4085, %v4009
      %v4087 = vpop.permute.xlu0 %4086
      %v4089 = vmul.f32 %v4087, %v2460
      %4090 = vset.pattern.permute.xlu0 110
      %4091 = vperm.xlu0 %4090, %v4009
      %v4092 = vpop.permute.xlu0 %4091
      %v4094 = vmul.f32 %v4092, %v2462
      %4095 = vset.pattern.permute.xlu0 111
      %4096 = vperm.xlu0 %4095, %v4009
      %v4097 = vpop.permute.xlu0 %4096
      %v4099 = vmul.f32 %v4097, %v2464
      %4100 = vset.pattern.permute.xlu0 112
      %4101 = vperm.xlu0 %4100, %v4009
      %v4102 = vpop.permute.xlu0 %4101
      %v4104 = vmul.f32 %v4102, %v2466
      %4105 = vset.pattern.permute.xlu0 113
      %4106 = vperm.xlu0 %4105, %v4009
      %v4107 = vpop.permute.xlu0 %4106
      %v4109 = vmul.f32 %v4107, %v2468
      %4110 = vset.pattern.permute.xlu0 114
      %4111 = vperm.xlu0 %4110, %v4009
      %v4112 = vpop.permute.xlu0 %4111
      %v4114 = vmul.f32 %v4112, %v2470
      %4115 = vset.pattern.permute.xlu0 115
      %4116 = vperm.xlu0 %4115, %v4009
      %v4117 = vpop.permute.xlu0 %4116
      %v4119 = vmul.f32 %v4117, %v2472
      %4120 = vset.pattern.permute.xlu0 116
      %4121 = vperm.xlu0 %4120, %v4009
      %v4122 = vpop.permute.xlu0 %4121
      %v4124 = vmul.f32 %v4122, %v2474
      %4125 = vset.pattern.permute.xlu0 117
      %4126 = vperm.xlu0 %4125, %v4009
      %v4127 = vpop.permute.xlu0 %4126
      %v4129 = vmul.f32 %v4127, %v2476
      %4130 = vset.pattern.permute.xlu0 118
      %4131 = vperm.xlu0 %4130, %v4009
      %v4132 = vpop.permute.xlu0 %4131
      %v4134 = vmul.f32 %v4132, %v2478
      %4135 = vset.pattern.permute.xlu0 119
      %4136 = vperm.xlu0 %4135, %v4009
      %v4137 = vpop.permute.xlu0 %4136
      %v4139 = vmul.f32 %v4137, %v2480
      %4140 = vset.pattern.permute.xlu0 120
      %4141 = vperm.xlu0 %4140, %v4009
      %v4142 = vpop.permute.xlu0 %4141
      %v4144 = vmul.f32 %v4142, %v2482
      %4145 = vset.pattern.permute.xlu0 121
      %4146 = vperm.xlu0 %4145, %v4009
      %v4147 = vpop.permute.xlu0 %4146
      %v4149 = vmul.f32 %v4147, %v2484
      %4150 = vset.pattern.permute.xlu0 122
      %4151 = vperm.xlu0 %4150, %v4009
      %v4152 = vpop.permute.xlu0 %4151
      %v4154 = vmul.f32 %v4152, %v2486
      %4155 = vset.pattern.permute.xlu0 123
      %4156 = vperm.xlu0 %4155, %v4009
      %v4157 = vpop.permute.xlu0 %4156
      %v4159 = vmul.f32 %v4157, %v2488
      %4160 = vset.pattern.permute.xlu0 124
      %4161 = vperm.xlu0 %4160, %v4009
      %v4162 = vpop.permute.xlu0 %4161
      %v4164 = vmul.f32 %v4162, %v2490
      %4165 = vset.pattern.permute.xlu0 125
      %4166 = vperm.xlu0 %4165, %v4009
      %v4167 = vpop.permute.xlu0 %4166
      %v4169 = vmul.f32 %v4167, %v2492
      %4170 = vset.pattern.permute.xlu0 126
      %4171 = vperm.xlu0 %4170, %v4009
      %v4172 = vpop.permute.xlu0 %4171
      %v4174 = vmul.f32 %v4172, %v2494
      %4175 = vset.pattern.permute.xlu0 127
      %4176 = vperm.xlu0 %4175, %v4009
      %v4177 = vpop.permute.xlu0 %4176
      %v4179 = vmul.f32 %v4177, %v2496
      %v4180 = vadd.f32 %v4024, %v4029
      %v4181 = vadd.f32 %v4034, %v4039
      %v4182 = vadd.f32 %v4044, %v4049
      %v4183 = vadd.f32 %v4054, %v4059
      %v4184 = vadd.f32 %v4064, %v4069
      %v4185 = vadd.f32 %v4074, %v4079
      %v4186 = vadd.f32 %v4084, %v4089
      %v4187 = vadd.f32 %v4094, %v4099
      %v4188 = vadd.f32 %v4104, %v4109
      %v4189 = vadd.f32 %v4114, %v4119
      %v4190 = vadd.f32 %v4124, %v4129
      %v4191 = vadd.f32 %v4134, %v4139
      %v4192 = vadd.f32 %v4144, %v4149
      %v4193 = vadd.f32 %v4154, %v4159
      %v4194 = vadd.f32 %v4164, %v4169
      %v4195 = vadd.f32 %v4174, %v4179
      %v4196 = vadd.f32 %v4180, %v4181
      %v4197 = vadd.f32 %v4182, %v4183
      %v4198 = vadd.f32 %v4184, %v4185
      %v4199 = vadd.f32 %v4186, %v4187
      %v4200 = vadd.f32 %v4188, %v4189
      %v4201 = vadd.f32 %v4190, %v4191
      %v4202 = vadd.f32 %v4192, %v4193
      %v4203 = vadd.f32 %v4194, %v4195
      %v4204 = vadd.f32 %v4196, %v4197
      %v4205 = vadd.f32 %v4198, %v4199
      %v4206 = vadd.f32 %v4200, %v4201
      %v4207 = vadd.f32 %v4202, %v4203
      %v4208 = vadd.f32 %v4204, %v4205
      %v4209 = vadd.f32 %v4206, %v4207
      %v4210 = vadd.f32 %v4208, %v4209
      %v4211 = vadd.f32 %v4018, %v4210
      %v4212 = vadd.f32 %v4211, %v2531
      %v4213 = vxor.u32 %v4212, 2147483648
      %v4214 = vmul.f32 %v4213, 1.442695
      %v4215 = vpow.pop %v4214
      %v4216 = vadd.f32 %v4215, 1.0
      %v4217 = vrcp.pop %v4216
      %v4218 = vmul.f32 %v4216, %v4217
      %v4219 = vsub.f32 1.0, %v4218
      %v4220 = vmul.f32 %v4217, %v4219
      %v4221 = vadd.f32 %v4217, %v4220
      %vm4222 = vweird.f32 %v4216
      %vm4223 = vweird.f32 %v4217
      %vm4224 = vmor %vm4222, %vm4223
      %v4225 = vsel %vm4224, %v4217, %v4221
      %v4226 = vand.u32 2147483647, %v4216
      %vm4227 = vcmp.eq.f32.partialorder %v4226, 8.507059e+37
      %v4228 = vand.u32 %v4216, 2147483648
      %v4229 = vor.u32 1.1754944e-38, %v4228
      %v4230 = vsel %vm4227, %v4229, %v4225
      %v4231 = vmul.f32 1.0, %v4230
      %v4232 = vtanh.pop %v4212
      %v4233 = vmul.f32 %v4231, %v4003
      %4235 = vrot.lane.b32.xlu0 %v4232, 64
      %v4236 = vpop.permute.xlu0 %4235
      %v4238 = vmul.f32 %v4231, %v4236
      %4240 = vrot.lane.b32.xlu0 %v4238, 32
      %v4241 = vpop.permute.xlu0 %4240
      %v4243 = vadd.f32 %v4233, %v4241
      %v4244 = vtanh.pop %v4243
      %4246 = vrot.lane.b32.xlu0 %v4244, 64
      %v4247 = vpop.permute.xlu0 %4246
      %v4249 = vmul.f32 %v4231, %v4247
      %v4250 = vmul.f32 %v4012, %v1890
      %v4252 = vperm.slane %v1996, 0
      %v4254 = vadd.f32 %v4250, %v4252
      %v4255 = vxor.u32 %v4254, 2147483648
      %v4256 = vmul.f32 %v4255, 1.442695
      %v4257 = vpow.pop %v4256
      %v4258 = vadd.f32 %v4257, 1.0
      %v4259 = vrcp.pop %v4258
      %v4260 = vmul.f32 %v4258, %v4259
      %v4261 = vsub.f32 1.0, %v4260
      %v4262 = vmul.f32 %v4259, %v4261
      %v4263 = vadd.f32 %v4259, %v4262
      %vm4264 = vweird.f32 %v4258
      %vm4265 = vweird.f32 %v4259
      %vm4266 = vmor %vm4264, %vm4265
      %v4267 = vsel %vm4266, %v4259, %v4263
      %v4268 = vand.u32 2147483647, %v4258
      %vm4269 = vcmp.eq.f32.partialorder %v4268, 8.507059e+37
      %v4270 = vand.u32 %v4258, 2147483648
      %v4271 = vor.u32 1.1754944e-38, %v4270
      %v4272 = vsel %vm4269, %v4271, %v4267
      %v4273 = vmul.f32 1.0, %v4272
      %v4274 = vtanh.pop %v4254
      %4276 = vrot.lane.b32.xlu0 %v4274, 64
      %v4277 = vpop.permute.xlu0 %4276
      %v4279 = vmul.f32 %v4273, %v4277
      %v4280 = vtanh.pop %v4279
      %4282 = vrot.lane.b32.xlu0 %v4280, 96
      %v4283 = vpop.permute.xlu0 %4282
      %v4285 = vmul.f32 %v4273, %v4283
      %4287 = vrot.lane.b32.xlu0 %v4285, 32
      %v4288 = vpop.permute.xlu0 %4287
      %v4289 = vsel %vm293, %v4288, 0
      %4291 = vmatpush.msra.mxu0 0.0
      %4292 = vmatpush.msra.mxu0 0.0
      %4293 = vmatpush.msra.mxu0 0.0
      %4294 = vmatpush.msra.mxu0 0.0
      %4295 = vmatpush.msra.mxu0 0.0
      %4296 = vmatpush.msra.mxu0 0.0
      %4297 = vmatpush.msra.mxu0 0.0
      %4298 = vmatpush.msra.mxu0 0.0
      %4299 = vmatpush.msra.mxu0 0.0
      %4300 = vmatpush.msra.mxu0 0.0
      %4301 = vmatpush.msra.mxu0 0.0
      %4302 = vmatpush.msra.mxu0 0.0
      %4303 = vmatpush.msra.mxu0 %v2004
      %4304 = vmatpush.msra.mxu0 %v2003
      %4305 = vmatpush.msra.mxu0 %v2002
      %4306 = vmatpush.msra.mxu0 %v2001
      %4307 = vmatmul.f32.gmra.mxu0 %v4289
      %v4308 = vpop.f32.mrf.mxu0
      %v4309 = vadd.f32 0.0, %v4308
      %4310 = vdwg.mxu0
      %4312 = vrot.lane.b32.xlu0 %v4249, 32
      %v4313 = vpop.permute.xlu0 %4312
      %v4314 = vsel %vm293, %v4313, 0
      %4316 = vmatpush.msra.mxu0 0.0
      %4317 = vmatpush.msra.mxu0 0.0
      %4318 = vmatpush.msra.mxu0 0.0
      %4319 = vmatpush.msra.mxu0 0.0
      %4320 = vmatpush.msra.mxu0 0.0
      %4321 = vmatpush.msra.mxu0 0.0
      %4322 = vmatpush.msra.mxu0 0.0
      %4323 = vmatpush.msra.mxu0 0.0
      %4324 = vmatpush.msra.mxu0 0.0
      %4325 = vmatpush.msra.mxu0 0.0
      %4326 = vmatpush.msra.mxu0 0.0
      %4327 = vmatpush.msra.mxu0 0.0
      %4328 = vmatpush.msra.mxu0 %v2000
      %4329 = vmatpush.msra.mxu0 %v1999
      %4330 = vmatpush.msra.mxu0 %v1998
      %4331 = vmatpush.msra.mxu0 %v1997
      %4332 = vmatmul.f32.gmra.mxu0 %v4314
      %v4333 = vpop.f32.mrf.mxu0
      %v4334 = vadd.f32 %v4309, %v4333
      %4335 = vdwg.mxu0
      %v4337 = vperm.slane %v2005, 0
      %v4339 = vadd.f32 %v4334, %v4337
      %v4340 = vrot.slane %v2231, 1
      %v4341 = vrot.slane %v2231, 2
      %v4342 = vrot.slane %v2231, 3
      %v4343 = vrot.slane %v2231, 4
      %v4344 = vrot.slane %v2231, 5
      %v4345 = vrot.slane %v2231, 6
      %v4346 = vrot.slane %v2231, 7
      %v4347 = vrot.slane %v2232, 1
      %v4348 = vrot.slane %v2232, 2
      %v4349 = vrot.slane %v2232, 3
      %v4350 = vrot.slane %v2232, 4
      %v4351 = vrot.slane %v2232, 5
      %v4352 = vrot.slane %v2232, 6
      %v4353 = vrot.slane %v2232, 7
      %4354 = vrot.lane.b32.xlu0 %v2231, 112
      %v4355 = vpop.permute.xlu0 %4354
      %4356 = vrot.lane.b32.xlu0 %v4340, 112
      %v4357 = vpop.permute.xlu0 %4356
      %4358 = vrot.lane.b32.xlu0 %v4341, 112
      %v4359 = vpop.permute.xlu0 %4358
      %4360 = vrot.lane.b32.xlu0 %v4342, 112
      %v4361 = vpop.permute.xlu0 %4360
      %4362 = vrot.lane.b32.xlu0 %v4343, 112
      %v4363 = vpop.permute.xlu0 %4362
      %4364 = vrot.lane.b32.xlu0 %v4344, 112
      %v4365 = vpop.permute.xlu0 %4364
      %4366 = vrot.lane.b32.xlu0 %v4345, 112
      %v4367 = vpop.permute.xlu0 %4366
      %4368 = vrot.lane.b32.xlu0 %v4346, 112
      %v4369 = vpop.permute.xlu0 %4368
      %4370 = vrot.lane.b32.xlu0 %v2232, 112
      %v4371 = vpop.permute.xlu0 %4370
      %4372 = vrot.lane.b32.xlu0 %v4347, 112
      %v4373 = vpop.permute.xlu0 %4372
      %4374 = vrot.lane.b32.xlu0 %v4348, 112
      %v4375 = vpop.permute.xlu0 %4374
      %4376 = vrot.lane.b32.xlu0 %v4349, 112
      %v4377 = vpop.permute.xlu0 %4376
      %4378 = vrot.lane.b32.xlu0 %v4350, 112
      %v4379 = vpop.permute.xlu0 %4378
      %4380 = vrot.lane.b32.xlu0 %v4351, 112
      %v4381 = vpop.permute.xlu0 %4380
      %4382 = vrot.lane.b32.xlu0 %v4352, 112
      %v4383 = vpop.permute.xlu0 %4382
      %4384 = vrot.lane.b32.xlu0 %v4353, 112
      %v4385 = vpop.permute.xlu0 %4384
      %v4402 = vadd.f32 %v1795, %v4355
      %v4403 = vadd.f32 %v1806, %v4357
      %v4404 = vadd.f32 %v1807, %v4359
      %v4405 = vadd.f32 %v1808, %v4361
      %v4406 = vadd.f32 %v1809, %v4363
      %v4407 = vadd.f32 %v1810, %v4365
      %v4408 = vadd.f32 %v1811, %v4367
      %v4409 = vadd.f32 %v1812, %v4369
      %v4410 = vadd.f32 %v1798, %v4355
      %v4411 = vadd.f32 %v1813, %v4371
      %v4412 = vadd.f32 %v1814, %v4373
      %v4413 = vadd.f32 %v1815, %v4375
      %v4414 = vadd.f32 %v1816, %v4377
      %v4415 = vadd.f32 %v1817, %v4379
      %v4416 = vadd.f32 %v1818, %v4381
      %v4417 = vadd.f32 %v1819, %v4383
      %v4418 = vadd.f32 %v1801, %v4385
      %v4419 = vadd.f32 %v1820, %v4371
      %v4420 = vmax.f32 %v4402, 0.0
      %v4421 = vmax.f32 %v4403, 0.0
      %v4422 = vmax.f32 %v4404, 0.0
      %v4423 = vmax.f32 %v4405, 0.0
      %v4424 = vmax.f32 %v4406, 0.0
      %v4425 = vmax.f32 %v4407, 0.0
      %v4426 = vmax.f32 %v4408, 0.0
      %v4427 = vmax.f32 %v4409, 0.0
      %v4428 = vmax.f32 %v4410, 0.0
      %v4429 = vmax.f32 %v4411, 0.0
      %v4430 = vmax.f32 %v4412, 0.0
      %v4431 = vmax.f32 %v4413, 0.0
      %v4432 = vmax.f32 %v4414, 0.0
      %v4433 = vmax.f32 %v4415, 0.0
      %v4434 = vmax.f32 %v4416, 0.0
      %v4435 = vmax.f32 %v4417, 0.0
      %v4436 = vmax.f32 %v4418, 0.0
      %v4437 = vmax.f32 %v4419, 0.0
      %v4439 = vperm.slane %v1976, 0
      %v4441 = vrot.slane %v4439, 1
      %v4442 = vrot.slane %v4439, 2
      %v4443 = vrot.slane %v4439, 3
      %v4444 = vrot.slane %v4439, 4
      %v4445 = vrot.slane %v4439, 5
      %v4446 = vrot.slane %v4439, 6
      %v4447 = vrot.slane %v4439, 7
      %v4455 = vmul.f32 %v4420, %v4439
      %v4456 = vmul.f32 %v4421, %v4441
      %v4457 = vmul.f32 %v4422, %v4442
      %v4458 = vmul.f32 %v4423, %v4443
      %v4459 = vmul.f32 %v4424, %v4444
      %v4460 = vmul.f32 %v4425, %v4445
      %v4461 = vmul.f32 %v4426, %v4446
      %v4462 = vmul.f32 %v4427, %v4447
      %v4463 = vmul.f32 %v4428, %v4439
      %v4464 = vmul.f32 %v4429, %v4439
      %v4465 = vmul.f32 %v4430, %v4441
      %v4466 = vmul.f32 %v4431, %v4442
      %v4467 = vmul.f32 %v4432, %v4443
      %v4468 = vmul.f32 %v4433, %v4444
      %v4469 = vmul.f32 %v4434, %v4445
      %v4470 = vmul.f32 %v4435, %v4446
      %v4471 = vmul.f32 %v4436, %v4447
      %v4472 = vmul.f32 %v4437, %v4439
      %4491 = vst [vmem:[#allocation1] ss:$9 sm:$0xff] %v4455
      %s4492 = scalar_lea.vmem [#allocation1], 1
      %4493 = vst [vmem:[%s4492] ss:$9 sm:$0xff] %v4456
      %s4494 = scalar_lea.vmem [#allocation1], 2
      %4495 = vst [vmem:[%s4494] ss:$9 sm:$0xff] %v4457
      %s4496 = scalar_lea.vmem [#allocation1], 3
      %4497 = vst [vmem:[%s4496] ss:$9 sm:$0xff] %v4458
      %s4498 = scalar_lea.vmem [#allocation1], 4
      %4499 = vst [vmem:[%s4498] ss:$9 sm:$0xff] %v4459
      %s4500 = scalar_lea.vmem [#allocation1], 5
      %4501 = vst [vmem:[%s4500] ss:$9 sm:$0xff] %v4460
      %s4502 = scalar_lea.vmem [#allocation1], 6
      %4503 = vst [vmem:[%s4502] ss:$9 sm:$0xff] %v4461
      %s4504 = scalar_lea.vmem [#allocation1], 7
      %4505 = vst [vmem:[%s4504] ss:$9 sm:$0xff] %v4462
      %v4506 = vld [vmem:[#allocation1] sm:$0xff]
      %4507 = vst [vmem:[#allocation1] ss:$9 sm:$0xff] %v4463
      %v4508 = vld [vmem:[#allocation1] sm:$0xff]
      %4509 = vst [vmem:[#allocation1] ss:$9 sm:$0xff] %v4464
      %4510 = vst [vmem:[%s4492] ss:$9 sm:$0xff] %v4465
      %4511 = vst [vmem:[%s4494] ss:$9 sm:$0xff] %v4466
      %4512 = vst [vmem:[%s4496] ss:$9 sm:$0xff] %v4467
      %4513 = vst [vmem:[%s4498] ss:$9 sm:$0xff] %v4468
      %4514 = vst [vmem:[%s4500] ss:$9 sm:$0xff] %v4469
      %4515 = vst [vmem:[%s4502] ss:$9 sm:$0xff] %v4470
      %4516 = vst [vmem:[%s4504] ss:$9 sm:$0xff] %v4471
      %v4517 = vld [vmem:[#allocation1] sm:$0xff]
      %4518 = vst [vmem:[#allocation1] ss:$9 sm:$0xff] %v4472
      %v4519 = vld [vmem:[#allocation1] sm:$0xff]
      %v4524 = vsel %vm2244, %v4506, 0.0
      %4525 = vadd.xlane.f32.xlu0 %v4524
      %v4526 = vpop.xlane.xlu0 %4525
      %vm4527 = vcmask 122880
      %v4528 = vsel %vm4527, %v4508, 0.0
      %4529 = vadd.xlane.f32.xlu0 %v4528
      %v4530 = vpop.xlane.xlu0 %4529
      %v4531 = vsel %vm2244, %v4517, 0.0
      %4532 = vadd.xlane.f32.xlu0 %v4531
      %v4533 = vpop.xlane.xlu0 %4532
      %v4534 = vsel %vm4527, %v4519, 0.0
      %4535 = vadd.xlane.f32.xlu0 %v4534
      %v4536 = vpop.xlane.xlu0 %4535
      %v4538 = vperm.slane %v1977, 0
      %4539 = vset.pattern.permute.xlu0 0
      %4540 = vperm.xlu0 %4539, %v4538
      %v4541 = vpop.permute.xlu0 %4540
      %v4543 = vadd.f32 %v4526, %v4541
      %v4544 = vadd.f32 %v4530, %v4541
      %v4545 = vadd.f32 %v4533, %v4541
      %v4546 = vadd.f32 %v4536, %v4541
      %v4551 = vperm.slane %v4543, %v277
      %v4552 = vadd.s32 %v277, 4294967288
      %v4553 = vperm.slane %v4544, %v4552
      %vm4554 = vcmask 130112
      %v4555 = vsel %vm4554, %v4553, %v4551
      %v4556 = vperm.slane %v4545, %v277
      %v4557 = vperm.slane %v4546, %v4552
      %v4558 = vsel %vm4554, %v4557, %v4556
      %v4559 = vsel %vm444, %v4558, %v4555
      %vm4561 = vcmask 66560
      %v4562 = vsel %vm4561, %v4559, -inf
      %4563 = vmax.xlane.f32.xlu0 %v4562
      %v4564 = vpop.xlane.xlu0 %4563
      %v4566 = vperm.slane %v4564, 0
      %v4567 = vperm.slane %v4564, 1
      %v4570 = vsub.f32 %v4543, %v4566
      %v4571 = vsub.f32 %v4544, %v4566
      %v4572 = vsub.f32 %v4545, %v4567
      %v4573 = vsub.f32 %v4546, %v4567
      %v4574 = vmul.f32 %v4570, 1.442695
      %v4575 = vpow.pop %v4574
      %v4576 = vmul.f32 %v4571, 1.442695
      %v4577 = vpow.pop %v4576
      %v4578 = vmul.f32 %v4572, 1.442695
      %v4579 = vpow.pop %v4578
      %v4580 = vmul.f32 %v4573, 1.442695
      %v4581 = vpow.pop %v4580
      %4586 = vset.pattern.permute.xlu0 0
      %4587 = vperm.xlu0 %4586, %v4575
      %v4588 = vpop.permute.xlu0 %4587
      %4589 = vset.pattern.permute.xlu0 0
      %4590 = vperm.xlu0 %4589, %v4577
      %v4591 = vpop.permute.xlu0 %4590
      %4592 = vset.pattern.permute.xlu0 0
      %4593 = vperm.xlu0 %4592, %v4579
      %v4594 = vpop.permute.xlu0 %4593
      %4595 = vset.pattern.permute.xlu0 0
      %4596 = vperm.xlu0 %4595, %v4581
      %v4597 = vpop.permute.xlu0 %4596
      %v4598 = vperm.slane %v4588, %v277
      %v4599 = vperm.slane %v4591, %v4552
      %v4600 = vsel %vm4554, %v4599, %v4598
      %v4601 = vperm.slane %v4594, %v277
      %v4602 = vperm.slane %v4597, %v4552
      %v4603 = vsel %vm4554, %v4602, %v4601
      %v4604 = vsel %vm444, %v4603, %v4600
      %v4606 = vsel %vm4561, %v4604, 0.0
      %4607 = vadd.xlane.f32.xlu0 %v4606
      %v4608 = vpop.xlane.xlu0 %4607
      %v4610 = vperm.slane %v4608, 0
      %v4611 = vperm.slane %v4608, 1
      %v4614 = vrcp.pop %v4610
      %v4615 = vmul.f32 %v4610, %v4614
      %v4616 = vsub.f32 1.0, %v4615
      %v4617 = vmul.f32 %v4614, %v4616
      %v4618 = vadd.f32 %v4614, %v4617
      %vm4619 = vweird.f32 %v4610
      %vm4620 = vweird.f32 %v4614
      %vm4621 = vmor %vm4619, %vm4620
      %v4622 = vsel %vm4621, %v4614, %v4618
      %v4623 = vand.u32 2147483647, %v4610
      %vm4624 = vcmp.eq.f32.partialorder %v4623, 8.507059e+37
      %v4625 = vand.u32 %v4610, 2147483648
      %v4626 = vor.u32 1.1754944e-38, %v4625
      %v4627 = vsel %vm4624, %v4626, %v4622
      %v4628 = vmul.f32 %v4575, %v4627
      %v4629 = vmul.f32 %v4577, %v4627
      %v4630 = vrcp.pop %v4611
      %v4631 = vmul.f32 %v4611, %v4630
      %v4632 = vsub.f32 1.0, %v4631
      %v4633 = vmul.f32 %v4630, %v4632
      %v4634 = vadd.f32 %v4630, %v4633
      %vm4635 = vweird.f32 %v4611
      %vm4636 = vweird.f32 %v4630
      %vm4637 = vmor %vm4635, %vm4636
      %v4638 = vsel %vm4637, %v4630, %v4634
      %v4639 = vand.u32 2147483647, %v4611
      %vm4640 = vcmp.eq.f32.partialorder %v4639, 8.507059e+37
      %v4641 = vand.u32 %v4611, 2147483648
      %v4642 = vor.u32 1.1754944e-38, %v4641
      %v4643 = vsel %vm4640, %v4642, %v4638
      %v4644 = vmul.f32 %v4579, %v4643
      %v4645 = vmul.f32 %v4581, %v4643
      %4647 = vset.pattern.permute.xlu0 0
      %4648 = vperm.xlu0 %4647, %v4628
      %v4649 = vpop.permute.xlu0 %4648
      %4652 = vset.pattern.permute.xlu0 0
      %4653 = vperm.xlu0 %4652, %v4629
      %v4654 = vpop.permute.xlu0 %4653
      %4657 = vset.pattern.permute.xlu0 0
      %4658 = vperm.xlu0 %4657, %v4644
      %v4659 = vpop.permute.xlu0 %4658
      %4662 = vset.pattern.permute.xlu0 0
      %4663 = vperm.xlu0 %4662, %v4645
      %v4664 = vpop.permute.xlu0 %4663
      %v4666 = vmul.f32 %v1593, %v4649
      %v4667 = vmul.f32 %v1594, %v4654
      %v4668 = vmul.f32 %v1595, %v4659
      %v4669 = vmul.f32 %v1596, %v4664
      %v4670 = vsel %vm1597, %v4666, 0.0
      %v4671 = vsel %vm1599, %v4667, 0.0
      %v4672 = vadd.f32 %v4670, %v4671
      %v4673 = vrot.slane %v4672, 4
      %v4674 = vadd.f32 %v4672, %v4673
      %v4675 = vrot.slane %v4674, 2
      %v4676 = vadd.f32 %v4674, %v4675
      %v4677 = vrot.slane %v4676, 1
      %v4678 = vadd.f32 %v4676, %v4677
      %v4679 = vsel %vm1597, %v4668, 0.0
      %v4680 = vsel %vm1599, %v4669, 0.0
      %v4681 = vadd.f32 %v4679, %v4680
      %v4682 = vrot.slane %v4681, 4
      %v4683 = vadd.f32 %v4681, %v4682
      %v4684 = vrot.slane %v4683, 2
      %v4685 = vadd.f32 %v4683, %v4684
      %v4686 = vrot.slane %v4685, 1
      %v4687 = vadd.f32 %v4685, %v4686
      %v4688 = vsel %vm2267, %v2291, -inf
      %4689 = vmax.xlane.f32.xlu0 %v4688
      %v4690 = vpop.xlane.xlu0 %4689
      %vm4691 = vcmp.eq.f32.partialorder %v2291, %v4690
      %v4692 = vsel %vm4691, %v277, 8
      %v4693 = vsel %vm2267, %v4692, 2147483647
      %v4694 = vand.u32 %v4693, 65535
      %v4695 = vshra.s32 %v4693, 16
      %v4696 = vcvt.s32.f32 %v4694
      %v4697 = vcvt.s32.f32 %v4695
      %4698 = vmin.xlane.f32.xlu0 %v4697
      %v4699 = vpop.xlane.xlu0 %4698
      %vm4700 = vcmp.eq.f32.partialorder %v4697, %v4699
      %v4701 = vsel %vm4700, %v4696, inf
      %4702 = vmin.xlane.f32.xlu0 %v4701
      %v4703 = vpop.xlane.xlu0 %4702
      %v4704 = vcvt.f32.s32 %v4703
      %v4705 = vcvt.f32.s32 %v4699
      %v4706 = vshll.u32 %v4705, 16
      %v4707 = vadd.s32 %v4706, %v4704
      %vm4708 = vcmp.eq.s32.totalorder %v277, %v4707
      %v4709 = vsel %vm4708, 1, 0
      %v4710 = vcvt.s32.f32 %v4709
      %v4711 = vperm.slane %v4710, 0
      %v4712 = vlaneseq
      %v4713 = vshrl.u32 %v4712, 7
      %4715 = vset.pattern.permute.xlu0 %v4713
      %4716 = vperm.xlu0 %4715, %v4711
      %v4717 = vpop.permute.xlu0 %4716
      %v4718 = vperm.slane %v4710, 1
      %v4719 = vlaneseq
      %v4720 = vshrl.u32 %v4719, 7
      %4722 = vset.pattern.permute.xlu0 %v4720
      %4723 = vperm.xlu0 %4722, %v4718
      %v4724 = vpop.permute.xlu0 %4723
      %v4725 = vmul.f32 %v1559, %v4717
      %v4726 = vmul.f32 %v1560, %v4724
      %v4727 = vsel %vm293, %v4725, 0.0
      %v4728 = vrot.slane %v4727, 4
      %v4729 = vadd.f32 %v4727, %v4728
      %v4730 = vrot.slane %v4729, 2
      %v4731 = vadd.f32 %v4729, %v4730
      %v4732 = vrot.slane %v4731, 1
      %v4733 = vadd.f32 %v4731, %v4732
      %v4734 = vsel %vm293, %v4726, 0.0
      %v4735 = vrot.slane %v4734, 4
      %v4736 = vadd.f32 %v4734, %v4735
      %v4737 = vrot.slane %v4736, 2
      %v4738 = vadd.f32 %v4736, %v4737
      %v4739 = vrot.slane %v4738, 1
      %v4740 = vadd.f32 %v4738, %v4739
      %v4742 = vsel %vm293, %v2422, 0
      %4744 = vmatpush.msra.mxu0 0.0
      %4745 = vmatpush.msra.mxu0 0.0
      %4746 = vmatpush.msra.mxu0 0.0
      %4747 = vmatpush.msra.mxu0 0.0
      %4748 = vmatpush.msra.mxu0 0.0
      %4749 = vmatpush.msra.mxu0 0.0
      %4750 = vmatpush.msra.mxu0 0.0
      %4751 = vmatpush.msra.mxu0 0.0
      %4752 = vmatpush.msra.mxu0 0.0
      %4753 = vmatpush.msra.mxu0 0.0
      %4754 = vmatpush.msra.mxu0 0.0
      %4755 = vmatpush.msra.mxu0 0.0
      %4756 = vmatpush.msra.mxu0 %v2013
      %4757 = vmatpush.msra.mxu0 %v2012
      %4758 = vmatpush.msra.mxu0 %v2011
      %4759 = vmatpush.msra.mxu0 %v2010
      %4760 = vmatmul.f32.gmra.mxu0 %v4742
      %v4761 = vpop.f32.mrf.mxu0
      %v4762 = vadd.f32 0.0, %v4761
      %4763 = vdwg.mxu0
      %4764 = vmatpush.msra.mxu0 0.0
      %4765 = vmatpush.msra.mxu0 0.0
      %4766 = vmatpush.msra.mxu0 0.0
      %4767 = vmatpush.msra.mxu0 0.0
      %4768 = vmatpush.msra.mxu0 0.0
      %4769 = vmatpush.msra.mxu0 0.0
      %4770 = vmatpush.msra.mxu0 0.0
      %4771 = vmatpush.msra.mxu0 0.0
      %4772 = vmatpush.msra.mxu0 0.0
      %4773 = vmatpush.msra.mxu0 0.0
      %4774 = vmatpush.msra.mxu0 0.0
      %4775 = vmatpush.msra.mxu0 0.0
      %4776 = vmatpush.msra.mxu0 %v2009
      %4777 = vmatpush.msra.mxu0 %v2008
      %4778 = vmatpush.msra.mxu0 %v2007
      %4779 = vmatpush.msra.mxu0 %v2006
      %4780 = vmatmul.f32.gmra.mxu0 %v2207
      %v4781 = vpop.f32.mrf.mxu0
      %v4782 = vadd.f32 %v4762, %v4781
      %4783 = vdwg.mxu0
      %v4786 = vsel %vm444, %v4687, %v4678
      %v4787 = vsel %vm1597, %v4786, 0
      %4789 = vmatpush.msra.mxu0 0.0
      %4790 = vmatpush.msra.mxu0 0.0
      %4791 = vmatpush.msra.mxu0 0.0
      %4792 = vmatpush.msra.mxu0 0.0
      %4793 = vmatpush.msra.mxu0 0.0
      %4794 = vmatpush.msra.mxu0 0.0
      %4795 = vmatpush.msra.mxu0 0.0
      %4796 = vmatpush.msra.mxu0 0.0
      %4797 = vmatpush.msra.mxu0 %v2021
      %4798 = vmatpush.msra.mxu0 %v2020
      %4799 = vmatpush.msra.mxu0 %v2019
      %4800 = vmatpush.msra.mxu0 %v2018
      %4801 = vmatpush.msra.mxu0 %v2017
      %4802 = vmatpush.msra.mxu0 %v2016
      %4803 = vmatpush.msra.mxu0 %v2015
      %4804 = vmatpush.msra.mxu0 %v2014
      %4805 = vmatmul.f32.gmra.mxu0 %v4787
      %v4806 = vpop.f32.mrf.mxu0
      %v4807 = vadd.f32 0.0, %v4806
      %4808 = vdwg.mxu0
      %v4809 = vadd.f32 %v4782, %v4807
      %4810 = vmatpush.msra.mxu0 0.0
      %4811 = vmatpush.msra.mxu0 0.0
      %4812 = vmatpush.msra.mxu0 0.0
      %4813 = vmatpush.msra.mxu0 0.0
      %4814 = vmatpush.msra.mxu0 0.0
      %4815 = vmatpush.msra.mxu0 0.0
      %4816 = vmatpush.msra.mxu0 0.0
      %4817 = vmatpush.msra.mxu0 0.0
      %4818 = vmatpush.msra.mxu0 0.0
      %4819 = vmatpush.msra.mxu0 0.0
      %4820 = vmatpush.msra.mxu0 0.0
      %4821 = vmatpush.msra.mxu0 0.0
      %4822 = vmatpush.msra.mxu0 %v2025
      %4823 = vmatpush.msra.mxu0 %v2024
      %4824 = vmatpush.msra.mxu0 %v2023
      %4825 = vmatpush.msra.mxu0 %v2022
      %4826 = vmatmul.f32.gmra.mxu0 %v2092
      %v4827 = vpop.f32.mrf.mxu0
      %v4828 = vadd.f32 0.0, %v4827
      %4829 = vdwg.mxu0
      %v4830 = vadd.f32 %v4809, %v4828
      %v4832 = vsel %vm293, %v4339, 0
      %4834 = vmatpush.msra.mxu0 0.0
      %4835 = vmatpush.msra.mxu0 0.0
      %4836 = vmatpush.msra.mxu0 0.0
      %4837 = vmatpush.msra.mxu0 0.0
      %4838 = vmatpush.msra.mxu0 0.0
      %4839 = vmatpush.msra.mxu0 0.0
      %4840 = vmatpush.msra.mxu0 0.0
      %4841 = vmatpush.msra.mxu0 0.0
      %4842 = vmatpush.msra.mxu0 0.0
      %4843 = vmatpush.msra.mxu0 0.0
      %4844 = vmatpush.msra.mxu0 0.0
      %4845 = vmatpush.msra.mxu0 0.0
      %4846 = vmatpush.msra.mxu0 %v2029
      %4847 = vmatpush.msra.mxu0 %v2028
      %4848 = vmatpush.msra.mxu0 %v2027
      %4849 = vmatpush.msra.mxu0 %v2026
      %4850 = vmatmul.f32.gmra.mxu0 %v4832
      %v4851 = vpop.f32.mrf.mxu0
      %v4852 = vadd.f32 0.0, %v4851
      %4853 = vdwg.mxu0
      %v4854 = vadd.f32 %v4830, %v4852
      %v4856 = vperm.slane %v2030, 0
      %v4858 = vadd.f32 %v4854, %v4856
      %v4859 = vxor.u32 %v4858, 2147483648
      %v4860 = vmul.f32 %v4859, 1.442695
      %v4861 = vpow.pop %v4860
      %v4862 = vadd.f32 %v4861, 1.0
      %v4863 = vrcp.pop %v4862
      %v4864 = vmul.f32 %v4862, %v4863
      %v4865 = vsub.f32 1.0, %v4864
      %v4866 = vmul.f32 %v4863, %v4865
      %v4867 = vadd.f32 %v4863, %v4866
      %vm4868 = vweird.f32 %v4862
      %vm4869 = vweird.f32 %v4863
      %vm4870 = vmor %vm4868, %vm4869
      %v4871 = vsel %vm4870, %v4863, %v4867
      %v4872 = vand.u32 2147483647, %v4862
      %vm4873 = vcmp.eq.f32.partialorder %v4872, 8.507059e+37
      %v4874 = vand.u32 %v4862, 2147483648
      %v4875 = vor.u32 1.1754944e-38, %v4874
      %v4876 = vsel %vm4873, %v4875, %v4871
      %v4877 = vmul.f32 1.0, %v4876
      %v4878 = vtanh.pop %v4858
      %4880 = vrot.lane.b32.xlu0 %v2052, 32
      %v4881 = vpop.permute.xlu0 %4880
      %v4883 = vmul.f32 %v4877, %v4881
      %4885 = vrot.lane.b32.xlu0 %v4878, 64
      %v4886 = vpop.permute.xlu0 %4885
      %v4888 = vmul.f32 %v4877, %v4886
      %4890 = vrot.lane.b32.xlu0 %v4888, 32
      %v4891 = vpop.permute.xlu0 %4890
      %v4893 = vadd.f32 %v4883, %v4891
      %v4896 = vsel %vm444, %v4740, %v4733
      %v4897 = vsel %vm293, %v4896, 0
      %4899 = vmatpush.msra.mxu0 0.0
      %4900 = vmatpush.msra.mxu0 0.0
      %4901 = vmatpush.msra.mxu0 0.0
      %4902 = vmatpush.msra.mxu0 0.0
      %4903 = vmatpush.msra.mxu0 0.0
      %4904 = vmatpush.msra.mxu0 0.0
      %4905 = vmatpush.msra.mxu0 0.0
      %4906 = vmatpush.msra.mxu0 0.0
      %4907 = vmatpush.msra.mxu0 0.0
      %4908 = vmatpush.msra.mxu0 0.0
      %4909 = vmatpush.msra.mxu0 0.0
      %4910 = vmatpush.msra.mxu0 0.0
      %4911 = vmatpush.msra.mxu0 %v2038
      %4912 = vmatpush.msra.mxu0 %v2037
      %4913 = vmatpush.msra.mxu0 %v2036
      %4914 = vmatpush.msra.mxu0 %v2035
      %4915 = vmatmul.f32.gmra.mxu0 %v4897
      %v4916 = vpop.f32.mrf.mxu0
      %v4917 = vadd.f32 0.0, %v4916
      %4918 = vdwg.mxu0
      %4920 = vrot.lane.b32.xlu0 %v4893, 96
      %v4921 = vpop.permute.xlu0 %4920
      %v4922 = vsel %vm293, %v4921, 0
      %4924 = vmatpush.msra.mxu0 0.0
      %4925 = vmatpush.msra.mxu0 0.0
      %4926 = vmatpush.msra.mxu0 0.0
      %4927 = vmatpush.msra.mxu0 0.0
      %4928 = vmatpush.msra.mxu0 0.0
      %4929 = vmatpush.msra.mxu0 0.0
      %4930 = vmatpush.msra.mxu0 0.0
      %4931 = vmatpush.msra.mxu0 0.0
      %4932 = vmatpush.msra.mxu0 0.0
      %4933 = vmatpush.msra.mxu0 0.0
      %4934 = vmatpush.msra.mxu0 0.0
      %4935 = vmatpush.msra.mxu0 0.0
      %4936 = vmatpush.msra.mxu0 %v2034
      %4937 = vmatpush.msra.mxu0 %v2033
      %4938 = vmatpush.msra.mxu0 %v2032
      %4939 = vmatpush.msra.mxu0 %v2031
      %4940 = vmatmul.f32.gmra.mxu0 %v4922
      %v4941 = vpop.f32.mrf.mxu0
      %v4942 = vadd.f32 %v4917, %v4941
      %4943 = vdwg.mxu0
      %v4945 = vperm.slane %v2039, 0
      %v4947 = vadd.f32 %v4942, %v4945
      %v4948 = vxor.u32 %v4947, 2147483648
      %v4949 = vmul.f32 %v4948, 1.442695
      %v4950 = vpow.pop %v4949
      %v4951 = vadd.f32 %v4950, 1.0
      %v4952 = vrcp.pop %v4951
      %v4953 = vmul.f32 %v4951, %v4952
      %v4954 = vsub.f32 1.0, %v4953
      %v4955 = vmul.f32 %v4952, %v4954
      %v4956 = vadd.f32 %v4952, %v4955
      %vm4957 = vweird.f32 %v4951
      %vm4958 = vweird.f32 %v4952
      %vm4959 = vmor %vm4957, %vm4958
      %v4960 = vsel %vm4959, %v4952, %v4956
      %v4961 = vand.u32 2147483647, %v4951
      %vm4962 = vcmp.eq.f32.partialorder %v4961, 8.507059e+37
      %v4963 = vand.u32 %v4951, 2147483648
      %v4964 = vor.u32 1.1754944e-38, %v4963
      %v4965 = vsel %vm4962, %v4964, %v4960
      %v4966 = vmul.f32 1.0, %v4965
      %v4968 = vmul.f32 %v4966, %v4896
      %v4969 = vsub.f32 1.0, %v4966
      %v4971 = vmul.f32 %v4969, %v4921
      %v4972 = vadd.f32 %v4968, %v4971
      %v4973 = vtanh.pop %v4972
      %4975 = vrot.lane.b32.xlu0 %v4973, 96
      %v4976 = vpop.permute.xlu0 %4975
      %v4978 = vmul.f32 %v4877, %v4976
      %v4980 = vperm.slane %v2044, 0
      %4983 = vrot.lane.b32.xlu0 %v4978, 32
      %v4984 = vpop.permute.xlu0 %4983
      %v4985 = vsel %vm293, %v4984, 0
      %4987 = vmatpush.msra.mxu0 0.0
      %4988 = vmatpush.msra.mxu0 0.0
      %4989 = vmatpush.msra.mxu0 0.0
      %4990 = vmatpush.msra.mxu0 0.0
      %4991 = vmatpush.msra.mxu0 0.0
      %4992 = vmatpush.msra.mxu0 0.0
      %4993 = vmatpush.msra.mxu0 0.0
      %4994 = vmatpush.msra.mxu0 0.0
      %4995 = vmatpush.msra.mxu0 0.0
      %4996 = vmatpush.msra.mxu0 0.0
      %4997 = vmatpush.msra.mxu0 0.0
      %4998 = vmatpush.msra.mxu0 0.0
      %4999 = vmatpush.msra.mxu0 %v2043
      %5000 = vmatpush.msra.mxu0 %v2042
      %5001 = vmatpush.msra.mxu0 %v2041
      %5002 = vmatpush.msra.mxu0 %v2040
      %5003 = vmatmul.f32.gmra.mxu0 %v4985
      %v5004 = vpop.f32.mrf.mxu0
      %v5005 = vadd.f32 %v4980, %v5004
      %5006 = vdwg.mxu0
      %vm5007 = vcmask 254976
      %v5008 = vsel %vm5007, %v5005, -inf
      %5009 = vmax.xlane.f32.xlu0 %v5008
      %v5010 = vpop.xlane.xlu0 %5009
      %v5011 = vsub.f32 %v5005, %v5010
      %v5012 = vmul.f32 %v5011, 1.442695
      %v5013 = vpow.pop %v5012
      %v5014 = vsel %vm5007, %v5013, 0.0
      %5015 = vadd.xlane.f32.xlu0 %v5014
      %v5016 = vpop.xlane.xlu0 %5015
      %v5017 = vlog2.pop %v5016
      %v5018 = vmul.f32 %v5017, 0.6931472
      %v5019 = vsub.f32 0.0, %v5018
      %vm5020 = vcmp.eq.f32.partialorder %v5005, %v5010
      %v5021 = vsel %vm5020, %v277, 32
      %v5022 = vsel %vm5007, %v5021, 2147483647
      %v5023 = vand.u32 %v5022, 65535
      %v5024 = vshra.s32 %v5022, 16
      %v5025 = vcvt.s32.f32 %v5023
      %v5026 = vcvt.s32.f32 %v5024
      %5027 = vmin.xlane.f32.xlu0 %v5026
      %v5028 = vpop.xlane.xlu0 %5027
      %vm5029 = vcmp.eq.f32.partialorder %v5026, %v5028
      %v5030 = vsel %vm5029, %v5025, inf
      %5031 = vmin.xlane.f32.xlu0 %v5030
      %v5032 = vpop.xlane.xlu0 %5031
      %v5033 = vcvt.f32.s32 %v5032
      %v5034 = vcvt.f32.s32 %v5028
      %v5035 = vshll.u32 %v5034, 16
      %v5036 = vadd.s32 %v5035, %v5033
      %vm5037 = vcmp.eq.s32.totalorder %v5036, 2
      %v5038 = vsel %vm5037, 0, %v5036
      %vm5039 = vcmp.gt.s32.totalorder %v5038, 0
      %v5040 = vsel %vm5039, 1, 0
      %v5041 = vcvt.s32.f32 %v5040
      %v5042 = vmul.f32 %v2053, %v5041
      %v5043 = vcvt.f32.s32.to.zero.pseudo %v5042
      %v5044 = vmul.u32 %v5038, %v5043
      %v5045 = vstv %s2046
      %vm5046 = vcmp.eq.s32.totalorder %v277, %v5045
      %v5047 = vsel %vm5046, %v5044, %v2054
      %v5048 = vsel %vm5046, %v5019, %v2055
      %vm5049 = vcmask 1024
      %v5050 = vsel %vm5049, %v5042, 0.0
      %5051 = vadd.xlane.f32.xlu0 %v5050
      %v5052 = vpop.xlane.xlu0 %5051
      %v5053 = vrot.slane %v5052, 4
      %v5054 = vadd.f32 %v5052, %v5053
      %v5055 = vrot.slane %v5054, 2
      %v5056 = vadd.f32 %v5054, %v5055
      %v5057 = vrot.slane %v5056, 1
      %v5058 = vadd.f32 %v5056, %v5057
      %s5059 = vtos %v5058
      %p5060 = scmp.gt.f32.partialorder %s5059, 0.0
      %s5061 = scalar_select %p5060, 1, 0
      %s5062 = sadd.s32 %s2046, 1
    $region226: #{_lambda_.1} parent=1 // loop_footer
      _
    $region227: #{_lambda_.1} parent=1 // loop_footer_branch
      %2045 = sbr.rel target = $region223
    $region228: #{_lambda_.1} parent=1 // loop_exit
      _
    %vm5063 = vcmask 140288
    %5064 = vst.msk [vmem:[#allocation14] sm:$0x3] %vm5063, %v2054
    %5065 = vst.msk [vmem:[#allocation15] sm:$0x3] %vm5063, %v2055
    // Predicated region
    $region229: #{_lambda_.1} parent=1 // pred_check
      _
    $region230: #{_lambda_.1} parent=1 // pred_check_branch
      %5067 = sbr.rel (0) target = $region232
    $region231: #{_lambda_.1} parent=1 // pred_region
      %5069 = vsyncadd [#allocation8], 0
      %s5071 = sshll.u32 [#allocation14], 4
      %s5072 = int_to_ptr.vmem [resolvable:$true] %s5071
      %s5073 = sshll.u32 %s103, 4
      %s5074 = int_to_ptr.hbm [resolvable:$true] %s5073
      %5076 = dma.vmem_to_hbm [thread:$0]  %s5072, 32, %s5074, [#allocation8]
    $region232: #{_lambda_.1} parent=1 // pred_fallthru
      _
    // Predicated region
    $region233: #{_lambda_.1} parent=1 // pred_check
      _
    $region234: #{_lambda_.1} parent=1 // pred_check_branch
      %5078 = sbr.rel (0) target = $region236
    $region235: #{_lambda_.1} parent=1 // pred_region
      %5080 = vsyncadd [#allocation16], 0
      %s5082 = sshll.u32 [#allocation15], 4
      %s5083 = int_to_ptr.vmem [resolvable:$true] %s5082
      %s5084 = sshll.u32 %s105, 4
      %s5085 = int_to_ptr.hbm [resolvable:$true] %s5084
      %5087 = dma.vmem_to_hbm [thread:$0]  %s5083, 32, %s5085, [#allocation16]
    $region236: #{_lambda_.1} parent=1 // pred_fallthru
      _
    // Predicated region
    $region237: #{_lambda_.1} parent=1 // pred_check
      _
    $region238: #{_lambda_.1} parent=1 // pred_check_branch
      %5089 = sbr.rel (0) target = $region240
    $region239: #{_lambda_.1} parent=1 // pred_region
      %5091 = dma.done [#allocation8], 32
    $region240: #{_lambda_.1} parent=1 // pred_fallthru
      _
    // Predicated region
    $region241: #{_lambda_.1} parent=1 // pred_check
      _
    $region242: #{_lambda_.1} parent=1 // pred_check_branch
      %5093 = sbr.rel (0) target = $region244
    $region243: #{_lambda_.1} parent=1 // pred_region
      %5095 = dma.done [#allocation16], 32
    $region244: #{_lambda_.1} parent=1 // pred_fallthru
      _
    %5096 = vsyncpa [#allocation7], 1
    %5097 = vsyncpa [#allocation10], 1
    %5098 = vsyncpa [#allocation13], 1
    %5099 = vsyncpa [#allocation8], 1
    %5100 = vsyncpa [#allocation16], 1

</llo_original>
